<compile_context>
chip_gen: v7x
topology: tpu7x:2x2x1
jax: 0.10.0
libtpu: 0.0.40
codegen_flags: <defaults>
</compile_context>

<pallas_src>
import jax
import jax.numpy as jnp
from jax.experimental import pallas as pl
from jax.experimental.pallas import tpu as pltpu  # noqa: F401  (TPU backend assumed)

BN_EPS = 1e-5


# ---------------------------------------------------------------------------
# Pallas kernels (each invoked gridless on full-array VMEM blocks)
# ---------------------------------------------------------------------------

def _conv_bn_kernel(p_ref, w_ref, b_ref, g_ref, beta_ref, o_ref):
    """Fused conv (im2col matmul) + bias + ReLU + training-mode BatchNorm.

    p_ref: (M, K) bf16 im2col patches, M = N*Ho*Wo
    w_ref: (K, C) bf16 reshaped conv weight
    b/g/beta_ref: (1, C) f32 conv bias / BN gamma / BN beta
    o_ref: (M, C) f32 normalized output
    """
    y = jnp.dot(p_ref[...], w_ref[...], preferred_element_type=jnp.float32)
    y = jnp.maximum(y + b_ref[...], 0.0)
    # Batch statistics over all M = N*H*W rows, per channel (biased variance,
    # matching PyTorch training-mode BatchNorm normalization).
    mean = jnp.mean(y, axis=0, keepdims=True)
    var = jnp.maximum(jnp.mean(y * y, axis=0, keepdims=True) - mean * mean, 0.0)
    scale = g_ref[...] * jax.lax.rsqrt(var + BN_EPS)
    shift = beta_ref[...] - mean * scale
    o_ref[...] = y * scale + shift


def _pool4_kernel(a_ref, b_ref, c_ref, d_ref, o_ref):
    """Elementwise max of the 4 candidates of a 2x2/stride-2 max-pool."""
    m = jnp.maximum(jnp.maximum(a_ref[...], b_ref[...]),
                    jnp.maximum(c_ref[...], d_ref[...]))
    o_ref[...] = m.astype(o_ref.dtype)


def _fc_fused_kernel(x_ref, w1_ref, b1_ref, w2_ref, b2_ref, o_ref):
    """Fused fc1 (3200->256) and fc2 (256->10); no HBM round trip for the hidden h."""
    h = jnp.dot(x_ref[...], w1_ref[...], preferred_element_type=jnp.float32)
    h = h + b1_ref[...]
    o_ref[...] = jnp.dot(h, w2_ref[...], preferred_element_type=jnp.float32) + b2_ref[...]


# ---------------------------------------------------------------------------
# Pallas wrappers (gridless: whole arrays live in VMEM for one invocation)
# ---------------------------------------------------------------------------

def conv_bn(patches, w, b, gamma, beta):
    M = patches.shape[0]
    C = w.shape[1]
    return pl.pallas_call(
        _conv_bn_kernel,
        out_shape=jax.ShapeDtypeStruct((M, C), jnp.float32),
    )(patches, w, b, gamma, beta)


def maxpool4(a, b, c, d, out_dtype=jnp.bfloat16):
    return pl.pallas_call(
        _pool4_kernel,
        out_shape=jax.ShapeDtypeStruct(a.shape, out_dtype),
    )(a, b, c, d)


def fc_fused(x, w1, b1, w2, b2):
    return pl.pallas_call(
        _fc_fused_kernel,
        out_shape=jax.ShapeDtypeStruct((x.shape[0], w2.shape[1]), jnp.float32),
    )(x, w1, b1, w2, b2)


# ---------------------------------------------------------------------------
# JAX glue (thin, all fused under one jit)
# ---------------------------------------------------------------------------

def _im2col_2x2(x_nhwc):
    """2x2/stride-1 im2col: (N,H,W,C) -> ((N*Ho*Wo, 4*C), dims). Feature order (kh,kw,cin)."""
    N, H, W, C = x_nhwc.shape
    Ho, Wo = H - 1, W - 1
    patches = jnp.concatenate(
        [x_nhwc[:, ki:ki + Ho, kj:kj + Wo, :] for ki in range(2) for kj in range(2)],
        axis=-1)
    return patches.reshape(N * Ho * Wo, 4 * C), (N, Ho, Wo)


def _pool_candidates(y_nhwc):
    """4 strided-slice candidates for a 2x2/stride-2 max-pool (floor mode)."""
    N, H, W, C = y_nhwc.shape
    Ho, Wo = H // 2, W // 2
    x = y_nhwc[:, :Ho * 2, :Wo * 2, :]
    a = x[:, 0::2, 0::2, :].reshape(-1, C)
    b = x[:, 0::2, 1::2, :].reshape(-1, C)
    c = x[:, 1::2, 0::2, :].reshape(-1, C)
    d = x[:, 1::2, 1::2, :].reshape(-1, C)
    return a, b, c, d, (N, Ho, Wo)


def init_params(key):
    """Deterministic synthetic parameters in the PyTorch module's layouts."""
    ks = jax.random.split(key, 10)
    p = {}
    p["w1"] = 0.1 * jax.random.normal(ks[0], (128, 1, 2, 2), jnp.float32)
    p["b1"] = 0.01 * jax.random.normal(ks[1], (128,), jnp.float32)
    p["w2"] = 0.05 * jax.random.normal(ks[2], (128, 128, 2, 2), jnp.float32)
    p["b2"] = 0.01 * jax.random.normal(ks[3], (128,), jnp.float32)
    p["w3"] = 0.05 * jax.random.normal(ks[4], (128, 128, 2, 2), jnp.float32)
    p["b3"] = 0.01 * jax.random.normal(ks[5], (128,), jnp.float32)
    for i in (1, 2, 3):  # BatchNorm affine defaults: gamma=1, beta=0
        p[f"gamma{i}"] = jnp.ones((128,), jnp.float32)
        p[f"beta{i}"] = jnp.zeros((128,), jnp.float32)
    p["fc1_w"] = 0.02 * jax.random.normal(ks[6], (256, 3200), jnp.float32)
    p["fc1_b"] = 0.01 * jax.random.normal(ks[7], (256,), jnp.float32)
    p["fc2_w"] = 0.05 * jax.random.normal(ks[8], (10, 256), jnp.float32)
    p["fc2_b"] = 0.01 * jax.random.normal(ks[9], (10,), jnp.float32)
    return p


def prepare_params(p):
    """One-time conversion to kernel-friendly layouts/dtypes (not repeated per forward)."""
    def conv_w(w):  # (Cout,Cin,2,2) -> (4*Cin, Cout), feature order (kh,kw,cin)
        return jnp.transpose(w, (2, 3, 1, 0)).reshape(-1, w.shape[0]).astype(jnp.bfloat16)

    q = {}
    q["w1"] = jnp.pad(conv_w(p["w1"]), ((0, 4), (0, 0)))   # (8,128) bf16, K padded 4->8
    q["w2"] = conv_w(p["w2"])                               # (512,128) bf16
    q["w3"] = conv_w(p["w3"])                               # (512,128) bf16
    for i in (1, 2, 3):
        q[f"b{i}"] = p[f"b{i}"].reshape(1, -1)
        q[f"gamma{i}"] = p[f"gamma{i}"].reshape(1, -1)
        q[f"beta{i}"] = p[f"beta{i}"].reshape(1, -1)
    q["fc1_w"] = p["fc1_w"].T.astype(jnp.bfloat16)          # (3200,256) bf16, pre-transposed
    q["fc1_b"] = p["fc1_b"].reshape(1, -1)
    q["fc2_w"] = p["fc2_w"].T                               # (256,10) f32 (tiny)
    q["fc2_b"] = p["fc2_b"].reshape(1, -1)
    return q


@jax.jit
def model_forward(x_nchw, q):
    """Forward pass equivalent to the PyTorch module (training-mode BatchNorm)."""
    N = x_nchw.shape[0]
    x = jnp.transpose(x_nchw, (0, 2, 3, 1))                    # NCHW -> NHWC (N,28,28,1)

    # block 1: conv1 -> relu1 -> batch1 -> max1
    p1, (_, H1, W1) = _im2col_2x2(x)                           # (N*27*27, 4)
    p1 = jnp.pad(p1, ((0, 0), (0, 4))).astype(jnp.bfloat16)    # K: 4 -> 8 (zero cols)
    y1 = conv_bn(p1, q["w1"], q["b1"], q["gamma1"], q["beta1"])
    a, b, c, d, (_, Hp1, Wp1) = _pool_candidates(y1.reshape(N, H1, W1, -1))
    y1p = maxpool4(a, b, c, d).reshape(N, Hp1, Wp1, -1)        # (N,13,13,128) bf16

    # block 2: conv2 -> relu2 -> batch2 -> max2
    p2, (_, H2, W2) = _im2col_2x2(y1p)                         # (N*12*12, 512) bf16
    y2 = conv_bn(p2, q["w2"], q["b2"], q["gamma2"], q["beta2"])
    a, b, c, d, (_, Hp2, Wp2) = _pool_candidates(y2.reshape(N, H2, W2, -1))
    y2p = maxpool4(a, b, c, d).reshape(N, Hp2, Wp2, -1)        # (N,6,6,128) bf16

    # block 3: conv3 -> relu3 -> batch3 (no pool)
    p3, (_, H3, W3) = _im2col_2x2(y2p)                         # (N*5*5, 512) bf16
    y3 = conv_bn(p3, q["w3"], q["b3"], q["gamma3"], q["beta3"])  # (N*25,128) f32

    # flatten in PyTorch NCHW .view(N,-1) order, then fused fc1+fc2
    flat = jnp.transpose(y3.reshape(N, H3, W3, -1), (0, 3, 1, 2)).reshape(N, -1)  # (N,3200)
    Mp = ((N + 7) // 8) * 8                                    # pad batch only to min sublane (8)
    flat_p = jnp.zeros((Mp, flat.shape[1]), jnp.bfloat16).at[:N].set(flat.astype(jnp.bfloat16))
    out = fc_fused(flat_p, q["fc1_w"], q["fc1_b"], q["fc2_w"], q["fc2_b"])
    return out[:N]                                             # (N, 10)


if __name__ == "__main__":
    key = jax.random.PRNGKey(0)
    k_x, k_p = jax.random.split(key)
    # MNIST-like input: fc1's 3200 = 128*5*5 in-features implies 28x28 input.
    x = jax.random.normal(k_x, (2, 1, 28, 28), jnp.float32)    # NCHW
    params = prepare_params(init_params(k_p))

    out = model_forward(x, params)
    out = jax.block_until_ready(out)
    assert out.shape == (2, 10), out.shape
    assert bool(jnp.all(jnp.isfinite(out)))
    print("KERNEL_OK")
</pallas_src>

<mosaic_0001>
module attributes {stable_mosaic.version = 11 : i64} {
  func.func @_conv_bn_kernel(%arg0: memref<1458x8xbf16, #tpu.memory_space<vmem>>, %arg1: memref<8x128xbf16, #tpu.memory_space<vmem>>, %arg2: memref<1x128xf32, #tpu.memory_space<vmem>>, %arg3: memref<1x128xf32, #tpu.memory_space<vmem>>, %arg4: memref<1x128xf32, #tpu.memory_space<vmem>>, %arg5: memref<1458x128xf32, #tpu.memory_space<vmem>>) attributes {dimension_semantics = [], scalar_prefetch = 0 : i64, scratch_operands = 0 : i64, tpu.core_type = #tpu.core_type<tc>} {
    %c0 = arith.constant 0 : index
    %c0_0 = arith.constant 0 : index
    %0 = vector.load %arg0[%c0, %c0_0] : memref<1458x8xbf16, #tpu.memory_space<vmem>>, vector<1458x8xbf16>
    %c0_1 = arith.constant 0 : index
    %c0_2 = arith.constant 0 : index
    %1 = vector.load %arg1[%c0_1, %c0_2] : memref<8x128xbf16, #tpu.memory_space<vmem>>, vector<8x128xbf16>
    %cst = arith.constant dense<0.000000e+00> : vector<1458x128xf32>
    %2 = tpu.matmul %0, %1, %cst {dimension_numbers = #tpu.dot_dimension_numbers<[1], [0], [0], [1], [0, 0, 1, 1], [], []>} : vector<1458x8xbf16>, vector<8x128xbf16>, vector<1458x128xf32> -> vector<1458x128xf32>
    %c0_3 = arith.constant 0 : index
    %c0_4 = arith.constant 0 : index
    %3 = vector.load %arg2[%c0_3, %c0_4] : memref<1x128xf32, #tpu.memory_space<vmem>>, vector<1x128xf32>
    %4 = vector.broadcast %3 : vector<1x128xf32> to vector<1458x128xf32>
    %5 = arith.addf %2, %4 : vector<1458x128xf32>
    %cst_5 = arith.constant 0.000000e+00 : f32
    %6 = vector.broadcast %cst_5 : f32 to vector<1458x128xf32>
    %7 = arith.maximumf %5, %6 : vector<1458x128xf32>
    %cst_6 = arith.constant dense<0.000000e+00> : vector<128xf32>
    %8 = vector.multi_reduction <add>, %7, %cst_6 [0] : vector<1458x128xf32> to vector<128xf32>
    %9 = vector.shape_cast %8 : vector<128xf32> to vector<1x128xf32>
    %cst_7 = arith.constant 1.458000e+03 : f32
    %10 = vector.broadcast %cst_7 : f32 to vector<1x128xf32>
    %11 = arith.divf %9, %10 : vector<1x128xf32>
    %12 = arith.mulf %7, %7 : vector<1458x128xf32>
    %cst_8 = arith.constant dense<0.000000e+00> : vector<128xf32>
    %13 = vector.multi_reduction <add>, %12, %cst_8 [0] : vector<1458x128xf32> to vector<128xf32>
    %14 = vector.shape_cast %13 : vector<128xf32> to vector<1x128xf32>
    %cst_9 = arith.constant 1.458000e+03 : f32
    %15 = vector.broadcast %cst_9 : f32 to vector<1x128xf32>
    %16 = arith.divf %14, %15 : vector<1x128xf32>
    %17 = arith.mulf %11, %11 : vector<1x128xf32>
    %18 = arith.subf %16, %17 : vector<1x128xf32>
    %cst_10 = arith.constant 0.000000e+00 : f32
    %19 = vector.broadcast %cst_10 : f32 to vector<1x128xf32>
    %20 = arith.maximumf %18, %19 : vector<1x128xf32>
    %c0_11 = arith.constant 0 : index
    %c0_12 = arith.constant 0 : index
    %21 = vector.load %arg3[%c0_11, %c0_12] : memref<1x128xf32, #tpu.memory_space<vmem>>, vector<1x128xf32>
    %cst_13 = arith.constant 9.99999974E-6 : f32
    %22 = vector.broadcast %cst_13 : f32 to vector<1x128xf32>
    %23 = arith.addf %20, %22 : vector<1x128xf32>
    %24 = math.rsqrt %23 : vector<1x128xf32>
    %25 = arith.mulf %21, %24 : vector<1x128xf32>
    %c0_14 = arith.constant 0 : index
    %c0_15 = arith.constant 0 : index
    %26 = vector.load %arg4[%c0_14, %c0_15] : memref<1x128xf32, #tpu.memory_space<vmem>>, vector<1x128xf32>
    %27 = arith.mulf %11, %25 : vector<1x128xf32>
    %28 = arith.subf %26, %27 : vector<1x128xf32>
    %29 = vector.broadcast %25 : vector<1x128xf32> to vector<1458x128xf32>
    %30 = arith.mulf %7, %29 : vector<1458x128xf32>
    %31 = vector.broadcast %28 : vector<1x128xf32> to vector<1458x128xf32>
    %32 = arith.addf %30, %31 : vector<1458x128xf32>
    %c0_16 = arith.constant 0 : index
    %c0_17 = arith.constant 0 : index
    %33 = vector.load %arg5[%c0_16, %c0_17] : memref<1458x128xf32, #tpu.memory_space<vmem>>, vector<1458x128xf32>
    tpu.vector_store %arg5[%c0_16, %c0_17], %32 {strides = array<i32>} : memref<1458x128xf32, #tpu.memory_space<vmem>>, vector<1458x128xf32>,
    return
  }
}

module attributes {stable_mosaic.version = 11 : i64} {
  func.func @_pool4_kernel(%arg0: memref<338x128xf32, #tpu.memory_space<vmem>>, %arg1: memref<338x128xf32, #tpu.memory_space<vmem>>, %arg2: memref<338x128xf32, #tpu.memory_space<vmem>>, %arg3: memref<338x128xf32, #tpu.memory_space<vmem>>, %arg4: memref<338x128xbf16, #tpu.memory_space<vmem>>) attributes {dimension_semantics = [], scalar_prefetch = 0 : i64, scratch_operands = 0 : i64, tpu.core_type = #tpu.core_type<tc>} {
    %c0 = arith.constant 0 : index
    %c0_0 = arith.constant 0 : index
    %0 = vector.load %arg0[%c0, %c0_0] : memref<338x128xf32, #tpu.memory_space<vmem>>, vector<338x128xf32>
    %c0_1 = arith.constant 0 : index
    %c0_2 = arith.constant 0 : index
    %1 = vector.load %arg1[%c0_1, %c0_2] : memref<338x128xf32, #tpu.memory_space<vmem>>, vector<338x128xf32>
    %2 = arith.maximumf %0, %1 : vector<338x128xf32>
    %c0_3 = arith.constant 0 : index
    %c0_4 = arith.constant 0 : index
    %3 = vector.load %arg2[%c0_3, %c0_4] : memref<338x128xf32, #tpu.memory_space<vmem>>, vector<338x128xf32>
    %c0_5 = arith.constant 0 : index
    %c0_6 = arith.constant 0 : index
    %4 = vector.load %arg3[%c0_5, %c0_6] : memref<338x128xf32, #tpu.memory_space<vmem>>, vector<338x128xf32>
    %5 = arith.maximumf %3, %4 : vector<338x128xf32>
    %6 = arith.maximumf %2, %5 : vector<338x128xf32>
    %7 = arith.truncf %6 : vector<338x128xf32> to vector<338x128xbf16>
    %c0_7 = arith.constant 0 : index
    %c0_8 = arith.constant 0 : index
    %8 = vector.load %arg4[%c0_7, %c0_8] : memref<338x128xbf16, #tpu.memory_space<vmem>>, vector<338x128xbf16>
    tpu.vector_store %arg4[%c0_7, %c0_8], %7 {strides = array<i32>} : memref<338x128xbf16, #tpu.memory_space<vmem>>, vector<338x128xbf16>,
    return
  }
}

module attributes {stable_mosaic.version = 11 : i64} {
  func.func @_conv_bn_kernel(%arg0: memref<288x512xbf16, #tpu.memory_space<vmem>>, %arg1: memref<512x128xbf16, #tpu.memory_space<vmem>>, %arg2: memref<1x128xf32, #tpu.memory_space<vmem>>, %arg3: memref<1x128xf32, #tpu.memory_space<vmem>>, %arg4: memref<1x128xf32, #tpu.memory_space<vmem>>, %arg5: memref<288x128xf32, #tpu.memory_space<vmem>>) attributes {dimension_semantics = [], scalar_prefetch = 0 : i64, scratch_operands = 0 : i64, tpu.core_type = #tpu.core_type<tc>} {
    %c0 = arith.constant 0 : index
    %c0_0 = arith.constant 0 : index
    %0 = vector.load %arg0[%c0, %c0_0] : memref<288x512xbf16, #tpu.memory_space<vmem>>, vector<288x512xbf16>
    %c0_1 = arith.constant 0 : index
    %c0_2 = arith.constant 0 : index
    %1 = vector.load %arg1[%c0_1, %c0_2] : memref<512x128xbf16, #tpu.memory_space<vmem>>, vector<512x128xbf16>
    %cst = arith.constant dense<0.000000e+00> : vector<288x128xf32>
    %2 = tpu.matmul %0, %1, %cst {dimension_numbers = #tpu.dot_dimension_numbers<[1], [0], [0], [1], [0, 0, 1, 1], [], []>} : vector<288x512xbf16>, vector<512x128xbf16>, vector<288x128xf32> -> vector<288x128xf32>
    %c0_3 = arith.constant 0 : index
    %c0_4 = arith.constant 0 : index
    %3 = vector.load %arg2[%c0_3, %c0_4] : memref<1x128xf32, #tpu.memory_space<vmem>>, vector<1x128xf32>
    %4 = vector.broadcast %3 : vector<1x128xf32> to vector<288x128xf32>
    %5 = arith.addf %2, %4 : vector<288x128xf32>
    %cst_5 = arith.constant 0.000000e+00 : f32
    %6 = vector.broadcast %cst_5 : f32 to vector<288x128xf32>
    %7 = arith.maximumf %5, %6 : vector<288x128xf32>
    %cst_6 = arith.constant dense<0.000000e+00> : vector<128xf32>
    %8 = vector.multi_reduction <add>, %7, %cst_6 [0] : vector<288x128xf32> to vector<128xf32>
    %9 = vector.shape_cast %8 : vector<128xf32> to vector<1x128xf32>
    %cst_7 = arith.constant 2.880000e+02 : f32
    %10 = vector.broadcast %cst_7 : f32 to vector<1x128xf32>
    %11 = arith.divf %9, %10 : vector<1x128xf32>
    %12 = arith.mulf %7, %7 : vector<288x128xf32>
    %cst_8 = arith.constant dense<0.000000e+00> : vector<128xf32>
    %13 = vector.multi_reduction <add>, %12, %cst_8 [0] : vector<288x128xf32> to vector<128xf32>
    %14 = vector.shape_cast %13 : vector<128xf32> to vector<1x128xf32>
    %cst_9 = arith.constant 2.880000e+02 : f32
    %15 = vector.broadcast %cst_9 : f32 to vector<1x128xf32>
    %16 = arith.divf %14, %15 : vector<1x128xf32>
    %17 = arith.mulf %11, %11 : vector<1x128xf32>
    %18 = arith.subf %16, %17 : vector<1x128xf32>
    %cst_10 = arith.constant 0.000000e+00 : f32
    %19 = vector.broadcast %cst_10 : f32 to vector<1x128xf32>
    %20 = arith.maximumf %18, %19 : vector<1x128xf32>
    %c0_11 = arith.constant 0 : index
    %c0_12 = arith.constant 0 : index
    %21 = vector.load %arg3[%c0_11, %c0_12] : memref<1x128xf32, #tpu.memory_space<vmem>>, vector<1x128xf32>
    %cst_13 = arith.constant 9.99999974E-6 : f32
    %22 = vector.broadcast %cst_13 : f32 to vector<1x128xf32>
    %23 = arith.addf %20, %22 : vector<1x128xf32>
    %24 = math.rsqrt %23 : vector<1x128xf32>
    %25 = arith.mulf %21, %24 : vector<1x128xf32>
    %c0_14 = arith.constant 0 : index
    %c0_15 = arith.constant 0 : index
    %26 = vector.load %arg4[%c0_14, %c0_15] : memref<1x128xf32, #tpu.memory_space<vmem>>, vector<1x128xf32>
    %27 = arith.mulf %11, %25 : vector<1x128xf32>
    %28 = arith.subf %26, %27 : vector<1x128xf32>
    %29 = vector.broadcast %25 : vector<1x128xf32> to vector<288x128xf32>
    %30 = arith.mulf %7, %29 : vector<288x128xf32>
    %31 = vector.broadcast %28 : vector<1x128xf32> to vector<288x128xf32>
    %32 = arith.addf %30, %31 : vector<288x128xf32>
    %c0_16 = arith.constant 0 : index
    %c0_17 = arith.constant 0 : index
    %33 = vector.load %arg5[%c0_16, %c0_17] : memref<288x128xf32, #tpu.memory_space<vmem>>, vector<288x128xf32>
    tpu.vector_store %arg5[%c0_16, %c0_17], %32 {strides = array<i32>} : memref<288x128xf32, #tpu.memory_space<vmem>>, vector<288x128xf32>,
    return
  }
}

module attributes {stable_mosaic.version = 11 : i64} {
  func.func @_pool4_kernel(%arg0: memref<72x128xf32, #tpu.memory_space<vmem>>, %arg1: memref<72x128xf32, #tpu.memory_space<vmem>>, %arg2: memref<72x128xf32, #tpu.memory_space<vmem>>, %arg3: memref<72x128xf32, #tpu.memory_space<vmem>>, %arg4: memref<72x128xbf16, #tpu.memory_space<vmem>>) attributes {dimension_semantics = [], scalar_prefetch = 0 : i64, scratch_operands = 0 : i64, tpu.core_type = #tpu.core_type<tc>} {
    %c0 = arith.constant 0 : index
    %c0_0 = arith.constant 0 : index
    %0 = vector.load %arg0[%c0, %c0_0] : memref<72x128xf32, #tpu.memory_space<vmem>>, vector<72x128xf32>
    %c0_1 = arith.constant 0 : index
    %c0_2 = arith.constant 0 : index
    %1 = vector.load %arg1[%c0_1, %c0_2] : memref<72x128xf32, #tpu.memory_space<vmem>>, vector<72x128xf32>
    %2 = arith.maximumf %0, %1 : vector<72x128xf32>
    %c0_3 = arith.constant 0 : index
    %c0_4 = arith.constant 0 : index
    %3 = vector.load %arg2[%c0_3, %c0_4] : memref<72x128xf32, #tpu.memory_space<vmem>>, vector<72x128xf32>
    %c0_5 = arith.constant 0 : index
    %c0_6 = arith.constant 0 : index
    %4 = vector.load %arg3[%c0_5, %c0_6] : memref<72x128xf32, #tpu.memory_space<vmem>>, vector<72x128xf32>
    %5 = arith.maximumf %3, %4 : vector<72x128xf32>
    %6 = arith.maximumf %2, %5 : vector<72x128xf32>
    %7 = arith.truncf %6 : vector<72x128xf32> to vector<72x128xbf16>
    %c0_7 = arith.constant 0 : index
    %c0_8 = arith.constant 0 : index
    %8 = vector.load %arg4[%c0_7, %c0_8] : memref<72x128xbf16, #tpu.memory_space<vmem>>, vector<72x128xbf16>
    tpu.vector_store %arg4[%c0_7, %c0_8], %7 {strides = array<i32>} : memref<72x128xbf16, #tpu.memory_space<vmem>>, vector<72x128xbf16>,
    return
  }
}

module attributes {stable_mosaic.version = 11 : i64} {
  func.func @_conv_bn_kernel(%arg0: memref<50x512xbf16, #tpu.memory_space<vmem>>, %arg1: memref<512x128xbf16, #tpu.memory_space<vmem>>, %arg2: memref<1x128xf32, #tpu.memory_space<vmem>>, %arg3: memref<1x128xf32, #tpu.memory_space<vmem>>, %arg4: memref<1x128xf32, #tpu.memory_space<vmem>>, %arg5: memref<50x128xf32, #tpu.memory_space<vmem>>) attributes {dimension_semantics = [], scalar_prefetch = 0 : i64, scratch_operands = 0 : i64, tpu.core_type = #tpu.core_type<tc>} {
    %c0 = arith.constant 0 : index
    %c0_0 = arith.constant 0 : index
    %0 = vector.load %arg0[%c0, %c0_0] : memref<50x512xbf16, #tpu.memory_space<vmem>>, vector<50x512xbf16>
    %c0_1 = arith.constant 0 : index
    %c0_2 = arith.constant 0 : index
    %1 = vector.load %arg1[%c0_1, %c0_2] : memref<512x128xbf16, #tpu.memory_space<vmem>>, vector<512x128xbf16>
    %cst = arith.constant dense<0.000000e+00> : vector<50x128xf32>
    %2 = tpu.matmul %0, %1, %cst {dimension_numbers = #tpu.dot_dimension_numbers<[1], [0], [0], [1], [0, 0, 1, 1], [], []>} : vector<50x512xbf16>, vector<512x128xbf16>, vector<50x128xf32> -> vector<50x128xf32>
    %c0_3 = arith.constant 0 : index
    %c0_4 = arith.constant 0 : index
    %3 = vector.load %arg2[%c0_3, %c0_4] : memref<1x128xf32, #tpu.memory_space<vmem>>, vector<1x128xf32>
    %4 = vector.broadcast %3 : vector<1x128xf32> to vector<50x128xf32>
    %5 = arith.addf %2, %4 : vector<50x128xf32>
    %cst_5 = arith.constant 0.000000e+00 : f32
    %6 = vector.broadcast %cst_5 : f32 to vector<50x128xf32>
    %7 = arith.maximumf %5, %6 : vector<50x128xf32>
    %cst_6 = arith.constant dense<0.000000e+00> : vector<128xf32>
    %8 = vector.multi_reduction <add>, %7, %cst_6 [0] : vector<50x128xf32> to vector<128xf32>
    %9 = vector.shape_cast %8 : vector<128xf32> to vector<1x128xf32>
    %cst_7 = arith.constant 5.000000e+01 : f32
    %10 = vector.broadcast %cst_7 : f32 to vector<1x128xf32>
    %11 = arith.divf %9, %10 : vector<1x128xf32>
    %12 = arith.mulf %7, %7 : vector<50x128xf32>
    %cst_8 = arith.constant dense<0.000000e+00> : vector<128xf32>
    %13 = vector.multi_reduction <add>, %12, %cst_8 [0] : vector<50x128xf32> to vector<128xf32>
    %14 = vector.shape_cast %13 : vector<128xf32> to vector<1x128xf32>
    %cst_9 = arith.constant 5.000000e+01 : f32
    %15 = vector.broadcast %cst_9 : f32 to vector<1x128xf32>
    %16 = arith.divf %14, %15 : vector<1x128xf32>
    %17 = arith.mulf %11, %11 : vector<1x128xf32>
    %18 = arith.subf %16, %17 : vector<1x128xf32>
    %cst_10 = arith.constant 0.000000e+00 : f32
    %19 = vector.broadcast %cst_10 : f32 to vector<1x128xf32>
    %20 = arith.maximumf %18, %19 : vector<1x128xf32>
    %c0_11 = arith.constant 0 : index
    %c0_12 = arith.constant 0 : index
    %21 = vector.load %arg3[%c0_11, %c0_12] : memref<1x128xf32, #tpu.memory_space<vmem>>, vector<1x128xf32>
    %cst_13 = arith.constant 9.99999974E-6 : f32
    %22 = vector.broadcast %cst_13 : f32 to vector<1x128xf32>
    %23 = arith.addf %20, %22 : vector<1x128xf32>
    %24 = math.rsqrt %23 : vector<1x128xf32>
    %25 = arith.mulf %21, %24 : vector<1x128xf32>
    %c0_14 = arith.constant 0 : index
    %c0_15 = arith.constant 0 : index
    %26 = vector.load %arg4[%c0_14, %c0_15] : memref<1x128xf32, #tpu.memory_space<vmem>>, vector<1x128xf32>
    %27 = arith.mulf %11, %25 : vector<1x128xf32>
    %28 = arith.subf %26, %27 : vector<1x128xf32>
    %29 = vector.broadcast %25 : vector<1x128xf32> to vector<50x128xf32>
    %30 = arith.mulf %7, %29 : vector<50x128xf32>
    %31 = vector.broadcast %28 : vector<1x128xf32> to vector<50x128xf32>
    %32 = arith.addf %30, %31 : vector<50x128xf32>
    %c0_16 = arith.constant 0 : index
    %c0_17 = arith.constant 0 : index
    %33 = vector.load %arg5[%c0_16, %c0_17] : memref<50x128xf32, #tpu.memory_space<vmem>>, vector<50x128xf32>
    tpu.vector_store %arg5[%c0_16, %c0_17], %32 {strides = array<i32>} : memref<50x128xf32, #tpu.memory_space<vmem>>, vector<50x128xf32>,
    return
  }
}

module attributes {stable_mosaic.version = 11 : i64} {
  func.func @_fc_fused_kernel(%arg0: memref<8x3200xbf16, #tpu.memory_space<vmem>>, %arg1: memref<3200x256xbf16, #tpu.memory_space<vmem>>, %arg2: memref<1x256xf32, #tpu.memory_space<vmem>>, %arg3: memref<256x10xf32, #tpu.memory_space<vmem>>, %arg4: memref<1x10xf32, #tpu.memory_space<vmem>>, %arg5: memref<8x10xf32, #tpu.memory_space<vmem>>) attributes {dimension_semantics = [], scalar_prefetch = 0 : i64, scratch_operands = 0 : i64, tpu.core_type = #tpu.core_type<tc>} {
    %c0 = arith.constant 0 : index
    %c0_0 = arith.constant 0 : index
    %0 = vector.load %arg0[%c0, %c0_0] : memref<8x3200xbf16, #tpu.memory_space<vmem>>, vector<8x3200xbf16>
    %c0_1 = arith.constant 0 : index
    %c0_2 = arith.constant 0 : index
    %1 = vector.load %arg1[%c0_1, %c0_2] : memref<3200x256xbf16, #tpu.memory_space<vmem>>, vector<3200x256xbf16>
    %cst = arith.constant dense<0.000000e+00> : vector<8x256xf32>
    %2 = tpu.matmul %0, %1, %cst {dimension_numbers = #tpu.dot_dimension_numbers<[1], [0], [0], [1], [0, 0, 1, 1], [], []>} : vector<8x3200xbf16>, vector<3200x256xbf16>, vector<8x256xf32> -> vector<8x256xf32>
    %c0_3 = arith.constant 0 : index
    %c0_4 = arith.constant 0 : index
    %3 = vector.load %arg2[%c0_3, %c0_4] : memref<1x256xf32, #tpu.memory_space<vmem>>, vector<1x256xf32>
    %4 = vector.broadcast %3 : vector<1x256xf32> to vector<8x256xf32>
    %5 = arith.addf %2, %4 : vector<8x256xf32>
    %c0_5 = arith.constant 0 : index
    %c0_6 = arith.constant 0 : index
    %6 = vector.load %arg3[%c0_5, %c0_6] : memref<256x10xf32, #tpu.memory_space<vmem>>, vector<256x10xf32>
    %cst_7 = arith.constant dense<0.000000e+00> : vector<8x10xf32>
    %7 = tpu.matmul %5, %6, %cst_7 {dimension_numbers = #tpu.dot_dimension_numbers<[1], [0], [0], [1], [0, 0, 1, 1], [], []>} : vector<8x256xf32>, vector<256x10xf32>, vector<8x10xf32> -> vector<8x10xf32>
    %c0_8 = arith.constant 0 : index
    %c0_9 = arith.constant 0 : index
    %8 = vector.load %arg4[%c0_8, %c0_9] : memref<1x10xf32, #tpu.memory_space<vmem>>, vector<1x10xf32>
    %9 = vector.broadcast %8 : vector<1x10xf32> to vector<8x10xf32>
    %10 = arith.addf %7, %9 : vector<8x10xf32>
    %c0_10 = arith.constant 0 : index
    %c0_11 = arith.constant 0 : index
    %11 = vector.load %arg5[%c0_10, %c0_11] : memref<8x10xf32, #tpu.memory_space<vmem>>, vector<8x10xf32>
    tpu.vector_store %arg5[%c0_10, %c0_11], %10 {strides = array<i32>} : memref<8x10xf32, #tpu.memory_space<vmem>>, vector<8x10xf32>,
    return
  }
}

</mosaic_0001>

<llo_original>
// kernel: model_forward.7
$region0: #{model_forward.7}
  #allocation0 [shape = 'u32[]', space=smem, size = 0x4, offset = 0x4, fixed_abs, tag = 'smem constant byte address 0x4 - core index']
  #allocation1 [shape = 'u32[144,128]{1,0:T(1,128)}', space=vmem, size = 0x12000, scoped, tag = 'internal scratch']
  %s0 = inlined_call_operand.vmem [shape: f32[338,128], index: 0, kind: input, shape index: {}]
  %s1 = inlined_call_operand.vmem [shape: f32[338,128], index: 1, kind: input, shape index: {}]
  %s2 = inlined_call_operand.vmem [shape: f32[338,128], index: 2, kind: input, shape index: {}]
  %s3 = inlined_call_operand.vmem [shape: f32[338,128], index: 3, kind: input, shape index: {}]
  %s4 = inlined_call_operand.vmem [shape: bf16[338,128], index: 4, kind: output, shape index: {}]
  %s5 = sld [smem:[#allocation0]]
  $region26: #{model_forward.7} parent=0
    _
  %s7 = ssub.s32 1, %s5
  %s8 = scalar_select 0, %s7, %s5
  // Predicated region
  $region2: #{model_forward.7} parent=0 // pred_check
    _
  $region3: #{model_forward.7} parent=0 // pred_check_branch
    %10 = sbr.rel (0) target = $region5
  $region4: #{model_forward.7} parent=0 // pred_region
    _
  $region5: #{model_forward.7} parent=0 // pred_fallthru
    _
  // Predicated region
  $region6: #{model_forward.7} parent=0 // pred_check
    _
  $region7: #{model_forward.7} parent=0 // pred_check_branch
    %12 = sbr.rel (0) target = $region9
  $region8: #{model_forward.7} parent=0 // pred_region
    _
  $region9: #{model_forward.7} parent=0 // pred_fallthru
    _
  // Predicated region
  $region10: #{model_forward.7} parent=0 // pred_check
    _
  $region11: #{model_forward.7} parent=0 // pred_check_branch
    %14 = sbr.rel (0) target = $region13
  $region12: #{model_forward.7} parent=0 // pred_region
    _
  $region13: #{model_forward.7} parent=0 // pred_fallthru
    _
  // Predicated region
  $region14: #{model_forward.7} parent=0 // pred_check
    _
  $region15: #{model_forward.7} parent=0 // pred_check_branch
    %16 = sbr.rel (0) target = $region17
  $region16: #{model_forward.7} parent=0 // pred_region
    _
  $region17: #{model_forward.7} parent=0 // pred_fallthru
    _
  %v17 = vld [vmem:[%s0] sm:$0xff]
  %v18 = vld [vmem:[%s0 + $0x8] sm:$0xff]
  %v19 = vld [vmem:[%s0 + $0x10] sm:$0xff]
  %v20 = vld [vmem:[%s0 + $0x18] sm:$0xff]
  %v21 = vld [vmem:[%s0 + $0x20] sm:$0xff]
  %v22 = vld [vmem:[%s0 + $0x28] sm:$0xff]
  %v23 = vld [vmem:[%s0 + $0x30] sm:$0xff]
  %v24 = vld [vmem:[%s0 + $0x38] sm:$0xff]
  %v25 = vld [vmem:[%s0 + $0x40] sm:$0xff]
  %v26 = vld [vmem:[%s0 + $0x48] sm:$0xff]
  %v27 = vld [vmem:[%s0 + $0x50] sm:$0xff]
  %v28 = vld [vmem:[%s0 + $0x58] sm:$0xff]
  %v29 = vld [vmem:[%s0 + $0x60] sm:$0xff]
  %v30 = vld [vmem:[%s0 + $0x68] sm:$0xff]
  %v31 = vld [vmem:[%s0 + $0x70] sm:$0xff]
  %v32 = vld [vmem:[%s0 + $0x78] sm:$0xff]
  %v33 = vld [vmem:[%s0 + $0x80] sm:$0xff]
  %v34 = vld [vmem:[%s0 + $0x88] sm:$0xff]
  %v35 = vld [vmem:[%s0 + $0x90] sm:$0xff]
  %v36 = vld [vmem:[%s0 + $0x98] sm:$0xff]
  %v37 = vld [vmem:[%s0 + $0xa0] sm:$0xff]
  %v38 = vld [vmem:[%s0 + $0xa8] sm:$0xff]
  %v39 = vld [vmem:[%s0 + $0xb0] sm:$0xff]
  %v40 = vld [vmem:[%s0 + $0xb8] sm:$0xff]
  %v41 = vld [vmem:[%s0 + $0xc0] sm:$0xff]
  %v42 = vld [vmem:[%s0 + $0xc8] sm:$0xff]
  %v43 = vld [vmem:[%s0 + $0xd0] sm:$0xff]
  %v44 = vld [vmem:[%s0 + $0xd8] sm:$0xff]
  %v45 = vld [vmem:[%s0 + $0xe0] sm:$0xff]
  %v46 = vld [vmem:[%s0 + $0xe8] sm:$0xff]
  %v47 = vld [vmem:[%s0 + $0xf0] sm:$0xff]
  %v48 = vld [vmem:[%s0 + $0xf8] sm:$0xff]
  %v49 = vld [vmem:[%s0 + $0x100] sm:$0xff]
  %v50 = vld [vmem:[%s0 + $0x108] sm:$0xff]
  %v51 = vld [vmem:[%s0 + $0x110] sm:$0xff]
  %v52 = vld [vmem:[%s0 + $0x118] sm:$0xff]
  %v53 = vld [vmem:[%s0 + $0x120] sm:$0xff]
  %v54 = vld [vmem:[%s0 + $0x128] sm:$0xff]
  %v55 = vld [vmem:[%s0 + $0x130] sm:$0xff]
  %v56 = vld [vmem:[%s0 + $0x138] sm:$0xff]
  %v57 = vld [vmem:[%s0 + $0x140] sm:$0xff]
  %v58 = vld [vmem:[%s0 + $0x148] sm:$0xff]
  %v59 = vld [vmem:[%s0 + $0x150] sm:$0x3]
  %v60 = vld [vmem:[%s1] sm:$0xff]
  %v61 = vld [vmem:[%s1 + $0x8] sm:$0xff]
  %v62 = vld [vmem:[%s1 + $0x10] sm:$0xff]
  %v63 = vld [vmem:[%s1 + $0x18] sm:$0xff]
  %v64 = vld [vmem:[%s1 + $0x20] sm:$0xff]
  %v65 = vld [vmem:[%s1 + $0x28] sm:$0xff]
  %v66 = vld [vmem:[%s1 + $0x30] sm:$0xff]
  %v67 = vld [vmem:[%s1 + $0x38] sm:$0xff]
  %v68 = vld [vmem:[%s1 + $0x40] sm:$0xff]
  %v69 = vld [vmem:[%s1 + $0x48] sm:$0xff]
  %v70 = vld [vmem:[%s1 + $0x50] sm:$0xff]
  %v71 = vld [vmem:[%s1 + $0x58] sm:$0xff]
  %v72 = vld [vmem:[%s1 + $0x60] sm:$0xff]
  %v73 = vld [vmem:[%s1 + $0x68] sm:$0xff]
  %v74 = vld [vmem:[%s1 + $0x70] sm:$0xff]
  %v75 = vld [vmem:[%s1 + $0x78] sm:$0xff]
  %v76 = vld [vmem:[%s1 + $0x80] sm:$0xff]
  %v77 = vld [vmem:[%s1 + $0x88] sm:$0xff]
  %v78 = vld [vmem:[%s1 + $0x90] sm:$0xff]
  %v79 = vld [vmem:[%s1 + $0x98] sm:$0xff]
  %v80 = vld [vmem:[%s1 + $0xa0] sm:$0xff]
  %v81 = vld [vmem:[%s1 + $0xa8] sm:$0xff]
  %v82 = vld [vmem:[%s1 + $0xb0] sm:$0xff]
  %v83 = vld [vmem:[%s1 + $0xb8] sm:$0xff]
  %v84 = vld [vmem:[%s1 + $0xc0] sm:$0xff]
  %v85 = vld [vmem:[%s1 + $0xc8] sm:$0xff]
  %v86 = vld [vmem:[%s1 + $0xd0] sm:$0xff]
  %v87 = vld [vmem:[%s1 + $0xd8] sm:$0xff]
  %v88 = vld [vmem:[%s1 + $0xe0] sm:$0xff]
  %v89 = vld [vmem:[%s1 + $0xe8] sm:$0xff]
  %v90 = vld [vmem:[%s1 + $0xf0] sm:$0xff]
  %v91 = vld [vmem:[%s1 + $0xf8] sm:$0xff]
  %v92 = vld [vmem:[%s1 + $0x100] sm:$0xff]
  %v93 = vld [vmem:[%s1 + $0x108] sm:$0xff]
  %v94 = vld [vmem:[%s1 + $0x110] sm:$0xff]
  %v95 = vld [vmem:[%s1 + $0x118] sm:$0xff]
  %v96 = vld [vmem:[%s1 + $0x120] sm:$0xff]
  %v97 = vld [vmem:[%s1 + $0x128] sm:$0xff]
  %v98 = vld [vmem:[%s1 + $0x130] sm:$0xff]
  %v99 = vld [vmem:[%s1 + $0x138] sm:$0xff]
  %v100 = vld [vmem:[%s1 + $0x140] sm:$0xff]
  %v101 = vld [vmem:[%s1 + $0x148] sm:$0xff]
  %v102 = vld [vmem:[%s1 + $0x150] sm:$0x3]
  %v103 = vmax.f32 %v17, %v60
  %v104 = vmax.f32 %v18, %v61
  %v105 = vmax.f32 %v19, %v62
  %v106 = vmax.f32 %v20, %v63
  %v107 = vmax.f32 %v21, %v64
  %v108 = vmax.f32 %v22, %v65
  %v109 = vmax.f32 %v23, %v66
  %v110 = vmax.f32 %v24, %v67
  %v111 = vmax.f32 %v25, %v68
  %v112 = vmax.f32 %v26, %v69
  %v113 = vmax.f32 %v27, %v70
  %v114 = vmax.f32 %v28, %v71
  %v115 = vmax.f32 %v29, %v72
  %v116 = vmax.f32 %v30, %v73
  %v117 = vmax.f32 %v31, %v74
  %v118 = vmax.f32 %v32, %v75
  %v119 = vmax.f32 %v33, %v76
  %v120 = vmax.f32 %v34, %v77
  %v121 = vmax.f32 %v35, %v78
  %v122 = vmax.f32 %v36, %v79
  %v123 = vmax.f32 %v37, %v80
  %v124 = vmax.f32 %v38, %v81
  %v125 = vmax.f32 %v39, %v82
  %v126 = vmax.f32 %v40, %v83
  %v127 = vmax.f32 %v41, %v84
  %v128 = vmax.f32 %v42, %v85
  %v129 = vmax.f32 %v43, %v86
  %v130 = vmax.f32 %v44, %v87
  %v131 = vmax.f32 %v45, %v88
  %v132 = vmax.f32 %v46, %v89
  %v133 = vmax.f32 %v47, %v90
  %v134 = vmax.f32 %v48, %v91
  %v135 = vmax.f32 %v49, %v92
  %v136 = vmax.f32 %v50, %v93
  %v137 = vmax.f32 %v51, %v94
  %v138 = vmax.f32 %v52, %v95
  %v139 = vmax.f32 %v53, %v96
  %v140 = vmax.f32 %v54, %v97
  %v141 = vmax.f32 %v55, %v98
  %v142 = vmax.f32 %v56, %v99
  %v143 = vmax.f32 %v57, %v100
  %v144 = vmax.f32 %v58, %v101
  %v145 = vmax.f32 %v59, %v102
  %v146 = vld [vmem:[%s2] sm:$0xff]
  %v147 = vld [vmem:[%s2 + $0x8] sm:$0xff]
  %v148 = vld [vmem:[%s2 + $0x10] sm:$0xff]
  %v149 = vld [vmem:[%s2 + $0x18] sm:$0xff]
  %v150 = vld [vmem:[%s2 + $0x20] sm:$0xff]
  %v151 = vld [vmem:[%s2 + $0x28] sm:$0xff]
  %v152 = vld [vmem:[%s2 + $0x30] sm:$0xff]
  %v153 = vld [vmem:[%s2 + $0x38] sm:$0xff]
  %v154 = vld [vmem:[%s2 + $0x40] sm:$0xff]
  %v155 = vld [vmem:[%s2 + $0x48] sm:$0xff]
  %v156 = vld [vmem:[%s2 + $0x50] sm:$0xff]
  %v157 = vld [vmem:[%s2 + $0x58] sm:$0xff]
  %v158 = vld [vmem:[%s2 + $0x60] sm:$0xff]
  %v159 = vld [vmem:[%s2 + $0x68] sm:$0xff]
  %v160 = vld [vmem:[%s2 + $0x70] sm:$0xff]
  %v161 = vld [vmem:[%s2 + $0x78] sm:$0xff]
  %v162 = vld [vmem:[%s2 + $0x80] sm:$0xff]
  %v163 = vld [vmem:[%s2 + $0x88] sm:$0xff]
  %v164 = vld [vmem:[%s2 + $0x90] sm:$0xff]
  %v165 = vld [vmem:[%s2 + $0x98] sm:$0xff]
  %v166 = vld [vmem:[%s2 + $0xa0] sm:$0xff]
  %v167 = vld [vmem:[%s2 + $0xa8] sm:$0xff]
  %v168 = vld [vmem:[%s2 + $0xb0] sm:$0xff]
  %v169 = vld [vmem:[%s2 + $0xb8] sm:$0xff]
  %v170 = vld [vmem:[%s2 + $0xc0] sm:$0xff]
  %v171 = vld [vmem:[%s2 + $0xc8] sm:$0xff]
  %v172 = vld [vmem:[%s2 + $0xd0] sm:$0xff]
  %v173 = vld [vmem:[%s2 + $0xd8] sm:$0xff]
  %v174 = vld [vmem:[%s2 + $0xe0] sm:$0xff]
  %v175 = vld [vmem:[%s2 + $0xe8] sm:$0xff]
  %v176 = vld [vmem:[%s2 + $0xf0] sm:$0xff]
  %v177 = vld [vmem:[%s2 + $0xf8] sm:$0xff]
  %v178 = vld [vmem:[%s2 + $0x100] sm:$0xff]
  %v179 = vld [vmem:[%s2 + $0x108] sm:$0xff]
  %v180 = vld [vmem:[%s2 + $0x110] sm:$0xff]
  %v181 = vld [vmem:[%s2 + $0x118] sm:$0xff]
  %v182 = vld [vmem:[%s2 + $0x120] sm:$0xff]
  %v183 = vld [vmem:[%s2 + $0x128] sm:$0xff]
  %v184 = vld [vmem:[%s2 + $0x130] sm:$0xff]
  %v185 = vld [vmem:[%s2 + $0x138] sm:$0xff]
  %v186 = vld [vmem:[%s2 + $0x140] sm:$0xff]
  %v187 = vld [vmem:[%s2 + $0x148] sm:$0xff]
  %v188 = vld [vmem:[%s2 + $0x150] sm:$0x3]
  %v189 = vld [vmem:[%s3] sm:$0xff]
  %v190 = vld [vmem:[%s3 + $0x8] sm:$0xff]
  %v191 = vld [vmem:[%s3 + $0x10] sm:$0xff]
  %v192 = vld [vmem:[%s3 + $0x18] sm:$0xff]
  %v193 = vld [vmem:[%s3 + $0x20] sm:$0xff]
  %v194 = vld [vmem:[%s3 + $0x28] sm:$0xff]
  %v195 = vld [vmem:[%s3 + $0x30] sm:$0xff]
  %v196 = vld [vmem:[%s3 + $0x38] sm:$0xff]
  %v197 = vld [vmem:[%s3 + $0x40] sm:$0xff]
  %v198 = vld [vmem:[%s3 + $0x48] sm:$0xff]
  %v199 = vld [vmem:[%s3 + $0x50] sm:$0xff]
  %v200 = vld [vmem:[%s3 + $0x58] sm:$0xff]
  %v201 = vld [vmem:[%s3 + $0x60] sm:$0xff]
  %v202 = vld [vmem:[%s3 + $0x68] sm:$0xff]
  %v203 = vld [vmem:[%s3 + $0x70] sm:$0xff]
  %v204 = vld [vmem:[%s3 + $0x78] sm:$0xff]
  %v205 = vld [vmem:[%s3 + $0x80] sm:$0xff]
  %v206 = vld [vmem:[%s3 + $0x88] sm:$0xff]
  %v207 = vld [vmem:[%s3 + $0x90] sm:$0xff]
  %v208 = vld [vmem:[%s3 + $0x98] sm:$0xff]
  %v209 = vld [vmem:[%s3 + $0xa0] sm:$0xff]
  %v210 = vld [vmem:[%s3 + $0xa8] sm:$0xff]
  %v211 = vld [vmem:[%s3 + $0xb0] sm:$0xff]
  %v212 = vld [vmem:[%s3 + $0xb8] sm:$0xff]
  %v213 = vld [vmem:[%s3 + $0xc0] sm:$0xff]
  %v214 = vld [vmem:[%s3 + $0xc8] sm:$0xff]
  %v215 = vld [vmem:[%s3 + $0xd0] sm:$0xff]
  %v216 = vld [vmem:[%s3 + $0xd8] sm:$0xff]
  %v217 = vld [vmem:[%s3 + $0xe0] sm:$0xff]
  %v218 = vld [vmem:[%s3 + $0xe8] sm:$0xff]
  %v219 = vld [vmem:[%s3 + $0xf0] sm:$0xff]
  %v220 = vld [vmem:[%s3 + $0xf8] sm:$0xff]
  %v221 = vld [vmem:[%s3 + $0x100] sm:$0xff]
  %v222 = vld [vmem:[%s3 + $0x108] sm:$0xff]
  %v223 = vld [vmem:[%s3 + $0x110] sm:$0xff]
  %v224 = vld [vmem:[%s3 + $0x118] sm:$0xff]
  %v225 = vld [vmem:[%s3 + $0x120] sm:$0xff]
  %v226 = vld [vmem:[%s3 + $0x128] sm:$0xff]
  %v227 = vld [vmem:[%s3 + $0x130] sm:$0xff]
  %v228 = vld [vmem:[%s3 + $0x138] sm:$0xff]
  %v229 = vld [vmem:[%s3 + $0x140] sm:$0xff]
  %v230 = vld [vmem:[%s3 + $0x148] sm:$0xff]
  %v231 = vld [vmem:[%s3 + $0x150] sm:$0x3]
  %v232 = vmax.f32 %v146, %v189
  %v233 = vmax.f32 %v147, %v190
  %v234 = vmax.f32 %v148, %v191
  %v235 = vmax.f32 %v149, %v192
  %v236 = vmax.f32 %v150, %v193
  %v237 = vmax.f32 %v151, %v194
  %v238 = vmax.f32 %v152, %v195
  %v239 = vmax.f32 %v153, %v196
  %v240 = vmax.f32 %v154, %v197
  %v241 = vmax.f32 %v155, %v198
  %v242 = vmax.f32 %v156, %v199
  %v243 = vmax.f32 %v157, %v200
  %v244 = vmax.f32 %v158, %v201
  %v245 = vmax.f32 %v159, %v202
  %v246 = vmax.f32 %v160, %v203
  %v247 = vmax.f32 %v161, %v204
  %v248 = vmax.f32 %v162, %v205
  %v249 = vmax.f32 %v163, %v206
  %v250 = vmax.f32 %v164, %v207
  %v251 = vmax.f32 %v165, %v208
  %v252 = vmax.f32 %v166, %v209
  %v253 = vmax.f32 %v167, %v210
  %v254 = vmax.f32 %v168, %v211
  %v255 = vmax.f32 %v169, %v212
  %v256 = vmax.f32 %v170, %v213
  %v257 = vmax.f32 %v171, %v214
  %v258 = vmax.f32 %v172, %v215
  %v259 = vmax.f32 %v173, %v216
  %v260 = vmax.f32 %v174, %v217
  %v261 = vmax.f32 %v175, %v218
  %v262 = vmax.f32 %v176, %v219
  %v263 = vmax.f32 %v177, %v220
  %v264 = vmax.f32 %v178, %v221
  %v265 = vmax.f32 %v179, %v222
  %v266 = vmax.f32 %v180, %v223
  %v267 = vmax.f32 %v181, %v224
  %v268 = vmax.f32 %v182, %v225
  %v269 = vmax.f32 %v183, %v226
  %v270 = vmax.f32 %v184, %v227
  %v271 = vmax.f32 %v185, %v228
  %v272 = vmax.f32 %v186, %v229
  %v273 = vmax.f32 %v187, %v230
  %v274 = vmax.f32 %v188, %v231
  %v275 = vmax.f32 %v103, %v232
  %v276 = vmax.f32 %v104, %v233
  %v277 = vmax.f32 %v105, %v234
  %v278 = vmax.f32 %v106, %v235
  %v279 = vmax.f32 %v107, %v236
  %v280 = vmax.f32 %v108, %v237
  %v281 = vmax.f32 %v109, %v238
  %v282 = vmax.f32 %v110, %v239
  %v283 = vmax.f32 %v111, %v240
  %v284 = vmax.f32 %v112, %v241
  %v285 = vmax.f32 %v113, %v242
  %v286 = vmax.f32 %v114, %v243
  %v287 = vmax.f32 %v115, %v244
  %v288 = vmax.f32 %v116, %v245
  %v289 = vmax.f32 %v117, %v246
  %v290 = vmax.f32 %v118, %v247
  %v291 = vmax.f32 %v119, %v248
  %v292 = vmax.f32 %v120, %v249
  %v293 = vmax.f32 %v121, %v250
  %v294 = vmax.f32 %v122, %v251
  %v295 = vmax.f32 %v123, %v252
  %v296 = vmax.f32 %v124, %v253
  %v297 = vmax.f32 %v125, %v254
  %v298 = vmax.f32 %v126, %v255
  %v299 = vmax.f32 %v127, %v256
  %v300 = vmax.f32 %v128, %v257
  %v301 = vmax.f32 %v129, %v258
  %v302 = vmax.f32 %v130, %v259
  %v303 = vmax.f32 %v131, %v260
  %v304 = vmax.f32 %v132, %v261
  %v305 = vmax.f32 %v133, %v262
  %v306 = vmax.f32 %v134, %v263
  %v307 = vmax.f32 %v135, %v264
  %v308 = vmax.f32 %v136, %v265
  %v309 = vmax.f32 %v137, %v266
  %v310 = vmax.f32 %v138, %v267
  %v311 = vmax.f32 %v139, %v268
  %v312 = vmax.f32 %v140, %v269
  %v313 = vmax.f32 %v141, %v270
  %v314 = vmax.f32 %v142, %v271
  %v315 = vmax.f32 %v143, %v272
  %v316 = vmax.f32 %v144, %v273
  %v317 = vmax.f32 %v145, %v274
  %v318 = vpack.c.bf16 %v276, %v275
  %v319 = vpack.c.bf16 %v278, %v277
  %v320 = vpack.c.bf16 %v280, %v279
  %v321 = vpack.c.bf16 %v282, %v281
  %v322 = vpack.c.bf16 %v284, %v283
  %v323 = vpack.c.bf16 %v286, %v285
  %v324 = vpack.c.bf16 %v288, %v287
  %v325 = vpack.c.bf16 %v290, %v289
  %v326 = vpack.c.bf16 %v292, %v291
  %v327 = vpack.c.bf16 %v294, %v293
  %v328 = vpack.c.bf16 %v296, %v295
  %v329 = vpack.c.bf16 %v298, %v297
  %v330 = vpack.c.bf16 %v300, %v299
  %v331 = vpack.c.bf16 %v302, %v301
  %v332 = vpack.c.bf16 %v304, %v303
  %v333 = vpack.c.bf16 %v306, %v305
  %v334 = vpack.c.bf16 %v308, %v307
  %v335 = vpack.c.bf16 %v310, %v309
  %v336 = vpack.c.bf16 %v312, %v311
  %v337 = vpack.c.bf16 %v314, %v313
  %v338 = vpack.c.bf16 %v316, %v315
  %v339 = vpack.c.bf16 %v317, %v317
  %v362 = vunpack.c.l.b16 %v318
  %v363 = vunpack.c.h.b16 %v318
  %v364 = vunpack.c.l.b16 %v319
  %v365 = vunpack.c.h.b16 %v319
  %v366 = vunpack.c.l.b16 %v320
  %v367 = vunpack.c.h.b16 %v320
  %v368 = vunpack.c.l.b16 %v321
  %v369 = vunpack.c.h.b16 %v321
  %v370 = vunpack.c.l.b16 %v322
  %v371 = vunpack.c.h.b16 %v322
  %v372 = vunpack.c.l.b16 %v323
  %v373 = vunpack.c.h.b16 %v323
  %v374 = vunpack.c.l.b16 %v324
  %v375 = vunpack.c.h.b16 %v324
  %v376 = vunpack.c.l.b16 %v325
  %v377 = vunpack.c.h.b16 %v325
  %v378 = vunpack.c.l.b16 %v326
  %v379 = vunpack.c.h.b16 %v326
  %v380 = vunpack.c.l.b16 %v327
  %v381 = vunpack.c.h.b16 %v327
  %v382 = vunpack.c.l.b16 %v328
  %v383 = vunpack.c.h.b16 %v328
  %v384 = vunpack.c.l.b16 %v329
  %v385 = vunpack.c.h.b16 %v329
  %v386 = vunpack.c.l.b16 %v330
  %v387 = vunpack.c.h.b16 %v330
  %v388 = vunpack.c.l.b16 %v331
  %v389 = vunpack.c.h.b16 %v331
  %v390 = vunpack.c.l.b16 %v332
  %v391 = vunpack.c.h.b16 %v332
  %v392 = vunpack.c.l.b16 %v333
  %v393 = vunpack.c.h.b16 %v333
  %v394 = vunpack.c.l.b16 %v334
  %v395 = vunpack.c.h.b16 %v334
  %v396 = vunpack.c.l.b16 %v335
  %v397 = vunpack.c.h.b16 %v335
  %v398 = vunpack.c.l.b16 %v336
  %v399 = vunpack.c.h.b16 %v336
  %v400 = vunpack.c.l.b16 %v337
  %v401 = vunpack.c.h.b16 %v337
  %v402 = vunpack.c.l.b16 %v338
  %v403 = vunpack.c.h.b16 %v338
  %v404 = vunpack.c.l.b16 %v339
  %v405 = vpack.c.b16 %v362, %v362
  %v406 = vpack.c.b16 %v363, %v363
  %v407 = vpack.c.b16 %v364, %v364
  %v408 = vpack.c.b16 %v365, %v365
  %v409 = vpack.c.b16 %v366, %v366
  %v410 = vpack.c.b16 %v367, %v367
  %v411 = vpack.c.b16 %v368, %v368
  %v412 = vpack.c.b16 %v369, %v369
  %v413 = vpack.c.b16 %v370, %v370
  %v414 = vpack.c.b16 %v371, %v371
  %v415 = vpack.c.b16 %v372, %v372
  %v416 = vpack.c.b16 %v373, %v373
  %v417 = vpack.c.b16 %v374, %v374
  %v418 = vpack.c.b16 %v375, %v375
  %v419 = vpack.c.b16 %v376, %v376
  %v420 = vpack.c.b16 %v377, %v377
  %v421 = vpack.c.b16 %v378, %v378
  %v422 = vpack.c.b16 %v379, %v379
  %v423 = vpack.c.b16 %v380, %v380
  %v424 = vpack.c.b16 %v381, %v381
  %v425 = vpack.c.b16 %v382, %v382
  %v426 = vpack.c.b16 %v383, %v383
  %v427 = vpack.c.b16 %v384, %v384
  %v428 = vpack.c.b16 %v385, %v385
  %v429 = vpack.c.b16 %v386, %v386
  %v430 = vpack.c.b16 %v387, %v387
  %v431 = vpack.c.b16 %v388, %v388
  %v432 = vpack.c.b16 %v389, %v389
  %v433 = vpack.c.b16 %v390, %v390
  %v434 = vpack.c.b16 %v391, %v391
  %v435 = vpack.c.b16 %v392, %v392
  %v436 = vpack.c.b16 %v393, %v393
  %v437 = vpack.c.b16 %v394, %v394
  %v438 = vpack.c.b16 %v395, %v395
  %v439 = vpack.c.b16 %v396, %v396
  %v440 = vpack.c.b16 %v397, %v397
  %v441 = vpack.c.b16 %v398, %v398
  %v442 = vpack.c.b16 %v399, %v399
  %v443 = vpack.c.b16 %v400, %v400
  %v444 = vpack.c.b16 %v401, %v401
  %v445 = vpack.c.b16 %v402, %v402
  %v446 = vpack.c.b16 %v403, %v403
  %v447 = vpack.c.b16 %v404, %v404
  %491 = vst [vmem:[%s4] sm:$0xf] %v405
  %492 = vst [vmem:[%s4 + $0x4] sm:$0xf] %v406
  %493 = vst [vmem:[%s4 + $0x8] sm:$0xf] %v407
  %494 = vst [vmem:[%s4 + $0xc] sm:$0xf] %v408
  %495 = vst [vmem:[%s4 + $0x10] sm:$0xf] %v409
  %496 = vst [vmem:[%s4 + $0x14] sm:$0xf] %v410
  %497 = vst [vmem:[%s4 + $0x18] sm:$0xf] %v411
  %498 = vst [vmem:[%s4 + $0x1c] sm:$0xf] %v412
  %499 = vst [vmem:[%s4 + $0x20] sm:$0xf] %v413
  %500 = vst [vmem:[%s4 + $0x24] sm:$0xf] %v414
  %501 = vst [vmem:[%s4 + $0x28] sm:$0xf] %v415
  %502 = vst [vmem:[%s4 + $0x2c] sm:$0xf] %v416
  %503 = vst [vmem:[%s4 + $0x30] sm:$0xf] %v417
  %504 = vst [vmem:[%s4 + $0x34] sm:$0xf] %v418
  %505 = vst [vmem:[%s4 + $0x38] sm:$0xf] %v419
  %506 = vst [vmem:[%s4 + $0x3c] sm:$0xf] %v420
  %507 = vst [vmem:[%s4 + $0x40] sm:$0xf] %v421
  %508 = vst [vmem:[%s4 + $0x44] sm:$0xf] %v422
  %509 = vst [vmem:[%s4 + $0x48] sm:$0xf] %v423
  %510 = vst [vmem:[%s4 + $0x4c] sm:$0xf] %v424
  %511 = vst [vmem:[%s4 + $0x50] sm:$0xf] %v425
  %512 = vst [vmem:[%s4 + $0x54] sm:$0xf] %v426
  %513 = vst [vmem:[%s4 + $0x58] sm:$0xf] %v427
  %514 = vst [vmem:[%s4 + $0x5c] sm:$0xf] %v428
  %515 = vst [vmem:[%s4 + $0x60] sm:$0xf] %v429
  %516 = vst [vmem:[%s4 + $0x64] sm:$0xf] %v430
  %517 = vst [vmem:[%s4 + $0x68] sm:$0xf] %v431
  %518 = vst [vmem:[%s4 + $0x6c] sm:$0xf] %v432
  %519 = vst [vmem:[%s4 + $0x70] sm:$0xf] %v433
  %520 = vst [vmem:[%s4 + $0x74] sm:$0xf] %v434
  %521 = vst [vmem:[%s4 + $0x78] sm:$0xf] %v435
  %522 = vst [vmem:[%s4 + $0x7c] sm:$0xf] %v436
  %523 = vst [vmem:[%s4 + $0x80] sm:$0xf] %v437
  %524 = vst [vmem:[%s4 + $0x84] sm:$0xf] %v438
  %525 = vst [vmem:[%s4 + $0x88] sm:$0xf] %v439
  %526 = vst [vmem:[%s4 + $0x8c] sm:$0xf] %v440
  %527 = vst [vmem:[%s4 + $0x90] sm:$0xf] %v441
  %528 = vst [vmem:[%s4 + $0x94] sm:$0xf] %v442
  %529 = vst [vmem:[%s4 + $0x98] sm:$0xf] %v443
  %530 = vst [vmem:[%s4 + $0x9c] sm:$0xf] %v444
  %531 = vst [vmem:[%s4 + $0xa0] sm:$0xf] %v445
  %532 = vst [vmem:[%s4 + $0xa4] sm:$0xf] %v446
  %533 = vst [vmem:[%s4 + $0xa8] sm:$0x1] %v447
  // Predicated region
  $region18: #{model_forward.7} parent=0 // pred_check
    _
  $region19: #{model_forward.7} parent=0 // pred_check_branch
    %535 = sbr.rel (0) target = $region21
  $region20: #{model_forward.7} parent=0 // pred_region
    _
  $region21: #{model_forward.7} parent=0 // pred_fallthru
    _
  // Predicated region
  $region22: #{model_forward.7} parent=0 // pred_check
    _
  $region23: #{model_forward.7} parent=0 // pred_check_branch
    %537 = sbr.rel (0) target = $region25
  $region24: #{model_forward.7} parent=0 // pred_region
    _
  $region25: #{model_forward.7} parent=0 // pred_fallthru
    _

// kernel: model_forward.6
$region0: #{model_forward.6}
  #allocation0 [shape = 'u32[]', space=smem, size = 0x4, offset = 0x4, fixed_abs, tag = 'smem constant byte address 0x4 - core index']
  #allocation1 [shape = 'u32[144,128]{1,0:T(1,128)}', space=vmem, size = 0x12000, scoped, tag = 'internal scratch']
  %s0 = inlined_call_operand.vmem [shape: bf16[1458,8], index: 0, kind: input, shape index: {}]
  %s1 = inlined_call_operand.vmem [shape: bf16[8,128], index: 1, kind: input, shape index: {}]
  %s2 = inlined_call_operand.vmem [shape: f32[1,128], index: 2, kind: input, shape index: {}]
  %s3 = inlined_call_operand.vmem [shape: f32[1,128], index: 3, kind: input, shape index: {}]
  %s4 = inlined_call_operand.vmem [shape: f32[1,128], index: 4, kind: input, shape index: {}]
  %s5 = inlined_call_operand.vmem [shape: f32[1458,128], index: 5, kind: output, shape index: {}]
  %s6 = sld [smem:[#allocation0]]
  $region30: #{model_forward.6} parent=0
    _
  %s8 = ssub.s32 1, %s6
  %s9 = scalar_select 0, %s8, %s6
  // Predicated region
  $region2: #{model_forward.6} parent=0 // pred_check
    _
  $region3: #{model_forward.6} parent=0 // pred_check_branch
    %11 = sbr.rel (0) target = $region5
  $region4: #{model_forward.6} parent=0 // pred_region
    _
  $region5: #{model_forward.6} parent=0 // pred_fallthru
    _
  // Predicated region
  $region6: #{model_forward.6} parent=0 // pred_check
    _
  $region7: #{model_forward.6} parent=0 // pred_check_branch
    %13 = sbr.rel (0) target = $region9
  $region8: #{model_forward.6} parent=0 // pred_region
    _
  $region9: #{model_forward.6} parent=0 // pred_fallthru
    _
  // Predicated region
  $region10: #{model_forward.6} parent=0 // pred_check
    _
  $region11: #{model_forward.6} parent=0 // pred_check_branch
    %15 = sbr.rel (0) target = $region13
  $region12: #{model_forward.6} parent=0 // pred_region
    _
  $region13: #{model_forward.6} parent=0 // pred_fallthru
    _
  // Predicated region
  $region14: #{model_forward.6} parent=0 // pred_check
    _
  $region15: #{model_forward.6} parent=0 // pred_check_branch
    %17 = sbr.rel (0) target = $region17
  $region16: #{model_forward.6} parent=0 // pred_region
    _
  $region17: #{model_forward.6} parent=0 // pred_fallthru
    _
  // Predicated region
  $region18: #{model_forward.6} parent=0 // pred_check
    _
  $region19: #{model_forward.6} parent=0 // pred_check_branch
    %19 = sbr.rel (0) target = $region21
  $region20: #{model_forward.6} parent=0 // pred_region
    _
  $region21: #{model_forward.6} parent=0 // pred_fallthru
    _
  %v21 = vld [vmem:[%s0] sm:$0xf]
  %v22 = vld [vmem:[%s0 + $0x4] sm:$0xf]
  %v23 = vld [vmem:[%s0 + $0x8] sm:$0xf]
  %v24 = vld [vmem:[%s0 + $0xc] sm:$0xf]
  %v25 = vld [vmem:[%s0 + $0x10] sm:$0xf]
  %v26 = vld [vmem:[%s0 + $0x14] sm:$0xf]
  %v27 = vld [vmem:[%s0 + $0x18] sm:$0xf]
  %v28 = vld [vmem:[%s0 + $0x1c] sm:$0xf]
  %v29 = vld [vmem:[%s0 + $0x20] sm:$0xf]
  %v30 = vld [vmem:[%s0 + $0x24] sm:$0xf]
  %v31 = vld [vmem:[%s0 + $0x28] sm:$0xf]
  %v32 = vld [vmem:[%s0 + $0x2c] sm:$0xf]
  %v33 = vld [vmem:[%s0 + $0x30] sm:$0xf]
  %v34 = vld [vmem:[%s0 + $0x34] sm:$0xf]
  %v35 = vld [vmem:[%s0 + $0x38] sm:$0xf]
  %v36 = vld [vmem:[%s0 + $0x3c] sm:$0xf]
  %v37 = vld [vmem:[%s0 + $0x40] sm:$0xf]
  %v38 = vld [vmem:[%s0 + $0x44] sm:$0xf]
  %v39 = vld [vmem:[%s0 + $0x48] sm:$0xf]
  %v40 = vld [vmem:[%s0 + $0x4c] sm:$0xf]
  %v41 = vld [vmem:[%s0 + $0x50] sm:$0xf]
  %v42 = vld [vmem:[%s0 + $0x54] sm:$0xf]
  %v43 = vld [vmem:[%s0 + $0x58] sm:$0xf]
  %v44 = vld [vmem:[%s0 + $0x5c] sm:$0xf]
  %v45 = vld [vmem:[%s0 + $0x60] sm:$0xf]
  %v46 = vld [vmem:[%s0 + $0x64] sm:$0xf]
  %v47 = vld [vmem:[%s0 + $0x68] sm:$0xf]
  %v48 = vld [vmem:[%s0 + $0x6c] sm:$0xf]
  %v49 = vld [vmem:[%s0 + $0x70] sm:$0xf]
  %v50 = vld [vmem:[%s0 + $0x74] sm:$0xf]
  %v51 = vld [vmem:[%s0 + $0x78] sm:$0xf]
  %v52 = vld [vmem:[%s0 + $0x7c] sm:$0xf]
  %v53 = vld [vmem:[%s0 + $0x80] sm:$0xf]
  %v54 = vld [vmem:[%s0 + $0x84] sm:$0xf]
  %v55 = vld [vmem:[%s0 + $0x88] sm:$0xf]
  %v56 = vld [vmem:[%s0 + $0x8c] sm:$0xf]
  %v57 = vld [vmem:[%s0 + $0x90] sm:$0xf]
  %v58 = vld [vmem:[%s0 + $0x94] sm:$0xf]
  %v59 = vld [vmem:[%s0 + $0x98] sm:$0xf]
  %v60 = vld [vmem:[%s0 + $0x9c] sm:$0xf]
  %v61 = vld [vmem:[%s0 + $0xa0] sm:$0xf]
  %v62 = vld [vmem:[%s0 + $0xa4] sm:$0xf]
  %v63 = vld [vmem:[%s0 + $0xa8] sm:$0xf]
  %v64 = vld [vmem:[%s0 + $0xac] sm:$0xf]
  %v65 = vld [vmem:[%s0 + $0xb0] sm:$0xf]
  %v66 = vld [vmem:[%s0 + $0xb4] sm:$0xf]
  %v67 = vld [vmem:[%s0 + $0xb8] sm:$0xf]
  %v68 = vld [vmem:[%s0 + $0xbc] sm:$0xf]
  %v69 = vld [vmem:[%s0 + $0xc0] sm:$0xf]
  %v70 = vld [vmem:[%s0 + $0xc4] sm:$0xf]
  %v71 = vld [vmem:[%s0 + $0xc8] sm:$0xf]
  %v72 = vld [vmem:[%s0 + $0xcc] sm:$0xf]
  %v73 = vld [vmem:[%s0 + $0xd0] sm:$0xf]
  %v74 = vld [vmem:[%s0 + $0xd4] sm:$0xf]
  %v75 = vld [vmem:[%s0 + $0xd8] sm:$0xf]
  %v76 = vld [vmem:[%s0 + $0xdc] sm:$0xf]
  %v77 = vld [vmem:[%s0 + $0xe0] sm:$0xf]
  %v78 = vld [vmem:[%s0 + $0xe4] sm:$0xf]
  %v79 = vld [vmem:[%s0 + $0xe8] sm:$0xf]
  %v80 = vld [vmem:[%s0 + $0xec] sm:$0xf]
  %v81 = vld [vmem:[%s0 + $0xf0] sm:$0xf]
  %v82 = vld [vmem:[%s0 + $0xf4] sm:$0xf]
  %v83 = vld [vmem:[%s0 + $0xf8] sm:$0xf]
  %v84 = vld [vmem:[%s0 + $0xfc] sm:$0xf]
  %v85 = vld [vmem:[%s0 + $0x100] sm:$0xf]
  %v86 = vld [vmem:[%s0 + $0x104] sm:$0xf]
  %v87 = vld [vmem:[%s0 + $0x108] sm:$0xf]
  %v88 = vld [vmem:[%s0 + $0x10c] sm:$0xf]
  %v89 = vld [vmem:[%s0 + $0x110] sm:$0xf]
  %v90 = vld [vmem:[%s0 + $0x114] sm:$0xf]
  %v91 = vld [vmem:[%s0 + $0x118] sm:$0xf]
  %v92 = vld [vmem:[%s0 + $0x11c] sm:$0xf]
  %v93 = vld [vmem:[%s0 + $0x120] sm:$0xf]
  %v94 = vld [vmem:[%s0 + $0x124] sm:$0xf]
  %v95 = vld [vmem:[%s0 + $0x128] sm:$0xf]
  %v96 = vld [vmem:[%s0 + $0x12c] sm:$0xf]
  %v97 = vld [vmem:[%s0 + $0x130] sm:$0xf]
  %v98 = vld [vmem:[%s0 + $0x134] sm:$0xf]
  %v99 = vld [vmem:[%s0 + $0x138] sm:$0xf]
  %v100 = vld [vmem:[%s0 + $0x13c] sm:$0xf]
  %v101 = vld [vmem:[%s0 + $0x140] sm:$0xf]
  %v102 = vld [vmem:[%s0 + $0x144] sm:$0xf]
  %v103 = vld [vmem:[%s0 + $0x148] sm:$0xf]
  %v104 = vld [vmem:[%s0 + $0x14c] sm:$0xf]
  %v105 = vld [vmem:[%s0 + $0x150] sm:$0xf]
  %v106 = vld [vmem:[%s0 + $0x154] sm:$0xf]
  %v107 = vld [vmem:[%s0 + $0x158] sm:$0xf]
  %v108 = vld [vmem:[%s0 + $0x15c] sm:$0xf]
  %v109 = vld [vmem:[%s0 + $0x160] sm:$0xf]
  %v110 = vld [vmem:[%s0 + $0x164] sm:$0xf]
  %v111 = vld [vmem:[%s0 + $0x168] sm:$0xf]
  %v112 = vld [vmem:[%s0 + $0x16c] sm:$0xf]
  %v113 = vld [vmem:[%s0 + $0x170] sm:$0xf]
  %v114 = vld [vmem:[%s0 + $0x174] sm:$0xf]
  %v115 = vld [vmem:[%s0 + $0x178] sm:$0xf]
  %v116 = vld [vmem:[%s0 + $0x17c] sm:$0xf]
  %v117 = vld [vmem:[%s0 + $0x180] sm:$0xf]
  %v118 = vld [vmem:[%s0 + $0x184] sm:$0xf]
  %v119 = vld [vmem:[%s0 + $0x188] sm:$0xf]
  %v120 = vld [vmem:[%s0 + $0x18c] sm:$0xf]
  %v121 = vld [vmem:[%s0 + $0x190] sm:$0xf]
  %v122 = vld [vmem:[%s0 + $0x194] sm:$0xf]
  %v123 = vld [vmem:[%s0 + $0x198] sm:$0xf]
  %v124 = vld [vmem:[%s0 + $0x19c] sm:$0xf]
  %v125 = vld [vmem:[%s0 + $0x1a0] sm:$0xf]
  %v126 = vld [vmem:[%s0 + $0x1a4] sm:$0xf]
  %v127 = vld [vmem:[%s0 + $0x1a8] sm:$0xf]
  %v128 = vld [vmem:[%s0 + $0x1ac] sm:$0xf]
  %v129 = vld [vmem:[%s0 + $0x1b0] sm:$0xf]
  %v130 = vld [vmem:[%s0 + $0x1b4] sm:$0xf]
  %v131 = vld [vmem:[%s0 + $0x1b8] sm:$0xf]
  %v132 = vld [vmem:[%s0 + $0x1bc] sm:$0xf]
  %v133 = vld [vmem:[%s0 + $0x1c0] sm:$0xf]
  %v134 = vld [vmem:[%s0 + $0x1c4] sm:$0xf]
  %v135 = vld [vmem:[%s0 + $0x1c8] sm:$0xf]
  %v136 = vld [vmem:[%s0 + $0x1cc] sm:$0xf]
  %v137 = vld [vmem:[%s0 + $0x1d0] sm:$0xf]
  %v138 = vld [vmem:[%s0 + $0x1d4] sm:$0xf]
  %v139 = vld [vmem:[%s0 + $0x1d8] sm:$0xf]
  %v140 = vld [vmem:[%s0 + $0x1dc] sm:$0xf]
  %v141 = vld [vmem:[%s0 + $0x1e0] sm:$0xf]
  %v142 = vld [vmem:[%s0 + $0x1e4] sm:$0xf]
  %v143 = vld [vmem:[%s0 + $0x1e8] sm:$0xf]
  %v144 = vld [vmem:[%s0 + $0x1ec] sm:$0xf]
  %v145 = vld [vmem:[%s0 + $0x1f0] sm:$0xf]
  %v146 = vld [vmem:[%s0 + $0x1f4] sm:$0xf]
  %v147 = vld [vmem:[%s0 + $0x1f8] sm:$0xf]
  %v148 = vld [vmem:[%s0 + $0x1fc] sm:$0xf]
  %v149 = vld [vmem:[%s0 + $0x200] sm:$0xf]
  %v150 = vld [vmem:[%s0 + $0x204] sm:$0xf]
  %v151 = vld [vmem:[%s0 + $0x208] sm:$0xf]
  %v152 = vld [vmem:[%s0 + $0x20c] sm:$0xf]
  %v153 = vld [vmem:[%s0 + $0x210] sm:$0xf]
  %v154 = vld [vmem:[%s0 + $0x214] sm:$0xf]
  %v155 = vld [vmem:[%s0 + $0x218] sm:$0xf]
  %v156 = vld [vmem:[%s0 + $0x21c] sm:$0xf]
  %v157 = vld [vmem:[%s0 + $0x220] sm:$0xf]
  %v158 = vld [vmem:[%s0 + $0x224] sm:$0xf]
  %v159 = vld [vmem:[%s0 + $0x228] sm:$0xf]
  %v160 = vld [vmem:[%s0 + $0x22c] sm:$0xf]
  %v161 = vld [vmem:[%s0 + $0x230] sm:$0xf]
  %v162 = vld [vmem:[%s0 + $0x234] sm:$0xf]
  %v163 = vld [vmem:[%s0 + $0x238] sm:$0xf]
  %v164 = vld [vmem:[%s0 + $0x23c] sm:$0xf]
  %v165 = vld [vmem:[%s0 + $0x240] sm:$0xf]
  %v166 = vld [vmem:[%s0 + $0x244] sm:$0xf]
  %v167 = vld [vmem:[%s0 + $0x248] sm:$0xf]
  %v168 = vld [vmem:[%s0 + $0x24c] sm:$0xf]
  %v169 = vld [vmem:[%s0 + $0x250] sm:$0xf]
  %v170 = vld [vmem:[%s0 + $0x254] sm:$0xf]
  %v171 = vld [vmem:[%s0 + $0x258] sm:$0xf]
  %v172 = vld [vmem:[%s0 + $0x25c] sm:$0xf]
  %v173 = vld [vmem:[%s0 + $0x260] sm:$0xf]
  %v174 = vld [vmem:[%s0 + $0x264] sm:$0xf]
  %v175 = vld [vmem:[%s0 + $0x268] sm:$0xf]
  %v176 = vld [vmem:[%s0 + $0x26c] sm:$0xf]
  %v177 = vld [vmem:[%s0 + $0x270] sm:$0xf]
  %v178 = vld [vmem:[%s0 + $0x274] sm:$0xf]
  %v179 = vld [vmem:[%s0 + $0x278] sm:$0xf]
  %v180 = vld [vmem:[%s0 + $0x27c] sm:$0xf]
  %v181 = vld [vmem:[%s0 + $0x280] sm:$0xf]
  %v182 = vld [vmem:[%s0 + $0x284] sm:$0xf]
  %v183 = vld [vmem:[%s0 + $0x288] sm:$0xf]
  %v184 = vld [vmem:[%s0 + $0x28c] sm:$0xf]
  %v185 = vld [vmem:[%s0 + $0x290] sm:$0xf]
  %v186 = vld [vmem:[%s0 + $0x294] sm:$0xf]
  %v187 = vld [vmem:[%s0 + $0x298] sm:$0xf]
  %v188 = vld [vmem:[%s0 + $0x29c] sm:$0xf]
  %v189 = vld [vmem:[%s0 + $0x2a0] sm:$0xf]
  %v190 = vld [vmem:[%s0 + $0x2a4] sm:$0xf]
  %v191 = vld [vmem:[%s0 + $0x2a8] sm:$0xf]
  %v192 = vld [vmem:[%s0 + $0x2ac] sm:$0xf]
  %v193 = vld [vmem:[%s0 + $0x2b0] sm:$0xf]
  %v194 = vld [vmem:[%s0 + $0x2b4] sm:$0xf]
  %v195 = vld [vmem:[%s0 + $0x2b8] sm:$0xf]
  %v196 = vld [vmem:[%s0 + $0x2bc] sm:$0xf]
  %v197 = vld [vmem:[%s0 + $0x2c0] sm:$0xf]
  %v198 = vld [vmem:[%s0 + $0x2c4] sm:$0xf]
  %v199 = vld [vmem:[%s0 + $0x2c8] sm:$0xf]
  %v200 = vld [vmem:[%s0 + $0x2cc] sm:$0xf]
  %v201 = vld [vmem:[%s0 + $0x2d0] sm:$0xf]
  %v202 = vld [vmem:[%s0 + $0x2d4] sm:$0xf]
  %v203 = vld [vmem:[%s0 + $0x2d8] sm:$0x1]
  %v204 = vld [vmem:[%s1] sm:$0xf]
  %v205 = vld [vmem:[%s2] sm:$0x1]
  %v207 = vlaneseq
  %v208 = vshrl.u32 %v207, 7
  %v209 = vsub.s32 0, %v208
  %v210 = vrot.slane %v205, %v209
  %v395 = vunpack.c.l.b16 %v21
  %v396 = vunpack.c.l.b16 %v22
  %v397 = vunpack.c.l.b16 %v23
  %v398 = vunpack.c.l.b16 %v24
  %v399 = vunpack.c.l.b16 %v25
  %v400 = vunpack.c.l.b16 %v26
  %v401 = vunpack.c.l.b16 %v27
  %v402 = vunpack.c.l.b16 %v28
  %v403 = vunpack.c.l.b16 %v29
  %v404 = vunpack.c.l.b16 %v30
  %v405 = vunpack.c.l.b16 %v31
  %v406 = vunpack.c.l.b16 %v32
  %v407 = vunpack.c.l.b16 %v33
  %v408 = vunpack.c.l.b16 %v34
  %v409 = vunpack.c.l.b16 %v35
  %v410 = vunpack.c.l.b16 %v36
  %v411 = vunpack.c.l.b16 %v37
  %v412 = vunpack.c.l.b16 %v38
  %v413 = vunpack.c.l.b16 %v39
  %v414 = vunpack.c.l.b16 %v40
  %v415 = vunpack.c.l.b16 %v41
  %v416 = vunpack.c.l.b16 %v42
  %v417 = vunpack.c.l.b16 %v43
  %v418 = vunpack.c.l.b16 %v44
  %v419 = vunpack.c.l.b16 %v45
  %v420 = vunpack.c.l.b16 %v46
  %v421 = vunpack.c.l.b16 %v47
  %v422 = vunpack.c.l.b16 %v48
  %v423 = vunpack.c.l.b16 %v49
  %v424 = vunpack.c.l.b16 %v50
  %v425 = vunpack.c.l.b16 %v51
  %v426 = vunpack.c.l.b16 %v52
  %v427 = vunpack.c.l.b16 %v53
  %v428 = vunpack.c.l.b16 %v54
  %v429 = vunpack.c.l.b16 %v55
  %v430 = vunpack.c.l.b16 %v56
  %v431 = vunpack.c.l.b16 %v57
  %v432 = vunpack.c.l.b16 %v58
  %v433 = vunpack.c.l.b16 %v59
  %v434 = vunpack.c.l.b16 %v60
  %v435 = vunpack.c.l.b16 %v61
  %v436 = vunpack.c.l.b16 %v62
  %v437 = vunpack.c.l.b16 %v63
  %v438 = vunpack.c.l.b16 %v64
  %v439 = vunpack.c.l.b16 %v65
  %v440 = vunpack.c.l.b16 %v66
  %v441 = vunpack.c.l.b16 %v67
  %v442 = vunpack.c.l.b16 %v68
  %v443 = vunpack.c.l.b16 %v69
  %v444 = vunpack.c.l.b16 %v70
  %v445 = vunpack.c.l.b16 %v71
  %v446 = vunpack.c.l.b16 %v72
  %v447 = vunpack.c.l.b16 %v73
  %v448 = vunpack.c.l.b16 %v74
  %v449 = vunpack.c.l.b16 %v75
  %v450 = vunpack.c.l.b16 %v76
  %v451 = vunpack.c.l.b16 %v77
  %v452 = vunpack.c.l.b16 %v78
  %v453 = vunpack.c.l.b16 %v79
  %v454 = vunpack.c.l.b16 %v80
  %v455 = vunpack.c.l.b16 %v81
  %v456 = vunpack.c.l.b16 %v82
  %v457 = vunpack.c.l.b16 %v83
  %v458 = vunpack.c.l.b16 %v84
  %v459 = vunpack.c.l.b16 %v85
  %v460 = vunpack.c.l.b16 %v86
  %v461 = vunpack.c.l.b16 %v87
  %v462 = vunpack.c.l.b16 %v88
  %v463 = vunpack.c.l.b16 %v89
  %v464 = vunpack.c.l.b16 %v90
  %v465 = vunpack.c.l.b16 %v91
  %v466 = vunpack.c.l.b16 %v92
  %v467 = vunpack.c.l.b16 %v93
  %v468 = vunpack.c.l.b16 %v94
  %v469 = vunpack.c.l.b16 %v95
  %v470 = vunpack.c.l.b16 %v96
  %v471 = vunpack.c.l.b16 %v97
  %v472 = vunpack.c.l.b16 %v98
  %v473 = vunpack.c.l.b16 %v99
  %v474 = vunpack.c.l.b16 %v100
  %v475 = vunpack.c.l.b16 %v101
  %v476 = vunpack.c.l.b16 %v102
  %v477 = vunpack.c.l.b16 %v103
  %v478 = vunpack.c.l.b16 %v104
  %v479 = vunpack.c.l.b16 %v105
  %v480 = vunpack.c.l.b16 %v106
  %v481 = vunpack.c.l.b16 %v107
  %v482 = vunpack.c.l.b16 %v108
  %v483 = vunpack.c.l.b16 %v109
  %v484 = vunpack.c.l.b16 %v110
  %v485 = vunpack.c.l.b16 %v111
  %v486 = vunpack.c.l.b16 %v112
  %v487 = vunpack.c.l.b16 %v113
  %v488 = vunpack.c.l.b16 %v114
  %v489 = vunpack.c.l.b16 %v115
  %v490 = vunpack.c.l.b16 %v116
  %v491 = vunpack.c.l.b16 %v117
  %v492 = vunpack.c.l.b16 %v118
  %v493 = vunpack.c.l.b16 %v119
  %v494 = vunpack.c.l.b16 %v120
  %v495 = vunpack.c.l.b16 %v121
  %v496 = vunpack.c.l.b16 %v122
  %v497 = vunpack.c.l.b16 %v123
  %v498 = vunpack.c.l.b16 %v124
  %v499 = vunpack.c.l.b16 %v125
  %v500 = vunpack.c.l.b16 %v126
  %v501 = vunpack.c.l.b16 %v127
  %v502 = vunpack.c.l.b16 %v128
  %v503 = vunpack.c.l.b16 %v129
  %v504 = vunpack.c.l.b16 %v130
  %v505 = vunpack.c.l.b16 %v131
  %v506 = vunpack.c.l.b16 %v132
  %v507 = vunpack.c.l.b16 %v133
  %v508 = vunpack.c.l.b16 %v134
  %v509 = vunpack.c.l.b16 %v135
  %v510 = vunpack.c.l.b16 %v136
  %v511 = vunpack.c.l.b16 %v137
  %v512 = vunpack.c.l.b16 %v138
  %v513 = vunpack.c.l.b16 %v139
  %v514 = vunpack.c.l.b16 %v140
  %v515 = vunpack.c.l.b16 %v141
  %v516 = vunpack.c.l.b16 %v142
  %v517 = vunpack.c.l.b16 %v143
  %v518 = vunpack.c.l.b16 %v144
  %v519 = vunpack.c.l.b16 %v145
  %v520 = vunpack.c.l.b16 %v146
  %v521 = vunpack.c.l.b16 %v147
  %v522 = vunpack.c.l.b16 %v148
  %v523 = vunpack.c.l.b16 %v149
  %v524 = vunpack.c.l.b16 %v150
  %v525 = vunpack.c.l.b16 %v151
  %v526 = vunpack.c.l.b16 %v152
  %v527 = vunpack.c.l.b16 %v153
  %v528 = vunpack.c.l.b16 %v154
  %v529 = vunpack.c.l.b16 %v155
  %v530 = vunpack.c.l.b16 %v156
  %v531 = vunpack.c.l.b16 %v157
  %v532 = vunpack.c.l.b16 %v158
  %v533 = vunpack.c.l.b16 %v159
  %v534 = vunpack.c.l.b16 %v160
  %v535 = vunpack.c.l.b16 %v161
  %v536 = vunpack.c.l.b16 %v162
  %v537 = vunpack.c.l.b16 %v163
  %v538 = vunpack.c.l.b16 %v164
  %v539 = vunpack.c.l.b16 %v165
  %v540 = vunpack.c.l.b16 %v166
  %v541 = vunpack.c.l.b16 %v167
  %v542 = vunpack.c.l.b16 %v168
  %v543 = vunpack.c.l.b16 %v169
  %v544 = vunpack.c.l.b16 %v170
  %v545 = vunpack.c.l.b16 %v171
  %v546 = vunpack.c.l.b16 %v172
  %v547 = vunpack.c.l.b16 %v173
  %v548 = vunpack.c.l.b16 %v174
  %v549 = vunpack.c.l.b16 %v175
  %v550 = vunpack.c.l.b16 %v176
  %v551 = vunpack.c.l.b16 %v177
  %v552 = vunpack.c.l.b16 %v178
  %v553 = vunpack.c.l.b16 %v179
  %v554 = vunpack.c.l.b16 %v180
  %v555 = vunpack.c.l.b16 %v181
  %v556 = vunpack.c.l.b16 %v182
  %v557 = vunpack.c.l.b16 %v183
  %v558 = vunpack.c.l.b16 %v184
  %v559 = vunpack.c.l.b16 %v185
  %v560 = vunpack.c.l.b16 %v186
  %v561 = vunpack.c.l.b16 %v187
  %v562 = vunpack.c.l.b16 %v188
  %v563 = vunpack.c.l.b16 %v189
  %v564 = vunpack.c.l.b16 %v190
  %v565 = vunpack.c.l.b16 %v191
  %v566 = vunpack.c.l.b16 %v192
  %v567 = vunpack.c.l.b16 %v193
  %v568 = vunpack.c.l.b16 %v194
  %v569 = vunpack.c.l.b16 %v195
  %v570 = vunpack.c.l.b16 %v196
  %v571 = vunpack.c.l.b16 %v197
  %v572 = vunpack.c.l.b16 %v198
  %v573 = vunpack.c.l.b16 %v199
  %v574 = vunpack.c.l.b16 %v200
  %v575 = vunpack.c.l.b16 %v201
  %v576 = vunpack.c.l.b16 %v202
  %v577 = vunpack.c.l.b16 %v203
  %v578 = vpack.c.b16 %v396, %v395
  %v579 = vpack.c.b16 %v398, %v397
  %v580 = vpack.c.b16 %v400, %v399
  %v581 = vpack.c.b16 %v402, %v401
  %v582 = vpack.c.b16 %v404, %v403
  %v583 = vpack.c.b16 %v406, %v405
  %v584 = vpack.c.b16 %v408, %v407
  %v585 = vpack.c.b16 %v410, %v409
  %v586 = vpack.c.b16 %v412, %v411
  %v587 = vpack.c.b16 %v414, %v413
  %v588 = vpack.c.b16 %v416, %v415
  %v589 = vpack.c.b16 %v418, %v417
  %v590 = vpack.c.b16 %v420, %v419
  %v591 = vpack.c.b16 %v422, %v421
  %v592 = vpack.c.b16 %v424, %v423
  %v593 = vpack.c.b16 %v426, %v425
  %v594 = vpack.c.b16 %v428, %v427
  %v595 = vpack.c.b16 %v430, %v429
  %v596 = vpack.c.b16 %v432, %v431
  %v597 = vpack.c.b16 %v434, %v433
  %v598 = vpack.c.b16 %v436, %v435
  %v599 = vpack.c.b16 %v438, %v437
  %v600 = vpack.c.b16 %v440, %v439
  %v601 = vpack.c.b16 %v442, %v441
  %v602 = vpack.c.b16 %v444, %v443
  %v603 = vpack.c.b16 %v446, %v445
  %v604 = vpack.c.b16 %v448, %v447
  %v605 = vpack.c.b16 %v450, %v449
  %v606 = vpack.c.b16 %v452, %v451
  %v607 = vpack.c.b16 %v454, %v453
  %v608 = vpack.c.b16 %v456, %v455
  %v609 = vpack.c.b16 %v458, %v457
  %v610 = vpack.c.b16 %v460, %v459
  %v611 = vpack.c.b16 %v462, %v461
  %v612 = vpack.c.b16 %v464, %v463
  %v613 = vpack.c.b16 %v466, %v465
  %v614 = vpack.c.b16 %v468, %v467
  %v615 = vpack.c.b16 %v470, %v469
  %v616 = vpack.c.b16 %v472, %v471
  %v617 = vpack.c.b16 %v474, %v473
  %v618 = vpack.c.b16 %v476, %v475
  %v619 = vpack.c.b16 %v478, %v477
  %v620 = vpack.c.b16 %v480, %v479
  %v621 = vpack.c.b16 %v482, %v481
  %v622 = vpack.c.b16 %v484, %v483
  %v623 = vpack.c.b16 %v486, %v485
  %v624 = vpack.c.b16 %v488, %v487
  %v625 = vpack.c.b16 %v490, %v489
  %v626 = vpack.c.b16 %v492, %v491
  %v627 = vpack.c.b16 %v494, %v493
  %v628 = vpack.c.b16 %v496, %v495
  %v629 = vpack.c.b16 %v498, %v497
  %v630 = vpack.c.b16 %v500, %v499
  %v631 = vpack.c.b16 %v502, %v501
  %v632 = vpack.c.b16 %v504, %v503
  %v633 = vpack.c.b16 %v506, %v505
  %v634 = vpack.c.b16 %v508, %v507
  %v635 = vpack.c.b16 %v510, %v509
  %v636 = vpack.c.b16 %v512, %v511
  %v637 = vpack.c.b16 %v514, %v513
  %v638 = vpack.c.b16 %v516, %v515
  %v639 = vpack.c.b16 %v518, %v517
  %v640 = vpack.c.b16 %v520, %v519
  %v641 = vpack.c.b16 %v522, %v521
  %v642 = vpack.c.b16 %v524, %v523
  %v643 = vpack.c.b16 %v526, %v525
  %v644 = vpack.c.b16 %v528, %v527
  %v645 = vpack.c.b16 %v530, %v529
  %v646 = vpack.c.b16 %v532, %v531
  %v647 = vpack.c.b16 %v534, %v533
  %v648 = vpack.c.b16 %v536, %v535
  %v649 = vpack.c.b16 %v538, %v537
  %v650 = vpack.c.b16 %v540, %v539
  %v651 = vpack.c.b16 %v542, %v541
  %v652 = vpack.c.b16 %v544, %v543
  %v653 = vpack.c.b16 %v546, %v545
  %v654 = vpack.c.b16 %v548, %v547
  %v655 = vpack.c.b16 %v550, %v549
  %v656 = vpack.c.b16 %v552, %v551
  %v657 = vpack.c.b16 %v554, %v553
  %v658 = vpack.c.b16 %v556, %v555
  %v659 = vpack.c.b16 %v558, %v557
  %v660 = vpack.c.b16 %v560, %v559
  %v661 = vpack.c.b16 %v562, %v561
  %v662 = vpack.c.b16 %v564, %v563
  %v663 = vpack.c.b16 %v566, %v565
  %v664 = vpack.c.b16 %v568, %v567
  %v665 = vpack.c.b16 %v570, %v569
  %v666 = vpack.c.b16 %v572, %v571
  %v667 = vpack.c.b16 %v574, %v573
  %v668 = vpack.c.b16 %v576, %v575
  %v669 = vpack.c.b16 %v577, %v577
  %vm670 = vcmask 64512
  %v672 = vsel %vm670, %v578, 0
  %v675 = vsel %vm670, %v579, 0
  %v678 = vsel %vm670, %v580, 0
  %v681 = vsel %vm670, %v581, 0
  %v684 = vsel %vm670, %v582, 0
  %v687 = vsel %vm670, %v583, 0
  %v690 = vsel %vm670, %v584, 0
  %v693 = vsel %vm670, %v585, 0
  %v696 = vsel %vm670, %v586, 0
  %v699 = vsel %vm670, %v587, 0
  %v702 = vsel %vm670, %v588, 0
  %v705 = vsel %vm670, %v589, 0
  %v708 = vsel %vm670, %v590, 0
  %v711 = vsel %vm670, %v591, 0
  %v714 = vsel %vm670, %v592, 0
  %v717 = vsel %vm670, %v593, 0
  %v720 = vsel %vm670, %v594, 0
  %v723 = vsel %vm670, %v595, 0
  %v726 = vsel %vm670, %v596, 0
  %v729 = vsel %vm670, %v597, 0
  %v732 = vsel %vm670, %v598, 0
  %v735 = vsel %vm670, %v599, 0
  %v738 = vsel %vm670, %v600, 0
  %v741 = vsel %vm670, %v601, 0
  %v744 = vsel %vm670, %v602, 0
  %v747 = vsel %vm670, %v603, 0
  %v750 = vsel %vm670, %v604, 0
  %v753 = vsel %vm670, %v605, 0
  %v756 = vsel %vm670, %v606, 0
  %v759 = vsel %vm670, %v607, 0
  %v762 = vsel %vm670, %v608, 0
  %v765 = vsel %vm670, %v609, 0
  %v768 = vsel %vm670, %v610, 0
  %v771 = vsel %vm670, %v611, 0
  %v774 = vsel %vm670, %v612, 0
  %v777 = vsel %vm670, %v613, 0
  %v780 = vsel %vm670, %v614, 0
  %v783 = vsel %vm670, %v615, 0
  %v786 = vsel %vm670, %v616, 0
  %v789 = vsel %vm670, %v617, 0
  %v792 = vsel %vm670, %v618, 0
  %v795 = vsel %vm670, %v619, 0
  %v798 = vsel %vm670, %v620, 0
  %v801 = vsel %vm670, %v621, 0
  %v804 = vsel %vm670, %v622, 0
  %v807 = vsel %vm670, %v623, 0
  %v810 = vsel %vm670, %v624, 0
  %v813 = vsel %vm670, %v625, 0
  %v816 = vsel %vm670, %v626, 0
  %v819 = vsel %vm670, %v627, 0
  %v822 = vsel %vm670, %v628, 0
  %v825 = vsel %vm670, %v629, 0
  %v828 = vsel %vm670, %v630, 0
  %v831 = vsel %vm670, %v631, 0
  %v834 = vsel %vm670, %v632, 0
  %v837 = vsel %vm670, %v633, 0
  %v840 = vsel %vm670, %v634, 0
  %v843 = vsel %vm670, %v635, 0
  %v846 = vsel %vm670, %v636, 0
  %v849 = vsel %vm670, %v637, 0
  %v852 = vsel %vm670, %v638, 0
  %v855 = vsel %vm670, %v639, 0
  %v858 = vsel %vm670, %v640, 0
  %v861 = vsel %vm670, %v641, 0
  %v864 = vsel %vm670, %v642, 0
  %v867 = vsel %vm670, %v643, 0
  %v870 = vsel %vm670, %v644, 0
  %v873 = vsel %vm670, %v645, 0
  %v876 = vsel %vm670, %v646, 0
  %v879 = vsel %vm670, %v647, 0
  %v882 = vsel %vm670, %v648, 0
  %v885 = vsel %vm670, %v649, 0
  %v888 = vsel %vm670, %v650, 0
  %v891 = vsel %vm670, %v651, 0
  %v894 = vsel %vm670, %v652, 0
  %v897 = vsel %vm670, %v653, 0
  %v900 = vsel %vm670, %v654, 0
  %v903 = vsel %vm670, %v655, 0
  %v906 = vsel %vm670, %v656, 0
  %v909 = vsel %vm670, %v657, 0
  %v912 = vsel %vm670, %v658, 0
  %v915 = vsel %vm670, %v659, 0
  %v918 = vsel %vm670, %v660, 0
  %v921 = vsel %vm670, %v661, 0
  %v924 = vsel %vm670, %v662, 0
  %v927 = vsel %vm670, %v663, 0
  %v930 = vsel %vm670, %v664, 0
  %v933 = vsel %vm670, %v665, 0
  %v936 = vsel %vm670, %v666, 0
  %v939 = vsel %vm670, %v667, 0
  %v942 = vsel %vm670, %v668, 0
  %v945 = vsel %vm670, %v669, 0
  %vm947 = vcmask 1043456
  %v949 = vsel %vm947, %v204, 0
  %951 = vmatprep.subr.bf16.mxu0 0
  %952 = vmatpush1.bf16.msra.mxu0 %v949
  %953 = vmatprep.subr.bf16.mxu0 0
  %954 = vmatpush1.bf16.msra.mxu0 0
  %955 = vmatprep.subr.bf16.mxu0 0
  %956 = vmatpush1.bf16.msra.mxu0 0
  %957 = vmatprep.subr.bf16.mxu0 0
  %958 = vmatpush1.bf16.msra.mxu0 0
  %959 = vmatprep.subr.bf16.mxu0 0
  %960 = vmatpush1.bf16.msra.mxu0 0
  %961 = vmatprep.subr.bf16.mxu0 0
  %962 = vmatpush1.bf16.msra.mxu0 0
  %963 = vmatprep.subr.bf16.mxu0 0
  %964 = vmatpush1.bf16.msra.mxu0 0
  %965 = vmatprep.subr.bf16.mxu0 0
  %966 = vmatpush1.bf16.msra.mxu0 0
  %967 = vmatprep.subr.bf16.mxu0 0
  %968 = vmatpush1.bf16.msra.mxu0 0
  %969 = vmatprep.subr.bf16.mxu0 0
  %970 = vmatpush1.bf16.msra.mxu0 0
  %971 = vmatprep.subr.bf16.mxu0 0
  %972 = vmatpush1.bf16.msra.mxu0 0
  %973 = vmatprep.subr.bf16.mxu0 0
  %974 = vmatpush1.bf16.msra.mxu0 0
  %975 = vmatprep.subr.bf16.mxu0 0
  %976 = vmatpush1.bf16.msra.mxu0 0
  %977 = vmatprep.subr.bf16.mxu0 0
  %978 = vmatpush1.bf16.msra.mxu0 0
  %979 = vmatprep.subr.bf16.mxu0 0
  %980 = vmatpush1.bf16.msra.mxu0 0
  %981 = vmatprep.subr.bf16.mxu0 0
  %982 = vmatpush1.bf16.msra.mxu0 0
  %983 = vmatprep.mubr.bf16.mxu0 0
  %984 = vmatmul.mubr.bf16.gmra.mrb[0].mxu0 %v672
  %v985 = vpop.f32.mrb[0].mxu0
  %v986 = vadd.f32 %v210, %v985
  %v987 = vpop.f32.mrb[0].mxu0
  %v988 = vpop.f32.mrb[0].mxu0
  %v989 = vadd.f32 %v210, %v988
  %v990 = vpop.f32.mrb[0].mxu0
  %991 = vmatprep.mubr.bf16.mxu0 0
  %992 = vmatmul.mubr.bf16.gmra.mrb[0].mxu0 %v675
  %v993 = vpop.f32.mrb[0].mxu0
  %v994 = vadd.f32 %v210, %v993
  %v995 = vpop.f32.mrb[0].mxu0
  %v996 = vpop.f32.mrb[0].mxu0
  %v997 = vadd.f32 %v210, %v996
  %v998 = vpop.f32.mrb[0].mxu0
  %999 = vmatprep.mubr.bf16.mxu0 0
  %1000 = vmatmul.mubr.bf16.gmra.mrb[0].mxu0 %v678
  %v1001 = vpop.f32.mrb[0].mxu0
  %v1002 = vadd.f32 %v210, %v1001
  %v1003 = vpop.f32.mrb[0].mxu0
  %v1004 = vpop.f32.mrb[0].mxu0
  %v1005 = vadd.f32 %v210, %v1004
  %v1006 = vpop.f32.mrb[0].mxu0
  %1007 = vmatprep.mubr.bf16.mxu0 0
  %1008 = vmatmul.mubr.bf16.gmra.mrb[0].mxu0 %v681
  %v1009 = vpop.f32.mrb[0].mxu0
  %v1010 = vadd.f32 %v210, %v1009
  %v1011 = vpop.f32.mrb[0].mxu0
  %v1012 = vpop.f32.mrb[0].mxu0
  %v1013 = vadd.f32 %v210, %v1012
  %v1014 = vpop.f32.mrb[0].mxu0
  %1015 = vmatprep.mubr.bf16.mxu0 0
  %1016 = vmatmul.mubr.bf16.gmra.mrb[0].mxu0 %v684
  %v1017 = vpop.f32.mrb[0].mxu0
  %v1018 = vadd.f32 %v210, %v1017
  %v1019 = vpop.f32.mrb[0].mxu0
  %v1020 = vpop.f32.mrb[0].mxu0
  %v1021 = vadd.f32 %v210, %v1020
  %v1022 = vpop.f32.mrb[0].mxu0
  %1023 = vmatprep.mubr.bf16.mxu0 0
  %1024 = vmatmul.mubr.bf16.gmra.mrb[0].mxu0 %v687
  %v1025 = vpop.f32.mrb[0].mxu0
  %v1026 = vadd.f32 %v210, %v1025
  %v1027 = vpop.f32.mrb[0].mxu0
  %v1028 = vpop.f32.mrb[0].mxu0
  %v1029 = vadd.f32 %v210, %v1028
  %v1030 = vpop.f32.mrb[0].mxu0
  %1031 = vmatprep.mubr.bf16.mxu0 0
  %1032 = vmatmul.mubr.bf16.gmra.mrb[0].mxu0 %v690
  %v1033 = vpop.f32.mrb[0].mxu0
  %v1034 = vadd.f32 %v210, %v1033
  %v1035 = vpop.f32.mrb[0].mxu0
  %v1036 = vpop.f32.mrb[0].mxu0
  %v1037 = vadd.f32 %v210, %v1036
  %v1038 = vpop.f32.mrb[0].mxu0
  %1039 = vmatprep.mubr.bf16.mxu0 0
  %1040 = vmatmul.mubr.bf16.gmra.mrb[0].mxu0 %v693
  %v1041 = vpop.f32.mrb[0].mxu0
  %v1042 = vadd.f32 %v210, %v1041
  %v1043 = vpop.f32.mrb[0].mxu0
  %v1044 = vpop.f32.mrb[0].mxu0
  %v1045 = vadd.f32 %v210, %v1044
  %v1046 = vpop.f32.mrb[0].mxu0
  %1047 = vmatprep.mubr.bf16.mxu0 0
  %1048 = vmatmul.mubr.bf16.gmra.mrb[0].mxu0 %v696
  %v1049 = vpop.f32.mrb[0].mxu0
  %v1050 = vadd.f32 %v210, %v1049
  %v1051 = vpop.f32.mrb[0].mxu0
  %v1052 = vpop.f32.mrb[0].mxu0
  %v1053 = vadd.f32 %v210, %v1052
  %v1054 = vpop.f32.mrb[0].mxu0
  %1055 = vmatprep.mubr.bf16.mxu0 0
  %1056 = vmatmul.mubr.bf16.gmra.mrb[0].mxu0 %v699
  %v1057 = vpop.f32.mrb[0].mxu0
  %v1058 = vadd.f32 %v210, %v1057
  %v1059 = vpop.f32.mrb[0].mxu0
  %v1060 = vpop.f32.mrb[0].mxu0
  %v1061 = vadd.f32 %v210, %v1060
  %v1062 = vpop.f32.mrb[0].mxu0
  %1063 = vmatprep.mubr.bf16.mxu0 0
  %1064 = vmatmul.mubr.bf16.gmra.mrb[0].mxu0 %v702
  %v1065 = vpop.f32.mrb[0].mxu0
  %v1066 = vadd.f32 %v210, %v1065
  %v1067 = vpop.f32.mrb[0].mxu0
  %v1068 = vpop.f32.mrb[0].mxu0
  %v1069 = vadd.f32 %v210, %v1068
  %v1070 = vpop.f32.mrb[0].mxu0
  %1071 = vmatprep.mubr.bf16.mxu0 0
  %1072 = vmatmul.mubr.bf16.gmra.mrb[0].mxu0 %v705
  %v1073 = vpop.f32.mrb[0].mxu0
  %v1074 = vadd.f32 %v210, %v1073
  %v1075 = vpop.f32.mrb[0].mxu0
  %v1076 = vpop.f32.mrb[0].mxu0
  %v1077 = vadd.f32 %v210, %v1076
  %v1078 = vpop.f32.mrb[0].mxu0
  %1079 = vmatprep.mubr.bf16.mxu0 0
  %1080 = vmatmul.mubr.bf16.gmra.mrb[0].mxu0 %v708
  %v1081 = vpop.f32.mrb[0].mxu0
  %v1082 = vadd.f32 %v210, %v1081
  %v1083 = vpop.f32.mrb[0].mxu0
  %v1084 = vpop.f32.mrb[0].mxu0
  %v1085 = vadd.f32 %v210, %v1084
  %v1086 = vpop.f32.mrb[0].mxu0
  %1087 = vmatprep.mubr.bf16.mxu0 0
  %1088 = vmatmul.mubr.bf16.gmra.mrb[0].mxu0 %v711
  %v1089 = vpop.f32.mrb[0].mxu0
  %v1090 = vadd.f32 %v210, %v1089
  %v1091 = vpop.f32.mrb[0].mxu0
  %v1092 = vpop.f32.mrb[0].mxu0
  %v1093 = vadd.f32 %v210, %v1092
  %v1094 = vpop.f32.mrb[0].mxu0
  %1095 = vmatprep.mubr.bf16.mxu0 0
  %1096 = vmatmul.mubr.bf16.gmra.mrb[0].mxu0 %v714
  %v1097 = vpop.f32.mrb[0].mxu0
  %v1098 = vadd.f32 %v210, %v1097
  %v1099 = vpop.f32.mrb[0].mxu0
  %v1100 = vpop.f32.mrb[0].mxu0
  %v1101 = vadd.f32 %v210, %v1100
  %v1102 = vpop.f32.mrb[0].mxu0
  %1103 = vmatprep.mubr.bf16.mxu0 0
  %1104 = vmatmul.mubr.bf16.gmra.mrb[0].mxu0 %v717
  %v1105 = vpop.f32.mrb[0].mxu0
  %v1106 = vadd.f32 %v210, %v1105
  %v1107 = vpop.f32.mrb[0].mxu0
  %v1108 = vpop.f32.mrb[0].mxu0
  %v1109 = vadd.f32 %v210, %v1108
  %v1110 = vpop.f32.mrb[0].mxu0
  %1111 = vmatprep.mubr.bf16.mxu0 0
  %1112 = vmatmul.mubr.bf16.gmra.mrb[0].mxu0 %v720
  %v1113 = vpop.f32.mrb[0].mxu0
  %v1114 = vadd.f32 %v210, %v1113
  %v1115 = vpop.f32.mrb[0].mxu0
  %v1116 = vpop.f32.mrb[0].mxu0
  %v1117 = vadd.f32 %v210, %v1116
  %v1118 = vpop.f32.mrb[0].mxu0
  %1119 = vmatprep.mubr.bf16.mxu0 0
  %1120 = vmatmul.mubr.bf16.gmra.mrb[0].mxu0 %v723
  %v1121 = vpop.f32.mrb[0].mxu0
  %v1122 = vadd.f32 %v210, %v1121
  %v1123 = vpop.f32.mrb[0].mxu0
  %v1124 = vpop.f32.mrb[0].mxu0
  %v1125 = vadd.f32 %v210, %v1124
  %v1126 = vpop.f32.mrb[0].mxu0
  %1127 = vmatprep.mubr.bf16.mxu0 0
  %1128 = vmatmul.mubr.bf16.gmra.mrb[0].mxu0 %v726
  %v1129 = vpop.f32.mrb[0].mxu0
  %v1130 = vadd.f32 %v210, %v1129
  %v1131 = vpop.f32.mrb[0].mxu0
  %v1132 = vpop.f32.mrb[0].mxu0
  %v1133 = vadd.f32 %v210, %v1132
  %v1134 = vpop.f32.mrb[0].mxu0
  %1135 = vmatprep.mubr.bf16.mxu0 0
  %1136 = vmatmul.mubr.bf16.gmra.mrb[0].mxu0 %v729
  %v1137 = vpop.f32.mrb[0].mxu0
  %v1138 = vadd.f32 %v210, %v1137
  %v1139 = vpop.f32.mrb[0].mxu0
  %v1140 = vpop.f32.mrb[0].mxu0
  %v1141 = vadd.f32 %v210, %v1140
  %v1142 = vpop.f32.mrb[0].mxu0
  %1143 = vmatprep.mubr.bf16.mxu0 0
  %1144 = vmatmul.mubr.bf16.gmra.mrb[0].mxu0 %v732
  %v1145 = vpop.f32.mrb[0].mxu0
  %v1146 = vadd.f32 %v210, %v1145
  %v1147 = vpop.f32.mrb[0].mxu0
  %v1148 = vpop.f32.mrb[0].mxu0
  %v1149 = vadd.f32 %v210, %v1148
  %v1150 = vpop.f32.mrb[0].mxu0
  %1151 = vmatprep.mubr.bf16.mxu0 0
  %1152 = vmatmul.mubr.bf16.gmra.mrb[0].mxu0 %v735
  %v1153 = vpop.f32.mrb[0].mxu0
  %v1154 = vadd.f32 %v210, %v1153
  %v1155 = vpop.f32.mrb[0].mxu0
  %v1156 = vpop.f32.mrb[0].mxu0
  %v1157 = vadd.f32 %v210, %v1156
  %v1158 = vpop.f32.mrb[0].mxu0
  %1159 = vmatprep.mubr.bf16.mxu0 0
  %1160 = vmatmul.mubr.bf16.gmra.mrb[0].mxu0 %v738
  %v1161 = vpop.f32.mrb[0].mxu0
  %v1162 = vadd.f32 %v210, %v1161
  %v1163 = vpop.f32.mrb[0].mxu0
  %v1164 = vpop.f32.mrb[0].mxu0
  %v1165 = vadd.f32 %v210, %v1164
  %v1166 = vpop.f32.mrb[0].mxu0
  %1167 = vmatprep.mubr.bf16.mxu0 0
  %1168 = vmatmul.mubr.bf16.gmra.mrb[0].mxu0 %v741
  %v1169 = vpop.f32.mrb[0].mxu0
  %v1170 = vadd.f32 %v210, %v1169
  %v1171 = vpop.f32.mrb[0].mxu0
  %v1172 = vpop.f32.mrb[0].mxu0
  %v1173 = vadd.f32 %v210, %v1172
  %v1174 = vpop.f32.mrb[0].mxu0
  %1175 = vmatprep.mubr.bf16.mxu0 0
  %1176 = vmatmul.mubr.bf16.gmra.mrb[0].mxu0 %v744
  %v1177 = vpop.f32.mrb[0].mxu0
  %v1178 = vadd.f32 %v210, %v1177
  %v1179 = vpop.f32.mrb[0].mxu0
  %v1180 = vpop.f32.mrb[0].mxu0
  %v1181 = vadd.f32 %v210, %v1180
  %v1182 = vpop.f32.mrb[0].mxu0
  %1183 = vmatprep.mubr.bf16.mxu0 0
  %1184 = vmatmul.mubr.bf16.gmra.mrb[0].mxu0 %v747
  %v1185 = vpop.f32.mrb[0].mxu0
  %v1186 = vadd.f32 %v210, %v1185
  %v1187 = vpop.f32.mrb[0].mxu0
  %v1188 = vpop.f32.mrb[0].mxu0
  %v1189 = vadd.f32 %v210, %v1188
  %v1190 = vpop.f32.mrb[0].mxu0
  %1191 = vmatprep.mubr.bf16.mxu0 0
  %1192 = vmatmul.mubr.bf16.gmra.mrb[0].mxu0 %v750
  %v1193 = vpop.f32.mrb[0].mxu0
  %v1194 = vadd.f32 %v210, %v1193
  %v1195 = vpop.f32.mrb[0].mxu0
  %v1196 = vpop.f32.mrb[0].mxu0
  %v1197 = vadd.f32 %v210, %v1196
  %v1198 = vpop.f32.mrb[0].mxu0
  %1199 = vmatprep.mubr.bf16.mxu0 0
  %1200 = vmatmul.mubr.bf16.gmra.mrb[0].mxu0 %v753
  %v1201 = vpop.f32.mrb[0].mxu0
  %v1202 = vadd.f32 %v210, %v1201
  %v1203 = vpop.f32.mrb[0].mxu0
  %v1204 = vpop.f32.mrb[0].mxu0
  %v1205 = vadd.f32 %v210, %v1204
  %v1206 = vpop.f32.mrb[0].mxu0
  %1207 = vmatprep.mubr.bf16.mxu0 0
  %1208 = vmatmul.mubr.bf16.gmra.mrb[0].mxu0 %v756
  %v1209 = vpop.f32.mrb[0].mxu0
  %v1210 = vadd.f32 %v210, %v1209
  %v1211 = vpop.f32.mrb[0].mxu0
  %v1212 = vpop.f32.mrb[0].mxu0
  %v1213 = vadd.f32 %v210, %v1212
  %v1214 = vpop.f32.mrb[0].mxu0
  %1215 = vmatprep.mubr.bf16.mxu0 0
  %1216 = vmatmul.mubr.bf16.gmra.mrb[0].mxu0 %v759
  %v1217 = vpop.f32.mrb[0].mxu0
  %v1218 = vadd.f32 %v210, %v1217
  %v1219 = vpop.f32.mrb[0].mxu0
  %v1220 = vpop.f32.mrb[0].mxu0
  %v1221 = vadd.f32 %v210, %v1220
  %v1222 = vpop.f32.mrb[0].mxu0
  %1223 = vmatprep.mubr.bf16.mxu0 0
  %1224 = vmatmul.mubr.bf16.gmra.mrb[0].mxu0 %v762
  %v1225 = vpop.f32.mrb[0].mxu0
  %v1226 = vadd.f32 %v210, %v1225
  %v1227 = vpop.f32.mrb[0].mxu0
  %v1228 = vpop.f32.mrb[0].mxu0
  %v1229 = vadd.f32 %v210, %v1228
  %v1230 = vpop.f32.mrb[0].mxu0
  %1231 = vmatprep.mubr.bf16.mxu0 0
  %1232 = vmatmul.mubr.bf16.gmra.mrb[0].mxu0 %v765
  %v1233 = vpop.f32.mrb[0].mxu0
  %v1234 = vadd.f32 %v210, %v1233
  %v1235 = vpop.f32.mrb[0].mxu0
  %v1236 = vpop.f32.mrb[0].mxu0
  %v1237 = vadd.f32 %v210, %v1236
  %v1238 = vpop.f32.mrb[0].mxu0
  %1239 = vmatprep.mubr.bf16.mxu0 0
  %1240 = vmatmul.mubr.bf16.gmra.mrb[0].mxu0 %v768
  %v1241 = vpop.f32.mrb[0].mxu0
  %v1242 = vadd.f32 %v210, %v1241
  %v1243 = vpop.f32.mrb[0].mxu0
  %v1244 = vpop.f32.mrb[0].mxu0
  %v1245 = vadd.f32 %v210, %v1244
  %v1246 = vpop.f32.mrb[0].mxu0
  %1247 = vmatprep.mubr.bf16.mxu0 0
  %1248 = vmatmul.mubr.bf16.gmra.mrb[0].mxu0 %v771
  %v1249 = vpop.f32.mrb[0].mxu0
  %v1250 = vadd.f32 %v210, %v1249
  %v1251 = vpop.f32.mrb[0].mxu0
  %v1252 = vpop.f32.mrb[0].mxu0
  %v1253 = vadd.f32 %v210, %v1252
  %v1254 = vpop.f32.mrb[0].mxu0
  %1255 = vmatprep.mubr.bf16.mxu0 0
  %1256 = vmatmul.mubr.bf16.gmra.mrb[0].mxu0 %v774
  %v1257 = vpop.f32.mrb[0].mxu0
  %v1258 = vadd.f32 %v210, %v1257
  %v1259 = vpop.f32.mrb[0].mxu0
  %v1260 = vpop.f32.mrb[0].mxu0
  %v1261 = vadd.f32 %v210, %v1260
  %v1262 = vpop.f32.mrb[0].mxu0
  %1263 = vmatprep.mubr.bf16.mxu0 0
  %1264 = vmatmul.mubr.bf16.gmra.mrb[0].mxu0 %v777
  %v1265 = vpop.f32.mrb[0].mxu0
  %v1266 = vadd.f32 %v210, %v1265
  %v1267 = vpop.f32.mrb[0].mxu0
  %v1268 = vpop.f32.mrb[0].mxu0
  %v1269 = vadd.f32 %v210, %v1268
  %v1270 = vpop.f32.mrb[0].mxu0
  %1271 = vmatprep.mubr.bf16.mxu0 0
  %1272 = vmatmul.mubr.bf16.gmra.mrb[0].mxu0 %v780
  %v1273 = vpop.f32.mrb[0].mxu0
  %v1274 = vadd.f32 %v210, %v1273
  %v1275 = vpop.f32.mrb[0].mxu0
  %v1276 = vpop.f32.mrb[0].mxu0
  %v1277 = vadd.f32 %v210, %v1276
  %v1278 = vpop.f32.mrb[0].mxu0
  %1279 = vmatprep.mubr.bf16.mxu0 0
  %1280 = vmatmul.mubr.bf16.gmra.mrb[0].mxu0 %v783
  %v1281 = vpop.f32.mrb[0].mxu0
  %v1282 = vadd.f32 %v210, %v1281
  %v1283 = vpop.f32.mrb[0].mxu0
  %v1284 = vpop.f32.mrb[0].mxu0
  %v1285 = vadd.f32 %v210, %v1284
  %v1286 = vpop.f32.mrb[0].mxu0
  %1287 = vmatprep.mubr.bf16.mxu0 0
  %1288 = vmatmul.mubr.bf16.gmra.mrb[0].mxu0 %v786
  %v1289 = vpop.f32.mrb[0].mxu0
  %v1290 = vadd.f32 %v210, %v1289
  %v1291 = vpop.f32.mrb[0].mxu0
  %v1292 = vpop.f32.mrb[0].mxu0
  %v1293 = vadd.f32 %v210, %v1292
  %v1294 = vpop.f32.mrb[0].mxu0
  %1295 = vmatprep.mubr.bf16.mxu0 0
  %1296 = vmatmul.mubr.bf16.gmra.mrb[0].mxu0 %v789
  %v1297 = vpop.f32.mrb[0].mxu0
  %v1298 = vadd.f32 %v210, %v1297
  %v1299 = vpop.f32.mrb[0].mxu0
  %v1300 = vpop.f32.mrb[0].mxu0
  %v1301 = vadd.f32 %v210, %v1300
  %v1302 = vpop.f32.mrb[0].mxu0
  %1303 = vmatprep.mubr.bf16.mxu0 0
  %1304 = vmatmul.mubr.bf16.gmra.mrb[0].mxu0 %v792
  %v1305 = vpop.f32.mrb[0].mxu0
  %v1306 = vadd.f32 %v210, %v1305
  %v1307 = vpop.f32.mrb[0].mxu0
  %v1308 = vpop.f32.mrb[0].mxu0
  %v1309 = vadd.f32 %v210, %v1308
  %v1310 = vpop.f32.mrb[0].mxu0
  %1311 = vmatprep.mubr.bf16.mxu0 0
  %1312 = vmatmul.mubr.bf16.gmra.mrb[0].mxu0 %v795
  %v1313 = vpop.f32.mrb[0].mxu0
  %v1314 = vadd.f32 %v210, %v1313
  %v1315 = vpop.f32.mrb[0].mxu0
  %v1316 = vpop.f32.mrb[0].mxu0
  %v1317 = vadd.f32 %v210, %v1316
  %v1318 = vpop.f32.mrb[0].mxu0
  %1319 = vmatprep.mubr.bf16.mxu0 0
  %1320 = vmatmul.mubr.bf16.gmra.mrb[0].mxu0 %v798
  %v1321 = vpop.f32.mrb[0].mxu0
  %v1322 = vadd.f32 %v210, %v1321
  %v1323 = vpop.f32.mrb[0].mxu0
  %v1324 = vpop.f32.mrb[0].mxu0
  %v1325 = vadd.f32 %v210, %v1324
  %v1326 = vpop.f32.mrb[0].mxu0
  %1327 = vmatprep.mubr.bf16.mxu0 0
  %1328 = vmatmul.mubr.bf16.gmra.mrb[0].mxu0 %v801
  %v1329 = vpop.f32.mrb[0].mxu0
  %v1330 = vadd.f32 %v210, %v1329
  %v1331 = vpop.f32.mrb[0].mxu0
  %v1332 = vpop.f32.mrb[0].mxu0
  %v1333 = vadd.f32 %v210, %v1332
  %v1334 = vpop.f32.mrb[0].mxu0
  %1335 = vmatprep.mubr.bf16.mxu0 0
  %1336 = vmatmul.mubr.bf16.gmra.mrb[0].mxu0 %v804
  %v1337 = vpop.f32.mrb[0].mxu0
  %v1338 = vadd.f32 %v210, %v1337
  %v1339 = vpop.f32.mrb[0].mxu0
  %v1340 = vpop.f32.mrb[0].mxu0
  %v1341 = vadd.f32 %v210, %v1340
  %v1342 = vpop.f32.mrb[0].mxu0
  %1343 = vmatprep.mubr.bf16.mxu0 0
  %1344 = vmatmul.mubr.bf16.gmra.mrb[0].mxu0 %v807
  %v1345 = vpop.f32.mrb[0].mxu0
  %v1346 = vadd.f32 %v210, %v1345
  %v1347 = vpop.f32.mrb[0].mxu0
  %v1348 = vpop.f32.mrb[0].mxu0
  %v1349 = vadd.f32 %v210, %v1348
  %v1350 = vpop.f32.mrb[0].mxu0
  %1351 = vmatprep.mubr.bf16.mxu0 0
  %1352 = vmatmul.mubr.bf16.gmra.mrb[0].mxu0 %v810
  %v1353 = vpop.f32.mrb[0].mxu0
  %v1354 = vadd.f32 %v210, %v1353
  %v1355 = vpop.f32.mrb[0].mxu0
  %v1356 = vpop.f32.mrb[0].mxu0
  %v1357 = vadd.f32 %v210, %v1356
  %v1358 = vpop.f32.mrb[0].mxu0
  %1359 = vmatprep.mubr.bf16.mxu0 0
  %1360 = vmatmul.mubr.bf16.gmra.mrb[0].mxu0 %v813
  %v1361 = vpop.f32.mrb[0].mxu0
  %v1362 = vadd.f32 %v210, %v1361
  %v1363 = vpop.f32.mrb[0].mxu0
  %v1364 = vpop.f32.mrb[0].mxu0
  %v1365 = vadd.f32 %v210, %v1364
  %v1366 = vpop.f32.mrb[0].mxu0
  %1367 = vmatprep.mubr.bf16.mxu0 0
  %1368 = vmatmul.mubr.bf16.gmra.mrb[0].mxu0 %v816
  %v1369 = vpop.f32.mrb[0].mxu0
  %v1370 = vadd.f32 %v210, %v1369
  %v1371 = vpop.f32.mrb[0].mxu0
  %v1372 = vpop.f32.mrb[0].mxu0
  %v1373 = vadd.f32 %v210, %v1372
  %v1374 = vpop.f32.mrb[0].mxu0
  %1375 = vmatprep.mubr.bf16.mxu0 0
  %1376 = vmatmul.mubr.bf16.gmra.mrb[0].mxu0 %v819
  %v1377 = vpop.f32.mrb[0].mxu0
  %v1378 = vadd.f32 %v210, %v1377
  %v1379 = vpop.f32.mrb[0].mxu0
  %v1380 = vpop.f32.mrb[0].mxu0
  %v1381 = vadd.f32 %v210, %v1380
  %v1382 = vpop.f32.mrb[0].mxu0
  %1383 = vmatprep.mubr.bf16.mxu0 0
  %1384 = vmatmul.mubr.bf16.gmra.mrb[0].mxu0 %v822
  %v1385 = vpop.f32.mrb[0].mxu0
  %v1386 = vadd.f32 %v210, %v1385
  %v1387 = vpop.f32.mrb[0].mxu0
  %v1388 = vpop.f32.mrb[0].mxu0
  %v1389 = vadd.f32 %v210, %v1388
  %v1390 = vpop.f32.mrb[0].mxu0
  %1391 = vmatprep.mubr.bf16.mxu0 0
  %1392 = vmatmul.mubr.bf16.gmra.mrb[0].mxu0 %v825
  %v1393 = vpop.f32.mrb[0].mxu0
  %v1394 = vadd.f32 %v210, %v1393
  %v1395 = vpop.f32.mrb[0].mxu0
  %v1396 = vpop.f32.mrb[0].mxu0
  %v1397 = vadd.f32 %v210, %v1396
  %v1398 = vpop.f32.mrb[0].mxu0
  %1399 = vmatprep.mubr.bf16.mxu0 0
  %1400 = vmatmul.mubr.bf16.gmra.mrb[0].mxu0 %v828
  %v1401 = vpop.f32.mrb[0].mxu0
  %v1402 = vadd.f32 %v210, %v1401
  %v1403 = vpop.f32.mrb[0].mxu0
  %v1404 = vpop.f32.mrb[0].mxu0
  %v1405 = vadd.f32 %v210, %v1404
  %v1406 = vpop.f32.mrb[0].mxu0
  %1407 = vmatprep.mubr.bf16.mxu0 0
  %1408 = vmatmul.mubr.bf16.gmra.mrb[0].mxu0 %v831
  %v1409 = vpop.f32.mrb[0].mxu0
  %v1410 = vadd.f32 %v210, %v1409
  %v1411 = vpop.f32.mrb[0].mxu0
  %v1412 = vpop.f32.mrb[0].mxu0
  %v1413 = vadd.f32 %v210, %v1412
  %v1414 = vpop.f32.mrb[0].mxu0
  %1415 = vmatprep.mubr.bf16.mxu0 0
  %1416 = vmatmul.mubr.bf16.gmra.mrb[0].mxu0 %v834
  %v1417 = vpop.f32.mrb[0].mxu0
  %v1418 = vadd.f32 %v210, %v1417
  %v1419 = vpop.f32.mrb[0].mxu0
  %v1420 = vpop.f32.mrb[0].mxu0
  %v1421 = vadd.f32 %v210, %v1420
  %v1422 = vpop.f32.mrb[0].mxu0
  %1423 = vmatprep.mubr.bf16.mxu0 0
  %1424 = vmatmul.mubr.bf16.gmra.mrb[0].mxu0 %v837
  %v1425 = vpop.f32.mrb[0].mxu0
  %v1426 = vadd.f32 %v210, %v1425
  %v1427 = vpop.f32.mrb[0].mxu0
  %v1428 = vpop.f32.mrb[0].mxu0
  %v1429 = vadd.f32 %v210, %v1428
  %v1430 = vpop.f32.mrb[0].mxu0
  %1431 = vmatprep.mubr.bf16.mxu0 0
  %1432 = vmatmul.mubr.bf16.gmra.mrb[0].mxu0 %v840
  %v1433 = vpop.f32.mrb[0].mxu0
  %v1434 = vadd.f32 %v210, %v1433
  %v1435 = vpop.f32.mrb[0].mxu0
  %v1436 = vpop.f32.mrb[0].mxu0
  %v1437 = vadd.f32 %v210, %v1436
  %v1438 = vpop.f32.mrb[0].mxu0
  %1439 = vmatprep.mubr.bf16.mxu0 0
  %1440 = vmatmul.mubr.bf16.gmra.mrb[0].mxu0 %v843
  %v1441 = vpop.f32.mrb[0].mxu0
  %v1442 = vadd.f32 %v210, %v1441
  %v1443 = vpop.f32.mrb[0].mxu0
  %v1444 = vpop.f32.mrb[0].mxu0
  %v1445 = vadd.f32 %v210, %v1444
  %v1446 = vpop.f32.mrb[0].mxu0
  %1447 = vmatprep.mubr.bf16.mxu0 0
  %1448 = vmatmul.mubr.bf16.gmra.mrb[0].mxu0 %v846
  %v1449 = vpop.f32.mrb[0].mxu0
  %v1450 = vadd.f32 %v210, %v1449
  %v1451 = vpop.f32.mrb[0].mxu0
  %v1452 = vpop.f32.mrb[0].mxu0
  %v1453 = vadd.f32 %v210, %v1452
  %v1454 = vpop.f32.mrb[0].mxu0
  %1455 = vmatprep.mubr.bf16.mxu0 0
  %1456 = vmatmul.mubr.bf16.gmra.mrb[0].mxu0 %v849
  %v1457 = vpop.f32.mrb[0].mxu0
  %v1458 = vadd.f32 %v210, %v1457
  %v1459 = vpop.f32.mrb[0].mxu0
  %v1460 = vpop.f32.mrb[0].mxu0
  %v1461 = vadd.f32 %v210, %v1460
  %v1462 = vpop.f32.mrb[0].mxu0
  %1463 = vmatprep.mubr.bf16.mxu0 0
  %1464 = vmatmul.mubr.bf16.gmra.mrb[0].mxu0 %v852
  %v1465 = vpop.f32.mrb[0].mxu0
  %v1466 = vadd.f32 %v210, %v1465
  %v1467 = vpop.f32.mrb[0].mxu0
  %v1468 = vpop.f32.mrb[0].mxu0
  %v1469 = vadd.f32 %v210, %v1468
  %v1470 = vpop.f32.mrb[0].mxu0
  %1471 = vmatprep.mubr.bf16.mxu0 0
  %1472 = vmatmul.mubr.bf16.gmra.mrb[0].mxu0 %v855
  %v1473 = vpop.f32.mrb[0].mxu0
  %v1474 = vadd.f32 %v210, %v1473
  %v1475 = vpop.f32.mrb[0].mxu0
  %v1476 = vpop.f32.mrb[0].mxu0
  %v1477 = vadd.f32 %v210, %v1476
  %v1478 = vpop.f32.mrb[0].mxu0
  %1479 = vmatprep.mubr.bf16.mxu0 0
  %1480 = vmatmul.mubr.bf16.gmra.mrb[0].mxu0 %v858
  %v1481 = vpop.f32.mrb[0].mxu0
  %v1482 = vadd.f32 %v210, %v1481
  %v1483 = vpop.f32.mrb[0].mxu0
  %v1484 = vpop.f32.mrb[0].mxu0
  %v1485 = vadd.f32 %v210, %v1484
  %v1486 = vpop.f32.mrb[0].mxu0
  %1487 = vmatprep.mubr.bf16.mxu0 0
  %1488 = vmatmul.mubr.bf16.gmra.mrb[0].mxu0 %v861
  %v1489 = vpop.f32.mrb[0].mxu0
  %v1490 = vadd.f32 %v210, %v1489
  %v1491 = vpop.f32.mrb[0].mxu0
  %v1492 = vpop.f32.mrb[0].mxu0
  %v1493 = vadd.f32 %v210, %v1492
  %v1494 = vpop.f32.mrb[0].mxu0
  %1495 = vmatprep.mubr.bf16.mxu0 0
  %1496 = vmatmul.mubr.bf16.gmra.mrb[0].mxu0 %v864
  %v1497 = vpop.f32.mrb[0].mxu0
  %v1498 = vadd.f32 %v210, %v1497
  %v1499 = vpop.f32.mrb[0].mxu0
  %v1500 = vpop.f32.mrb[0].mxu0
  %v1501 = vadd.f32 %v210, %v1500
  %v1502 = vpop.f32.mrb[0].mxu0
  %1503 = vmatprep.mubr.bf16.mxu0 0
  %1504 = vmatmul.mubr.bf16.gmra.mrb[0].mxu0 %v867
  %v1505 = vpop.f32.mrb[0].mxu0
  %v1506 = vadd.f32 %v210, %v1505
  %v1507 = vpop.f32.mrb[0].mxu0
  %v1508 = vpop.f32.mrb[0].mxu0
  %v1509 = vadd.f32 %v210, %v1508
  %v1510 = vpop.f32.mrb[0].mxu0
  %1511 = vmatprep.mubr.bf16.mxu0 0
  %1512 = vmatmul.mubr.bf16.gmra.mrb[0].mxu0 %v870
  %v1513 = vpop.f32.mrb[0].mxu0
  %v1514 = vadd.f32 %v210, %v1513
  %v1515 = vpop.f32.mrb[0].mxu0
  %v1516 = vpop.f32.mrb[0].mxu0
  %v1517 = vadd.f32 %v210, %v1516
  %v1518 = vpop.f32.mrb[0].mxu0
  %1519 = vmatprep.mubr.bf16.mxu0 0
  %1520 = vmatmul.mubr.bf16.gmra.mrb[0].mxu0 %v873
  %v1521 = vpop.f32.mrb[0].mxu0
  %v1522 = vadd.f32 %v210, %v1521
  %v1523 = vpop.f32.mrb[0].mxu0
  %v1524 = vpop.f32.mrb[0].mxu0
  %v1525 = vadd.f32 %v210, %v1524
  %v1526 = vpop.f32.mrb[0].mxu0
  %1527 = vmatprep.mubr.bf16.mxu0 0
  %1528 = vmatmul.mubr.bf16.gmra.mrb[0].mxu0 %v876
  %v1529 = vpop.f32.mrb[0].mxu0
  %v1530 = vadd.f32 %v210, %v1529
  %v1531 = vpop.f32.mrb[0].mxu0
  %v1532 = vpop.f32.mrb[0].mxu0
  %v1533 = vadd.f32 %v210, %v1532
  %v1534 = vpop.f32.mrb[0].mxu0
  %1535 = vmatprep.mubr.bf16.mxu0 0
  %1536 = vmatmul.mubr.bf16.gmra.mrb[0].mxu0 %v879
  %v1537 = vpop.f32.mrb[0].mxu0
  %v1538 = vadd.f32 %v210, %v1537
  %v1539 = vpop.f32.mrb[0].mxu0
  %v1540 = vpop.f32.mrb[0].mxu0
  %v1541 = vadd.f32 %v210, %v1540
  %v1542 = vpop.f32.mrb[0].mxu0
  %1543 = vmatprep.mubr.bf16.mxu0 0
  %1544 = vmatmul.mubr.bf16.gmra.mrb[0].mxu0 %v882
  %v1545 = vpop.f32.mrb[0].mxu0
  %v1546 = vadd.f32 %v210, %v1545
  %v1547 = vpop.f32.mrb[0].mxu0
  %v1548 = vpop.f32.mrb[0].mxu0
  %v1549 = vadd.f32 %v210, %v1548
  %v1550 = vpop.f32.mrb[0].mxu0
  %1551 = vmatprep.mubr.bf16.mxu0 0
  %1552 = vmatmul.mubr.bf16.gmra.mrb[0].mxu0 %v885
  %v1553 = vpop.f32.mrb[0].mxu0
  %v1554 = vadd.f32 %v210, %v1553
  %v1555 = vpop.f32.mrb[0].mxu0
  %v1556 = vpop.f32.mrb[0].mxu0
  %v1557 = vadd.f32 %v210, %v1556
  %v1558 = vpop.f32.mrb[0].mxu0
  %1559 = vmatprep.mubr.bf16.mxu0 0
  %1560 = vmatmul.mubr.bf16.gmra.mrb[0].mxu0 %v888
  %v1561 = vpop.f32.mrb[0].mxu0
  %v1562 = vadd.f32 %v210, %v1561
  %v1563 = vpop.f32.mrb[0].mxu0
  %v1564 = vpop.f32.mrb[0].mxu0
  %v1565 = vadd.f32 %v210, %v1564
  %v1566 = vpop.f32.mrb[0].mxu0
  %1567 = vmatprep.mubr.bf16.mxu0 0
  %1568 = vmatmul.mubr.bf16.gmra.mrb[0].mxu0 %v891
  %v1569 = vpop.f32.mrb[0].mxu0
  %v1570 = vadd.f32 %v210, %v1569
  %v1571 = vpop.f32.mrb[0].mxu0
  %v1572 = vpop.f32.mrb[0].mxu0
  %v1573 = vadd.f32 %v210, %v1572
  %v1574 = vpop.f32.mrb[0].mxu0
  %1575 = vmatprep.mubr.bf16.mxu0 0
  %1576 = vmatmul.mubr.bf16.gmra.mrb[0].mxu0 %v894
  %v1577 = vpop.f32.mrb[0].mxu0
  %v1578 = vadd.f32 %v210, %v1577
  %v1579 = vpop.f32.mrb[0].mxu0
  %v1580 = vpop.f32.mrb[0].mxu0
  %v1581 = vadd.f32 %v210, %v1580
  %v1582 = vpop.f32.mrb[0].mxu0
  %1583 = vmatprep.mubr.bf16.mxu0 0
  %1584 = vmatmul.mubr.bf16.gmra.mrb[0].mxu0 %v897
  %v1585 = vpop.f32.mrb[0].mxu0
  %v1586 = vadd.f32 %v210, %v1585
  %v1587 = vpop.f32.mrb[0].mxu0
  %v1588 = vpop.f32.mrb[0].mxu0
  %v1589 = vadd.f32 %v210, %v1588
  %v1590 = vpop.f32.mrb[0].mxu0
  %1591 = vmatprep.mubr.bf16.mxu0 0
  %1592 = vmatmul.mubr.bf16.gmra.mrb[0].mxu0 %v900
  %v1593 = vpop.f32.mrb[0].mxu0
  %v1594 = vadd.f32 %v210, %v1593
  %v1595 = vpop.f32.mrb[0].mxu0
  %v1596 = vpop.f32.mrb[0].mxu0
  %v1597 = vadd.f32 %v210, %v1596
  %v1598 = vpop.f32.mrb[0].mxu0
  %1599 = vmatprep.mubr.bf16.mxu0 0
  %1600 = vmatmul.mubr.bf16.gmra.mrb[0].mxu0 %v903
  %v1601 = vpop.f32.mrb[0].mxu0
  %v1602 = vadd.f32 %v210, %v1601
  %v1603 = vpop.f32.mrb[0].mxu0
  %v1604 = vpop.f32.mrb[0].mxu0
  %v1605 = vadd.f32 %v210, %v1604
  %v1606 = vpop.f32.mrb[0].mxu0
  %1607 = vmatprep.mubr.bf16.mxu0 0
  %1608 = vmatmul.mubr.bf16.gmra.mrb[0].mxu0 %v906
  %v1609 = vpop.f32.mrb[0].mxu0
  %v1610 = vadd.f32 %v210, %v1609
  %v1611 = vpop.f32.mrb[0].mxu0
  %v1612 = vpop.f32.mrb[0].mxu0
  %v1613 = vadd.f32 %v210, %v1612
  %v1614 = vpop.f32.mrb[0].mxu0
  %1615 = vmatprep.mubr.bf16.mxu0 0
  %1616 = vmatmul.mubr.bf16.gmra.mrb[0].mxu0 %v909
  %v1617 = vpop.f32.mrb[0].mxu0
  %v1618 = vadd.f32 %v210, %v1617
  %v1619 = vpop.f32.mrb[0].mxu0
  %v1620 = vpop.f32.mrb[0].mxu0
  %v1621 = vadd.f32 %v210, %v1620
  %v1622 = vpop.f32.mrb[0].mxu0
  %1623 = vmatprep.mubr.bf16.mxu0 0
  %1624 = vmatmul.mubr.bf16.gmra.mrb[0].mxu0 %v912
  %v1625 = vpop.f32.mrb[0].mxu0
  %v1626 = vadd.f32 %v210, %v1625
  %v1627 = vpop.f32.mrb[0].mxu0
  %v1628 = vpop.f32.mrb[0].mxu0
  %v1629 = vadd.f32 %v210, %v1628
  %v1630 = vpop.f32.mrb[0].mxu0
  %1631 = vmatprep.mubr.bf16.mxu0 0
  %1632 = vmatmul.mubr.bf16.gmra.mrb[0].mxu0 %v915
  %v1633 = vpop.f32.mrb[0].mxu0
  %v1634 = vadd.f32 %v210, %v1633
  %v1635 = vpop.f32.mrb[0].mxu0
  %v1636 = vpop.f32.mrb[0].mxu0
  %v1637 = vadd.f32 %v210, %v1636
  %v1638 = vpop.f32.mrb[0].mxu0
  %1639 = vmatprep.mubr.bf16.mxu0 0
  %1640 = vmatmul.mubr.bf16.gmra.mrb[0].mxu0 %v918
  %v1641 = vpop.f32.mrb[0].mxu0
  %v1642 = vadd.f32 %v210, %v1641
  %v1643 = vpop.f32.mrb[0].mxu0
  %v1644 = vpop.f32.mrb[0].mxu0
  %v1645 = vadd.f32 %v210, %v1644
  %v1646 = vpop.f32.mrb[0].mxu0
  %1647 = vmatprep.mubr.bf16.mxu0 0
  %1648 = vmatmul.mubr.bf16.gmra.mrb[0].mxu0 %v921
  %v1649 = vpop.f32.mrb[0].mxu0
  %v1650 = vadd.f32 %v210, %v1649
  %v1651 = vpop.f32.mrb[0].mxu0
  %v1652 = vpop.f32.mrb[0].mxu0
  %v1653 = vadd.f32 %v210, %v1652
  %v1654 = vpop.f32.mrb[0].mxu0
  %1655 = vmatprep.mubr.bf16.mxu0 0
  %1656 = vmatmul.mubr.bf16.gmra.mrb[0].mxu0 %v924
  %v1657 = vpop.f32.mrb[0].mxu0
  %v1658 = vadd.f32 %v210, %v1657
  %v1659 = vpop.f32.mrb[0].mxu0
  %v1660 = vpop.f32.mrb[0].mxu0
  %v1661 = vadd.f32 %v210, %v1660
  %v1662 = vpop.f32.mrb[0].mxu0
  %1663 = vmatprep.mubr.bf16.mxu0 0
  %1664 = vmatmul.mubr.bf16.gmra.mrb[0].mxu0 %v927
  %v1665 = vpop.f32.mrb[0].mxu0
  %v1666 = vadd.f32 %v210, %v1665
  %v1667 = vpop.f32.mrb[0].mxu0
  %v1668 = vpop.f32.mrb[0].mxu0
  %v1669 = vadd.f32 %v210, %v1668
  %v1670 = vpop.f32.mrb[0].mxu0
  %1671 = vmatprep.mubr.bf16.mxu0 0
  %1672 = vmatmul.mubr.bf16.gmra.mrb[0].mxu0 %v930
  %v1673 = vpop.f32.mrb[0].mxu0
  %v1674 = vadd.f32 %v210, %v1673
  %v1675 = vpop.f32.mrb[0].mxu0
  %v1676 = vpop.f32.mrb[0].mxu0
  %v1677 = vadd.f32 %v210, %v1676
  %v1678 = vpop.f32.mrb[0].mxu0
  %1679 = vmatprep.mubr.bf16.mxu0 0
  %1680 = vmatmul.mubr.bf16.gmra.mrb[0].mxu0 %v933
  %v1681 = vpop.f32.mrb[0].mxu0
  %v1682 = vadd.f32 %v210, %v1681
  %v1683 = vpop.f32.mrb[0].mxu0
  %v1684 = vpop.f32.mrb[0].mxu0
  %v1685 = vadd.f32 %v210, %v1684
  %v1686 = vpop.f32.mrb[0].mxu0
  %1687 = vmatprep.mubr.bf16.mxu0 0
  %1688 = vmatmul.mubr.bf16.gmra.mrb[0].mxu0 %v936
  %v1689 = vpop.f32.mrb[0].mxu0
  %v1690 = vadd.f32 %v210, %v1689
  %v1691 = vpop.f32.mrb[0].mxu0
  %v1692 = vpop.f32.mrb[0].mxu0
  %v1693 = vadd.f32 %v210, %v1692
  %v1694 = vpop.f32.mrb[0].mxu0
  %1695 = vmatprep.mubr.bf16.mxu0 0
  %1696 = vmatmul.mubr.bf16.gmra.mrb[0].mxu0 %v939
  %v1697 = vpop.f32.mrb[0].mxu0
  %v1698 = vadd.f32 %v210, %v1697
  %v1699 = vpop.f32.mrb[0].mxu0
  %v1700 = vpop.f32.mrb[0].mxu0
  %v1701 = vadd.f32 %v210, %v1700
  %v1702 = vpop.f32.mrb[0].mxu0
  %1703 = vmatprep.mubr.bf16.mxu0 0
  %1704 = vmatmul.mubr.bf16.gmra.mrb[0].mxu0 %v942
  %v1705 = vpop.f32.mrb[0].mxu0
  %v1706 = vadd.f32 %v210, %v1705
  %v1707 = vpop.f32.mrb[0].mxu0
  %v1708 = vpop.f32.mrb[0].mxu0
  %v1709 = vadd.f32 %v210, %v1708
  %v1710 = vpop.f32.mrb[0].mxu0
  %1711 = vmatprep.mubr.bf16.mxu0 0
  %1712 = vmatmul.mubr.bf16.gmra.mrb[0].mxu0 %v945
  %v1713 = vpop.f32.mrb[0].mxu0
  %v1714 = vadd.f32 %v210, %v1713
  %v1715 = vpop.f32.mrb[0].mxu0
  %v1716 = vpop.f32.mrb[0].mxu0
  %v1717 = vpop.f32.mrb[0].mxu0
  %1718 = vdwg.mxu0
  %v1719 = vmax.f32 %v986, 0.0
  %v1720 = vmax.f32 %v989, 0.0
  %v1721 = vmax.f32 %v994, 0.0
  %v1722 = vmax.f32 %v997, 0.0
  %v1723 = vmax.f32 %v1002, 0.0
  %v1724 = vmax.f32 %v1005, 0.0
  %v1725 = vmax.f32 %v1010, 0.0
  %v1726 = vmax.f32 %v1013, 0.0
  %v1727 = vmax.f32 %v1018, 0.0
  %v1728 = vmax.f32 %v1021, 0.0
  %v1729 = vmax.f32 %v1026, 0.0
  %v1730 = vmax.f32 %v1029, 0.0
  %v1731 = vmax.f32 %v1034, 0.0
  %v1732 = vmax.f32 %v1037, 0.0
  %v1733 = vmax.f32 %v1042, 0.0
  %v1734 = vmax.f32 %v1045, 0.0
  %v1735 = vmax.f32 %v1050, 0.0
  %v1736 = vmax.f32 %v1053, 0.0
  %v1737 = vmax.f32 %v1058, 0.0
  %v1738 = vmax.f32 %v1061, 0.0
  %v1739 = vmax.f32 %v1066, 0.0
  %v1740 = vmax.f32 %v1069, 0.0
  %v1741 = vmax.f32 %v1074, 0.0
  %v1742 = vmax.f32 %v1077, 0.0
  %v1743 = vmax.f32 %v1082, 0.0
  %v1744 = vmax.f32 %v1085, 0.0
  %v1745 = vmax.f32 %v1090, 0.0
  %v1746 = vmax.f32 %v1093, 0.0
  %v1747 = vmax.f32 %v1098, 0.0
  %v1748 = vmax.f32 %v1101, 0.0
  %v1749 = vmax.f32 %v1106, 0.0
  %v1750 = vmax.f32 %v1109, 0.0
  %v1751 = vmax.f32 %v1114, 0.0
  %v1752 = vmax.f32 %v1117, 0.0
  %v1753 = vmax.f32 %v1122, 0.0
  %v1754 = vmax.f32 %v1125, 0.0
  %v1755 = vmax.f32 %v1130, 0.0
  %v1756 = vmax.f32 %v1133, 0.0
  %v1757 = vmax.f32 %v1138, 0.0
  %v1758 = vmax.f32 %v1141, 0.0
  %v1759 = vmax.f32 %v1146, 0.0
  %v1760 = vmax.f32 %v1149, 0.0
  %v1761 = vmax.f32 %v1154, 0.0
  %v1762 = vmax.f32 %v1157, 0.0
  %v1763 = vmax.f32 %v1162, 0.0
  %v1764 = vmax.f32 %v1165, 0.0
  %v1765 = vmax.f32 %v1170, 0.0
  %v1766 = vmax.f32 %v1173, 0.0
  %v1767 = vmax.f32 %v1178, 0.0
  %v1768 = vmax.f32 %v1181, 0.0
  %v1769 = vmax.f32 %v1186, 0.0
  %v1770 = vmax.f32 %v1189, 0.0
  %v1771 = vmax.f32 %v1194, 0.0
  %v1772 = vmax.f32 %v1197, 0.0
  %v1773 = vmax.f32 %v1202, 0.0
  %v1774 = vmax.f32 %v1205, 0.0
  %v1775 = vmax.f32 %v1210, 0.0
  %v1776 = vmax.f32 %v1213, 0.0
  %v1777 = vmax.f32 %v1218, 0.0
  %v1778 = vmax.f32 %v1221, 0.0
  %v1779 = vmax.f32 %v1226, 0.0
  %v1780 = vmax.f32 %v1229, 0.0
  %v1781 = vmax.f32 %v1234, 0.0
  %v1782 = vmax.f32 %v1237, 0.0
  %v1783 = vmax.f32 %v1242, 0.0
  %v1784 = vmax.f32 %v1245, 0.0
  %v1785 = vmax.f32 %v1250, 0.0
  %v1786 = vmax.f32 %v1253, 0.0
  %v1787 = vmax.f32 %v1258, 0.0
  %v1788 = vmax.f32 %v1261, 0.0
  %v1789 = vmax.f32 %v1266, 0.0
  %v1790 = vmax.f32 %v1269, 0.0
  %v1791 = vmax.f32 %v1274, 0.0
  %v1792 = vmax.f32 %v1277, 0.0
  %v1793 = vmax.f32 %v1282, 0.0
  %v1794 = vmax.f32 %v1285, 0.0
  %v1795 = vmax.f32 %v1290, 0.0
  %v1796 = vmax.f32 %v1293, 0.0
  %v1797 = vmax.f32 %v1298, 0.0
  %v1798 = vmax.f32 %v1301, 0.0
  %v1799 = vmax.f32 %v1306, 0.0
  %v1800 = vmax.f32 %v1309, 0.0
  %v1801 = vmax.f32 %v1314, 0.0
  %v1802 = vmax.f32 %v1317, 0.0
  %v1803 = vmax.f32 %v1322, 0.0
  %v1804 = vmax.f32 %v1325, 0.0
  %v1805 = vmax.f32 %v1330, 0.0
  %v1806 = vmax.f32 %v1333, 0.0
  %v1807 = vmax.f32 %v1338, 0.0
  %v1808 = vmax.f32 %v1341, 0.0
  %v1809 = vmax.f32 %v1346, 0.0
  %v1810 = vmax.f32 %v1349, 0.0
  %v1811 = vmax.f32 %v1354, 0.0
  %v1812 = vmax.f32 %v1357, 0.0
  %v1813 = vmax.f32 %v1362, 0.0
  %v1814 = vmax.f32 %v1365, 0.0
  %v1815 = vmax.f32 %v1370, 0.0
  %v1816 = vmax.f32 %v1373, 0.0
  %v1817 = vmax.f32 %v1378, 0.0
  %v1818 = vmax.f32 %v1381, 0.0
  %v1819 = vmax.f32 %v1386, 0.0
  %v1820 = vmax.f32 %v1389, 0.0
  %v1821 = vmax.f32 %v1394, 0.0
  %v1822 = vmax.f32 %v1397, 0.0
  %v1823 = vmax.f32 %v1402, 0.0
  %v1824 = vmax.f32 %v1405, 0.0
  %v1825 = vmax.f32 %v1410, 0.0
  %v1826 = vmax.f32 %v1413, 0.0
  %v1827 = vmax.f32 %v1418, 0.0
  %v1828 = vmax.f32 %v1421, 0.0
  %v1829 = vmax.f32 %v1426, 0.0
  %v1830 = vmax.f32 %v1429, 0.0
  %v1831 = vmax.f32 %v1434, 0.0
  %v1832 = vmax.f32 %v1437, 0.0
  %v1833 = vmax.f32 %v1442, 0.0
  %v1834 = vmax.f32 %v1445, 0.0
  %v1835 = vmax.f32 %v1450, 0.0
  %v1836 = vmax.f32 %v1453, 0.0
  %v1837 = vmax.f32 %v1458, 0.0
  %v1838 = vmax.f32 %v1461, 0.0
  %v1839 = vmax.f32 %v1466, 0.0
  %v1840 = vmax.f32 %v1469, 0.0
  %v1841 = vmax.f32 %v1474, 0.0
  %v1842 = vmax.f32 %v1477, 0.0
  %v1843 = vmax.f32 %v1482, 0.0
  %v1844 = vmax.f32 %v1485, 0.0
  %v1845 = vmax.f32 %v1490, 0.0
  %v1846 = vmax.f32 %v1493, 0.0
  %v1847 = vmax.f32 %v1498, 0.0
  %v1848 = vmax.f32 %v1501, 0.0
  %v1849 = vmax.f32 %v1506, 0.0
  %v1850 = vmax.f32 %v1509, 0.0
  %v1851 = vmax.f32 %v1514, 0.0
  %v1852 = vmax.f32 %v1517, 0.0
  %v1853 = vmax.f32 %v1522, 0.0
  %v1854 = vmax.f32 %v1525, 0.0
  %v1855 = vmax.f32 %v1530, 0.0
  %v1856 = vmax.f32 %v1533, 0.0
  %v1857 = vmax.f32 %v1538, 0.0
  %v1858 = vmax.f32 %v1541, 0.0
  %v1859 = vmax.f32 %v1546, 0.0
  %v1860 = vmax.f32 %v1549, 0.0
  %v1861 = vmax.f32 %v1554, 0.0
  %v1862 = vmax.f32 %v1557, 0.0
  %v1863 = vmax.f32 %v1562, 0.0
  %v1864 = vmax.f32 %v1565, 0.0
  %v1865 = vmax.f32 %v1570, 0.0
  %v1866 = vmax.f32 %v1573, 0.0
  %v1867 = vmax.f32 %v1578, 0.0
  %v1868 = vmax.f32 %v1581, 0.0
  %v1869 = vmax.f32 %v1586, 0.0
  %v1870 = vmax.f32 %v1589, 0.0
  %v1871 = vmax.f32 %v1594, 0.0
  %v1872 = vmax.f32 %v1597, 0.0
  %v1873 = vmax.f32 %v1602, 0.0
  %v1874 = vmax.f32 %v1605, 0.0
  %v1875 = vmax.f32 %v1610, 0.0
  %v1876 = vmax.f32 %v1613, 0.0
  %v1877 = vmax.f32 %v1618, 0.0
  %v1878 = vmax.f32 %v1621, 0.0
  %v1879 = vmax.f32 %v1626, 0.0
  %v1880 = vmax.f32 %v1629, 0.0
  %v1881 = vmax.f32 %v1634, 0.0
  %v1882 = vmax.f32 %v1637, 0.0
  %v1883 = vmax.f32 %v1642, 0.0
  %v1884 = vmax.f32 %v1645, 0.0
  %v1885 = vmax.f32 %v1650, 0.0
  %v1886 = vmax.f32 %v1653, 0.0
  %v1887 = vmax.f32 %v1658, 0.0
  %v1888 = vmax.f32 %v1661, 0.0
  %v1889 = vmax.f32 %v1666, 0.0
  %v1890 = vmax.f32 %v1669, 0.0
  %v1891 = vmax.f32 %v1674, 0.0
  %v1892 = vmax.f32 %v1677, 0.0
  %v1893 = vmax.f32 %v1682, 0.0
  %v1894 = vmax.f32 %v1685, 0.0
  %v1895 = vmax.f32 %v1690, 0.0
  %v1896 = vmax.f32 %v1693, 0.0
  %v1897 = vmax.f32 %v1698, 0.0
  %v1898 = vmax.f32 %v1701, 0.0
  %v1899 = vmax.f32 %v1706, 0.0
  %v1900 = vmax.f32 %v1709, 0.0
  %v1901 = vmax.f32 %v1714, 0.0
  %v1902 = vadd.f32 %v1719, %v1720
  %v1903 = vadd.f32 %v1902, %v1721
  %v1904 = vadd.f32 %v1903, %v1722
  %v1905 = vadd.f32 %v1904, %v1723
  %v1906 = vadd.f32 %v1905, %v1724
  %v1907 = vadd.f32 %v1906, %v1725
  %v1908 = vadd.f32 %v1907, %v1726
  %v1909 = vadd.f32 %v1908, %v1727
  %v1910 = vadd.f32 %v1909, %v1728
  %v1911 = vadd.f32 %v1910, %v1729
  %v1912 = vadd.f32 %v1911, %v1730
  %v1913 = vadd.f32 %v1912, %v1731
  %v1914 = vadd.f32 %v1913, %v1732
  %v1915 = vadd.f32 %v1914, %v1733
  %v1916 = vadd.f32 %v1915, %v1734
  %v1917 = vadd.f32 %v1916, %v1735
  %v1918 = vadd.f32 %v1917, %v1736
  %v1919 = vadd.f32 %v1918, %v1737
  %v1920 = vadd.f32 %v1919, %v1738
  %v1921 = vadd.f32 %v1920, %v1739
  %v1922 = vadd.f32 %v1921, %v1740
  %v1923 = vadd.f32 %v1922, %v1741
  %v1924 = vadd.f32 %v1923, %v1742
  %v1925 = vadd.f32 %v1924, %v1743
  %v1926 = vadd.f32 %v1925, %v1744
  %v1927 = vadd.f32 %v1926, %v1745
  %v1928 = vadd.f32 %v1927, %v1746
  %v1929 = vadd.f32 %v1928, %v1747
  %v1930 = vadd.f32 %v1929, %v1748
  %v1931 = vadd.f32 %v1930, %v1749
  %v1932 = vadd.f32 %v1931, %v1750
  %v1933 = vadd.f32 %v1932, %v1751
  %v1934 = vadd.f32 %v1933, %v1752
  %v1935 = vadd.f32 %v1934, %v1753
  %v1936 = vadd.f32 %v1935, %v1754
  %v1937 = vadd.f32 %v1936, %v1755
  %v1938 = vadd.f32 %v1937, %v1756
  %v1939 = vadd.f32 %v1938, %v1757
  %v1940 = vadd.f32 %v1939, %v1758
  %v1941 = vadd.f32 %v1940, %v1759
  %v1942 = vadd.f32 %v1941, %v1760
  %v1943 = vadd.f32 %v1942, %v1761
  %v1944 = vadd.f32 %v1943, %v1762
  %v1945 = vadd.f32 %v1944, %v1763
  %v1946 = vadd.f32 %v1945, %v1764
  %v1947 = vadd.f32 %v1946, %v1765
  %v1948 = vadd.f32 %v1947, %v1766
  %v1949 = vadd.f32 %v1948, %v1767
  %v1950 = vadd.f32 %v1949, %v1768
  %v1951 = vadd.f32 %v1950, %v1769
  %v1952 = vadd.f32 %v1951, %v1770
  %v1953 = vadd.f32 %v1952, %v1771
  %v1954 = vadd.f32 %v1953, %v1772
  %v1955 = vadd.f32 %v1954, %v1773
  %v1956 = vadd.f32 %v1955, %v1774
  %v1957 = vadd.f32 %v1956, %v1775
  %v1958 = vadd.f32 %v1957, %v1776
  %v1959 = vadd.f32 %v1958, %v1777
  %v1960 = vadd.f32 %v1959, %v1778
  %v1961 = vadd.f32 %v1960, %v1779
  %v1962 = vadd.f32 %v1961, %v1780
  %v1963 = vadd.f32 %v1962, %v1781
  %v1964 = vadd.f32 %v1963, %v1782
  %v1965 = vadd.f32 %v1964, %v1783
  %v1966 = vadd.f32 %v1965, %v1784
  %v1967 = vadd.f32 %v1966, %v1785
  %v1968 = vadd.f32 %v1967, %v1786
  %v1969 = vadd.f32 %v1968, %v1787
  %v1970 = vadd.f32 %v1969, %v1788
  %v1971 = vadd.f32 %v1970, %v1789
  %v1972 = vadd.f32 %v1971, %v1790
  %v1973 = vadd.f32 %v1972, %v1791
  %v1974 = vadd.f32 %v1973, %v1792
  %v1975 = vadd.f32 %v1974, %v1793
  %v1976 = vadd.f32 %v1975, %v1794
  %v1977 = vadd.f32 %v1976, %v1795
  %v1978 = vadd.f32 %v1977, %v1796
  %v1979 = vadd.f32 %v1978, %v1797
  %v1980 = vadd.f32 %v1979, %v1798
  %v1981 = vadd.f32 %v1980, %v1799
  %v1982 = vadd.f32 %v1981, %v1800
  %v1983 = vadd.f32 %v1982, %v1801
  %v1984 = vadd.f32 %v1983, %v1802
  %v1985 = vadd.f32 %v1984, %v1803
  %v1986 = vadd.f32 %v1985, %v1804
  %v1987 = vadd.f32 %v1986, %v1805
  %v1988 = vadd.f32 %v1987, %v1806
  %v1989 = vadd.f32 %v1988, %v1807
  %v1990 = vadd.f32 %v1989, %v1808
  %v1991 = vadd.f32 %v1990, %v1809
  %v1992 = vadd.f32 %v1991, %v1810
  %v1993 = vadd.f32 %v1992, %v1811
  %v1994 = vadd.f32 %v1993, %v1812
  %v1995 = vadd.f32 %v1994, %v1813
  %v1996 = vadd.f32 %v1995, %v1814
  %v1997 = vadd.f32 %v1996, %v1815
  %v1998 = vadd.f32 %v1997, %v1816
  %v1999 = vadd.f32 %v1998, %v1817
  %v2000 = vadd.f32 %v1999, %v1818
  %v2001 = vadd.f32 %v2000, %v1819
  %v2002 = vadd.f32 %v2001, %v1820
  %v2003 = vadd.f32 %v2002, %v1821
  %v2004 = vadd.f32 %v2003, %v1822
  %v2005 = vadd.f32 %v2004, %v1823
  %v2006 = vadd.f32 %v2005, %v1824
  %v2007 = vadd.f32 %v2006, %v1825
  %v2008 = vadd.f32 %v2007, %v1826
  %v2009 = vadd.f32 %v2008, %v1827
  %v2010 = vadd.f32 %v2009, %v1828
  %v2011 = vadd.f32 %v2010, %v1829
  %v2012 = vadd.f32 %v2011, %v1830
  %v2013 = vadd.f32 %v2012, %v1831
  %v2014 = vadd.f32 %v2013, %v1832
  %v2015 = vadd.f32 %v2014, %v1833
  %v2016 = vadd.f32 %v2015, %v1834
  %v2017 = vadd.f32 %v2016, %v1835
  %v2018 = vadd.f32 %v2017, %v1836
  %v2019 = vadd.f32 %v2018, %v1837
  %v2020 = vadd.f32 %v2019, %v1838
  %v2021 = vadd.f32 %v2020, %v1839
  %v2022 = vadd.f32 %v2021, %v1840
  %v2023 = vadd.f32 %v2022, %v1841
  %v2024 = vadd.f32 %v2023, %v1842
  %v2025 = vadd.f32 %v2024, %v1843
  %v2026 = vadd.f32 %v2025, %v1844
  %v2027 = vadd.f32 %v2026, %v1845
  %v2028 = vadd.f32 %v2027, %v1846
  %v2029 = vadd.f32 %v2028, %v1847
  %v2030 = vadd.f32 %v2029, %v1848
  %v2031 = vadd.f32 %v2030, %v1849
  %v2032 = vadd.f32 %v2031, %v1850
  %v2033 = vadd.f32 %v2032, %v1851
  %v2034 = vadd.f32 %v2033, %v1852
  %v2035 = vadd.f32 %v2034, %v1853
  %v2036 = vadd.f32 %v2035, %v1854
  %v2037 = vadd.f32 %v2036, %v1855
  %v2038 = vadd.f32 %v2037, %v1856
  %v2039 = vadd.f32 %v2038, %v1857
  %v2040 = vadd.f32 %v2039, %v1858
  %v2041 = vadd.f32 %v2040, %v1859
  %v2042 = vadd.f32 %v2041, %v1860
  %v2043 = vadd.f32 %v2042, %v1861
  %v2044 = vadd.f32 %v2043, %v1862
  %v2045 = vadd.f32 %v2044, %v1863
  %v2046 = vadd.f32 %v2045, %v1864
  %v2047 = vadd.f32 %v2046, %v1865
  %v2048 = vadd.f32 %v2047, %v1866
  %v2049 = vadd.f32 %v2048, %v1867
  %v2050 = vadd.f32 %v2049, %v1868
  %v2051 = vadd.f32 %v2050, %v1869
  %v2052 = vadd.f32 %v2051, %v1870
  %v2053 = vadd.f32 %v2052, %v1871
  %v2054 = vadd.f32 %v2053, %v1872
  %v2055 = vadd.f32 %v2054, %v1873
  %v2056 = vadd.f32 %v2055, %v1874
  %v2057 = vadd.f32 %v2056, %v1875
  %v2058 = vadd.f32 %v2057, %v1876
  %v2059 = vadd.f32 %v2058, %v1877
  %v2060 = vadd.f32 %v2059, %v1878
  %v2061 = vadd.f32 %v2060, %v1879
  %v2062 = vadd.f32 %v2061, %v1880
  %v2063 = vadd.f32 %v2062, %v1881
  %v2064 = vadd.f32 %v2063, %v1882
  %v2065 = vadd.f32 %v2064, %v1883
  %v2066 = vadd.f32 %v2065, %v1884
  %v2067 = vadd.f32 %v2066, %v1885
  %v2068 = vadd.f32 %v2067, %v1886
  %v2069 = vadd.f32 %v2068, %v1887
  %v2070 = vadd.f32 %v2069, %v1888
  %v2071 = vadd.f32 %v2070, %v1889
  %v2072 = vadd.f32 %v2071, %v1890
  %v2073 = vadd.f32 %v2072, %v1891
  %v2074 = vadd.f32 %v2073, %v1892
  %v2075 = vadd.f32 %v2074, %v1893
  %v2076 = vadd.f32 %v2075, %v1894
  %v2077 = vadd.f32 %v2076, %v1895
  %v2078 = vadd.f32 %v2077, %v1896
  %v2079 = vadd.f32 %v2078, %v1897
  %v2080 = vadd.f32 %v2079, %v1898
  %v2081 = vadd.f32 %v2080, %v1899
  %v2082 = vadd.f32 %v2081, %v1900
  %vm2083 = vcmask 1041408
  %v2084 = vsel %vm2083, %v1901, 0.0
  %v2085 = vadd.f32 %v2082, %v2084
  %v2086 = vrot.slane %v2085, 4
  %v2087 = vadd.f32 %v2085, %v2086
  %v2088 = vrot.slane %v2087, 2
  %v2089 = vadd.f32 %v2087, %v2088
  %v2090 = vrot.slane %v2089, 1
  %v2091 = vadd.f32 %v2089, %v2090
  %v2092 = vrcp.pop 1458.0
  %v2093 = vmul.f32 %v2091, %v2092
  %v2094 = vmul.f32 %v1719, %v1719
  %v2095 = vmul.f32 %v1720, %v1720
  %v2096 = vmul.f32 %v1721, %v1721
  %v2097 = vmul.f32 %v1722, %v1722
  %v2098 = vmul.f32 %v1723, %v1723
  %v2099 = vmul.f32 %v1724, %v1724
  %v2100 = vmul.f32 %v1725, %v1725
  %v2101 = vmul.f32 %v1726, %v1726
  %v2102 = vmul.f32 %v1727, %v1727
  %v2103 = vmul.f32 %v1728, %v1728
  %v2104 = vmul.f32 %v1729, %v1729
  %v2105 = vmul.f32 %v1730, %v1730
  %v2106 = vmul.f32 %v1731, %v1731
  %v2107 = vmul.f32 %v1732, %v1732
  %v2108 = vmul.f32 %v1733, %v1733
  %v2109 = vmul.f32 %v1734, %v1734
  %v2110 = vmul.f32 %v1735, %v1735
  %v2111 = vmul.f32 %v1736, %v1736
  %v2112 = vmul.f32 %v1737, %v1737
  %v2113 = vmul.f32 %v1738, %v1738
  %v2114 = vmul.f32 %v1739, %v1739
  %v2115 = vmul.f32 %v1740, %v1740
  %v2116 = vmul.f32 %v1741, %v1741
  %v2117 = vmul.f32 %v1742, %v1742
  %v2118 = vmul.f32 %v1743, %v1743
  %v2119 = vmul.f32 %v1744, %v1744
  %v2120 = vmul.f32 %v1745, %v1745
  %v2121 = vmul.f32 %v1746, %v1746
  %v2122 = vmul.f32 %v1747, %v1747
  %v2123 = vmul.f32 %v1748, %v1748
  %v2124 = vmul.f32 %v1749, %v1749
  %v2125 = vmul.f32 %v1750, %v1750
  %v2126 = vmul.f32 %v1751, %v1751
  %v2127 = vmul.f32 %v1752, %v1752
  %v2128 = vmul.f32 %v1753, %v1753
  %v2129 = vmul.f32 %v1754, %v1754
  %v2130 = vmul.f32 %v1755, %v1755
  %v2131 = vmul.f32 %v1756, %v1756
  %v2132 = vmul.f32 %v1757, %v1757
  %v2133 = vmul.f32 %v1758, %v1758
  %v2134 = vmul.f32 %v1759, %v1759
  %v2135 = vmul.f32 %v1760, %v1760
  %v2136 = vmul.f32 %v1761, %v1761
  %v2137 = vmul.f32 %v1762, %v1762
  %v2138 = vmul.f32 %v1763, %v1763
  %v2139 = vmul.f32 %v1764, %v1764
  %v2140 = vmul.f32 %v1765, %v1765
  %v2141 = vmul.f32 %v1766, %v1766
  %v2142 = vmul.f32 %v1767, %v1767
  %v2143 = vmul.f32 %v1768, %v1768
  %v2144 = vmul.f32 %v1769, %v1769
  %v2145 = vmul.f32 %v1770, %v1770
  %v2146 = vmul.f32 %v1771, %v1771
  %v2147 = vmul.f32 %v1772, %v1772
  %v2148 = vmul.f32 %v1773, %v1773
  %v2149 = vmul.f32 %v1774, %v1774
  %v2150 = vmul.f32 %v1775, %v1775
  %v2151 = vmul.f32 %v1776, %v1776
  %v2152 = vmul.f32 %v1777, %v1777
  %v2153 = vmul.f32 %v1778, %v1778
  %v2154 = vmul.f32 %v1779, %v1779
  %v2155 = vmul.f32 %v1780, %v1780
  %v2156 = vmul.f32 %v1781, %v1781
  %v2157 = vmul.f32 %v1782, %v1782
  %v2158 = vmul.f32 %v1783, %v1783
  %v2159 = vmul.f32 %v1784, %v1784
  %v2160 = vmul.f32 %v1785, %v1785
  %v2161 = vmul.f32 %v1786, %v1786
  %v2162 = vmul.f32 %v1787, %v1787
  %v2163 = vmul.f32 %v1788, %v1788
  %v2164 = vmul.f32 %v1789, %v1789
  %v2165 = vmul.f32 %v1790, %v1790
  %v2166 = vmul.f32 %v1791, %v1791
  %v2167 = vmul.f32 %v1792, %v1792
  %v2168 = vmul.f32 %v1793, %v1793
  %v2169 = vmul.f32 %v1794, %v1794
  %v2170 = vmul.f32 %v1795, %v1795
  %v2171 = vmul.f32 %v1796, %v1796
  %v2172 = vmul.f32 %v1797, %v1797
  %v2173 = vmul.f32 %v1798, %v1798
  %v2174 = vmul.f32 %v1799, %v1799
  %v2175 = vmul.f32 %v1800, %v1800
  %v2176 = vmul.f32 %v1801, %v1801
  %v2177 = vmul.f32 %v1802, %v1802
  %v2178 = vmul.f32 %v1803, %v1803
  %v2179 = vmul.f32 %v1804, %v1804
  %v2180 = vmul.f32 %v1805, %v1805
  %v2181 = vmul.f32 %v1806, %v1806
  %v2182 = vmul.f32 %v1807, %v1807
  %v2183 = vmul.f32 %v1808, %v1808
  %v2184 = vmul.f32 %v1809, %v1809
  %v2185 = vmul.f32 %v1810, %v1810
  %v2186 = vmul.f32 %v1811, %v1811
  %v2187 = vmul.f32 %v1812, %v1812
  %v2188 = vmul.f32 %v1813, %v1813
  %v2189 = vmul.f32 %v1814, %v1814
  %v2190 = vmul.f32 %v1815, %v1815
  %v2191 = vmul.f32 %v1816, %v1816
  %v2192 = vmul.f32 %v1817, %v1817
  %v2193 = vmul.f32 %v1818, %v1818
  %v2194 = vmul.f32 %v1819, %v1819
  %v2195 = vmul.f32 %v1820, %v1820
  %v2196 = vmul.f32 %v1821, %v1821
  %v2197 = vmul.f32 %v1822, %v1822
  %v2198 = vmul.f32 %v1823, %v1823
  %v2199 = vmul.f32 %v1824, %v1824
  %v2200 = vmul.f32 %v1825, %v1825
  %v2201 = vmul.f32 %v1826, %v1826
  %v2202 = vmul.f32 %v1827, %v1827
  %v2203 = vmul.f32 %v1828, %v1828
  %v2204 = vmul.f32 %v1829, %v1829
  %v2205 = vmul.f32 %v1830, %v1830
  %v2206 = vmul.f32 %v1831, %v1831
  %v2207 = vmul.f32 %v1832, %v1832
  %v2208 = vmul.f32 %v1833, %v1833
  %v2209 = vmul.f32 %v1834, %v1834
  %v2210 = vmul.f32 %v1835, %v1835
  %v2211 = vmul.f32 %v1836, %v1836
  %v2212 = vmul.f32 %v1837, %v1837
  %v2213 = vmul.f32 %v1838, %v1838
  %v2214 = vmul.f32 %v1839, %v1839
  %v2215 = vmul.f32 %v1840, %v1840
  %v2216 = vmul.f32 %v1841, %v1841
  %v2217 = vmul.f32 %v1842, %v1842
  %v2218 = vmul.f32 %v1843, %v1843
  %v2219 = vmul.f32 %v1844, %v1844
  %v2220 = vmul.f32 %v1845, %v1845
  %v2221 = vmul.f32 %v1846, %v1846
  %v2222 = vmul.f32 %v1847, %v1847
  %v2223 = vmul.f32 %v1848, %v1848
  %v2224 = vmul.f32 %v1849, %v1849
  %v2225 = vmul.f32 %v1850, %v1850
  %v2226 = vmul.f32 %v1851, %v1851
  %v2227 = vmul.f32 %v1852, %v1852
  %v2228 = vmul.f32 %v1853, %v1853
  %v2229 = vmul.f32 %v1854, %v1854
  %v2230 = vmul.f32 %v1855, %v1855
  %v2231 = vmul.f32 %v1856, %v1856
  %v2232 = vmul.f32 %v1857, %v1857
  %v2233 = vmul.f32 %v1858, %v1858
  %v2234 = vmul.f32 %v1859, %v1859
  %v2235 = vmul.f32 %v1860, %v1860
  %v2236 = vmul.f32 %v1861, %v1861
  %v2237 = vmul.f32 %v1862, %v1862
  %v2238 = vmul.f32 %v1863, %v1863
  %v2239 = vmul.f32 %v1864, %v1864
  %v2240 = vmul.f32 %v1865, %v1865
  %v2241 = vmul.f32 %v1866, %v1866
  %v2242 = vmul.f32 %v1867, %v1867
  %v2243 = vmul.f32 %v1868, %v1868
  %v2244 = vmul.f32 %v1869, %v1869
  %v2245 = vmul.f32 %v1870, %v1870
  %v2246 = vmul.f32 %v1871, %v1871
  %v2247 = vmul.f32 %v1872, %v1872
  %v2248 = vmul.f32 %v1873, %v1873
  %v2249 = vmul.f32 %v1874, %v1874
  %v2250 = vmul.f32 %v1875, %v1875
  %v2251 = vmul.f32 %v1876, %v1876
  %v2252 = vmul.f32 %v1877, %v1877
  %v2253 = vmul.f32 %v1878, %v1878
  %v2254 = vmul.f32 %v1879, %v1879
  %v2255 = vmul.f32 %v1880, %v1880
  %v2256 = vmul.f32 %v1881, %v1881
  %v2257 = vmul.f32 %v1882, %v1882
  %v2258 = vmul.f32 %v1883, %v1883
  %v2259 = vmul.f32 %v1884, %v1884
  %v2260 = vmul.f32 %v1885, %v1885
  %v2261 = vmul.f32 %v1886, %v1886
  %v2262 = vmul.f32 %v1887, %v1887
  %v2263 = vmul.f32 %v1888, %v1888
  %v2264 = vmul.f32 %v1889, %v1889
  %v2265 = vmul.f32 %v1890, %v1890
  %v2266 = vmul.f32 %v1891, %v1891
  %v2267 = vmul.f32 %v1892, %v1892
  %v2268 = vmul.f32 %v1893, %v1893
  %v2269 = vmul.f32 %v1894, %v1894
  %v2270 = vmul.f32 %v1895, %v1895
  %v2271 = vmul.f32 %v1896, %v1896
  %v2272 = vmul.f32 %v1897, %v1897
  %v2273 = vmul.f32 %v1898, %v1898
  %v2274 = vmul.f32 %v1899, %v1899
  %v2275 = vmul.f32 %v1900, %v1900
  %v2276 = vmul.f32 %v1901, %v1901
  %v2277 = vadd.f32 %v2094, %v2095
  %v2278 = vadd.f32 %v2277, %v2096
  %v2279 = vadd.f32 %v2278, %v2097
  %v2280 = vadd.f32 %v2279, %v2098
  %v2281 = vadd.f32 %v2280, %v2099
  %v2282 = vadd.f32 %v2281, %v2100
  %v2283 = vadd.f32 %v2282, %v2101
  %v2284 = vadd.f32 %v2283, %v2102
  %v2285 = vadd.f32 %v2284, %v2103
  %v2286 = vadd.f32 %v2285, %v2104
  %v2287 = vadd.f32 %v2286, %v2105
  %v2288 = vadd.f32 %v2287, %v2106
  %v2289 = vadd.f32 %v2288, %v2107
  %v2290 = vadd.f32 %v2289, %v2108
  %v2291 = vadd.f32 %v2290, %v2109
  %v2292 = vadd.f32 %v2291, %v2110
  %v2293 = vadd.f32 %v2292, %v2111
  %v2294 = vadd.f32 %v2293, %v2112
  %v2295 = vadd.f32 %v2294, %v2113
  %v2296 = vadd.f32 %v2295, %v2114
  %v2297 = vadd.f32 %v2296, %v2115
  %v2298 = vadd.f32 %v2297, %v2116
  %v2299 = vadd.f32 %v2298, %v2117
  %v2300 = vadd.f32 %v2299, %v2118
  %v2301 = vadd.f32 %v2300, %v2119
  %v2302 = vadd.f32 %v2301, %v2120
  %v2303 = vadd.f32 %v2302, %v2121
  %v2304 = vadd.f32 %v2303, %v2122
  %v2305 = vadd.f32 %v2304, %v2123
  %v2306 = vadd.f32 %v2305, %v2124
  %v2307 = vadd.f32 %v2306, %v2125
  %v2308 = vadd.f32 %v2307, %v2126
  %v2309 = vadd.f32 %v2308, %v2127
  %v2310 = vadd.f32 %v2309, %v2128
  %v2311 = vadd.f32 %v2310, %v2129
  %v2312 = vadd.f32 %v2311, %v2130
  %v2313 = vadd.f32 %v2312, %v2131
  %v2314 = vadd.f32 %v2313, %v2132
  %v2315 = vadd.f32 %v2314, %v2133
  %v2316 = vadd.f32 %v2315, %v2134
  %v2317 = vadd.f32 %v2316, %v2135
  %v2318 = vadd.f32 %v2317, %v2136
  %v2319 = vadd.f32 %v2318, %v2137
  %v2320 = vadd.f32 %v2319, %v2138
  %v2321 = vadd.f32 %v2320, %v2139
  %v2322 = vadd.f32 %v2321, %v2140
  %v2323 = vadd.f32 %v2322, %v2141
  %v2324 = vadd.f32 %v2323, %v2142
  %v2325 = vadd.f32 %v2324, %v2143
  %v2326 = vadd.f32 %v2325, %v2144
  %v2327 = vadd.f32 %v2326, %v2145
  %v2328 = vadd.f32 %v2327, %v2146
  %v2329 = vadd.f32 %v2328, %v2147
  %v2330 = vadd.f32 %v2329, %v2148
  %v2331 = vadd.f32 %v2330, %v2149
  %v2332 = vadd.f32 %v2331, %v2150
  %v2333 = vadd.f32 %v2332, %v2151
  %v2334 = vadd.f32 %v2333, %v2152
  %v2335 = vadd.f32 %v2334, %v2153
  %v2336 = vadd.f32 %v2335, %v2154
  %v2337 = vadd.f32 %v2336, %v2155
  %v2338 = vadd.f32 %v2337, %v2156
  %v2339 = vadd.f32 %v2338, %v2157
  %v2340 = vadd.f32 %v2339, %v2158
  %v2341 = vadd.f32 %v2340, %v2159
  %v2342 = vadd.f32 %v2341, %v2160
  %v2343 = vadd.f32 %v2342, %v2161
  %v2344 = vadd.f32 %v2343, %v2162
  %v2345 = vadd.f32 %v2344, %v2163
  %v2346 = vadd.f32 %v2345, %v2164
  %v2347 = vadd.f32 %v2346, %v2165
  %v2348 = vadd.f32 %v2347, %v2166
  %v2349 = vadd.f32 %v2348, %v2167
  %v2350 = vadd.f32 %v2349, %v2168
  %v2351 = vadd.f32 %v2350, %v2169
  %v2352 = vadd.f32 %v2351, %v2170
  %v2353 = vadd.f32 %v2352, %v2171
  %v2354 = vadd.f32 %v2353, %v2172
  %v2355 = vadd.f32 %v2354, %v2173
  %v2356 = vadd.f32 %v2355, %v2174
  %v2357 = vadd.f32 %v2356, %v2175
  %v2358 = vadd.f32 %v2357, %v2176
  %v2359 = vadd.f32 %v2358, %v2177
  %v2360 = vadd.f32 %v2359, %v2178
  %v2361 = vadd.f32 %v2360, %v2179
  %v2362 = vadd.f32 %v2361, %v2180
  %v2363 = vadd.f32 %v2362, %v2181
  %v2364 = vadd.f32 %v2363, %v2182
  %v2365 = vadd.f32 %v2364, %v2183
  %v2366 = vadd.f32 %v2365, %v2184
  %v2367 = vadd.f32 %v2366, %v2185
  %v2368 = vadd.f32 %v2367, %v2186
  %v2369 = vadd.f32 %v2368, %v2187
  %v2370 = vadd.f32 %v2369, %v2188
  %v2371 = vadd.f32 %v2370, %v2189
  %v2372 = vadd.f32 %v2371, %v2190
  %v2373 = vadd.f32 %v2372, %v2191
  %v2374 = vadd.f32 %v2373, %v2192
  %v2375 = vadd.f32 %v2374, %v2193
  %v2376 = vadd.f32 %v2375, %v2194
  %v2377 = vadd.f32 %v2376, %v2195
  %v2378 = vadd.f32 %v2377, %v2196
  %v2379 = vadd.f32 %v2378, %v2197
  %v2380 = vadd.f32 %v2379, %v2198
  %v2381 = vadd.f32 %v2380, %v2199
  %v2382 = vadd.f32 %v2381, %v2200
  %v2383 = vadd.f32 %v2382, %v2201
  %v2384 = vadd.f32 %v2383, %v2202
  %v2385 = vadd.f32 %v2384, %v2203
  %v2386 = vadd.f32 %v2385, %v2204
  %v2387 = vadd.f32 %v2386, %v2205
  %v2388 = vadd.f32 %v2387, %v2206
  %v2389 = vadd.f32 %v2388, %v2207
  %v2390 = vadd.f32 %v2389, %v2208
  %v2391 = vadd.f32 %v2390, %v2209
  %v2392 = vadd.f32 %v2391, %v2210
  %v2393 = vadd.f32 %v2392, %v2211
  %v2394 = vadd.f32 %v2393, %v2212
  %v2395 = vadd.f32 %v2394, %v2213
  %v2396 = vadd.f32 %v2395, %v2214
  %v2397 = vadd.f32 %v2396, %v2215
  %v2398 = vadd.f32 %v2397, %v2216
  %v2399 = vadd.f32 %v2398, %v2217
  %v2400 = vadd.f32 %v2399, %v2218
  %v2401 = vadd.f32 %v2400, %v2219
  %v2402 = vadd.f32 %v2401, %v2220
  %v2403 = vadd.f32 %v2402, %v2221
  %v2404 = vadd.f32 %v2403, %v2222
  %v2405 = vadd.f32 %v2404, %v2223
  %v2406 = vadd.f32 %v2405, %v2224
  %v2407 = vadd.f32 %v2406, %v2225
  %v2408 = vadd.f32 %v2407, %v2226
  %v2409 = vadd.f32 %v2408, %v2227
  %v2410 = vadd.f32 %v2409, %v2228
  %v2411 = vadd.f32 %v2410, %v2229
  %v2412 = vadd.f32 %v2411, %v2230
  %v2413 = vadd.f32 %v2412, %v2231
  %v2414 = vadd.f32 %v2413, %v2232
  %v2415 = vadd.f32 %v2414, %v2233
  %v2416 = vadd.f32 %v2415, %v2234
  %v2417 = vadd.f32 %v2416, %v2235
  %v2418 = vadd.f32 %v2417, %v2236
  %v2419 = vadd.f32 %v2418, %v2237
  %v2420 = vadd.f32 %v2419, %v2238
  %v2421 = vadd.f32 %v2420, %v2239
  %v2422 = vadd.f32 %v2421, %v2240
  %v2423 = vadd.f32 %v2422, %v2241
  %v2424 = vadd.f32 %v2423, %v2242
  %v2425 = vadd.f32 %v2424, %v2243
  %v2426 = vadd.f32 %v2425, %v2244
  %v2427 = vadd.f32 %v2426, %v2245
  %v2428 = vadd.f32 %v2427, %v2246
  %v2429 = vadd.f32 %v2428, %v2247
  %v2430 = vadd.f32 %v2429, %v2248
  %v2431 = vadd.f32 %v2430, %v2249
  %v2432 = vadd.f32 %v2431, %v2250
  %v2433 = vadd.f32 %v2432, %v2251
  %v2434 = vadd.f32 %v2433, %v2252
  %v2435 = vadd.f32 %v2434, %v2253
  %v2436 = vadd.f32 %v2435, %v2254
  %v2437 = vadd.f32 %v2436, %v2255
  %v2438 = vadd.f32 %v2437, %v2256
  %v2439 = vadd.f32 %v2438, %v2257
  %v2440 = vadd.f32 %v2439, %v2258
  %v2441 = vadd.f32 %v2440, %v2259
  %v2442 = vadd.f32 %v2441, %v2260
  %v2443 = vadd.f32 %v2442, %v2261
  %v2444 = vadd.f32 %v2443, %v2262
  %v2445 = vadd.f32 %v2444, %v2263
  %v2446 = vadd.f32 %v2445, %v2264
  %v2447 = vadd.f32 %v2446, %v2265
  %v2448 = vadd.f32 %v2447, %v2266
  %v2449 = vadd.f32 %v2448, %v2267
  %v2450 = vadd.f32 %v2449, %v2268
  %v2451 = vadd.f32 %v2450, %v2269
  %v2452 = vadd.f32 %v2451, %v2270
  %v2453 = vadd.f32 %v2452, %v2271
  %v2454 = vadd.f32 %v2453, %v2272
  %v2455 = vadd.f32 %v2454, %v2273
  %v2456 = vadd.f32 %v2455, %v2274
  %v2457 = vadd.f32 %v2456, %v2275
  %v2458 = vsel %vm2083, %v2276, 0.0
  %v2459 = vadd.f32 %v2457, %v2458
  %v2460 = vrot.slane %v2459, 4
  %v2461 = vadd.f32 %v2459, %v2460
  %v2462 = vrot.slane %v2461, 2
  %v2463 = vadd.f32 %v2461, %v2462
  %v2464 = vrot.slane %v2463, 1
  %v2465 = vadd.f32 %v2463, %v2464
  %v2466 = vmul.f32 %v2465, %v2092
  %v2467 = vmul.f32 %v2093, %v2093
  %v2468 = vsub.f32 %v2466, %v2467
  %v2469 = vmax.f32 %v2468, 0.0
  %v2470 = vld [vmem:[%s3] sm:$0x1]
  %v2471 = vadd.f32 %v2469, 1e-05
  %v2472 = vrsqrt.pop %v2471
  %v2473 = vmul.f32 %v2470, %v2472
  %v2474 = vld [vmem:[%s4] sm:$0x1]
  %v2475 = vmul.f32 %v2093, %v2473
  %v2476 = vsub.f32 %v2474, %v2475
  %v2478 = vlaneseq
  %v2479 = vshrl.u32 %v2478, 7
  %v2480 = vsub.s32 0, %v2479
  %v2481 = vrot.slane %v2473, %v2480
  %v2483 = vmul.f32 %v1719, %v2481
  %v2484 = vmul.f32 %v1720, %v2481
  %v2485 = vmul.f32 %v1721, %v2481
  %v2486 = vmul.f32 %v1722, %v2481
  %v2487 = vmul.f32 %v1723, %v2481
  %v2488 = vmul.f32 %v1724, %v2481
  %v2489 = vmul.f32 %v1725, %v2481
  %v2490 = vmul.f32 %v1726, %v2481
  %v2491 = vmul.f32 %v1727, %v2481
  %v2492 = vmul.f32 %v1728, %v2481
  %v2493 = vmul.f32 %v1729, %v2481
  %v2494 = vmul.f32 %v1730, %v2481
  %v2495 = vmul.f32 %v1731, %v2481
  %v2496 = vmul.f32 %v1732, %v2481
  %v2497 = vmul.f32 %v1733, %v2481
  %v2498 = vmul.f32 %v1734, %v2481
  %v2499 = vmul.f32 %v1735, %v2481
  %v2500 = vmul.f32 %v1736, %v2481
  %v2501 = vmul.f32 %v1737, %v2481
  %v2502 = vmul.f32 %v1738, %v2481
  %v2503 = vmul.f32 %v1739, %v2481
  %v2504 = vmul.f32 %v1740, %v2481
  %v2505 = vmul.f32 %v1741, %v2481
  %v2506 = vmul.f32 %v1742, %v2481
  %v2507 = vmul.f32 %v1743, %v2481
  %v2508 = vmul.f32 %v1744, %v2481
  %v2509 = vmul.f32 %v1745, %v2481
  %v2510 = vmul.f32 %v1746, %v2481
  %v2511 = vmul.f32 %v1747, %v2481
  %v2512 = vmul.f32 %v1748, %v2481
  %v2513 = vmul.f32 %v1749, %v2481
  %v2514 = vmul.f32 %v1750, %v2481
  %v2515 = vmul.f32 %v1751, %v2481
  %v2516 = vmul.f32 %v1752, %v2481
  %v2517 = vmul.f32 %v1753, %v2481
  %v2518 = vmul.f32 %v1754, %v2481
  %v2519 = vmul.f32 %v1755, %v2481
  %v2520 = vmul.f32 %v1756, %v2481
  %v2521 = vmul.f32 %v1757, %v2481
  %v2522 = vmul.f32 %v1758, %v2481
  %v2523 = vmul.f32 %v1759, %v2481
  %v2524 = vmul.f32 %v1760, %v2481
  %v2525 = vmul.f32 %v1761, %v2481
  %v2526 = vmul.f32 %v1762, %v2481
  %v2527 = vmul.f32 %v1763, %v2481
  %v2528 = vmul.f32 %v1764, %v2481
  %v2529 = vmul.f32 %v1765, %v2481
  %v2530 = vmul.f32 %v1766, %v2481
  %v2531 = vmul.f32 %v1767, %v2481
  %v2532 = vmul.f32 %v1768, %v2481
  %v2533 = vmul.f32 %v1769, %v2481
  %v2534 = vmul.f32 %v1770, %v2481
  %v2535 = vmul.f32 %v1771, %v2481
  %v2536 = vmul.f32 %v1772, %v2481
  %v2537 = vmul.f32 %v1773, %v2481
  %v2538 = vmul.f32 %v1774, %v2481
  %v2539 = vmul.f32 %v1775, %v2481
  %v2540 = vmul.f32 %v1776, %v2481
  %v2541 = vmul.f32 %v1777, %v2481
  %v2542 = vmul.f32 %v1778, %v2481
  %v2543 = vmul.f32 %v1779, %v2481
  %v2544 = vmul.f32 %v1780, %v2481
  %v2545 = vmul.f32 %v1781, %v2481
  %v2546 = vmul.f32 %v1782, %v2481
  %v2547 = vmul.f32 %v1783, %v2481
  %v2548 = vmul.f32 %v1784, %v2481
  %v2549 = vmul.f32 %v1785, %v2481
  %v2550 = vmul.f32 %v1786, %v2481
  %v2551 = vmul.f32 %v1787, %v2481
  %v2552 = vmul.f32 %v1788, %v2481
  %v2553 = vmul.f32 %v1789, %v2481
  %v2554 = vmul.f32 %v1790, %v2481
  %v2555 = vmul.f32 %v1791, %v2481
  %v2556 = vmul.f32 %v1792, %v2481
  %v2557 = vmul.f32 %v1793, %v2481
  %v2558 = vmul.f32 %v1794, %v2481
  %v2559 = vmul.f32 %v1795, %v2481
  %v2560 = vmul.f32 %v1796, %v2481
  %v2561 = vmul.f32 %v1797, %v2481
  %v2562 = vmul.f32 %v1798, %v2481
  %v2563 = vmul.f32 %v1799, %v2481
  %v2564 = vmul.f32 %v1800, %v2481
  %v2565 = vmul.f32 %v1801, %v2481
  %v2566 = vmul.f32 %v1802, %v2481
  %v2567 = vmul.f32 %v1803, %v2481
  %v2568 = vmul.f32 %v1804, %v2481
  %v2569 = vmul.f32 %v1805, %v2481
  %v2570 = vmul.f32 %v1806, %v2481
  %v2571 = vmul.f32 %v1807, %v2481
  %v2572 = vmul.f32 %v1808, %v2481
  %v2573 = vmul.f32 %v1809, %v2481
  %v2574 = vmul.f32 %v1810, %v2481
  %v2575 = vmul.f32 %v1811, %v2481
  %v2576 = vmul.f32 %v1812, %v2481
  %v2577 = vmul.f32 %v1813, %v2481
  %v2578 = vmul.f32 %v1814, %v2481
  %v2579 = vmul.f32 %v1815, %v2481
  %v2580 = vmul.f32 %v1816, %v2481
  %v2581 = vmul.f32 %v1817, %v2481
  %v2582 = vmul.f32 %v1818, %v2481
  %v2583 = vmul.f32 %v1819, %v2481
  %v2584 = vmul.f32 %v1820, %v2481
  %v2585 = vmul.f32 %v1821, %v2481
  %v2586 = vmul.f32 %v1822, %v2481
  %v2587 = vmul.f32 %v1823, %v2481
  %v2588 = vmul.f32 %v1824, %v2481
  %v2589 = vmul.f32 %v1825, %v2481
  %v2590 = vmul.f32 %v1826, %v2481
  %v2591 = vmul.f32 %v1827, %v2481
  %v2592 = vmul.f32 %v1828, %v2481
  %v2593 = vmul.f32 %v1829, %v2481
  %v2594 = vmul.f32 %v1830, %v2481
  %v2595 = vmul.f32 %v1831, %v2481
  %v2596 = vmul.f32 %v1832, %v2481
  %v2597 = vmul.f32 %v1833, %v2481
  %v2598 = vmul.f32 %v1834, %v2481
  %v2599 = vmul.f32 %v1835, %v2481
  %v2600 = vmul.f32 %v1836, %v2481
  %v2601 = vmul.f32 %v1837, %v2481
  %v2602 = vmul.f32 %v1838, %v2481
  %v2603 = vmul.f32 %v1839, %v2481
  %v2604 = vmul.f32 %v1840, %v2481
  %v2605 = vmul.f32 %v1841, %v2481
  %v2606 = vmul.f32 %v1842, %v2481
  %v2607 = vmul.f32 %v1843, %v2481
  %v2608 = vmul.f32 %v1844, %v2481
  %v2609 = vmul.f32 %v1845, %v2481
  %v2610 = vmul.f32 %v1846, %v2481
  %v2611 = vmul.f32 %v1847, %v2481
  %v2612 = vmul.f32 %v1848, %v2481
  %v2613 = vmul.f32 %v1849, %v2481
  %v2614 = vmul.f32 %v1850, %v2481
  %v2615 = vmul.f32 %v1851, %v2481
  %v2616 = vmul.f32 %v1852, %v2481
  %v2617 = vmul.f32 %v1853, %v2481
  %v2618 = vmul.f32 %v1854, %v2481
  %v2619 = vmul.f32 %v1855, %v2481
  %v2620 = vmul.f32 %v1856, %v2481
  %v2621 = vmul.f32 %v1857, %v2481
  %v2622 = vmul.f32 %v1858, %v2481
  %v2623 = vmul.f32 %v1859, %v2481
  %v2624 = vmul.f32 %v1860, %v2481
  %v2625 = vmul.f32 %v1861, %v2481
  %v2626 = vmul.f32 %v1862, %v2481
  %v2627 = vmul.f32 %v1863, %v2481
  %v2628 = vmul.f32 %v1864, %v2481
  %v2629 = vmul.f32 %v1865, %v2481
  %v2630 = vmul.f32 %v1866, %v2481
  %v2631 = vmul.f32 %v1867, %v2481
  %v2632 = vmul.f32 %v1868, %v2481
  %v2633 = vmul.f32 %v1869, %v2481
  %v2634 = vmul.f32 %v1870, %v2481
  %v2635 = vmul.f32 %v1871, %v2481
  %v2636 = vmul.f32 %v1872, %v2481
  %v2637 = vmul.f32 %v1873, %v2481
  %v2638 = vmul.f32 %v1874, %v2481
  %v2639 = vmul.f32 %v1875, %v2481
  %v2640 = vmul.f32 %v1876, %v2481
  %v2641 = vmul.f32 %v1877, %v2481
  %v2642 = vmul.f32 %v1878, %v2481
  %v2643 = vmul.f32 %v1879, %v2481
  %v2644 = vmul.f32 %v1880, %v2481
  %v2645 = vmul.f32 %v1881, %v2481
  %v2646 = vmul.f32 %v1882, %v2481
  %v2647 = vmul.f32 %v1883, %v2481
  %v2648 = vmul.f32 %v1884, %v2481
  %v2649 = vmul.f32 %v1885, %v2481
  %v2650 = vmul.f32 %v1886, %v2481
  %v2651 = vmul.f32 %v1887, %v2481
  %v2652 = vmul.f32 %v1888, %v2481
  %v2653 = vmul.f32 %v1889, %v2481
  %v2654 = vmul.f32 %v1890, %v2481
  %v2655 = vmul.f32 %v1891, %v2481
  %v2656 = vmul.f32 %v1892, %v2481
  %v2657 = vmul.f32 %v1893, %v2481
  %v2658 = vmul.f32 %v1894, %v2481
  %v2659 = vmul.f32 %v1895, %v2481
  %v2660 = vmul.f32 %v1896, %v2481
  %v2661 = vmul.f32 %v1897, %v2481
  %v2662 = vmul.f32 %v1898, %v2481
  %v2663 = vmul.f32 %v1899, %v2481
  %v2664 = vmul.f32 %v1900, %v2481
  %v2665 = vmul.f32 %v1901, %v2481
  %v2667 = vlaneseq
  %v2668 = vshrl.u32 %v2667, 7
  %v2669 = vsub.s32 0, %v2668
  %v2670 = vrot.slane %v2476, %v2669
  %v2672 = vadd.f32 %v2483, %v2670
  %v2673 = vadd.f32 %v2484, %v2670
  %v2674 = vadd.f32 %v2485, %v2670
  %v2675 = vadd.f32 %v2486, %v2670
  %v2676 = vadd.f32 %v2487, %v2670
  %v2677 = vadd.f32 %v2488, %v2670
  %v2678 = vadd.f32 %v2489, %v2670
  %v2679 = vadd.f32 %v2490, %v2670
  %v2680 = vadd.f32 %v2491, %v2670
  %v2681 = vadd.f32 %v2492, %v2670
  %v2682 = vadd.f32 %v2493, %v2670
  %v2683 = vadd.f32 %v2494, %v2670
  %v2684 = vadd.f32 %v2495, %v2670
  %v2685 = vadd.f32 %v2496, %v2670
  %v2686 = vadd.f32 %v2497, %v2670
  %v2687 = vadd.f32 %v2498, %v2670
  %v2688 = vadd.f32 %v2499, %v2670
  %v2689 = vadd.f32 %v2500, %v2670
  %v2690 = vadd.f32 %v2501, %v2670
  %v2691 = vadd.f32 %v2502, %v2670
  %v2692 = vadd.f32 %v2503, %v2670
  %v2693 = vadd.f32 %v2504, %v2670
  %v2694 = vadd.f32 %v2505, %v2670
  %v2695 = vadd.f32 %v2506, %v2670
  %v2696 = vadd.f32 %v2507, %v2670
  %v2697 = vadd.f32 %v2508, %v2670
  %v2698 = vadd.f32 %v2509, %v2670
  %v2699 = vadd.f32 %v2510, %v2670
  %v2700 = vadd.f32 %v2511, %v2670
  %v2701 = vadd.f32 %v2512, %v2670
  %v2702 = vadd.f32 %v2513, %v2670
  %v2703 = vadd.f32 %v2514, %v2670
  %v2704 = vadd.f32 %v2515, %v2670
  %v2705 = vadd.f32 %v2516, %v2670
  %v2706 = vadd.f32 %v2517, %v2670
  %v2707 = vadd.f32 %v2518, %v2670
  %v2708 = vadd.f32 %v2519, %v2670
  %v2709 = vadd.f32 %v2520, %v2670
  %v2710 = vadd.f32 %v2521, %v2670
  %v2711 = vadd.f32 %v2522, %v2670
  %v2712 = vadd.f32 %v2523, %v2670
  %v2713 = vadd.f32 %v2524, %v2670
  %v2714 = vadd.f32 %v2525, %v2670
  %v2715 = vadd.f32 %v2526, %v2670
  %v2716 = vadd.f32 %v2527, %v2670
  %v2717 = vadd.f32 %v2528, %v2670
  %v2718 = vadd.f32 %v2529, %v2670
  %v2719 = vadd.f32 %v2530, %v2670
  %v2720 = vadd.f32 %v2531, %v2670
  %v2721 = vadd.f32 %v2532, %v2670
  %v2722 = vadd.f32 %v2533, %v2670
  %v2723 = vadd.f32 %v2534, %v2670
  %v2724 = vadd.f32 %v2535, %v2670
  %v2725 = vadd.f32 %v2536, %v2670
  %v2726 = vadd.f32 %v2537, %v2670
  %v2727 = vadd.f32 %v2538, %v2670
  %v2728 = vadd.f32 %v2539, %v2670
  %v2729 = vadd.f32 %v2540, %v2670
  %v2730 = vadd.f32 %v2541, %v2670
  %v2731 = vadd.f32 %v2542, %v2670
  %v2732 = vadd.f32 %v2543, %v2670
  %v2733 = vadd.f32 %v2544, %v2670
  %v2734 = vadd.f32 %v2545, %v2670
  %v2735 = vadd.f32 %v2546, %v2670
  %v2736 = vadd.f32 %v2547, %v2670
  %v2737 = vadd.f32 %v2548, %v2670
  %v2738 = vadd.f32 %v2549, %v2670
  %v2739 = vadd.f32 %v2550, %v2670
  %v2740 = vadd.f32 %v2551, %v2670
  %v2741 = vadd.f32 %v2552, %v2670
  %v2742 = vadd.f32 %v2553, %v2670
  %v2743 = vadd.f32 %v2554, %v2670
  %v2744 = vadd.f32 %v2555, %v2670
  %v2745 = vadd.f32 %v2556, %v2670
  %v2746 = vadd.f32 %v2557, %v2670
  %v2747 = vadd.f32 %v2558, %v2670
  %v2748 = vadd.f32 %v2559, %v2670
  %v2749 = vadd.f32 %v2560, %v2670
  %v2750 = vadd.f32 %v2561, %v2670
  %v2751 = vadd.f32 %v2562, %v2670
  %v2752 = vadd.f32 %v2563, %v2670
  %v2753 = vadd.f32 %v2564, %v2670
  %v2754 = vadd.f32 %v2565, %v2670
  %v2755 = vadd.f32 %v2566, %v2670
  %v2756 = vadd.f32 %v2567, %v2670
  %v2757 = vadd.f32 %v2568, %v2670
  %v2758 = vadd.f32 %v2569, %v2670
  %v2759 = vadd.f32 %v2570, %v2670
  %v2760 = vadd.f32 %v2571, %v2670
  %v2761 = vadd.f32 %v2572, %v2670
  %v2762 = vadd.f32 %v2573, %v2670
  %v2763 = vadd.f32 %v2574, %v2670
  %v2764 = vadd.f32 %v2575, %v2670
  %v2765 = vadd.f32 %v2576, %v2670
  %v2766 = vadd.f32 %v2577, %v2670
  %v2767 = vadd.f32 %v2578, %v2670
  %v2768 = vadd.f32 %v2579, %v2670
  %v2769 = vadd.f32 %v2580, %v2670
  %v2770 = vadd.f32 %v2581, %v2670
  %v2771 = vadd.f32 %v2582, %v2670
  %v2772 = vadd.f32 %v2583, %v2670
  %v2773 = vadd.f32 %v2584, %v2670
  %v2774 = vadd.f32 %v2585, %v2670
  %v2775 = vadd.f32 %v2586, %v2670
  %v2776 = vadd.f32 %v2587, %v2670
  %v2777 = vadd.f32 %v2588, %v2670
  %v2778 = vadd.f32 %v2589, %v2670
  %v2779 = vadd.f32 %v2590, %v2670
  %v2780 = vadd.f32 %v2591, %v2670
  %v2781 = vadd.f32 %v2592, %v2670
  %v2782 = vadd.f32 %v2593, %v2670
  %v2783 = vadd.f32 %v2594, %v2670
  %v2784 = vadd.f32 %v2595, %v2670
  %v2785 = vadd.f32 %v2596, %v2670
  %v2786 = vadd.f32 %v2597, %v2670
  %v2787 = vadd.f32 %v2598, %v2670
  %v2788 = vadd.f32 %v2599, %v2670
  %v2789 = vadd.f32 %v2600, %v2670
  %v2790 = vadd.f32 %v2601, %v2670
  %v2791 = vadd.f32 %v2602, %v2670
  %v2792 = vadd.f32 %v2603, %v2670
  %v2793 = vadd.f32 %v2604, %v2670
  %v2794 = vadd.f32 %v2605, %v2670
  %v2795 = vadd.f32 %v2606, %v2670
  %v2796 = vadd.f32 %v2607, %v2670
  %v2797 = vadd.f32 %v2608, %v2670
  %v2798 = vadd.f32 %v2609, %v2670
  %v2799 = vadd.f32 %v2610, %v2670
  %v2800 = vadd.f32 %v2611, %v2670
  %v2801 = vadd.f32 %v2612, %v2670
  %v2802 = vadd.f32 %v2613, %v2670
  %v2803 = vadd.f32 %v2614, %v2670
  %v2804 = vadd.f32 %v2615, %v2670
  %v2805 = vadd.f32 %v2616, %v2670
  %v2806 = vadd.f32 %v2617, %v2670
  %v2807 = vadd.f32 %v2618, %v2670
  %v2808 = vadd.f32 %v2619, %v2670
  %v2809 = vadd.f32 %v2620, %v2670
  %v2810 = vadd.f32 %v2621, %v2670
  %v2811 = vadd.f32 %v2622, %v2670
  %v2812 = vadd.f32 %v2623, %v2670
  %v2813 = vadd.f32 %v2624, %v2670
  %v2814 = vadd.f32 %v2625, %v2670
  %v2815 = vadd.f32 %v2626, %v2670
  %v2816 = vadd.f32 %v2627, %v2670
  %v2817 = vadd.f32 %v2628, %v2670
  %v2818 = vadd.f32 %v2629, %v2670
  %v2819 = vadd.f32 %v2630, %v2670
  %v2820 = vadd.f32 %v2631, %v2670
  %v2821 = vadd.f32 %v2632, %v2670
  %v2822 = vadd.f32 %v2633, %v2670
  %v2823 = vadd.f32 %v2634, %v2670
  %v2824 = vadd.f32 %v2635, %v2670
  %v2825 = vadd.f32 %v2636, %v2670
  %v2826 = vadd.f32 %v2637, %v2670
  %v2827 = vadd.f32 %v2638, %v2670
  %v2828 = vadd.f32 %v2639, %v2670
  %v2829 = vadd.f32 %v2640, %v2670
  %v2830 = vadd.f32 %v2641, %v2670
  %v2831 = vadd.f32 %v2642, %v2670
  %v2832 = vadd.f32 %v2643, %v2670
  %v2833 = vadd.f32 %v2644, %v2670
  %v2834 = vadd.f32 %v2645, %v2670
  %v2835 = vadd.f32 %v2646, %v2670
  %v2836 = vadd.f32 %v2647, %v2670
  %v2837 = vadd.f32 %v2648, %v2670
  %v2838 = vadd.f32 %v2649, %v2670
  %v2839 = vadd.f32 %v2650, %v2670
  %v2840 = vadd.f32 %v2651, %v2670
  %v2841 = vadd.f32 %v2652, %v2670
  %v2842 = vadd.f32 %v2653, %v2670
  %v2843 = vadd.f32 %v2654, %v2670
  %v2844 = vadd.f32 %v2655, %v2670
  %v2845 = vadd.f32 %v2656, %v2670
  %v2846 = vadd.f32 %v2657, %v2670
  %v2847 = vadd.f32 %v2658, %v2670
  %v2848 = vadd.f32 %v2659, %v2670
  %v2849 = vadd.f32 %v2660, %v2670
  %v2850 = vadd.f32 %v2661, %v2670
  %v2851 = vadd.f32 %v2662, %v2670
  %v2852 = vadd.f32 %v2663, %v2670
  %v2853 = vadd.f32 %v2664, %v2670
  %v2854 = vadd.f32 %v2665, %v2670
  %2855 = vst [vmem:[%s5] sm:$0xff] %v2672
  %2856 = vst [vmem:[%s5 + $0x8] sm:$0xff] %v2673
  %2857 = vst [vmem:[%s5 + $0x10] sm:$0xff] %v2674
  %2858 = vst [vmem:[%s5 + $0x18] sm:$0xff] %v2675
  %2859 = vst [vmem:[%s5 + $0x20] sm:$0xff] %v2676
  %2860 = vst [vmem:[%s5 + $0x28] sm:$0xff] %v2677
  %2861 = vst [vmem:[%s5 + $0x30] sm:$0xff] %v2678
  %2862 = vst [vmem:[%s5 + $0x38] sm:$0xff] %v2679
  %2863 = vst [vmem:[%s5 + $0x40] sm:$0xff] %v2680
  %2864 = vst [vmem:[%s5 + $0x48] sm:$0xff] %v2681
  %2865 = vst [vmem:[%s5 + $0x50] sm:$0xff] %v2682
  %2866 = vst [vmem:[%s5 + $0x58] sm:$0xff] %v2683
  %2867 = vst [vmem:[%s5 + $0x60] sm:$0xff] %v2684
  %2868 = vst [vmem:[%s5 + $0x68] sm:$0xff] %v2685
  %2869 = vst [vmem:[%s5 + $0x70] sm:$0xff] %v2686
  %2870 = vst [vmem:[%s5 + $0x78] sm:$0xff] %v2687
  %2871 = vst [vmem:[%s5 + $0x80] sm:$0xff] %v2688
  %2872 = vst [vmem:[%s5 + $0x88] sm:$0xff] %v2689
  %2873 = vst [vmem:[%s5 + $0x90] sm:$0xff] %v2690
  %2874 = vst [vmem:[%s5 + $0x98] sm:$0xff] %v2691
  %2875 = vst [vmem:[%s5 + $0xa0] sm:$0xff] %v2692
  %2876 = vst [vmem:[%s5 + $0xa8] sm:$0xff] %v2693
  %2877 = vst [vmem:[%s5 + $0xb0] sm:$0xff] %v2694
  %2878 = vst [vmem:[%s5 + $0xb8] sm:$0xff] %v2695
  %2879 = vst [vmem:[%s5 + $0xc0] sm:$0xff] %v2696
  %2880 = vst [vmem:[%s5 + $0xc8] sm:$0xff] %v2697
  %2881 = vst [vmem:[%s5 + $0xd0] sm:$0xff] %v2698
  %2882 = vst [vmem:[%s5 + $0xd8] sm:$0xff] %v2699
  %2883 = vst [vmem:[%s5 + $0xe0] sm:$0xff] %v2700
  %2884 = vst [vmem:[%s5 + $0xe8] sm:$0xff] %v2701
  %2885 = vst [vmem:[%s5 + $0xf0] sm:$0xff] %v2702
  %2886 = vst [vmem:[%s5 + $0xf8] sm:$0xff] %v2703
  %2887 = vst [vmem:[%s5 + $0x100] sm:$0xff] %v2704
  %2888 = vst [vmem:[%s5 + $0x108] sm:$0xff] %v2705
  %2889 = vst [vmem:[%s5 + $0x110] sm:$0xff] %v2706
  %2890 = vst [vmem:[%s5 + $0x118] sm:$0xff] %v2707
  %2891 = vst [vmem:[%s5 + $0x120] sm:$0xff] %v2708
  %2892 = vst [vmem:[%s5 + $0x128] sm:$0xff] %v2709
  %2893 = vst [vmem:[%s5 + $0x130] sm:$0xff] %v2710
  %2894 = vst [vmem:[%s5 + $0x138] sm:$0xff] %v2711
  %2895 = vst [vmem:[%s5 + $0x140] sm:$0xff] %v2712
  %2896 = vst [vmem:[%s5 + $0x148] sm:$0xff] %v2713
  %2897 = vst [vmem:[%s5 + $0x150] sm:$0xff] %v2714
  %2898 = vst [vmem:[%s5 + $0x158] sm:$0xff] %v2715
  %2899 = vst [vmem:[%s5 + $0x160] sm:$0xff] %v2716
  %2900 = vst [vmem:[%s5 + $0x168] sm:$0xff] %v2717
  %2901 = vst [vmem:[%s5 + $0x170] sm:$0xff] %v2718
  %2902 = vst [vmem:[%s5 + $0x178] sm:$0xff] %v2719
  %2903 = vst [vmem:[%s5 + $0x180] sm:$0xff] %v2720
  %2904 = vst [vmem:[%s5 + $0x188] sm:$0xff] %v2721
  %2905 = vst [vmem:[%s5 + $0x190] sm:$0xff] %v2722
  %2906 = vst [vmem:[%s5 + $0x198] sm:$0xff] %v2723
  %2907 = vst [vmem:[%s5 + $0x1a0] sm:$0xff] %v2724
  %2908 = vst [vmem:[%s5 + $0x1a8] sm:$0xff] %v2725
  %2909 = vst [vmem:[%s5 + $0x1b0] sm:$0xff] %v2726
  %2910 = vst [vmem:[%s5 + $0x1b8] sm:$0xff] %v2727
  %2911 = vst [vmem:[%s5 + $0x1c0] sm:$0xff] %v2728
  %2912 = vst [vmem:[%s5 + $0x1c8] sm:$0xff] %v2729
  %2913 = vst [vmem:[%s5 + $0x1d0] sm:$0xff] %v2730
  %2914 = vst [vmem:[%s5 + $0x1d8] sm:$0xff] %v2731
  %2915 = vst [vmem:[%s5 + $0x1e0] sm:$0xff] %v2732
  %2916 = vst [vmem:[%s5 + $0x1e8] sm:$0xff] %v2733
  %2917 = vst [vmem:[%s5 + $0x1f0] sm:$0xff] %v2734
  %2918 = vst [vmem:[%s5 + $0x1f8] sm:$0xff] %v2735
  %2919 = vst [vmem:[%s5 + $0x200] sm:$0xff] %v2736
  %2920 = vst [vmem:[%s5 + $0x208] sm:$0xff] %v2737
  %2921 = vst [vmem:[%s5 + $0x210] sm:$0xff] %v2738
  %2922 = vst [vmem:[%s5 + $0x218] sm:$0xff] %v2739
  %2923 = vst [vmem:[%s5 + $0x220] sm:$0xff] %v2740
  %2924 = vst [vmem:[%s5 + $0x228] sm:$0xff] %v2741
  %2925 = vst [vmem:[%s5 + $0x230] sm:$0xff] %v2742
  %2926 = vst [vmem:[%s5 + $0x238] sm:$0xff] %v2743
  %2927 = vst [vmem:[%s5 + $0x240] sm:$0xff] %v2744
  %2928 = vst [vmem:[%s5 + $0x248] sm:$0xff] %v2745
  %2929 = vst [vmem:[%s5 + $0x250] sm:$0xff] %v2746
  %2930 = vst [vmem:[%s5 + $0x258] sm:$0xff] %v2747
  %2931 = vst [vmem:[%s5 + $0x260] sm:$0xff] %v2748
  %2932 = vst [vmem:[%s5 + $0x268] sm:$0xff] %v2749
  %2933 = vst [vmem:[%s5 + $0x270] sm:$0xff] %v2750
  %2934 = vst [vmem:[%s5 + $0x278] sm:$0xff] %v2751
  %2935 = vst [vmem:[%s5 + $0x280] sm:$0xff] %v2752
  %2936 = vst [vmem:[%s5 + $0x288] sm:$0xff] %v2753
  %2937 = vst [vmem:[%s5 + $0x290] sm:$0xff] %v2754
  %2938 = vst [vmem:[%s5 + $0x298] sm:$0xff] %v2755
  %2939 = vst [vmem:[%s5 + $0x2a0] sm:$0xff] %v2756
  %2940 = vst [vmem:[%s5 + $0x2a8] sm:$0xff] %v2757
  %2941 = vst [vmem:[%s5 + $0x2b0] sm:$0xff] %v2758
  %2942 = vst [vmem:[%s5 + $0x2b8] sm:$0xff] %v2759
  %2943 = vst [vmem:[%s5 + $0x2c0] sm:$0xff] %v2760
  %2944 = vst [vmem:[%s5 + $0x2c8] sm:$0xff] %v2761
  %2945 = vst [vmem:[%s5 + $0x2d0] sm:$0xff] %v2762
  %2946 = vst [vmem:[%s5 + $0x2d8] sm:$0xff] %v2763
  %2947 = vst [vmem:[%s5 + $0x2e0] sm:$0xff] %v2764
  %2948 = vst [vmem:[%s5 + $0x2e8] sm:$0xff] %v2765
  %2949 = vst [vmem:[%s5 + $0x2f0] sm:$0xff] %v2766
  %2950 = vst [vmem:[%s5 + $0x2f8] sm:$0xff] %v2767
  %2951 = vst [vmem:[%s5 + $0x300] sm:$0xff] %v2768
  %2952 = vst [vmem:[%s5 + $0x308] sm:$0xff] %v2769
  %2953 = vst [vmem:[%s5 + $0x310] sm:$0xff] %v2770
  %2954 = vst [vmem:[%s5 + $0x318] sm:$0xff] %v2771
  %2955 = vst [vmem:[%s5 + $0x320] sm:$0xff] %v2772
  %2956 = vst [vmem:[%s5 + $0x328] sm:$0xff] %v2773
  %2957 = vst [vmem:[%s5 + $0x330] sm:$0xff] %v2774
  %2958 = vst [vmem:[%s5 + $0x338] sm:$0xff] %v2775
  %2959 = vst [vmem:[%s5 + $0x340] sm:$0xff] %v2776
  %2960 = vst [vmem:[%s5 + $0x348] sm:$0xff] %v2777
  %2961 = vst [vmem:[%s5 + $0x350] sm:$0xff] %v2778
  %2962 = vst [vmem:[%s5 + $0x358] sm:$0xff] %v2779
  %2963 = vst [vmem:[%s5 + $0x360] sm:$0xff] %v2780
  %2964 = vst [vmem:[%s5 + $0x368] sm:$0xff] %v2781
  %2965 = vst [vmem:[%s5 + $0x370] sm:$0xff] %v2782
  %2966 = vst [vmem:[%s5 + $0x378] sm:$0xff] %v2783
  %2967 = vst [vmem:[%s5 + $0x380] sm:$0xff] %v2784
  %2968 = vst [vmem:[%s5 + $0x388] sm:$0xff] %v2785
  %2969 = vst [vmem:[%s5 + $0x390] sm:$0xff] %v2786
  %2970 = vst [vmem:[%s5 + $0x398] sm:$0xff] %v2787
  %2971 = vst [vmem:[%s5 + $0x3a0] sm:$0xff] %v2788
  %2972 = vst [vmem:[%s5 + $0x3a8] sm:$0xff] %v2789
  %2973 = vst [vmem:[%s5 + $0x3b0] sm:$0xff] %v2790
  %2974 = vst [vmem:[%s5 + $0x3b8] sm:$0xff] %v2791
  %2975 = vst [vmem:[%s5 + $0x3c0] sm:$0xff] %v2792
  %2976 = vst [vmem:[%s5 + $0x3c8] sm:$0xff] %v2793
  %2977 = vst [vmem:[%s5 + $0x3d0] sm:$0xff] %v2794
  %2978 = vst [vmem:[%s5 + $0x3d8] sm:$0xff] %v2795
  %2979 = vst [vmem:[%s5 + $0x3e0] sm:$0xff] %v2796
  %2980 = vst [vmem:[%s5 + $0x3e8] sm:$0xff] %v2797
  %2981 = vst [vmem:[%s5 + $0x3f0] sm:$0xff] %v2798
  %2982 = vst [vmem:[%s5 + $0x3f8] sm:$0xff] %v2799
  %2983 = vst [vmem:[%s5 + $0x400] sm:$0xff] %v2800
  %2984 = vst [vmem:[%s5 + $0x408] sm:$0xff] %v2801
  %2985 = vst [vmem:[%s5 + $0x410] sm:$0xff] %v2802
  %2986 = vst [vmem:[%s5 + $0x418] sm:$0xff] %v2803
  %2987 = vst [vmem:[%s5 + $0x420] sm:$0xff] %v2804
  %2988 = vst [vmem:[%s5 + $0x428] sm:$0xff] %v2805
  %2989 = vst [vmem:[%s5 + $0x430] sm:$0xff] %v2806
  %2990 = vst [vmem:[%s5 + $0x438] sm:$0xff] %v2807
  %2991 = vst [vmem:[%s5 + $0x440] sm:$0xff] %v2808
  %2992 = vst [vmem:[%s5 + $0x448] sm:$0xff] %v2809
  %2993 = vst [vmem:[%s5 + $0x450] sm:$0xff] %v2810
  %2994 = vst [vmem:[%s5 + $0x458] sm:$0xff] %v2811
  %2995 = vst [vmem:[%s5 + $0x460] sm:$0xff] %v2812
  %2996 = vst [vmem:[%s5 + $0x468] sm:$0xff] %v2813
  %2997 = vst [vmem:[%s5 + $0x470] sm:$0xff] %v2814
  %2998 = vst [vmem:[%s5 + $0x478] sm:$0xff] %v2815
  %2999 = vst [vmem:[%s5 + $0x480] sm:$0xff] %v2816
  %3000 = vst [vmem:[%s5 + $0x488] sm:$0xff] %v2817
  %3001 = vst [vmem:[%s5 + $0x490] sm:$0xff] %v2818
  %3002 = vst [vmem:[%s5 + $0x498] sm:$0xff] %v2819
  %3003 = vst [vmem:[%s5 + $0x4a0] sm:$0xff] %v2820
  %3004 = vst [vmem:[%s5 + $0x4a8] sm:$0xff] %v2821
  %3005 = vst [vmem:[%s5 + $0x4b0] sm:$0xff] %v2822
  %3006 = vst [vmem:[%s5 + $0x4b8] sm:$0xff] %v2823
  %3007 = vst [vmem:[%s5 + $0x4c0] sm:$0xff] %v2824
  %3008 = vst [vmem:[%s5 + $0x4c8] sm:$0xff] %v2825
  %3009 = vst [vmem:[%s5 + $0x4d0] sm:$0xff] %v2826
  %3010 = vst [vmem:[%s5 + $0x4d8] sm:$0xff] %v2827
  %3011 = vst [vmem:[%s5 + $0x4e0] sm:$0xff] %v2828
  %3012 = vst [vmem:[%s5 + $0x4e8] sm:$0xff] %v2829
  %3013 = vst [vmem:[%s5 + $0x4f0] sm:$0xff] %v2830
  %3014 = vst [vmem:[%s5 + $0x4f8] sm:$0xff] %v2831
  %3015 = vst [vmem:[%s5 + $0x500] sm:$0xff] %v2832
  %3016 = vst [vmem:[%s5 + $0x508] sm:$0xff] %v2833
  %3017 = vst [vmem:[%s5 + $0x510] sm:$0xff] %v2834
  %3018 = vst [vmem:[%s5 + $0x518] sm:$0xff] %v2835
  %3019 = vst [vmem:[%s5 + $0x520] sm:$0xff] %v2836
  %3020 = vst [vmem:[%s5 + $0x528] sm:$0xff] %v2837
  %3021 = vst [vmem:[%s5 + $0x530] sm:$0xff] %v2838
  %3022 = vst [vmem:[%s5 + $0x538] sm:$0xff] %v2839
  %3023 = vst [vmem:[%s5 + $0x540] sm:$0xff] %v2840
  %3024 = vst [vmem:[%s5 + $0x548] sm:$0xff] %v2841
  %3025 = vst [vmem:[%s5 + $0x550] sm:$0xff] %v2842
  %3026 = vst [vmem:[%s5 + $0x558] sm:$0xff] %v2843
  %3027 = vst [vmem:[%s5 + $0x560] sm:$0xff] %v2844
  %3028 = vst [vmem:[%s5 + $0x568] sm:$0xff] %v2845
  %3029 = vst [vmem:[%s5 + $0x570] sm:$0xff] %v2846
  %3030 = vst [vmem:[%s5 + $0x578] sm:$0xff] %v2847
  %3031 = vst [vmem:[%s5 + $0x580] sm:$0xff] %v2848
  %3032 = vst [vmem:[%s5 + $0x588] sm:$0xff] %v2849
  %3033 = vst [vmem:[%s5 + $0x590] sm:$0xff] %v2850
  %3034 = vst [vmem:[%s5 + $0x598] sm:$0xff] %v2851
  %3035 = vst [vmem:[%s5 + $0x5a0] sm:$0xff] %v2852
  %3036 = vst [vmem:[%s5 + $0x5a8] sm:$0xff] %v2853
  %3037 = vst [vmem:[%s5 + $0x5b0] sm:$0x3] %v2854
  // Predicated region
  $region22: #{model_forward.6} parent=0 // pred_check
    _
  $region23: #{model_forward.6} parent=0 // pred_check_branch
    %3039 = sbr.rel (0) target = $region25
  $region24: #{model_forward.6} parent=0 // pred_region
    _
  $region25: #{model_forward.6} parent=0 // pred_fallthru
    _
  // Predicated region
  $region26: #{model_forward.6} parent=0 // pred_check
    _
  $region27: #{model_forward.6} parent=0 // pred_check_branch
    %3041 = sbr.rel (0) target = $region29
  $region28: #{model_forward.6} parent=0 // pred_region
    _
  $region29: #{model_forward.6} parent=0 // pred_fallthru
    _

// kernel: model_forward.9
$region0: #{model_forward.9}
  #allocation0 [shape = 'u32[]', space=smem, size = 0x4, offset = 0x4, fixed_abs, tag = 'smem constant byte address 0x4 - core index']
  #allocation1 [shape = 'u32[144,128]{1,0:T(1,128)}', space=vmem, size = 0x12000, scoped, tag = 'internal scratch']
  %s0 = inlined_call_operand.vmem [shape: f32[72,128], index: 0, kind: input, shape index: {}]
  %s1 = inlined_call_operand.vmem [shape: f32[72,128], index: 1, kind: input, shape index: {}]
  %s2 = inlined_call_operand.vmem [shape: f32[72,128], index: 2, kind: input, shape index: {}]
  %s3 = inlined_call_operand.vmem [shape: f32[72,128], index: 3, kind: input, shape index: {}]
  %s4 = inlined_call_operand.vmem [shape: bf16[72,128], index: 4, kind: output, shape index: {}]
  %s5 = sld [smem:[#allocation0]]
  $region26: #{model_forward.9} parent=0
    _
  %s7 = ssub.s32 1, %s5
  %s8 = scalar_select 0, %s7, %s5
  // Predicated region
  $region2: #{model_forward.9} parent=0 // pred_check
    _
  $region3: #{model_forward.9} parent=0 // pred_check_branch
    %10 = sbr.rel (0) target = $region5
  $region4: #{model_forward.9} parent=0 // pred_region
    _
  $region5: #{model_forward.9} parent=0 // pred_fallthru
    _
  // Predicated region
  $region6: #{model_forward.9} parent=0 // pred_check
    _
  $region7: #{model_forward.9} parent=0 // pred_check_branch
    %12 = sbr.rel (0) target = $region9
  $region8: #{model_forward.9} parent=0 // pred_region
    _
  $region9: #{model_forward.9} parent=0 // pred_fallthru
    _
  // Predicated region
  $region10: #{model_forward.9} parent=0 // pred_check
    _
  $region11: #{model_forward.9} parent=0 // pred_check_branch
    %14 = sbr.rel (0) target = $region13
  $region12: #{model_forward.9} parent=0 // pred_region
    _
  $region13: #{model_forward.9} parent=0 // pred_fallthru
    _
  // Predicated region
  $region14: #{model_forward.9} parent=0 // pred_check
    _
  $region15: #{model_forward.9} parent=0 // pred_check_branch
    %16 = sbr.rel (0) target = $region17
  $region16: #{model_forward.9} parent=0 // pred_region
    _
  $region17: #{model_forward.9} parent=0 // pred_fallthru
    _
  %v17 = vld [vmem:[%s0] sm:$0xff]
  %v18 = vld [vmem:[%s0 + $0x8] sm:$0xff]
  %v19 = vld [vmem:[%s0 + $0x10] sm:$0xff]
  %v20 = vld [vmem:[%s0 + $0x18] sm:$0xff]
  %v21 = vld [vmem:[%s0 + $0x20] sm:$0xff]
  %v22 = vld [vmem:[%s0 + $0x28] sm:$0xff]
  %v23 = vld [vmem:[%s0 + $0x30] sm:$0xff]
  %v24 = vld [vmem:[%s0 + $0x38] sm:$0xff]
  %v25 = vld [vmem:[%s0 + $0x40] sm:$0xff]
  %v26 = vld [vmem:[%s1] sm:$0xff]
  %v27 = vld [vmem:[%s1 + $0x8] sm:$0xff]
  %v28 = vld [vmem:[%s1 + $0x10] sm:$0xff]
  %v29 = vld [vmem:[%s1 + $0x18] sm:$0xff]
  %v30 = vld [vmem:[%s1 + $0x20] sm:$0xff]
  %v31 = vld [vmem:[%s1 + $0x28] sm:$0xff]
  %v32 = vld [vmem:[%s1 + $0x30] sm:$0xff]
  %v33 = vld [vmem:[%s1 + $0x38] sm:$0xff]
  %v34 = vld [vmem:[%s1 + $0x40] sm:$0xff]
  %v35 = vmax.f32 %v17, %v26
  %v36 = vmax.f32 %v18, %v27
  %v37 = vmax.f32 %v19, %v28
  %v38 = vmax.f32 %v20, %v29
  %v39 = vmax.f32 %v21, %v30
  %v40 = vmax.f32 %v22, %v31
  %v41 = vmax.f32 %v23, %v32
  %v42 = vmax.f32 %v24, %v33
  %v43 = vmax.f32 %v25, %v34
  %v44 = vld [vmem:[%s2] sm:$0xff]
  %v45 = vld [vmem:[%s2 + $0x8] sm:$0xff]
  %v46 = vld [vmem:[%s2 + $0x10] sm:$0xff]
  %v47 = vld [vmem:[%s2 + $0x18] sm:$0xff]
  %v48 = vld [vmem:[%s2 + $0x20] sm:$0xff]
  %v49 = vld [vmem:[%s2 + $0x28] sm:$0xff]
  %v50 = vld [vmem:[%s2 + $0x30] sm:$0xff]
  %v51 = vld [vmem:[%s2 + $0x38] sm:$0xff]
  %v52 = vld [vmem:[%s2 + $0x40] sm:$0xff]
  %v53 = vld [vmem:[%s3] sm:$0xff]
  %v54 = vld [vmem:[%s3 + $0x8] sm:$0xff]
  %v55 = vld [vmem:[%s3 + $0x10] sm:$0xff]
  %v56 = vld [vmem:[%s3 + $0x18] sm:$0xff]
  %v57 = vld [vmem:[%s3 + $0x20] sm:$0xff]
  %v58 = vld [vmem:[%s3 + $0x28] sm:$0xff]
  %v59 = vld [vmem:[%s3 + $0x30] sm:$0xff]
  %v60 = vld [vmem:[%s3 + $0x38] sm:$0xff]
  %v61 = vld [vmem:[%s3 + $0x40] sm:$0xff]
  %v62 = vmax.f32 %v44, %v53
  %v63 = vmax.f32 %v45, %v54
  %v64 = vmax.f32 %v46, %v55
  %v65 = vmax.f32 %v47, %v56
  %v66 = vmax.f32 %v48, %v57
  %v67 = vmax.f32 %v49, %v58
  %v68 = vmax.f32 %v50, %v59
  %v69 = vmax.f32 %v51, %v60
  %v70 = vmax.f32 %v52, %v61
  %v71 = vmax.f32 %v35, %v62
  %v72 = vmax.f32 %v36, %v63
  %v73 = vmax.f32 %v37, %v64
  %v74 = vmax.f32 %v38, %v65
  %v75 = vmax.f32 %v39, %v66
  %v76 = vmax.f32 %v40, %v67
  %v77 = vmax.f32 %v41, %v68
  %v78 = vmax.f32 %v42, %v69
  %v79 = vmax.f32 %v43, %v70
  %v80 = vpack.c.bf16 %v72, %v71
  %v81 = vpack.c.bf16 %v74, %v73
  %v82 = vpack.c.bf16 %v76, %v75
  %v83 = vpack.c.bf16 %v78, %v77
  %v84 = vpack.c.bf16 %v79, %v79
  %v90 = vunpack.c.l.b16 %v80
  %v91 = vunpack.c.h.b16 %v80
  %v92 = vunpack.c.l.b16 %v81
  %v93 = vunpack.c.h.b16 %v81
  %v94 = vunpack.c.l.b16 %v82
  %v95 = vunpack.c.h.b16 %v82
  %v96 = vunpack.c.l.b16 %v83
  %v97 = vunpack.c.h.b16 %v83
  %v98 = vunpack.c.l.b16 %v84
  %v99 = vpack.c.b16 %v90, %v90
  %v100 = vpack.c.b16 %v91, %v91
  %v101 = vpack.c.b16 %v92, %v92
  %v102 = vpack.c.b16 %v93, %v93
  %v103 = vpack.c.b16 %v94, %v94
  %v104 = vpack.c.b16 %v95, %v95
  %v105 = vpack.c.b16 %v96, %v96
  %v106 = vpack.c.b16 %v97, %v97
  %v107 = vpack.c.b16 %v98, %v98
  %117 = vst [vmem:[%s4] sm:$0xf] %v99
  %118 = vst [vmem:[%s4 + $0x4] sm:$0xf] %v100
  %119 = vst [vmem:[%s4 + $0x8] sm:$0xf] %v101
  %120 = vst [vmem:[%s4 + $0xc] sm:$0xf] %v102
  %121 = vst [vmem:[%s4 + $0x10] sm:$0xf] %v103
  %122 = vst [vmem:[%s4 + $0x14] sm:$0xf] %v104
  %123 = vst [vmem:[%s4 + $0x18] sm:$0xf] %v105
  %124 = vst [vmem:[%s4 + $0x1c] sm:$0xf] %v106
  %125 = vst [vmem:[%s4 + $0x20] sm:$0xf] %v107
  // Predicated region
  $region18: #{model_forward.9} parent=0 // pred_check
    _
  $region19: #{model_forward.9} parent=0 // pred_check_branch
    %127 = sbr.rel (0) target = $region21
  $region20: #{model_forward.9} parent=0 // pred_region
    _
  $region21: #{model_forward.9} parent=0 // pred_fallthru
    _
  // Predicated region
  $region22: #{model_forward.9} parent=0 // pred_check
    _
  $region23: #{model_forward.9} parent=0 // pred_check_branch
    %129 = sbr.rel (0) target = $region25
  $region24: #{model_forward.9} parent=0 // pred_region
    _
  $region25: #{model_forward.9} parent=0 // pred_fallthru
    _

// kernel: model_forward.8
$region0: #{model_forward.8}
  #allocation0 [shape = 'u32[]', space=smem, size = 0x4, offset = 0x4, fixed_abs, tag = 'smem constant byte address 0x4 - core index']
  #allocation1 [shape = 'u32[144,128]{1,0:T(1,128)}', space=vmem, size = 0x12000, scoped, tag = 'internal scratch']
  %s0 = inlined_call_operand.vmem [shape: bf16[288,512], index: 0, kind: input, shape index: {}]
  %s1 = inlined_call_operand.vmem [shape: bf16[512,128], index: 1, kind: input, shape index: {}]
  %s2 = inlined_call_operand.vmem [shape: f32[1,128], index: 2, kind: input, shape index: {}]
  %s3 = inlined_call_operand.vmem [shape: f32[1,128], index: 3, kind: input, shape index: {}]
  %s4 = inlined_call_operand.vmem [shape: f32[1,128], index: 4, kind: input, shape index: {}]
  %s5 = inlined_call_operand.vmem [shape: f32[288,128], index: 5, kind: output, shape index: {}]
  %s6 = sld [smem:[#allocation0]]
  $region30: #{model_forward.8} parent=0
    _
  %s8 = ssub.s32 1, %s6
  %s9 = scalar_select 0, %s8, %s6
  // Predicated region
  $region2: #{model_forward.8} parent=0 // pred_check
    _
  $region3: #{model_forward.8} parent=0 // pred_check_branch
    %11 = sbr.rel (0) target = $region5
  $region4: #{model_forward.8} parent=0 // pred_region
    _
  $region5: #{model_forward.8} parent=0 // pred_fallthru
    _
  // Predicated region
  $region6: #{model_forward.8} parent=0 // pred_check
    _
  $region7: #{model_forward.8} parent=0 // pred_check_branch
    %13 = sbr.rel (0) target = $region9
  $region8: #{model_forward.8} parent=0 // pred_region
    _
  $region9: #{model_forward.8} parent=0 // pred_fallthru
    _
  // Predicated region
  $region10: #{model_forward.8} parent=0 // pred_check
    _
  $region11: #{model_forward.8} parent=0 // pred_check_branch
    %15 = sbr.rel (0) target = $region13
  $region12: #{model_forward.8} parent=0 // pred_region
    _
  $region13: #{model_forward.8} parent=0 // pred_fallthru
    _
  // Predicated region
  $region14: #{model_forward.8} parent=0 // pred_check
    _
  $region15: #{model_forward.8} parent=0 // pred_check_branch
    %17 = sbr.rel (0) target = $region17
  $region16: #{model_forward.8} parent=0 // pred_region
    _
  $region17: #{model_forward.8} parent=0 // pred_fallthru
    _
  // Predicated region
  $region18: #{model_forward.8} parent=0 // pred_check
    _
  $region19: #{model_forward.8} parent=0 // pred_check_branch
    %19 = sbr.rel (0) target = $region21
  $region20: #{model_forward.8} parent=0 // pred_region
    _
  $region21: #{model_forward.8} parent=0 // pred_fallthru
    _
  %v21 = vld [vmem:[%s0] sm:$0xff]
  %v22 = vld [vmem:[%s0 + $0x8] sm:$0xff]
  %v23 = vld [vmem:[%s0 + $0x10] sm:$0xff]
  %v24 = vld [vmem:[%s0 + $0x18] sm:$0xff]
  %v25 = vld [vmem:[%s0 + $0x20] sm:$0xff]
  %v26 = vld [vmem:[%s0 + $0x28] sm:$0xff]
  %v27 = vld [vmem:[%s0 + $0x30] sm:$0xff]
  %v28 = vld [vmem:[%s0 + $0x38] sm:$0xff]
  %v29 = vld [vmem:[%s0 + $0x40] sm:$0xff]
  %v30 = vld [vmem:[%s0 + $0x48] sm:$0xff]
  %v31 = vld [vmem:[%s0 + $0x50] sm:$0xff]
  %v32 = vld [vmem:[%s0 + $0x58] sm:$0xff]
  %v33 = vld [vmem:[%s0 + $0x60] sm:$0xff]
  %v34 = vld [vmem:[%s0 + $0x68] sm:$0xff]
  %v35 = vld [vmem:[%s0 + $0x70] sm:$0xff]
  %v36 = vld [vmem:[%s0 + $0x78] sm:$0xff]
  %v37 = vld [vmem:[%s0 + $0x80] sm:$0xff]
  %v38 = vld [vmem:[%s0 + $0x88] sm:$0xff]
  %v39 = vld [vmem:[%s0 + $0x90] sm:$0xff]
  %v40 = vld [vmem:[%s0 + $0x98] sm:$0xff]
  %v41 = vld [vmem:[%s0 + $0xa0] sm:$0xff]
  %v42 = vld [vmem:[%s0 + $0xa8] sm:$0xff]
  %v43 = vld [vmem:[%s0 + $0xb0] sm:$0xff]
  %v44 = vld [vmem:[%s0 + $0xb8] sm:$0xff]
  %v45 = vld [vmem:[%s0 + $0xc0] sm:$0xff]
  %v46 = vld [vmem:[%s0 + $0xc8] sm:$0xff]
  %v47 = vld [vmem:[%s0 + $0xd0] sm:$0xff]
  %v48 = vld [vmem:[%s0 + $0xd8] sm:$0xff]
  %v49 = vld [vmem:[%s0 + $0xe0] sm:$0xff]
  %v50 = vld [vmem:[%s0 + $0xe8] sm:$0xff]
  %v51 = vld [vmem:[%s0 + $0xf0] sm:$0xff]
  %v52 = vld [vmem:[%s0 + $0xf8] sm:$0xff]
  %v53 = vld [vmem:[%s0 + $0x100] sm:$0xff]
  %v54 = vld [vmem:[%s0 + $0x108] sm:$0xff]
  %v55 = vld [vmem:[%s0 + $0x110] sm:$0xff]
  %v56 = vld [vmem:[%s0 + $0x118] sm:$0xff]
  %v57 = vld [vmem:[%s0 + $0x120] sm:$0xff]
  %v58 = vld [vmem:[%s0 + $0x128] sm:$0xff]
  %v59 = vld [vmem:[%s0 + $0x130] sm:$0xff]
  %v60 = vld [vmem:[%s0 + $0x138] sm:$0xff]
  %v61 = vld [vmem:[%s0 + $0x140] sm:$0xff]
  %v62 = vld [vmem:[%s0 + $0x148] sm:$0xff]
  %v63 = vld [vmem:[%s0 + $0x150] sm:$0xff]
  %v64 = vld [vmem:[%s0 + $0x158] sm:$0xff]
  %v65 = vld [vmem:[%s0 + $0x160] sm:$0xff]
  %v66 = vld [vmem:[%s0 + $0x168] sm:$0xff]
  %v67 = vld [vmem:[%s0 + $0x170] sm:$0xff]
  %v68 = vld [vmem:[%s0 + $0x178] sm:$0xff]
  %v69 = vld [vmem:[%s0 + $0x180] sm:$0xff]
  %v70 = vld [vmem:[%s0 + $0x188] sm:$0xff]
  %v71 = vld [vmem:[%s0 + $0x190] sm:$0xff]
  %v72 = vld [vmem:[%s0 + $0x198] sm:$0xff]
  %v73 = vld [vmem:[%s0 + $0x1a0] sm:$0xff]
  %v74 = vld [vmem:[%s0 + $0x1a8] sm:$0xff]
  %v75 = vld [vmem:[%s0 + $0x1b0] sm:$0xff]
  %v76 = vld [vmem:[%s0 + $0x1b8] sm:$0xff]
  %v77 = vld [vmem:[%s0 + $0x1c0] sm:$0xff]
  %v78 = vld [vmem:[%s0 + $0x1c8] sm:$0xff]
  %v79 = vld [vmem:[%s0 + $0x1d0] sm:$0xff]
  %v80 = vld [vmem:[%s0 + $0x1d8] sm:$0xff]
  %v81 = vld [vmem:[%s0 + $0x1e0] sm:$0xff]
  %v82 = vld [vmem:[%s0 + $0x1e8] sm:$0xff]
  %v83 = vld [vmem:[%s0 + $0x1f0] sm:$0xff]
  %v84 = vld [vmem:[%s0 + $0x1f8] sm:$0xff]
  %v85 = vld [vmem:[%s0 + $0x200] sm:$0xff]
  %v86 = vld [vmem:[%s0 + $0x208] sm:$0xff]
  %v87 = vld [vmem:[%s0 + $0x210] sm:$0xff]
  %v88 = vld [vmem:[%s0 + $0x218] sm:$0xff]
  %v89 = vld [vmem:[%s0 + $0x220] sm:$0xff]
  %v90 = vld [vmem:[%s0 + $0x228] sm:$0xff]
  %v91 = vld [vmem:[%s0 + $0x230] sm:$0xff]
  %v92 = vld [vmem:[%s0 + $0x238] sm:$0xff]
  %v93 = vld [vmem:[%s1] sm:$0xf]
  %v94 = vld [vmem:[%s1 + $0x4] sm:$0xf]
  %v95 = vld [vmem:[%s1 + $0x8] sm:$0xf]
  %v96 = vld [vmem:[%s1 + $0xc] sm:$0xf]
  %v97 = vld [vmem:[%s1 + $0x10] sm:$0xf]
  %v98 = vld [vmem:[%s1 + $0x14] sm:$0xf]
  %v99 = vld [vmem:[%s1 + $0x18] sm:$0xf]
  %v100 = vld [vmem:[%s1 + $0x1c] sm:$0xf]
  %v101 = vld [vmem:[%s1 + $0x20] sm:$0xf]
  %v102 = vld [vmem:[%s1 + $0x24] sm:$0xf]
  %v103 = vld [vmem:[%s1 + $0x28] sm:$0xf]
  %v104 = vld [vmem:[%s1 + $0x2c] sm:$0xf]
  %v105 = vld [vmem:[%s1 + $0x30] sm:$0xf]
  %v106 = vld [vmem:[%s1 + $0x34] sm:$0xf]
  %v107 = vld [vmem:[%s1 + $0x38] sm:$0xf]
  %v108 = vld [vmem:[%s1 + $0x3c] sm:$0xf]
  %v109 = vld [vmem:[%s1 + $0x40] sm:$0xf]
  %v110 = vld [vmem:[%s1 + $0x44] sm:$0xf]
  %v111 = vld [vmem:[%s1 + $0x48] sm:$0xf]
  %v112 = vld [vmem:[%s1 + $0x4c] sm:$0xf]
  %v113 = vld [vmem:[%s1 + $0x50] sm:$0xf]
  %v114 = vld [vmem:[%s1 + $0x54] sm:$0xf]
  %v115 = vld [vmem:[%s1 + $0x58] sm:$0xf]
  %v116 = vld [vmem:[%s1 + $0x5c] sm:$0xf]
  %v117 = vld [vmem:[%s1 + $0x60] sm:$0xf]
  %v118 = vld [vmem:[%s1 + $0x64] sm:$0xf]
  %v119 = vld [vmem:[%s1 + $0x68] sm:$0xf]
  %v120 = vld [vmem:[%s1 + $0x6c] sm:$0xf]
  %v121 = vld [vmem:[%s1 + $0x70] sm:$0xf]
  %v122 = vld [vmem:[%s1 + $0x74] sm:$0xf]
  %v123 = vld [vmem:[%s1 + $0x78] sm:$0xf]
  %v124 = vld [vmem:[%s1 + $0x7c] sm:$0xf]
  %v125 = vld [vmem:[%s1 + $0x80] sm:$0xf]
  %v126 = vld [vmem:[%s1 + $0x84] sm:$0xf]
  %v127 = vld [vmem:[%s1 + $0x88] sm:$0xf]
  %v128 = vld [vmem:[%s1 + $0x8c] sm:$0xf]
  %v129 = vld [vmem:[%s1 + $0x90] sm:$0xf]
  %v130 = vld [vmem:[%s1 + $0x94] sm:$0xf]
  %v131 = vld [vmem:[%s1 + $0x98] sm:$0xf]
  %v132 = vld [vmem:[%s1 + $0x9c] sm:$0xf]
  %v133 = vld [vmem:[%s1 + $0xa0] sm:$0xf]
  %v134 = vld [vmem:[%s1 + $0xa4] sm:$0xf]
  %v135 = vld [vmem:[%s1 + $0xa8] sm:$0xf]
  %v136 = vld [vmem:[%s1 + $0xac] sm:$0xf]
  %v137 = vld [vmem:[%s1 + $0xb0] sm:$0xf]
  %v138 = vld [vmem:[%s1 + $0xb4] sm:$0xf]
  %v139 = vld [vmem:[%s1 + $0xb8] sm:$0xf]
  %v140 = vld [vmem:[%s1 + $0xbc] sm:$0xf]
  %v141 = vld [vmem:[%s1 + $0xc0] sm:$0xf]
  %v142 = vld [vmem:[%s1 + $0xc4] sm:$0xf]
  %v143 = vld [vmem:[%s1 + $0xc8] sm:$0xf]
  %v144 = vld [vmem:[%s1 + $0xcc] sm:$0xf]
  %v145 = vld [vmem:[%s1 + $0xd0] sm:$0xf]
  %v146 = vld [vmem:[%s1 + $0xd4] sm:$0xf]
  %v147 = vld [vmem:[%s1 + $0xd8] sm:$0xf]
  %v148 = vld [vmem:[%s1 + $0xdc] sm:$0xf]
  %v149 = vld [vmem:[%s1 + $0xe0] sm:$0xf]
  %v150 = vld [vmem:[%s1 + $0xe4] sm:$0xf]
  %v151 = vld [vmem:[%s1 + $0xe8] sm:$0xf]
  %v152 = vld [vmem:[%s1 + $0xec] sm:$0xf]
  %v153 = vld [vmem:[%s1 + $0xf0] sm:$0xf]
  %v154 = vld [vmem:[%s1 + $0xf4] sm:$0xf]
  %v155 = vld [vmem:[%s1 + $0xf8] sm:$0xf]
  %v156 = vld [vmem:[%s1 + $0xfc] sm:$0xf]
  %v157 = vld [vmem:[%s2] sm:$0x1]
  %v159 = vlaneseq
  %v160 = vshrl.u32 %v159, 7
  %v161 = vsub.s32 0, %v160
  %v162 = vrot.slane %v157, %v161
  %v236 = vunpack.c.l.b16 %v21
  %v237 = vunpack.c.h.b16 %v21
  %v238 = vunpack.c.l.b16 %v22
  %v239 = vunpack.c.h.b16 %v22
  %v240 = vunpack.c.l.b16 %v23
  %v241 = vunpack.c.h.b16 %v23
  %v242 = vunpack.c.l.b16 %v24
  %v243 = vunpack.c.h.b16 %v24
  %v244 = vunpack.c.l.b16 %v25
  %v245 = vunpack.c.h.b16 %v25
  %v246 = vunpack.c.l.b16 %v26
  %v247 = vunpack.c.h.b16 %v26
  %v248 = vunpack.c.l.b16 %v27
  %v249 = vunpack.c.h.b16 %v27
  %v250 = vunpack.c.l.b16 %v28
  %v251 = vunpack.c.h.b16 %v28
  %v252 = vunpack.c.l.b16 %v29
  %v253 = vunpack.c.h.b16 %v29
  %v254 = vunpack.c.l.b16 %v30
  %v255 = vunpack.c.h.b16 %v30
  %v256 = vunpack.c.l.b16 %v31
  %v257 = vunpack.c.h.b16 %v31
  %v258 = vunpack.c.l.b16 %v32
  %v259 = vunpack.c.h.b16 %v32
  %v260 = vunpack.c.l.b16 %v33
  %v261 = vunpack.c.h.b16 %v33
  %v262 = vunpack.c.l.b16 %v34
  %v263 = vunpack.c.h.b16 %v34
  %v264 = vunpack.c.l.b16 %v35
  %v265 = vunpack.c.h.b16 %v35
  %v266 = vunpack.c.l.b16 %v36
  %v267 = vunpack.c.h.b16 %v36
  %v268 = vunpack.c.l.b16 %v37
  %v269 = vunpack.c.h.b16 %v37
  %v270 = vunpack.c.l.b16 %v38
  %v271 = vunpack.c.h.b16 %v38
  %v272 = vunpack.c.l.b16 %v39
  %v273 = vunpack.c.h.b16 %v39
  %v274 = vunpack.c.l.b16 %v40
  %v275 = vunpack.c.h.b16 %v40
  %v276 = vunpack.c.l.b16 %v41
  %v277 = vunpack.c.h.b16 %v41
  %v278 = vunpack.c.l.b16 %v42
  %v279 = vunpack.c.h.b16 %v42
  %v280 = vunpack.c.l.b16 %v43
  %v281 = vunpack.c.h.b16 %v43
  %v282 = vunpack.c.l.b16 %v44
  %v283 = vunpack.c.h.b16 %v44
  %v284 = vunpack.c.l.b16 %v45
  %v285 = vunpack.c.h.b16 %v45
  %v286 = vunpack.c.l.b16 %v46
  %v287 = vunpack.c.h.b16 %v46
  %v288 = vunpack.c.l.b16 %v47
  %v289 = vunpack.c.h.b16 %v47
  %v290 = vunpack.c.l.b16 %v48
  %v291 = vunpack.c.h.b16 %v48
  %v292 = vunpack.c.l.b16 %v49
  %v293 = vunpack.c.h.b16 %v49
  %v294 = vunpack.c.l.b16 %v50
  %v295 = vunpack.c.h.b16 %v50
  %v296 = vunpack.c.l.b16 %v51
  %v297 = vunpack.c.h.b16 %v51
  %v298 = vunpack.c.l.b16 %v52
  %v299 = vunpack.c.h.b16 %v52
  %v300 = vunpack.c.l.b16 %v53
  %v301 = vunpack.c.h.b16 %v53
  %v302 = vunpack.c.l.b16 %v54
  %v303 = vunpack.c.h.b16 %v54
  %v304 = vunpack.c.l.b16 %v55
  %v305 = vunpack.c.h.b16 %v55
  %v306 = vunpack.c.l.b16 %v56
  %v307 = vunpack.c.h.b16 %v56
  %v308 = vunpack.c.l.b16 %v57
  %v309 = vunpack.c.h.b16 %v57
  %v310 = vunpack.c.l.b16 %v58
  %v311 = vunpack.c.h.b16 %v58
  %v312 = vunpack.c.l.b16 %v59
  %v313 = vunpack.c.h.b16 %v59
  %v314 = vunpack.c.l.b16 %v60
  %v315 = vunpack.c.h.b16 %v60
  %v316 = vunpack.c.l.b16 %v61
  %v317 = vunpack.c.h.b16 %v61
  %v318 = vunpack.c.l.b16 %v62
  %v319 = vunpack.c.h.b16 %v62
  %v320 = vunpack.c.l.b16 %v63
  %v321 = vunpack.c.h.b16 %v63
  %v322 = vunpack.c.l.b16 %v64
  %v323 = vunpack.c.h.b16 %v64
  %v324 = vunpack.c.l.b16 %v65
  %v325 = vunpack.c.h.b16 %v65
  %v326 = vunpack.c.l.b16 %v66
  %v327 = vunpack.c.h.b16 %v66
  %v328 = vunpack.c.l.b16 %v67
  %v329 = vunpack.c.h.b16 %v67
  %v330 = vunpack.c.l.b16 %v68
  %v331 = vunpack.c.h.b16 %v68
  %v332 = vunpack.c.l.b16 %v69
  %v333 = vunpack.c.h.b16 %v69
  %v334 = vunpack.c.l.b16 %v70
  %v335 = vunpack.c.h.b16 %v70
  %v336 = vunpack.c.l.b16 %v71
  %v337 = vunpack.c.h.b16 %v71
  %v338 = vunpack.c.l.b16 %v72
  %v339 = vunpack.c.h.b16 %v72
  %v340 = vunpack.c.l.b16 %v73
  %v341 = vunpack.c.h.b16 %v73
  %v342 = vunpack.c.l.b16 %v74
  %v343 = vunpack.c.h.b16 %v74
  %v344 = vunpack.c.l.b16 %v75
  %v345 = vunpack.c.h.b16 %v75
  %v346 = vunpack.c.l.b16 %v76
  %v347 = vunpack.c.h.b16 %v76
  %v348 = vunpack.c.l.b16 %v77
  %v349 = vunpack.c.h.b16 %v77
  %v350 = vunpack.c.l.b16 %v78
  %v351 = vunpack.c.h.b16 %v78
  %v352 = vunpack.c.l.b16 %v79
  %v353 = vunpack.c.h.b16 %v79
  %v354 = vunpack.c.l.b16 %v80
  %v355 = vunpack.c.h.b16 %v80
  %v356 = vunpack.c.l.b16 %v81
  %v357 = vunpack.c.h.b16 %v81
  %v358 = vunpack.c.l.b16 %v82
  %v359 = vunpack.c.h.b16 %v82
  %v360 = vunpack.c.l.b16 %v83
  %v361 = vunpack.c.h.b16 %v83
  %v362 = vunpack.c.l.b16 %v84
  %v363 = vunpack.c.h.b16 %v84
  %v364 = vunpack.c.l.b16 %v85
  %v365 = vunpack.c.h.b16 %v85
  %v366 = vunpack.c.l.b16 %v86
  %v367 = vunpack.c.h.b16 %v86
  %v368 = vunpack.c.l.b16 %v87
  %v369 = vunpack.c.h.b16 %v87
  %v370 = vunpack.c.l.b16 %v88
  %v371 = vunpack.c.h.b16 %v88
  %v372 = vunpack.c.l.b16 %v89
  %v373 = vunpack.c.h.b16 %v89
  %v374 = vunpack.c.l.b16 %v90
  %v375 = vunpack.c.h.b16 %v90
  %v376 = vunpack.c.l.b16 %v91
  %v377 = vunpack.c.h.b16 %v91
  %v378 = vunpack.c.l.b16 %v92
  %v379 = vunpack.c.h.b16 %v92
  %v380 = vpack.c.b16 %v240, %v236
  %v381 = vpack.c.b16 %v241, %v237
  %v382 = vpack.c.b16 %v242, %v238
  %v383 = vpack.c.b16 %v243, %v239
  %v384 = vpack.c.b16 %v248, %v244
  %v385 = vpack.c.b16 %v249, %v245
  %v386 = vpack.c.b16 %v250, %v246
  %v387 = vpack.c.b16 %v251, %v247
  %v388 = vpack.c.b16 %v256, %v252
  %v389 = vpack.c.b16 %v257, %v253
  %v390 = vpack.c.b16 %v258, %v254
  %v391 = vpack.c.b16 %v259, %v255
  %v392 = vpack.c.b16 %v264, %v260
  %v393 = vpack.c.b16 %v265, %v261
  %v394 = vpack.c.b16 %v266, %v262
  %v395 = vpack.c.b16 %v267, %v263
  %v396 = vpack.c.b16 %v272, %v268
  %v397 = vpack.c.b16 %v273, %v269
  %v398 = vpack.c.b16 %v274, %v270
  %v399 = vpack.c.b16 %v275, %v271
  %v400 = vpack.c.b16 %v280, %v276
  %v401 = vpack.c.b16 %v281, %v277
  %v402 = vpack.c.b16 %v282, %v278
  %v403 = vpack.c.b16 %v283, %v279
  %v404 = vpack.c.b16 %v288, %v284
  %v405 = vpack.c.b16 %v289, %v285
  %v406 = vpack.c.b16 %v290, %v286
  %v407 = vpack.c.b16 %v291, %v287
  %v408 = vpack.c.b16 %v296, %v292
  %v409 = vpack.c.b16 %v297, %v293
  %v410 = vpack.c.b16 %v298, %v294
  %v411 = vpack.c.b16 %v299, %v295
  %v412 = vpack.c.b16 %v304, %v300
  %v413 = vpack.c.b16 %v305, %v301
  %v414 = vpack.c.b16 %v306, %v302
  %v415 = vpack.c.b16 %v307, %v303
  %v416 = vpack.c.b16 %v312, %v308
  %v417 = vpack.c.b16 %v313, %v309
  %v418 = vpack.c.b16 %v314, %v310
  %v419 = vpack.c.b16 %v315, %v311
  %v420 = vpack.c.b16 %v320, %v316
  %v421 = vpack.c.b16 %v321, %v317
  %v422 = vpack.c.b16 %v322, %v318
  %v423 = vpack.c.b16 %v323, %v319
  %v424 = vpack.c.b16 %v328, %v324
  %v425 = vpack.c.b16 %v329, %v325
  %v426 = vpack.c.b16 %v330, %v326
  %v427 = vpack.c.b16 %v331, %v327
  %v428 = vpack.c.b16 %v336, %v332
  %v429 = vpack.c.b16 %v337, %v333
  %v430 = vpack.c.b16 %v338, %v334
  %v431 = vpack.c.b16 %v339, %v335
  %v432 = vpack.c.b16 %v344, %v340
  %v433 = vpack.c.b16 %v345, %v341
  %v434 = vpack.c.b16 %v346, %v342
  %v435 = vpack.c.b16 %v347, %v343
  %v436 = vpack.c.b16 %v352, %v348
  %v437 = vpack.c.b16 %v353, %v349
  %v438 = vpack.c.b16 %v354, %v350
  %v439 = vpack.c.b16 %v355, %v351
  %v440 = vpack.c.b16 %v360, %v356
  %v441 = vpack.c.b16 %v361, %v357
  %v442 = vpack.c.b16 %v362, %v358
  %v443 = vpack.c.b16 %v363, %v359
  %v444 = vpack.c.b16 %v368, %v364
  %v445 = vpack.c.b16 %v369, %v365
  %v446 = vpack.c.b16 %v370, %v366
  %v447 = vpack.c.b16 %v371, %v367
  %v448 = vpack.c.b16 %v376, %v372
  %v449 = vpack.c.b16 %v377, %v373
  %v450 = vpack.c.b16 %v378, %v374
  %v451 = vpack.c.b16 %v379, %v375
  %v588 = vunpack.c.l.b16 %v93
  %v589 = vunpack.c.l.b16 %v94
  %v590 = vunpack.c.l.b16 %v95
  %v591 = vunpack.c.l.b16 %v96
  %v592 = vunpack.c.l.b16 %v97
  %v593 = vunpack.c.l.b16 %v98
  %v594 = vunpack.c.l.b16 %v99
  %v595 = vunpack.c.l.b16 %v100
  %v596 = vunpack.c.l.b16 %v101
  %v597 = vunpack.c.l.b16 %v102
  %v598 = vunpack.c.l.b16 %v103
  %v599 = vunpack.c.l.b16 %v104
  %v600 = vunpack.c.l.b16 %v105
  %v601 = vunpack.c.l.b16 %v106
  %v602 = vunpack.c.l.b16 %v107
  %v603 = vunpack.c.l.b16 %v108
  %v604 = vunpack.c.l.b16 %v109
  %v605 = vunpack.c.l.b16 %v110
  %v606 = vunpack.c.l.b16 %v111
  %v607 = vunpack.c.l.b16 %v112
  %v608 = vunpack.c.l.b16 %v113
  %v609 = vunpack.c.l.b16 %v114
  %v610 = vunpack.c.l.b16 %v115
  %v611 = vunpack.c.l.b16 %v116
  %v612 = vunpack.c.l.b16 %v117
  %v613 = vunpack.c.l.b16 %v118
  %v614 = vunpack.c.l.b16 %v119
  %v615 = vunpack.c.l.b16 %v120
  %v616 = vunpack.c.l.b16 %v121
  %v617 = vunpack.c.l.b16 %v122
  %v618 = vunpack.c.l.b16 %v123
  %v619 = vunpack.c.l.b16 %v124
  %v620 = vunpack.c.l.b16 %v125
  %v621 = vunpack.c.l.b16 %v126
  %v622 = vunpack.c.l.b16 %v127
  %v623 = vunpack.c.l.b16 %v128
  %v624 = vunpack.c.l.b16 %v129
  %v625 = vunpack.c.l.b16 %v130
  %v626 = vunpack.c.l.b16 %v131
  %v627 = vunpack.c.l.b16 %v132
  %v628 = vunpack.c.l.b16 %v133
  %v629 = vunpack.c.l.b16 %v134
  %v630 = vunpack.c.l.b16 %v135
  %v631 = vunpack.c.l.b16 %v136
  %v632 = vunpack.c.l.b16 %v137
  %v633 = vunpack.c.l.b16 %v138
  %v634 = vunpack.c.l.b16 %v139
  %v635 = vunpack.c.l.b16 %v140
  %v636 = vunpack.c.l.b16 %v141
  %v637 = vunpack.c.l.b16 %v142
  %v638 = vunpack.c.l.b16 %v143
  %v639 = vunpack.c.l.b16 %v144
  %v640 = vunpack.c.l.b16 %v145
  %v641 = vunpack.c.l.b16 %v146
  %v642 = vunpack.c.l.b16 %v147
  %v643 = vunpack.c.l.b16 %v148
  %v644 = vunpack.c.l.b16 %v149
  %v645 = vunpack.c.l.b16 %v150
  %v646 = vunpack.c.l.b16 %v151
  %v647 = vunpack.c.l.b16 %v152
  %v648 = vunpack.c.l.b16 %v153
  %v649 = vunpack.c.l.b16 %v154
  %v650 = vunpack.c.l.b16 %v155
  %v651 = vunpack.c.l.b16 %v156
  %v652 = vpack.c.b16 %v589, %v588
  %v653 = vpack.c.b16 %v591, %v590
  %v654 = vpack.c.b16 %v593, %v592
  %v655 = vpack.c.b16 %v595, %v594
  %v656 = vpack.c.b16 %v597, %v596
  %v657 = vpack.c.b16 %v599, %v598
  %v658 = vpack.c.b16 %v601, %v600
  %v659 = vpack.c.b16 %v603, %v602
  %v660 = vpack.c.b16 %v605, %v604
  %v661 = vpack.c.b16 %v607, %v606
  %v662 = vpack.c.b16 %v609, %v608
  %v663 = vpack.c.b16 %v611, %v610
  %v664 = vpack.c.b16 %v613, %v612
  %v665 = vpack.c.b16 %v615, %v614
  %v666 = vpack.c.b16 %v617, %v616
  %v667 = vpack.c.b16 %v619, %v618
  %v668 = vpack.c.b16 %v621, %v620
  %v669 = vpack.c.b16 %v623, %v622
  %v670 = vpack.c.b16 %v625, %v624
  %v671 = vpack.c.b16 %v627, %v626
  %v672 = vpack.c.b16 %v629, %v628
  %v673 = vpack.c.b16 %v631, %v630
  %v674 = vpack.c.b16 %v633, %v632
  %v675 = vpack.c.b16 %v635, %v634
  %v676 = vpack.c.b16 %v637, %v636
  %v677 = vpack.c.b16 %v639, %v638
  %v678 = vpack.c.b16 %v641, %v640
  %v679 = vpack.c.b16 %v643, %v642
  %v680 = vpack.c.b16 %v645, %v644
  %v681 = vpack.c.b16 %v647, %v646
  %v682 = vpack.c.b16 %v649, %v648
  %v683 = vpack.c.b16 %v651, %v650
  %716 = vmatprep.subr.bf16.mxu0 0
  %717 = vmatpush1.bf16.msra.mxu0 %v652
  %718 = vmatprep.subr.bf16.mxu0 0
  %719 = vmatpush1.bf16.msra.mxu0 %v653
  %720 = vmatprep.subr.bf16.mxu0 0
  %721 = vmatpush1.bf16.msra.mxu0 %v654
  %722 = vmatprep.subr.bf16.mxu0 0
  %723 = vmatpush1.bf16.msra.mxu0 %v655
  %724 = vmatprep.subr.bf16.mxu0 0
  %725 = vmatpush1.bf16.msra.mxu0 %v656
  %726 = vmatprep.subr.bf16.mxu0 0
  %727 = vmatpush1.bf16.msra.mxu0 %v657
  %728 = vmatprep.subr.bf16.mxu0 0
  %729 = vmatpush1.bf16.msra.mxu0 %v658
  %730 = vmatprep.subr.bf16.mxu0 0
  %731 = vmatpush1.bf16.msra.mxu0 %v659
  %732 = vmatprep.subr.bf16.mxu0 0
  %733 = vmatpush1.bf16.msra.mxu0 %v660
  %734 = vmatprep.subr.bf16.mxu0 0
  %735 = vmatpush1.bf16.msra.mxu0 %v661
  %736 = vmatprep.subr.bf16.mxu0 0
  %737 = vmatpush1.bf16.msra.mxu0 %v662
  %738 = vmatprep.subr.bf16.mxu0 0
  %739 = vmatpush1.bf16.msra.mxu0 %v663
  %740 = vmatprep.subr.bf16.mxu0 0
  %741 = vmatpush1.bf16.msra.mxu0 %v664
  %742 = vmatprep.subr.bf16.mxu0 0
  %743 = vmatpush1.bf16.msra.mxu0 %v665
  %744 = vmatprep.subr.bf16.mxu0 0
  %745 = vmatpush1.bf16.msra.mxu0 %v666
  %746 = vmatprep.subr.bf16.mxu0 0
  %747 = vmatpush1.bf16.msra.mxu0 %v667
  %748 = vmatprep.mubr.bf16.mxu0 %v381
  %749 = vmatmul.mubr.bf16.gmra.mrb[0].mxu0 %v380
  %v750 = vpop.f32.mrb[0].mxu0
  %v751 = vadd.f32 %v162, %v750
  %v752 = vpop.f32.mrb[0].mxu0
  %v753 = vpop.f32.mrb[0].mxu0
  %v754 = vadd.f32 %v162, %v753
  %v755 = vpop.f32.mrb[0].mxu0
  %756 = vmatprep.mubr.bf16.mxu0 %v385
  %757 = vmatmul.mubr.bf16.gmra.mrb[0].mxu0 %v384
  %v758 = vpop.f32.mrb[0].mxu0
  %v759 = vadd.f32 %v162, %v758
  %v760 = vpop.f32.mrb[0].mxu0
  %v761 = vpop.f32.mrb[0].mxu0
  %v762 = vadd.f32 %v162, %v761
  %v763 = vpop.f32.mrb[0].mxu0
  %764 = vmatprep.mubr.bf16.mxu0 %v389
  %765 = vmatmul.mubr.bf16.gmra.mrb[0].mxu0 %v388
  %v766 = vpop.f32.mrb[0].mxu0
  %v767 = vadd.f32 %v162, %v766
  %v768 = vpop.f32.mrb[0].mxu0
  %v769 = vpop.f32.mrb[0].mxu0
  %v770 = vadd.f32 %v162, %v769
  %v771 = vpop.f32.mrb[0].mxu0
  %772 = vmatprep.mubr.bf16.mxu0 %v393
  %773 = vmatmul.mubr.bf16.gmra.mrb[0].mxu0 %v392
  %v774 = vpop.f32.mrb[0].mxu0
  %v775 = vadd.f32 %v162, %v774
  %v776 = vpop.f32.mrb[0].mxu0
  %v777 = vpop.f32.mrb[0].mxu0
  %v778 = vadd.f32 %v162, %v777
  %v779 = vpop.f32.mrb[0].mxu0
  %780 = vmatprep.mubr.bf16.mxu0 %v397
  %781 = vmatmul.mubr.bf16.gmra.mrb[0].mxu0 %v396
  %v782 = vpop.f32.mrb[0].mxu0
  %v783 = vadd.f32 %v162, %v782
  %v784 = vpop.f32.mrb[0].mxu0
  %v785 = vpop.f32.mrb[0].mxu0
  %v786 = vadd.f32 %v162, %v785
  %v787 = vpop.f32.mrb[0].mxu0
  %788 = vmatprep.mubr.bf16.mxu0 %v401
  %789 = vmatmul.mubr.bf16.gmra.mrb[0].mxu0 %v400
  %v790 = vpop.f32.mrb[0].mxu0
  %v791 = vadd.f32 %v162, %v790
  %v792 = vpop.f32.mrb[0].mxu0
  %v793 = vpop.f32.mrb[0].mxu0
  %v794 = vadd.f32 %v162, %v793
  %v795 = vpop.f32.mrb[0].mxu0
  %796 = vmatprep.mubr.bf16.mxu0 %v405
  %797 = vmatmul.mubr.bf16.gmra.mrb[0].mxu0 %v404
  %v798 = vpop.f32.mrb[0].mxu0
  %v799 = vadd.f32 %v162, %v798
  %v800 = vpop.f32.mrb[0].mxu0
  %v801 = vpop.f32.mrb[0].mxu0
  %v802 = vadd.f32 %v162, %v801
  %v803 = vpop.f32.mrb[0].mxu0
  %804 = vmatprep.mubr.bf16.mxu0 %v409
  %805 = vmatmul.mubr.bf16.gmra.mrb[0].mxu0 %v408
  %v806 = vpop.f32.mrb[0].mxu0
  %v807 = vadd.f32 %v162, %v806
  %v808 = vpop.f32.mrb[0].mxu0
  %v809 = vpop.f32.mrb[0].mxu0
  %v810 = vadd.f32 %v162, %v809
  %v811 = vpop.f32.mrb[0].mxu0
  %812 = vmatprep.mubr.bf16.mxu0 %v413
  %813 = vmatmul.mubr.bf16.gmra.mrb[0].mxu0 %v412
  %v814 = vpop.f32.mrb[0].mxu0
  %v815 = vadd.f32 %v162, %v814
  %v816 = vpop.f32.mrb[0].mxu0
  %v817 = vpop.f32.mrb[0].mxu0
  %v818 = vadd.f32 %v162, %v817
  %v819 = vpop.f32.mrb[0].mxu0
  %820 = vmatprep.mubr.bf16.mxu0 %v417
  %821 = vmatmul.mubr.bf16.gmra.mrb[0].mxu0 %v416
  %v822 = vpop.f32.mrb[0].mxu0
  %v823 = vadd.f32 %v162, %v822
  %v824 = vpop.f32.mrb[0].mxu0
  %v825 = vpop.f32.mrb[0].mxu0
  %v826 = vadd.f32 %v162, %v825
  %v827 = vpop.f32.mrb[0].mxu0
  %828 = vmatprep.mubr.bf16.mxu0 %v421
  %829 = vmatmul.mubr.bf16.gmra.mrb[0].mxu0 %v420
  %v830 = vpop.f32.mrb[0].mxu0
  %v831 = vadd.f32 %v162, %v830
  %v832 = vpop.f32.mrb[0].mxu0
  %v833 = vpop.f32.mrb[0].mxu0
  %v834 = vadd.f32 %v162, %v833
  %v835 = vpop.f32.mrb[0].mxu0
  %836 = vmatprep.mubr.bf16.mxu0 %v425
  %837 = vmatmul.mubr.bf16.gmra.mrb[0].mxu0 %v424
  %v838 = vpop.f32.mrb[0].mxu0
  %v839 = vadd.f32 %v162, %v838
  %v840 = vpop.f32.mrb[0].mxu0
  %v841 = vpop.f32.mrb[0].mxu0
  %v842 = vadd.f32 %v162, %v841
  %v843 = vpop.f32.mrb[0].mxu0
  %844 = vmatprep.mubr.bf16.mxu0 %v429
  %845 = vmatmul.mubr.bf16.gmra.mrb[0].mxu0 %v428
  %v846 = vpop.f32.mrb[0].mxu0
  %v847 = vadd.f32 %v162, %v846
  %v848 = vpop.f32.mrb[0].mxu0
  %v849 = vpop.f32.mrb[0].mxu0
  %v850 = vadd.f32 %v162, %v849
  %v851 = vpop.f32.mrb[0].mxu0
  %852 = vmatprep.mubr.bf16.mxu0 %v433
  %853 = vmatmul.mubr.bf16.gmra.mrb[0].mxu0 %v432
  %v854 = vpop.f32.mrb[0].mxu0
  %v855 = vadd.f32 %v162, %v854
  %v856 = vpop.f32.mrb[0].mxu0
  %v857 = vpop.f32.mrb[0].mxu0
  %v858 = vadd.f32 %v162, %v857
  %v859 = vpop.f32.mrb[0].mxu0
  %860 = vmatprep.mubr.bf16.mxu0 %v437
  %861 = vmatmul.mubr.bf16.gmra.mrb[0].mxu0 %v436
  %v862 = vpop.f32.mrb[0].mxu0
  %v863 = vadd.f32 %v162, %v862
  %v864 = vpop.f32.mrb[0].mxu0
  %v865 = vpop.f32.mrb[0].mxu0
  %v866 = vadd.f32 %v162, %v865
  %v867 = vpop.f32.mrb[0].mxu0
  %868 = vmatprep.mubr.bf16.mxu0 %v441
  %869 = vmatmul.mubr.bf16.gmra.mrb[0].mxu0 %v440
  %v870 = vpop.f32.mrb[0].mxu0
  %v871 = vadd.f32 %v162, %v870
  %v872 = vpop.f32.mrb[0].mxu0
  %v873 = vpop.f32.mrb[0].mxu0
  %v874 = vadd.f32 %v162, %v873
  %v875 = vpop.f32.mrb[0].mxu0
  %876 = vmatprep.mubr.bf16.mxu0 %v445
  %877 = vmatmul.mubr.bf16.gmra.mrb[0].mxu0 %v444
  %v878 = vpop.f32.mrb[0].mxu0
  %v879 = vadd.f32 %v162, %v878
  %v880 = vpop.f32.mrb[0].mxu0
  %v881 = vpop.f32.mrb[0].mxu0
  %v882 = vadd.f32 %v162, %v881
  %v883 = vpop.f32.mrb[0].mxu0
  %884 = vmatprep.mubr.bf16.mxu0 %v449
  %885 = vmatmul.mubr.bf16.gmra.mrb[0].mxu0 %v448
  %v886 = vpop.f32.mrb[0].mxu0
  %v887 = vadd.f32 %v162, %v886
  %v888 = vpop.f32.mrb[0].mxu0
  %v889 = vpop.f32.mrb[0].mxu0
  %v890 = vadd.f32 %v162, %v889
  %v891 = vpop.f32.mrb[0].mxu0
  %892 = vdwg.mxu0
  %893 = vmatprep.subr.bf16.mxu0 0
  %894 = vmatpush1.bf16.msra.mxu0 %v668
  %895 = vmatprep.subr.bf16.mxu0 0
  %896 = vmatpush1.bf16.msra.mxu0 %v669
  %897 = vmatprep.subr.bf16.mxu0 0
  %898 = vmatpush1.bf16.msra.mxu0 %v670
  %899 = vmatprep.subr.bf16.mxu0 0
  %900 = vmatpush1.bf16.msra.mxu0 %v671
  %901 = vmatprep.subr.bf16.mxu0 0
  %902 = vmatpush1.bf16.msra.mxu0 %v672
  %903 = vmatprep.subr.bf16.mxu0 0
  %904 = vmatpush1.bf16.msra.mxu0 %v673
  %905 = vmatprep.subr.bf16.mxu0 0
  %906 = vmatpush1.bf16.msra.mxu0 %v674
  %907 = vmatprep.subr.bf16.mxu0 0
  %908 = vmatpush1.bf16.msra.mxu0 %v675
  %909 = vmatprep.subr.bf16.mxu0 0
  %910 = vmatpush1.bf16.msra.mxu0 %v676
  %911 = vmatprep.subr.bf16.mxu0 0
  %912 = vmatpush1.bf16.msra.mxu0 %v677
  %913 = vmatprep.subr.bf16.mxu0 0
  %914 = vmatpush1.bf16.msra.mxu0 %v678
  %915 = vmatprep.subr.bf16.mxu0 0
  %916 = vmatpush1.bf16.msra.mxu0 %v679
  %917 = vmatprep.subr.bf16.mxu0 0
  %918 = vmatpush1.bf16.msra.mxu0 %v680
  %919 = vmatprep.subr.bf16.mxu0 0
  %920 = vmatpush1.bf16.msra.mxu0 %v681
  %921 = vmatprep.subr.bf16.mxu0 0
  %922 = vmatpush1.bf16.msra.mxu0 %v682
  %923 = vmatprep.subr.bf16.mxu0 0
  %924 = vmatpush1.bf16.msra.mxu0 %v683
  %925 = vmatprep.mubr.bf16.mxu0 %v383
  %926 = vmatmul.mubr.bf16.gmra.mrb[0].mxu0 %v382
  %v927 = vpop.f32.mrb[0].mxu0
  %v928 = vadd.f32 %v751, %v927
  %v929 = vpop.f32.mrb[0].mxu0
  %v930 = vpop.f32.mrb[0].mxu0
  %v931 = vadd.f32 %v754, %v930
  %v932 = vpop.f32.mrb[0].mxu0
  %933 = vmatprep.mubr.bf16.mxu0 %v387
  %934 = vmatmul.mubr.bf16.gmra.mrb[0].mxu0 %v386
  %v935 = vpop.f32.mrb[0].mxu0
  %v936 = vadd.f32 %v759, %v935
  %v937 = vpop.f32.mrb[0].mxu0
  %v938 = vpop.f32.mrb[0].mxu0
  %v939 = vadd.f32 %v762, %v938
  %v940 = vpop.f32.mrb[0].mxu0
  %941 = vmatprep.mubr.bf16.mxu0 %v391
  %942 = vmatmul.mubr.bf16.gmra.mrb[0].mxu0 %v390
  %v943 = vpop.f32.mrb[0].mxu0
  %v944 = vadd.f32 %v767, %v943
  %v945 = vpop.f32.mrb[0].mxu0
  %v946 = vpop.f32.mrb[0].mxu0
  %v947 = vadd.f32 %v770, %v946
  %v948 = vpop.f32.mrb[0].mxu0
  %949 = vmatprep.mubr.bf16.mxu0 %v395
  %950 = vmatmul.mubr.bf16.gmra.mrb[0].mxu0 %v394
  %v951 = vpop.f32.mrb[0].mxu0
  %v952 = vadd.f32 %v775, %v951
  %v953 = vpop.f32.mrb[0].mxu0
  %v954 = vpop.f32.mrb[0].mxu0
  %v955 = vadd.f32 %v778, %v954
  %v956 = vpop.f32.mrb[0].mxu0
  %957 = vmatprep.mubr.bf16.mxu0 %v399
  %958 = vmatmul.mubr.bf16.gmra.mrb[0].mxu0 %v398
  %v959 = vpop.f32.mrb[0].mxu0
  %v960 = vadd.f32 %v783, %v959
  %v961 = vpop.f32.mrb[0].mxu0
  %v962 = vpop.f32.mrb[0].mxu0
  %v963 = vadd.f32 %v786, %v962
  %v964 = vpop.f32.mrb[0].mxu0
  %965 = vmatprep.mubr.bf16.mxu0 %v403
  %966 = vmatmul.mubr.bf16.gmra.mrb[0].mxu0 %v402
  %v967 = vpop.f32.mrb[0].mxu0
  %v968 = vadd.f32 %v791, %v967
  %v969 = vpop.f32.mrb[0].mxu0
  %v970 = vpop.f32.mrb[0].mxu0
  %v971 = vadd.f32 %v794, %v970
  %v972 = vpop.f32.mrb[0].mxu0
  %973 = vmatprep.mubr.bf16.mxu0 %v407
  %974 = vmatmul.mubr.bf16.gmra.mrb[0].mxu0 %v406
  %v975 = vpop.f32.mrb[0].mxu0
  %v976 = vadd.f32 %v799, %v975
  %v977 = vpop.f32.mrb[0].mxu0
  %v978 = vpop.f32.mrb[0].mxu0
  %v979 = vadd.f32 %v802, %v978
  %v980 = vpop.f32.mrb[0].mxu0
  %981 = vmatprep.mubr.bf16.mxu0 %v411
  %982 = vmatmul.mubr.bf16.gmra.mrb[0].mxu0 %v410
  %v983 = vpop.f32.mrb[0].mxu0
  %v984 = vadd.f32 %v807, %v983
  %v985 = vpop.f32.mrb[0].mxu0
  %v986 = vpop.f32.mrb[0].mxu0
  %v987 = vadd.f32 %v810, %v986
  %v988 = vpop.f32.mrb[0].mxu0
  %989 = vmatprep.mubr.bf16.mxu0 %v415
  %990 = vmatmul.mubr.bf16.gmra.mrb[0].mxu0 %v414
  %v991 = vpop.f32.mrb[0].mxu0
  %v992 = vadd.f32 %v815, %v991
  %v993 = vpop.f32.mrb[0].mxu0
  %v994 = vpop.f32.mrb[0].mxu0
  %v995 = vadd.f32 %v818, %v994
  %v996 = vpop.f32.mrb[0].mxu0
  %997 = vmatprep.mubr.bf16.mxu0 %v419
  %998 = vmatmul.mubr.bf16.gmra.mrb[0].mxu0 %v418
  %v999 = vpop.f32.mrb[0].mxu0
  %v1000 = vadd.f32 %v823, %v999
  %v1001 = vpop.f32.mrb[0].mxu0
  %v1002 = vpop.f32.mrb[0].mxu0
  %v1003 = vadd.f32 %v826, %v1002
  %v1004 = vpop.f32.mrb[0].mxu0
  %1005 = vmatprep.mubr.bf16.mxu0 %v423
  %1006 = vmatmul.mubr.bf16.gmra.mrb[0].mxu0 %v422
  %v1007 = vpop.f32.mrb[0].mxu0
  %v1008 = vadd.f32 %v831, %v1007
  %v1009 = vpop.f32.mrb[0].mxu0
  %v1010 = vpop.f32.mrb[0].mxu0
  %v1011 = vadd.f32 %v834, %v1010
  %v1012 = vpop.f32.mrb[0].mxu0
  %1013 = vmatprep.mubr.bf16.mxu0 %v427
  %1014 = vmatmul.mubr.bf16.gmra.mrb[0].mxu0 %v426
  %v1015 = vpop.f32.mrb[0].mxu0
  %v1016 = vadd.f32 %v839, %v1015
  %v1017 = vpop.f32.mrb[0].mxu0
  %v1018 = vpop.f32.mrb[0].mxu0
  %v1019 = vadd.f32 %v842, %v1018
  %v1020 = vpop.f32.mrb[0].mxu0
  %1021 = vmatprep.mubr.bf16.mxu0 %v431
  %1022 = vmatmul.mubr.bf16.gmra.mrb[0].mxu0 %v430
  %v1023 = vpop.f32.mrb[0].mxu0
  %v1024 = vadd.f32 %v847, %v1023
  %v1025 = vpop.f32.mrb[0].mxu0
  %v1026 = vpop.f32.mrb[0].mxu0
  %v1027 = vadd.f32 %v850, %v1026
  %v1028 = vpop.f32.mrb[0].mxu0
  %1029 = vmatprep.mubr.bf16.mxu0 %v435
  %1030 = vmatmul.mubr.bf16.gmra.mrb[0].mxu0 %v434
  %v1031 = vpop.f32.mrb[0].mxu0
  %v1032 = vadd.f32 %v855, %v1031
  %v1033 = vpop.f32.mrb[0].mxu0
  %v1034 = vpop.f32.mrb[0].mxu0
  %v1035 = vadd.f32 %v858, %v1034
  %v1036 = vpop.f32.mrb[0].mxu0
  %1037 = vmatprep.mubr.bf16.mxu0 %v439
  %1038 = vmatmul.mubr.bf16.gmra.mrb[0].mxu0 %v438
  %v1039 = vpop.f32.mrb[0].mxu0
  %v1040 = vadd.f32 %v863, %v1039
  %v1041 = vpop.f32.mrb[0].mxu0
  %v1042 = vpop.f32.mrb[0].mxu0
  %v1043 = vadd.f32 %v866, %v1042
  %v1044 = vpop.f32.mrb[0].mxu0
  %1045 = vmatprep.mubr.bf16.mxu0 %v443
  %1046 = vmatmul.mubr.bf16.gmra.mrb[0].mxu0 %v442
  %v1047 = vpop.f32.mrb[0].mxu0
  %v1048 = vadd.f32 %v871, %v1047
  %v1049 = vpop.f32.mrb[0].mxu0
  %v1050 = vpop.f32.mrb[0].mxu0
  %v1051 = vadd.f32 %v874, %v1050
  %v1052 = vpop.f32.mrb[0].mxu0
  %1053 = vmatprep.mubr.bf16.mxu0 %v447
  %1054 = vmatmul.mubr.bf16.gmra.mrb[0].mxu0 %v446
  %v1055 = vpop.f32.mrb[0].mxu0
  %v1056 = vadd.f32 %v879, %v1055
  %v1057 = vpop.f32.mrb[0].mxu0
  %v1058 = vpop.f32.mrb[0].mxu0
  %v1059 = vadd.f32 %v882, %v1058
  %v1060 = vpop.f32.mrb[0].mxu0
  %1061 = vmatprep.mubr.bf16.mxu0 %v451
  %1062 = vmatmul.mubr.bf16.gmra.mrb[0].mxu0 %v450
  %v1063 = vpop.f32.mrb[0].mxu0
  %v1064 = vadd.f32 %v887, %v1063
  %v1065 = vpop.f32.mrb[0].mxu0
  %v1066 = vpop.f32.mrb[0].mxu0
  %v1067 = vadd.f32 %v890, %v1066
  %v1068 = vpop.f32.mrb[0].mxu0
  %1069 = vdwg.mxu0
  %v1070 = vmax.f32 %v928, 0.0
  %v1071 = vmax.f32 %v931, 0.0
  %v1072 = vmax.f32 %v936, 0.0
  %v1073 = vmax.f32 %v939, 0.0
  %v1074 = vmax.f32 %v944, 0.0
  %v1075 = vmax.f32 %v947, 0.0
  %v1076 = vmax.f32 %v952, 0.0
  %v1077 = vmax.f32 %v955, 0.0
  %v1078 = vmax.f32 %v960, 0.0
  %v1079 = vmax.f32 %v963, 0.0
  %v1080 = vmax.f32 %v968, 0.0
  %v1081 = vmax.f32 %v971, 0.0
  %v1082 = vmax.f32 %v976, 0.0
  %v1083 = vmax.f32 %v979, 0.0
  %v1084 = vmax.f32 %v984, 0.0
  %v1085 = vmax.f32 %v987, 0.0
  %v1086 = vmax.f32 %v992, 0.0
  %v1087 = vmax.f32 %v995, 0.0
  %v1088 = vmax.f32 %v1000, 0.0
  %v1089 = vmax.f32 %v1003, 0.0
  %v1090 = vmax.f32 %v1008, 0.0
  %v1091 = vmax.f32 %v1011, 0.0
  %v1092 = vmax.f32 %v1016, 0.0
  %v1093 = vmax.f32 %v1019, 0.0
  %v1094 = vmax.f32 %v1024, 0.0
  %v1095 = vmax.f32 %v1027, 0.0
  %v1096 = vmax.f32 %v1032, 0.0
  %v1097 = vmax.f32 %v1035, 0.0
  %v1098 = vmax.f32 %v1040, 0.0
  %v1099 = vmax.f32 %v1043, 0.0
  %v1100 = vmax.f32 %v1048, 0.0
  %v1101 = vmax.f32 %v1051, 0.0
  %v1102 = vmax.f32 %v1056, 0.0
  %v1103 = vmax.f32 %v1059, 0.0
  %v1104 = vmax.f32 %v1064, 0.0
  %v1105 = vmax.f32 %v1067, 0.0
  %v1106 = vadd.f32 %v1070, %v1071
  %v1107 = vadd.f32 %v1106, %v1072
  %v1108 = vadd.f32 %v1107, %v1073
  %v1109 = vadd.f32 %v1108, %v1074
  %v1110 = vadd.f32 %v1109, %v1075
  %v1111 = vadd.f32 %v1110, %v1076
  %v1112 = vadd.f32 %v1111, %v1077
  %v1113 = vadd.f32 %v1112, %v1078
  %v1114 = vadd.f32 %v1113, %v1079
  %v1115 = vadd.f32 %v1114, %v1080
  %v1116 = vadd.f32 %v1115, %v1081
  %v1117 = vadd.f32 %v1116, %v1082
  %v1118 = vadd.f32 %v1117, %v1083
  %v1119 = vadd.f32 %v1118, %v1084
  %v1120 = vadd.f32 %v1119, %v1085
  %v1121 = vadd.f32 %v1120, %v1086
  %v1122 = vadd.f32 %v1121, %v1087
  %v1123 = vadd.f32 %v1122, %v1088
  %v1124 = vadd.f32 %v1123, %v1089
  %v1125 = vadd.f32 %v1124, %v1090
  %v1126 = vadd.f32 %v1125, %v1091
  %v1127 = vadd.f32 %v1126, %v1092
  %v1128 = vadd.f32 %v1127, %v1093
  %v1129 = vadd.f32 %v1128, %v1094
  %v1130 = vadd.f32 %v1129, %v1095
  %v1131 = vadd.f32 %v1130, %v1096
  %v1132 = vadd.f32 %v1131, %v1097
  %v1133 = vadd.f32 %v1132, %v1098
  %v1134 = vadd.f32 %v1133, %v1099
  %v1135 = vadd.f32 %v1134, %v1100
  %v1136 = vadd.f32 %v1135, %v1101
  %v1137 = vadd.f32 %v1136, %v1102
  %v1138 = vadd.f32 %v1137, %v1103
  %v1139 = vadd.f32 %v1138, %v1104
  %v1140 = vadd.f32 %v1139, %v1105
  %v1141 = vrot.slane %v1140, 4
  %v1142 = vadd.f32 %v1140, %v1141
  %v1143 = vrot.slane %v1142, 2
  %v1144 = vadd.f32 %v1142, %v1143
  %v1145 = vrot.slane %v1144, 1
  %v1146 = vadd.f32 %v1144, %v1145
  %v1147 = vrcp.pop 288.0
  %v1148 = vmul.f32 %v1146, %v1147
  %v1149 = vmul.f32 %v1070, %v1070
  %v1150 = vmul.f32 %v1071, %v1071
  %v1151 = vmul.f32 %v1072, %v1072
  %v1152 = vmul.f32 %v1073, %v1073
  %v1153 = vmul.f32 %v1074, %v1074
  %v1154 = vmul.f32 %v1075, %v1075
  %v1155 = vmul.f32 %v1076, %v1076
  %v1156 = vmul.f32 %v1077, %v1077
  %v1157 = vmul.f32 %v1078, %v1078
  %v1158 = vmul.f32 %v1079, %v1079
  %v1159 = vmul.f32 %v1080, %v1080
  %v1160 = vmul.f32 %v1081, %v1081
  %v1161 = vmul.f32 %v1082, %v1082
  %v1162 = vmul.f32 %v1083, %v1083
  %v1163 = vmul.f32 %v1084, %v1084
  %v1164 = vmul.f32 %v1085, %v1085
  %v1165 = vmul.f32 %v1086, %v1086
  %v1166 = vmul.f32 %v1087, %v1087
  %v1167 = vmul.f32 %v1088, %v1088
  %v1168 = vmul.f32 %v1089, %v1089
  %v1169 = vmul.f32 %v1090, %v1090
  %v1170 = vmul.f32 %v1091, %v1091
  %v1171 = vmul.f32 %v1092, %v1092
  %v1172 = vmul.f32 %v1093, %v1093
  %v1173 = vmul.f32 %v1094, %v1094
  %v1174 = vmul.f32 %v1095, %v1095
  %v1175 = vmul.f32 %v1096, %v1096
  %v1176 = vmul.f32 %v1097, %v1097
  %v1177 = vmul.f32 %v1098, %v1098
  %v1178 = vmul.f32 %v1099, %v1099
  %v1179 = vmul.f32 %v1100, %v1100
  %v1180 = vmul.f32 %v1101, %v1101
  %v1181 = vmul.f32 %v1102, %v1102
  %v1182 = vmul.f32 %v1103, %v1103
  %v1183 = vmul.f32 %v1104, %v1104
  %v1184 = vmul.f32 %v1105, %v1105
  %v1185 = vadd.f32 %v1149, %v1150
  %v1186 = vadd.f32 %v1185, %v1151
  %v1187 = vadd.f32 %v1186, %v1152
  %v1188 = vadd.f32 %v1187, %v1153
  %v1189 = vadd.f32 %v1188, %v1154
  %v1190 = vadd.f32 %v1189, %v1155
  %v1191 = vadd.f32 %v1190, %v1156
  %v1192 = vadd.f32 %v1191, %v1157
  %v1193 = vadd.f32 %v1192, %v1158
  %v1194 = vadd.f32 %v1193, %v1159
  %v1195 = vadd.f32 %v1194, %v1160
  %v1196 = vadd.f32 %v1195, %v1161
  %v1197 = vadd.f32 %v1196, %v1162
  %v1198 = vadd.f32 %v1197, %v1163
  %v1199 = vadd.f32 %v1198, %v1164
  %v1200 = vadd.f32 %v1199, %v1165
  %v1201 = vadd.f32 %v1200, %v1166
  %v1202 = vadd.f32 %v1201, %v1167
  %v1203 = vadd.f32 %v1202, %v1168
  %v1204 = vadd.f32 %v1203, %v1169
  %v1205 = vadd.f32 %v1204, %v1170
  %v1206 = vadd.f32 %v1205, %v1171
  %v1207 = vadd.f32 %v1206, %v1172
  %v1208 = vadd.f32 %v1207, %v1173
  %v1209 = vadd.f32 %v1208, %v1174
  %v1210 = vadd.f32 %v1209, %v1175
  %v1211 = vadd.f32 %v1210, %v1176
  %v1212 = vadd.f32 %v1211, %v1177
  %v1213 = vadd.f32 %v1212, %v1178
  %v1214 = vadd.f32 %v1213, %v1179
  %v1215 = vadd.f32 %v1214, %v1180
  %v1216 = vadd.f32 %v1215, %v1181
  %v1217 = vadd.f32 %v1216, %v1182
  %v1218 = vadd.f32 %v1217, %v1183
  %v1219 = vadd.f32 %v1218, %v1184
  %v1220 = vrot.slane %v1219, 4
  %v1221 = vadd.f32 %v1219, %v1220
  %v1222 = vrot.slane %v1221, 2
  %v1223 = vadd.f32 %v1221, %v1222
  %v1224 = vrot.slane %v1223, 1
  %v1225 = vadd.f32 %v1223, %v1224
  %v1226 = vmul.f32 %v1225, %v1147
  %v1227 = vmul.f32 %v1148, %v1148
  %v1228 = vsub.f32 %v1226, %v1227
  %v1229 = vmax.f32 %v1228, 0.0
  %v1230 = vld [vmem:[%s3] sm:$0x1]
  %v1231 = vadd.f32 %v1229, 1e-05
  %v1232 = vrsqrt.pop %v1231
  %v1233 = vmul.f32 %v1230, %v1232
  %v1234 = vld [vmem:[%s4] sm:$0x1]
  %v1235 = vmul.f32 %v1148, %v1233
  %v1236 = vsub.f32 %v1234, %v1235
  %v1238 = vlaneseq
  %v1239 = vshrl.u32 %v1238, 7
  %v1240 = vsub.s32 0, %v1239
  %v1241 = vrot.slane %v1233, %v1240
  %v1243 = vmul.f32 %v1070, %v1241
  %v1244 = vmul.f32 %v1071, %v1241
  %v1245 = vmul.f32 %v1072, %v1241
  %v1246 = vmul.f32 %v1073, %v1241
  %v1247 = vmul.f32 %v1074, %v1241
  %v1248 = vmul.f32 %v1075, %v1241
  %v1249 = vmul.f32 %v1076, %v1241
  %v1250 = vmul.f32 %v1077, %v1241
  %v1251 = vmul.f32 %v1078, %v1241
  %v1252 = vmul.f32 %v1079, %v1241
  %v1253 = vmul.f32 %v1080, %v1241
  %v1254 = vmul.f32 %v1081, %v1241
  %v1255 = vmul.f32 %v1082, %v1241
  %v1256 = vmul.f32 %v1083, %v1241
  %v1257 = vmul.f32 %v1084, %v1241
  %v1258 = vmul.f32 %v1085, %v1241
  %v1259 = vmul.f32 %v1086, %v1241
  %v1260 = vmul.f32 %v1087, %v1241
  %v1261 = vmul.f32 %v1088, %v1241
  %v1262 = vmul.f32 %v1089, %v1241
  %v1263 = vmul.f32 %v1090, %v1241
  %v1264 = vmul.f32 %v1091, %v1241
  %v1265 = vmul.f32 %v1092, %v1241
  %v1266 = vmul.f32 %v1093, %v1241
  %v1267 = vmul.f32 %v1094, %v1241
  %v1268 = vmul.f32 %v1095, %v1241
  %v1269 = vmul.f32 %v1096, %v1241
  %v1270 = vmul.f32 %v1097, %v1241
  %v1271 = vmul.f32 %v1098, %v1241
  %v1272 = vmul.f32 %v1099, %v1241
  %v1273 = vmul.f32 %v1100, %v1241
  %v1274 = vmul.f32 %v1101, %v1241
  %v1275 = vmul.f32 %v1102, %v1241
  %v1276 = vmul.f32 %v1103, %v1241
  %v1277 = vmul.f32 %v1104, %v1241
  %v1278 = vmul.f32 %v1105, %v1241
  %v1280 = vlaneseq
  %v1281 = vshrl.u32 %v1280, 7
  %v1282 = vsub.s32 0, %v1281
  %v1283 = vrot.slane %v1236, %v1282
  %v1285 = vadd.f32 %v1243, %v1283
  %v1286 = vadd.f32 %v1244, %v1283
  %v1287 = vadd.f32 %v1245, %v1283
  %v1288 = vadd.f32 %v1246, %v1283
  %v1289 = vadd.f32 %v1247, %v1283
  %v1290 = vadd.f32 %v1248, %v1283
  %v1291 = vadd.f32 %v1249, %v1283
  %v1292 = vadd.f32 %v1250, %v1283
  %v1293 = vadd.f32 %v1251, %v1283
  %v1294 = vadd.f32 %v1252, %v1283
  %v1295 = vadd.f32 %v1253, %v1283
  %v1296 = vadd.f32 %v1254, %v1283
  %v1297 = vadd.f32 %v1255, %v1283
  %v1298 = vadd.f32 %v1256, %v1283
  %v1299 = vadd.f32 %v1257, %v1283
  %v1300 = vadd.f32 %v1258, %v1283
  %v1301 = vadd.f32 %v1259, %v1283
  %v1302 = vadd.f32 %v1260, %v1283
  %v1303 = vadd.f32 %v1261, %v1283
  %v1304 = vadd.f32 %v1262, %v1283
  %v1305 = vadd.f32 %v1263, %v1283
  %v1306 = vadd.f32 %v1264, %v1283
  %v1307 = vadd.f32 %v1265, %v1283
  %v1308 = vadd.f32 %v1266, %v1283
  %v1309 = vadd.f32 %v1267, %v1283
  %v1310 = vadd.f32 %v1268, %v1283
  %v1311 = vadd.f32 %v1269, %v1283
  %v1312 = vadd.f32 %v1270, %v1283
  %v1313 = vadd.f32 %v1271, %v1283
  %v1314 = vadd.f32 %v1272, %v1283
  %v1315 = vadd.f32 %v1273, %v1283
  %v1316 = vadd.f32 %v1274, %v1283
  %v1317 = vadd.f32 %v1275, %v1283
  %v1318 = vadd.f32 %v1276, %v1283
  %v1319 = vadd.f32 %v1277, %v1283
  %v1320 = vadd.f32 %v1278, %v1283
  %1321 = vst [vmem:[%s5] sm:$0xff] %v1285
  %1322 = vst [vmem:[%s5 + $0x8] sm:$0xff] %v1286
  %1323 = vst [vmem:[%s5 + $0x10] sm:$0xff] %v1287
  %1324 = vst [vmem:[%s5 + $0x18] sm:$0xff] %v1288
  %1325 = vst [vmem:[%s5 + $0x20] sm:$0xff] %v1289
  %1326 = vst [vmem:[%s5 + $0x28] sm:$0xff] %v1290
  %1327 = vst [vmem:[%s5 + $0x30] sm:$0xff] %v1291
  %1328 = vst [vmem:[%s5 + $0x38] sm:$0xff] %v1292
  %1329 = vst [vmem:[%s5 + $0x40] sm:$0xff] %v1293
  %1330 = vst [vmem:[%s5 + $0x48] sm:$0xff] %v1294
  %1331 = vst [vmem:[%s5 + $0x50] sm:$0xff] %v1295
  %1332 = vst [vmem:[%s5 + $0x58] sm:$0xff] %v1296
  %1333 = vst [vmem:[%s5 + $0x60] sm:$0xff] %v1297
  %1334 = vst [vmem:[%s5 + $0x68] sm:$0xff] %v1298
  %1335 = vst [vmem:[%s5 + $0x70] sm:$0xff] %v1299
  %1336 = vst [vmem:[%s5 + $0x78] sm:$0xff] %v1300
  %1337 = vst [vmem:[%s5 + $0x80] sm:$0xff] %v1301
  %1338 = vst [vmem:[%s5 + $0x88] sm:$0xff] %v1302
  %1339 = vst [vmem:[%s5 + $0x90] sm:$0xff] %v1303
  %1340 = vst [vmem:[%s5 + $0x98] sm:$0xff] %v1304
  %1341 = vst [vmem:[%s5 + $0xa0] sm:$0xff] %v1305
  %1342 = vst [vmem:[%s5 + $0xa8] sm:$0xff] %v1306
  %1343 = vst [vmem:[%s5 + $0xb0] sm:$0xff] %v1307
  %1344 = vst [vmem:[%s5 + $0xb8] sm:$0xff] %v1308
  %1345 = vst [vmem:[%s5 + $0xc0] sm:$0xff] %v1309
  %1346 = vst [vmem:[%s5 + $0xc8] sm:$0xff] %v1310
  %1347 = vst [vmem:[%s5 + $0xd0] sm:$0xff] %v1311
  %1348 = vst [vmem:[%s5 + $0xd8] sm:$0xff] %v1312
  %1349 = vst [vmem:[%s5 + $0xe0] sm:$0xff] %v1313
  %1350 = vst [vmem:[%s5 + $0xe8] sm:$0xff] %v1314
  %1351 = vst [vmem:[%s5 + $0xf0] sm:$0xff] %v1315
  %1352 = vst [vmem:[%s5 + $0xf8] sm:$0xff] %v1316
  %1353 = vst [vmem:[%s5 + $0x100] sm:$0xff] %v1317
  %1354 = vst [vmem:[%s5 + $0x108] sm:$0xff] %v1318
  %1355 = vst [vmem:[%s5 + $0x110] sm:$0xff] %v1319
  %1356 = vst [vmem:[%s5 + $0x118] sm:$0xff] %v1320
  // Predicated region
  $region22: #{model_forward.8} parent=0 // pred_check
    _
  $region23: #{model_forward.8} parent=0 // pred_check_branch
    %1358 = sbr.rel (0) target = $region25
  $region24: #{model_forward.8} parent=0 // pred_region
    _
  $region25: #{model_forward.8} parent=0 // pred_fallthru
    _
  // Predicated region
  $region26: #{model_forward.8} parent=0 // pred_check
    _
  $region27: #{model_forward.8} parent=0 // pred_check_branch
    %1360 = sbr.rel (0) target = $region29
  $region28: #{model_forward.8} parent=0 // pred_region
    _
  $region29: #{model_forward.8} parent=0 // pred_fallthru
    _

// kernel: model_forward.10
$region0: #{model_forward.10}
  #allocation0 [shape = 'u32[]', space=smem, size = 0x4, offset = 0x4, fixed_abs, tag = 'smem constant byte address 0x4 - core index']
  #allocation1 [shape = 'u32[144,128]{1,0:T(1,128)}', space=vmem, size = 0x12000, scoped, tag = 'internal scratch']
  %s0 = inlined_call_operand.vmem [shape: bf16[50,512], index: 0, kind: input, shape index: {}]
  %s1 = inlined_call_operand.vmem [shape: bf16[512,128], index: 1, kind: input, shape index: {}]
  %s2 = inlined_call_operand.vmem [shape: f32[1,128], index: 2, kind: input, shape index: {}]
  %s3 = inlined_call_operand.vmem [shape: f32[1,128], index: 3, kind: input, shape index: {}]
  %s4 = inlined_call_operand.vmem [shape: f32[1,128], index: 4, kind: input, shape index: {}]
  %s5 = inlined_call_operand.vmem [shape: f32[50,128], index: 5, kind: output, shape index: {}]
  %s6 = sld [smem:[#allocation0]]
  $region30: #{model_forward.10} parent=0
    _
  %s8 = ssub.s32 1, %s6
  %s9 = scalar_select 0, %s8, %s6
  // Predicated region
  $region2: #{model_forward.10} parent=0 // pred_check
    _
  $region3: #{model_forward.10} parent=0 // pred_check_branch
    %11 = sbr.rel (0) target = $region5
  $region4: #{model_forward.10} parent=0 // pred_region
    _
  $region5: #{model_forward.10} parent=0 // pred_fallthru
    _
  // Predicated region
  $region6: #{model_forward.10} parent=0 // pred_check
    _
  $region7: #{model_forward.10} parent=0 // pred_check_branch
    %13 = sbr.rel (0) target = $region9
  $region8: #{model_forward.10} parent=0 // pred_region
    _
  $region9: #{model_forward.10} parent=0 // pred_fallthru
    _
  // Predicated region
  $region10: #{model_forward.10} parent=0 // pred_check
    _
  $region11: #{model_forward.10} parent=0 // pred_check_branch
    %15 = sbr.rel (0) target = $region13
  $region12: #{model_forward.10} parent=0 // pred_region
    _
  $region13: #{model_forward.10} parent=0 // pred_fallthru
    _
  // Predicated region
  $region14: #{model_forward.10} parent=0 // pred_check
    _
  $region15: #{model_forward.10} parent=0 // pred_check_branch
    %17 = sbr.rel (0) target = $region17
  $region16: #{model_forward.10} parent=0 // pred_region
    _
  $region17: #{model_forward.10} parent=0 // pred_fallthru
    _
  // Predicated region
  $region18: #{model_forward.10} parent=0 // pred_check
    _
  $region19: #{model_forward.10} parent=0 // pred_check_branch
    %19 = sbr.rel (0) target = $region21
  $region20: #{model_forward.10} parent=0 // pred_region
    _
  $region21: #{model_forward.10} parent=0 // pred_fallthru
    _
  %v21 = vld [vmem:[%s0] sm:$0xff]
  %v22 = vld [vmem:[%s0 + $0x8] sm:$0xff]
  %v23 = vld [vmem:[%s0 + $0x10] sm:$0xff]
  %v24 = vld [vmem:[%s0 + $0x18] sm:$0xff]
  %v25 = vld [vmem:[%s0 + $0x20] sm:$0xff]
  %v26 = vld [vmem:[%s0 + $0x28] sm:$0xff]
  %v27 = vld [vmem:[%s0 + $0x30] sm:$0xff]
  %v28 = vld [vmem:[%s0 + $0x38] sm:$0xff]
  %v29 = vld [vmem:[%s0 + $0x40] sm:$0xff]
  %v30 = vld [vmem:[%s0 + $0x48] sm:$0xff]
  %v31 = vld [vmem:[%s0 + $0x50] sm:$0xff]
  %v32 = vld [vmem:[%s0 + $0x58] sm:$0xff]
  %v33 = vld [vmem:[%s0 + $0x60] sm:$0x11]
  %v34 = vld [vmem:[%s0 + $0x68] sm:$0x11]
  %v35 = vld [vmem:[%s1] sm:$0xf]
  %v36 = vld [vmem:[%s1 + $0x4] sm:$0xf]
  %v37 = vld [vmem:[%s1 + $0x8] sm:$0xf]
  %v38 = vld [vmem:[%s1 + $0xc] sm:$0xf]
  %v39 = vld [vmem:[%s1 + $0x10] sm:$0xf]
  %v40 = vld [vmem:[%s1 + $0x14] sm:$0xf]
  %v41 = vld [vmem:[%s1 + $0x18] sm:$0xf]
  %v42 = vld [vmem:[%s1 + $0x1c] sm:$0xf]
  %v43 = vld [vmem:[%s1 + $0x20] sm:$0xf]
  %v44 = vld [vmem:[%s1 + $0x24] sm:$0xf]
  %v45 = vld [vmem:[%s1 + $0x28] sm:$0xf]
  %v46 = vld [vmem:[%s1 + $0x2c] sm:$0xf]
  %v47 = vld [vmem:[%s1 + $0x30] sm:$0xf]
  %v48 = vld [vmem:[%s1 + $0x34] sm:$0xf]
  %v49 = vld [vmem:[%s1 + $0x38] sm:$0xf]
  %v50 = vld [vmem:[%s1 + $0x3c] sm:$0xf]
  %v51 = vld [vmem:[%s1 + $0x40] sm:$0xf]
  %v52 = vld [vmem:[%s1 + $0x44] sm:$0xf]
  %v53 = vld [vmem:[%s1 + $0x48] sm:$0xf]
  %v54 = vld [vmem:[%s1 + $0x4c] sm:$0xf]
  %v55 = vld [vmem:[%s1 + $0x50] sm:$0xf]
  %v56 = vld [vmem:[%s1 + $0x54] sm:$0xf]
  %v57 = vld [vmem:[%s1 + $0x58] sm:$0xf]
  %v58 = vld [vmem:[%s1 + $0x5c] sm:$0xf]
  %v59 = vld [vmem:[%s1 + $0x60] sm:$0xf]
  %v60 = vld [vmem:[%s1 + $0x64] sm:$0xf]
  %v61 = vld [vmem:[%s1 + $0x68] sm:$0xf]
  %v62 = vld [vmem:[%s1 + $0x6c] sm:$0xf]
  %v63 = vld [vmem:[%s1 + $0x70] sm:$0xf]
  %v64 = vld [vmem:[%s1 + $0x74] sm:$0xf]
  %v65 = vld [vmem:[%s1 + $0x78] sm:$0xf]
  %v66 = vld [vmem:[%s1 + $0x7c] sm:$0xf]
  %v67 = vld [vmem:[%s1 + $0x80] sm:$0xf]
  %v68 = vld [vmem:[%s1 + $0x84] sm:$0xf]
  %v69 = vld [vmem:[%s1 + $0x88] sm:$0xf]
  %v70 = vld [vmem:[%s1 + $0x8c] sm:$0xf]
  %v71 = vld [vmem:[%s1 + $0x90] sm:$0xf]
  %v72 = vld [vmem:[%s1 + $0x94] sm:$0xf]
  %v73 = vld [vmem:[%s1 + $0x98] sm:$0xf]
  %v74 = vld [vmem:[%s1 + $0x9c] sm:$0xf]
  %v75 = vld [vmem:[%s1 + $0xa0] sm:$0xf]
  %v76 = vld [vmem:[%s1 + $0xa4] sm:$0xf]
  %v77 = vld [vmem:[%s1 + $0xa8] sm:$0xf]
  %v78 = vld [vmem:[%s1 + $0xac] sm:$0xf]
  %v79 = vld [vmem:[%s1 + $0xb0] sm:$0xf]
  %v80 = vld [vmem:[%s1 + $0xb4] sm:$0xf]
  %v81 = vld [vmem:[%s1 + $0xb8] sm:$0xf]
  %v82 = vld [vmem:[%s1 + $0xbc] sm:$0xf]
  %v83 = vld [vmem:[%s1 + $0xc0] sm:$0xf]
  %v84 = vld [vmem:[%s1 + $0xc4] sm:$0xf]
  %v85 = vld [vmem:[%s1 + $0xc8] sm:$0xf]
  %v86 = vld [vmem:[%s1 + $0xcc] sm:$0xf]
  %v87 = vld [vmem:[%s1 + $0xd0] sm:$0xf]
  %v88 = vld [vmem:[%s1 + $0xd4] sm:$0xf]
  %v89 = vld [vmem:[%s1 + $0xd8] sm:$0xf]
  %v90 = vld [vmem:[%s1 + $0xdc] sm:$0xf]
  %v91 = vld [vmem:[%s1 + $0xe0] sm:$0xf]
  %v92 = vld [vmem:[%s1 + $0xe4] sm:$0xf]
  %v93 = vld [vmem:[%s1 + $0xe8] sm:$0xf]
  %v94 = vld [vmem:[%s1 + $0xec] sm:$0xf]
  %v95 = vld [vmem:[%s1 + $0xf0] sm:$0xf]
  %v96 = vld [vmem:[%s1 + $0xf4] sm:$0xf]
  %v97 = vld [vmem:[%s1 + $0xf8] sm:$0xf]
  %v98 = vld [vmem:[%s1 + $0xfc] sm:$0xf]
  %v99 = vld [vmem:[%s2] sm:$0x1]
  %v101 = vlaneseq
  %v102 = vshrl.u32 %v101, 7
  %v103 = vsub.s32 0, %v102
  %v104 = vrot.slane %v99, %v103
  %v120 = vunpack.c.l.b16 %v21
  %v121 = vunpack.c.h.b16 %v21
  %v122 = vunpack.c.l.b16 %v22
  %v123 = vunpack.c.h.b16 %v22
  %v124 = vunpack.c.l.b16 %v23
  %v125 = vunpack.c.h.b16 %v23
  %v126 = vunpack.c.l.b16 %v24
  %v127 = vunpack.c.h.b16 %v24
  %v128 = vunpack.c.l.b16 %v25
  %v129 = vunpack.c.h.b16 %v25
  %v130 = vunpack.c.l.b16 %v26
  %v131 = vunpack.c.h.b16 %v26
  %v132 = vunpack.c.l.b16 %v27
  %v133 = vunpack.c.h.b16 %v27
  %v134 = vunpack.c.l.b16 %v28
  %v135 = vunpack.c.h.b16 %v28
  %v136 = vunpack.c.l.b16 %v29
  %v137 = vunpack.c.h.b16 %v29
  %v138 = vunpack.c.l.b16 %v30
  %v139 = vunpack.c.h.b16 %v30
  %v140 = vunpack.c.l.b16 %v31
  %v141 = vunpack.c.h.b16 %v31
  %v142 = vunpack.c.l.b16 %v32
  %v143 = vunpack.c.h.b16 %v32
  %v144 = vunpack.c.l.b16 %v33
  %v145 = vunpack.c.h.b16 %v33
  %v146 = vunpack.c.l.b16 %v34
  %v147 = vunpack.c.h.b16 %v34
  %v148 = vpack.c.b16 %v124, %v120
  %v149 = vpack.c.b16 %v125, %v121
  %v150 = vpack.c.b16 %v126, %v122
  %v151 = vpack.c.b16 %v127, %v123
  %v152 = vpack.c.b16 %v132, %v128
  %v153 = vpack.c.b16 %v133, %v129
  %v154 = vpack.c.b16 %v134, %v130
  %v155 = vpack.c.b16 %v135, %v131
  %v156 = vpack.c.b16 %v140, %v136
  %v157 = vpack.c.b16 %v141, %v137
  %v158 = vpack.c.b16 %v142, %v138
  %v159 = vpack.c.b16 %v143, %v139
  %v160 = vpack.c.b16 %v144, %v144
  %v161 = vpack.c.b16 %v145, %v145
  %v162 = vpack.c.b16 %v146, %v146
  %v163 = vpack.c.b16 %v147, %v147
  %v244 = vunpack.c.l.b16 %v35
  %v245 = vunpack.c.l.b16 %v36
  %v246 = vunpack.c.l.b16 %v37
  %v247 = vunpack.c.l.b16 %v38
  %v248 = vunpack.c.l.b16 %v39
  %v249 = vunpack.c.l.b16 %v40
  %v250 = vunpack.c.l.b16 %v41
  %v251 = vunpack.c.l.b16 %v42
  %v252 = vunpack.c.l.b16 %v43
  %v253 = vunpack.c.l.b16 %v44
  %v254 = vunpack.c.l.b16 %v45
  %v255 = vunpack.c.l.b16 %v46
  %v256 = vunpack.c.l.b16 %v47
  %v257 = vunpack.c.l.b16 %v48
  %v258 = vunpack.c.l.b16 %v49
  %v259 = vunpack.c.l.b16 %v50
  %v260 = vunpack.c.l.b16 %v51
  %v261 = vunpack.c.l.b16 %v52
  %v262 = vunpack.c.l.b16 %v53
  %v263 = vunpack.c.l.b16 %v54
  %v264 = vunpack.c.l.b16 %v55
  %v265 = vunpack.c.l.b16 %v56
  %v266 = vunpack.c.l.b16 %v57
  %v267 = vunpack.c.l.b16 %v58
  %v268 = vunpack.c.l.b16 %v59
  %v269 = vunpack.c.l.b16 %v60
  %v270 = vunpack.c.l.b16 %v61
  %v271 = vunpack.c.l.b16 %v62
  %v272 = vunpack.c.l.b16 %v63
  %v273 = vunpack.c.l.b16 %v64
  %v274 = vunpack.c.l.b16 %v65
  %v275 = vunpack.c.l.b16 %v66
  %v276 = vunpack.c.l.b16 %v67
  %v277 = vunpack.c.l.b16 %v68
  %v278 = vunpack.c.l.b16 %v69
  %v279 = vunpack.c.l.b16 %v70
  %v280 = vunpack.c.l.b16 %v71
  %v281 = vunpack.c.l.b16 %v72
  %v282 = vunpack.c.l.b16 %v73
  %v283 = vunpack.c.l.b16 %v74
  %v284 = vunpack.c.l.b16 %v75
  %v285 = vunpack.c.l.b16 %v76
  %v286 = vunpack.c.l.b16 %v77
  %v287 = vunpack.c.l.b16 %v78
  %v288 = vunpack.c.l.b16 %v79
  %v289 = vunpack.c.l.b16 %v80
  %v290 = vunpack.c.l.b16 %v81
  %v291 = vunpack.c.l.b16 %v82
  %v292 = vunpack.c.l.b16 %v83
  %v293 = vunpack.c.l.b16 %v84
  %v294 = vunpack.c.l.b16 %v85
  %v295 = vunpack.c.l.b16 %v86
  %v296 = vunpack.c.l.b16 %v87
  %v297 = vunpack.c.l.b16 %v88
  %v298 = vunpack.c.l.b16 %v89
  %v299 = vunpack.c.l.b16 %v90
  %v300 = vunpack.c.l.b16 %v91
  %v301 = vunpack.c.l.b16 %v92
  %v302 = vunpack.c.l.b16 %v93
  %v303 = vunpack.c.l.b16 %v94
  %v304 = vunpack.c.l.b16 %v95
  %v305 = vunpack.c.l.b16 %v96
  %v306 = vunpack.c.l.b16 %v97
  %v307 = vunpack.c.l.b16 %v98
  %v308 = vpack.c.b16 %v245, %v244
  %v309 = vpack.c.b16 %v247, %v246
  %v310 = vpack.c.b16 %v249, %v248
  %v311 = vpack.c.b16 %v251, %v250
  %v312 = vpack.c.b16 %v253, %v252
  %v313 = vpack.c.b16 %v255, %v254
  %v314 = vpack.c.b16 %v257, %v256
  %v315 = vpack.c.b16 %v259, %v258
  %v316 = vpack.c.b16 %v261, %v260
  %v317 = vpack.c.b16 %v263, %v262
  %v318 = vpack.c.b16 %v265, %v264
  %v319 = vpack.c.b16 %v267, %v266
  %v320 = vpack.c.b16 %v269, %v268
  %v321 = vpack.c.b16 %v271, %v270
  %v322 = vpack.c.b16 %v273, %v272
  %v323 = vpack.c.b16 %v275, %v274
  %v324 = vpack.c.b16 %v277, %v276
  %v325 = vpack.c.b16 %v279, %v278
  %v326 = vpack.c.b16 %v281, %v280
  %v327 = vpack.c.b16 %v283, %v282
  %v328 = vpack.c.b16 %v285, %v284
  %v329 = vpack.c.b16 %v287, %v286
  %v330 = vpack.c.b16 %v289, %v288
  %v331 = vpack.c.b16 %v291, %v290
  %v332 = vpack.c.b16 %v293, %v292
  %v333 = vpack.c.b16 %v295, %v294
  %v334 = vpack.c.b16 %v297, %v296
  %v335 = vpack.c.b16 %v299, %v298
  %v336 = vpack.c.b16 %v301, %v300
  %v337 = vpack.c.b16 %v303, %v302
  %v338 = vpack.c.b16 %v305, %v304
  %v339 = vpack.c.b16 %v307, %v306
  %372 = vmatprep.subr.bf16.mxu0 0
  %373 = vmatpush1.bf16.msra.mxu0 %v308
  %374 = vmatprep.subr.bf16.mxu0 0
  %375 = vmatpush1.bf16.msra.mxu0 %v309
  %376 = vmatprep.subr.bf16.mxu0 0
  %377 = vmatpush1.bf16.msra.mxu0 %v310
  %378 = vmatprep.subr.bf16.mxu0 0
  %379 = vmatpush1.bf16.msra.mxu0 %v311
  %380 = vmatprep.subr.bf16.mxu0 0
  %381 = vmatpush1.bf16.msra.mxu0 %v312
  %382 = vmatprep.subr.bf16.mxu0 0
  %383 = vmatpush1.bf16.msra.mxu0 %v313
  %384 = vmatprep.subr.bf16.mxu0 0
  %385 = vmatpush1.bf16.msra.mxu0 %v314
  %386 = vmatprep.subr.bf16.mxu0 0
  %387 = vmatpush1.bf16.msra.mxu0 %v315
  %388 = vmatprep.subr.bf16.mxu0 0
  %389 = vmatpush1.bf16.msra.mxu0 %v316
  %390 = vmatprep.subr.bf16.mxu0 0
  %391 = vmatpush1.bf16.msra.mxu0 %v317
  %392 = vmatprep.subr.bf16.mxu0 0
  %393 = vmatpush1.bf16.msra.mxu0 %v318
  %394 = vmatprep.subr.bf16.mxu0 0
  %395 = vmatpush1.bf16.msra.mxu0 %v319
  %396 = vmatprep.subr.bf16.mxu0 0
  %397 = vmatpush1.bf16.msra.mxu0 %v320
  %398 = vmatprep.subr.bf16.mxu0 0
  %399 = vmatpush1.bf16.msra.mxu0 %v321
  %400 = vmatprep.subr.bf16.mxu0 0
  %401 = vmatpush1.bf16.msra.mxu0 %v322
  %402 = vmatprep.subr.bf16.mxu0 0
  %403 = vmatpush1.bf16.msra.mxu0 %v323
  %404 = vmatprep.mubr.bf16.mxu0 %v149
  %405 = vmatmul.mubr.bf16.gmra.mrb[0].mxu0 %v148
  %v406 = vpop.f32.mrb[0].mxu0
  %v407 = vadd.f32 %v104, %v406
  %v408 = vpop.f32.mrb[0].mxu0
  %v409 = vpop.f32.mrb[0].mxu0
  %v410 = vadd.f32 %v104, %v409
  %v411 = vpop.f32.mrb[0].mxu0
  %412 = vmatprep.mubr.bf16.mxu0 %v153
  %413 = vmatmul.mubr.bf16.gmra.mrb[0].mxu0 %v152
  %v414 = vpop.f32.mrb[0].mxu0
  %v415 = vadd.f32 %v104, %v414
  %v416 = vpop.f32.mrb[0].mxu0
  %v417 = vpop.f32.mrb[0].mxu0
  %v418 = vadd.f32 %v104, %v417
  %v419 = vpop.f32.mrb[0].mxu0
  %420 = vmatprep.mubr.bf16.mxu0 %v157
  %421 = vmatmul.mubr.bf16.gmra.mrb[0].mxu0 %v156
  %v422 = vpop.f32.mrb[0].mxu0
  %v423 = vadd.f32 %v104, %v422
  %v424 = vpop.f32.mrb[0].mxu0
  %v425 = vpop.f32.mrb[0].mxu0
  %v426 = vadd.f32 %v104, %v425
  %v427 = vpop.f32.mrb[0].mxu0
  %428 = vmatprep.mubr.bf16.mxu0 %v161
  %429 = vmatmul.mubr.bf16.gmra.mrb[0].mxu0 %v160
  %v430 = vpop.f32.mrb[0].mxu0
  %v431 = vadd.f32 %v104, %v430
  %v432 = vpop.f32.mrb[0].mxu0
  %v433 = vpop.f32.mrb[0].mxu0
  %v434 = vpop.f32.mrb[0].mxu0
  %435 = vdwg.mxu0
  %436 = vmatprep.subr.bf16.mxu0 0
  %437 = vmatpush1.bf16.msra.mxu0 %v324
  %438 = vmatprep.subr.bf16.mxu0 0
  %439 = vmatpush1.bf16.msra.mxu0 %v325
  %440 = vmatprep.subr.bf16.mxu0 0
  %441 = vmatpush1.bf16.msra.mxu0 %v326
  %442 = vmatprep.subr.bf16.mxu0 0
  %443 = vmatpush1.bf16.msra.mxu0 %v327
  %444 = vmatprep.subr.bf16.mxu0 0
  %445 = vmatpush1.bf16.msra.mxu0 %v328
  %446 = vmatprep.subr.bf16.mxu0 0
  %447 = vmatpush1.bf16.msra.mxu0 %v329
  %448 = vmatprep.subr.bf16.mxu0 0
  %449 = vmatpush1.bf16.msra.mxu0 %v330
  %450 = vmatprep.subr.bf16.mxu0 0
  %451 = vmatpush1.bf16.msra.mxu0 %v331
  %452 = vmatprep.subr.bf16.mxu0 0
  %453 = vmatpush1.bf16.msra.mxu0 %v332
  %454 = vmatprep.subr.bf16.mxu0 0
  %455 = vmatpush1.bf16.msra.mxu0 %v333
  %456 = vmatprep.subr.bf16.mxu0 0
  %457 = vmatpush1.bf16.msra.mxu0 %v334
  %458 = vmatprep.subr.bf16.mxu0 0
  %459 = vmatpush1.bf16.msra.mxu0 %v335
  %460 = vmatprep.subr.bf16.mxu0 0
  %461 = vmatpush1.bf16.msra.mxu0 %v336
  %462 = vmatprep.subr.bf16.mxu0 0
  %463 = vmatpush1.bf16.msra.mxu0 %v337
  %464 = vmatprep.subr.bf16.mxu0 0
  %465 = vmatpush1.bf16.msra.mxu0 %v338
  %466 = vmatprep.subr.bf16.mxu0 0
  %467 = vmatpush1.bf16.msra.mxu0 %v339
  %468 = vmatprep.mubr.bf16.mxu0 %v151
  %469 = vmatmul.mubr.bf16.gmra.mrb[0].mxu0 %v150
  %v470 = vpop.f32.mrb[0].mxu0
  %v471 = vadd.f32 %v407, %v470
  %v472 = vpop.f32.mrb[0].mxu0
  %v473 = vpop.f32.mrb[0].mxu0
  %v474 = vadd.f32 %v410, %v473
  %v475 = vpop.f32.mrb[0].mxu0
  %476 = vmatprep.mubr.bf16.mxu0 %v155
  %477 = vmatmul.mubr.bf16.gmra.mrb[0].mxu0 %v154
  %v478 = vpop.f32.mrb[0].mxu0
  %v479 = vadd.f32 %v415, %v478
  %v480 = vpop.f32.mrb[0].mxu0
  %v481 = vpop.f32.mrb[0].mxu0
  %v482 = vadd.f32 %v418, %v481
  %v483 = vpop.f32.mrb[0].mxu0
  %484 = vmatprep.mubr.bf16.mxu0 %v159
  %485 = vmatmul.mubr.bf16.gmra.mrb[0].mxu0 %v158
  %v486 = vpop.f32.mrb[0].mxu0
  %v487 = vadd.f32 %v423, %v486
  %v488 = vpop.f32.mrb[0].mxu0
  %v489 = vpop.f32.mrb[0].mxu0
  %v490 = vadd.f32 %v426, %v489
  %v491 = vpop.f32.mrb[0].mxu0
  %492 = vmatprep.mubr.bf16.mxu0 %v163
  %493 = vmatmul.mubr.bf16.gmra.mrb[0].mxu0 %v162
  %v494 = vpop.f32.mrb[0].mxu0
  %v495 = vadd.f32 %v431, %v494
  %v496 = vpop.f32.mrb[0].mxu0
  %v497 = vpop.f32.mrb[0].mxu0
  %v498 = vpop.f32.mrb[0].mxu0
  %499 = vdwg.mxu0
  %v500 = vmax.f32 %v471, 0.0
  %v501 = vmax.f32 %v474, 0.0
  %v502 = vmax.f32 %v479, 0.0
  %v503 = vmax.f32 %v482, 0.0
  %v504 = vmax.f32 %v487, 0.0
  %v505 = vmax.f32 %v490, 0.0
  %v506 = vmax.f32 %v495, 0.0
  %v507 = vadd.f32 %v500, %v501
  %v508 = vadd.f32 %v507, %v502
  %v509 = vadd.f32 %v508, %v503
  %v510 = vadd.f32 %v509, %v504
  %v511 = vadd.f32 %v510, %v505
  %vm512 = vcmask 1041408
  %v513 = vsel %vm512, %v506, 0.0
  %v514 = vadd.f32 %v511, %v513
  %v515 = vrot.slane %v514, 4
  %v516 = vadd.f32 %v514, %v515
  %v517 = vrot.slane %v516, 2
  %v518 = vadd.f32 %v516, %v517
  %v519 = vrot.slane %v518, 1
  %v520 = vadd.f32 %v518, %v519
  %v521 = vrcp.pop 50.0
  %v522 = vmul.f32 %v520, %v521
  %v523 = vmul.f32 %v500, %v500
  %v524 = vmul.f32 %v501, %v501
  %v525 = vmul.f32 %v502, %v502
  %v526 = vmul.f32 %v503, %v503
  %v527 = vmul.f32 %v504, %v504
  %v528 = vmul.f32 %v505, %v505
  %v529 = vmul.f32 %v506, %v506
  %v530 = vadd.f32 %v523, %v524
  %v531 = vadd.f32 %v530, %v525
  %v532 = vadd.f32 %v531, %v526
  %v533 = vadd.f32 %v532, %v527
  %v534 = vadd.f32 %v533, %v528
  %v535 = vsel %vm512, %v529, 0.0
  %v536 = vadd.f32 %v534, %v535
  %v537 = vrot.slane %v536, 4
  %v538 = vadd.f32 %v536, %v537
  %v539 = vrot.slane %v538, 2
  %v540 = vadd.f32 %v538, %v539
  %v541 = vrot.slane %v540, 1
  %v542 = vadd.f32 %v540, %v541
  %v543 = vmul.f32 %v542, %v521
  %v544 = vmul.f32 %v522, %v522
  %v545 = vsub.f32 %v543, %v544
  %v546 = vmax.f32 %v545, 0.0
  %v547 = vld [vmem:[%s3] sm:$0x1]
  %v548 = vadd.f32 %v546, 1e-05
  %v549 = vrsqrt.pop %v548
  %v550 = vmul.f32 %v547, %v549
  %v551 = vld [vmem:[%s4] sm:$0x1]
  %v552 = vmul.f32 %v522, %v550
  %v553 = vsub.f32 %v551, %v552
  %v555 = vlaneseq
  %v556 = vshrl.u32 %v555, 7
  %v557 = vsub.s32 0, %v556
  %v558 = vrot.slane %v550, %v557
  %v560 = vmul.f32 %v500, %v558
  %v561 = vmul.f32 %v501, %v558
  %v562 = vmul.f32 %v502, %v558
  %v563 = vmul.f32 %v503, %v558
  %v564 = vmul.f32 %v504, %v558
  %v565 = vmul.f32 %v505, %v558
  %v566 = vmul.f32 %v506, %v558
  %v568 = vlaneseq
  %v569 = vshrl.u32 %v568, 7
  %v570 = vsub.s32 0, %v569
  %v571 = vrot.slane %v553, %v570
  %v573 = vadd.f32 %v560, %v571
  %v574 = vadd.f32 %v561, %v571
  %v575 = vadd.f32 %v562, %v571
  %v576 = vadd.f32 %v563, %v571
  %v577 = vadd.f32 %v564, %v571
  %v578 = vadd.f32 %v565, %v571
  %v579 = vadd.f32 %v566, %v571
  %580 = vst [vmem:[%s5] sm:$0xff] %v573
  %581 = vst [vmem:[%s5 + $0x8] sm:$0xff] %v574
  %582 = vst [vmem:[%s5 + $0x10] sm:$0xff] %v575
  %583 = vst [vmem:[%s5 + $0x18] sm:$0xff] %v576
  %584 = vst [vmem:[%s5 + $0x20] sm:$0xff] %v577
  %585 = vst [vmem:[%s5 + $0x28] sm:$0xff] %v578
  %586 = vst [vmem:[%s5 + $0x30] sm:$0x3] %v579
  // Predicated region
  $region22: #{model_forward.10} parent=0 // pred_check
    _
  $region23: #{model_forward.10} parent=0 // pred_check_branch
    %588 = sbr.rel (0) target = $region25
  $region24: #{model_forward.10} parent=0 // pred_region
    _
  $region25: #{model_forward.10} parent=0 // pred_fallthru
    _
  // Predicated region
  $region26: #{model_forward.10} parent=0 // pred_check
    _
  $region27: #{model_forward.10} parent=0 // pred_check_branch
    %590 = sbr.rel (0) target = $region29
  $region28: #{model_forward.10} parent=0 // pred_region
    _
  $region29: #{model_forward.10} parent=0 // pred_fallthru
    _

// kernel: model_forward.11
$region0: #{model_forward.11}
  #allocation0 [shape = 'u32[]', space=smem, size = 0x4, offset = 0x4, fixed_abs, tag = 'smem constant byte address 0x4 - core index']
  #allocation1 [shape = 'u32[144,128]{1,0:T(1,128)}', space=vmem, size = 0x12000, scoped, tag = 'internal scratch']
  %s0 = inlined_call_operand.vmem [shape: bf16[8,3200], index: 0, kind: input, shape index: {}]
  %s1 = inlined_call_operand.vmem [shape: bf16[3200,256], index: 1, kind: input, shape index: {}]
  %s2 = inlined_call_operand.vmem [shape: f32[1,256], index: 2, kind: input, shape index: {}]
  %s3 = inlined_call_operand.vmem [shape: f32[256,10], index: 3, kind: input, shape index: {}]
  %s4 = inlined_call_operand.vmem [shape: f32[1,10], index: 4, kind: input, shape index: {}]
  %s5 = inlined_call_operand.vmem [shape: f32[8,10], index: 5, kind: output, shape index: {}]
  %s6 = sld [smem:[#allocation0]]
  $region30: #{model_forward.11} parent=0
    _
  %s8 = ssub.s32 1, %s6
  %s9 = scalar_select 0, %s8, %s6
  // Predicated region
  $region2: #{model_forward.11} parent=0 // pred_check
    _
  $region3: #{model_forward.11} parent=0 // pred_check_branch
    %11 = sbr.rel (0) target = $region5
  $region4: #{model_forward.11} parent=0 // pred_region
    _
  $region5: #{model_forward.11} parent=0 // pred_fallthru
    _
  // Predicated region
  $region6: #{model_forward.11} parent=0 // pred_check
    _
  $region7: #{model_forward.11} parent=0 // pred_check_branch
    %13 = sbr.rel (0) target = $region9
  $region8: #{model_forward.11} parent=0 // pred_region
    _
  $region9: #{model_forward.11} parent=0 // pred_fallthru
    _
  // Predicated region
  $region10: #{model_forward.11} parent=0 // pred_check
    _
  $region11: #{model_forward.11} parent=0 // pred_check_branch
    %15 = sbr.rel (0) target = $region13
  $region12: #{model_forward.11} parent=0 // pred_region
    _
  $region13: #{model_forward.11} parent=0 // pred_fallthru
    _
  // Predicated region
  $region14: #{model_forward.11} parent=0 // pred_check
    _
  $region15: #{model_forward.11} parent=0 // pred_check_branch
    %17 = sbr.rel (0) target = $region17
  $region16: #{model_forward.11} parent=0 // pred_region
    _
  $region17: #{model_forward.11} parent=0 // pred_fallthru
    _
  // Predicated region
  $region18: #{model_forward.11} parent=0 // pred_check
    _
  $region19: #{model_forward.11} parent=0 // pred_check_branch
    %19 = sbr.rel (0) target = $region21
  $region20: #{model_forward.11} parent=0 // pred_region
    _
  $region21: #{model_forward.11} parent=0 // pred_fallthru
    _
  %v21 = vld [vmem:[%s0] sm:$0xff]
  %v22 = vld [vmem:[%s0 + $0x8] sm:$0xff]
  %v23 = vld [vmem:[%s0 + $0x10] sm:$0xff]
  %v24 = vld [vmem:[%s0 + $0x18] sm:$0xff]
  %v25 = vld [vmem:[%s0 + $0x20] sm:$0xff]
  %v26 = vld [vmem:[%s0 + $0x28] sm:$0xff]
  %v27 = vld [vmem:[%s0 + $0x30] sm:$0xff]
  %v28 = vld [vmem:[%s0 + $0x38] sm:$0xff]
  %v29 = vld [vmem:[%s0 + $0x40] sm:$0xff]
  %v30 = vld [vmem:[%s0 + $0x48] sm:$0xff]
  %v31 = vld [vmem:[%s0 + $0x50] sm:$0xff]
  %v32 = vld [vmem:[%s0 + $0x58] sm:$0xff]
  %v33 = vld [vmem:[%s0 + $0x60] sm:$0xf]
  %v34 = vld [vmem:[%s1] sm:$0xff]
  %v35 = vld [vmem:[%s1 + $0x8] sm:$0xff]
  %v36 = vld [vmem:[%s1 + $0x10] sm:$0xff]
  %v37 = vld [vmem:[%s1 + $0x18] sm:$0xff]
  %v38 = vld [vmem:[%s1 + $0x20] sm:$0xff]
  %v39 = vld [vmem:[%s1 + $0x28] sm:$0xff]
  %v40 = vld [vmem:[%s1 + $0x30] sm:$0xff]
  %v41 = vld [vmem:[%s1 + $0x38] sm:$0xff]
  %v42 = vld [vmem:[%s1 + $0x40] sm:$0xff]
  %v43 = vld [vmem:[%s1 + $0x48] sm:$0xff]
  %v44 = vld [vmem:[%s1 + $0x50] sm:$0xff]
  %v45 = vld [vmem:[%s1 + $0x58] sm:$0xff]
  %v46 = vld [vmem:[%s1 + $0x60] sm:$0xff]
  %v47 = vld [vmem:[%s1 + $0x68] sm:$0xff]
  %v48 = vld [vmem:[%s1 + $0x70] sm:$0xff]
  %v49 = vld [vmem:[%s1 + $0x78] sm:$0xff]
  %v50 = vld [vmem:[%s1 + $0x80] sm:$0xff]
  %v51 = vld [vmem:[%s1 + $0x88] sm:$0xff]
  %v52 = vld [vmem:[%s1 + $0x90] sm:$0xff]
  %v53 = vld [vmem:[%s1 + $0x98] sm:$0xff]
  %v54 = vld [vmem:[%s1 + $0xa0] sm:$0xff]
  %v55 = vld [vmem:[%s1 + $0xa8] sm:$0xff]
  %v56 = vld [vmem:[%s1 + $0xb0] sm:$0xff]
  %v57 = vld [vmem:[%s1 + $0xb8] sm:$0xff]
  %v58 = vld [vmem:[%s1 + $0xc0] sm:$0xff]
  %v59 = vld [vmem:[%s1 + $0xc8] sm:$0xff]
  %v60 = vld [vmem:[%s1 + $0xd0] sm:$0xff]
  %v61 = vld [vmem:[%s1 + $0xd8] sm:$0xff]
  %v62 = vld [vmem:[%s1 + $0xe0] sm:$0xff]
  %v63 = vld [vmem:[%s1 + $0xe8] sm:$0xff]
  %v64 = vld [vmem:[%s1 + $0xf0] sm:$0xff]
  %v65 = vld [vmem:[%s1 + $0xf8] sm:$0xff]
  %v66 = vld [vmem:[%s1 + $0x100] sm:$0xff]
  %v67 = vld [vmem:[%s1 + $0x108] sm:$0xff]
  %v68 = vld [vmem:[%s1 + $0x110] sm:$0xff]
  %v69 = vld [vmem:[%s1 + $0x118] sm:$0xff]
  %v70 = vld [vmem:[%s1 + $0x120] sm:$0xff]
  %v71 = vld [vmem:[%s1 + $0x128] sm:$0xff]
  %v72 = vld [vmem:[%s1 + $0x130] sm:$0xff]
  %v73 = vld [vmem:[%s1 + $0x138] sm:$0xff]
  %v74 = vld [vmem:[%s1 + $0x140] sm:$0xff]
  %v75 = vld [vmem:[%s1 + $0x148] sm:$0xff]
  %v76 = vld [vmem:[%s1 + $0x150] sm:$0xff]
  %v77 = vld [vmem:[%s1 + $0x158] sm:$0xff]
  %v78 = vld [vmem:[%s1 + $0x160] sm:$0xff]
  %v79 = vld [vmem:[%s1 + $0x168] sm:$0xff]
  %v80 = vld [vmem:[%s1 + $0x170] sm:$0xff]
  %v81 = vld [vmem:[%s1 + $0x178] sm:$0xff]
  %v82 = vld [vmem:[%s1 + $0x180] sm:$0xff]
  %v83 = vld [vmem:[%s1 + $0x188] sm:$0xff]
  %v84 = vld [vmem:[%s1 + $0x190] sm:$0xff]
  %v85 = vld [vmem:[%s1 + $0x198] sm:$0xff]
  %v86 = vld [vmem:[%s1 + $0x1a0] sm:$0xff]
  %v87 = vld [vmem:[%s1 + $0x1a8] sm:$0xff]
  %v88 = vld [vmem:[%s1 + $0x1b0] sm:$0xff]
  %v89 = vld [vmem:[%s1 + $0x1b8] sm:$0xff]
  %v90 = vld [vmem:[%s1 + $0x1c0] sm:$0xff]
  %v91 = vld [vmem:[%s1 + $0x1c8] sm:$0xff]
  %v92 = vld [vmem:[%s1 + $0x1d0] sm:$0xff]
  %v93 = vld [vmem:[%s1 + $0x1d8] sm:$0xff]
  %v94 = vld [vmem:[%s1 + $0x1e0] sm:$0xff]
  %v95 = vld [vmem:[%s1 + $0x1e8] sm:$0xff]
  %v96 = vld [vmem:[%s1 + $0x1f0] sm:$0xff]
  %v97 = vld [vmem:[%s1 + $0x1f8] sm:$0xff]
  %v98 = vld [vmem:[%s1 + $0x200] sm:$0xff]
  %v99 = vld [vmem:[%s1 + $0x208] sm:$0xff]
  %v100 = vld [vmem:[%s1 + $0x210] sm:$0xff]
  %v101 = vld [vmem:[%s1 + $0x218] sm:$0xff]
  %v102 = vld [vmem:[%s1 + $0x220] sm:$0xff]
  %v103 = vld [vmem:[%s1 + $0x228] sm:$0xff]
  %v104 = vld [vmem:[%s1 + $0x230] sm:$0xff]
  %v105 = vld [vmem:[%s1 + $0x238] sm:$0xff]
  %v106 = vld [vmem:[%s1 + $0x240] sm:$0xff]
  %v107 = vld [vmem:[%s1 + $0x248] sm:$0xff]
  %v108 = vld [vmem:[%s1 + $0x250] sm:$0xff]
  %v109 = vld [vmem:[%s1 + $0x258] sm:$0xff]
  %v110 = vld [vmem:[%s1 + $0x260] sm:$0xff]
  %v111 = vld [vmem:[%s1 + $0x268] sm:$0xff]
  %v112 = vld [vmem:[%s1 + $0x270] sm:$0xff]
  %v113 = vld [vmem:[%s1 + $0x278] sm:$0xff]
  %v114 = vld [vmem:[%s1 + $0x280] sm:$0xff]
  %v115 = vld [vmem:[%s1 + $0x288] sm:$0xff]
  %v116 = vld [vmem:[%s1 + $0x290] sm:$0xff]
  %v117 = vld [vmem:[%s1 + $0x298] sm:$0xff]
  %v118 = vld [vmem:[%s1 + $0x2a0] sm:$0xff]
  %v119 = vld [vmem:[%s1 + $0x2a8] sm:$0xff]
  %v120 = vld [vmem:[%s1 + $0x2b0] sm:$0xff]
  %v121 = vld [vmem:[%s1 + $0x2b8] sm:$0xff]
  %v122 = vld [vmem:[%s1 + $0x2c0] sm:$0xff]
  %v123 = vld [vmem:[%s1 + $0x2c8] sm:$0xff]
  %v124 = vld [vmem:[%s1 + $0x2d0] sm:$0xff]
  %v125 = vld [vmem:[%s1 + $0x2d8] sm:$0xff]
  %v126 = vld [vmem:[%s1 + $0x2e0] sm:$0xff]
  %v127 = vld [vmem:[%s1 + $0x2e8] sm:$0xff]
  %v128 = vld [vmem:[%s1 + $0x2f0] sm:$0xff]
  %v129 = vld [vmem:[%s1 + $0x2f8] sm:$0xff]
  %v130 = vld [vmem:[%s1 + $0x300] sm:$0xff]
  %v131 = vld [vmem:[%s1 + $0x308] sm:$0xff]
  %v132 = vld [vmem:[%s1 + $0x310] sm:$0xff]
  %v133 = vld [vmem:[%s1 + $0x318] sm:$0xff]
  %v134 = vld [vmem:[%s1 + $0x320] sm:$0xff]
  %v135 = vld [vmem:[%s1 + $0x328] sm:$0xff]
  %v136 = vld [vmem:[%s1 + $0x330] sm:$0xff]
  %v137 = vld [vmem:[%s1 + $0x338] sm:$0xff]
  %v138 = vld [vmem:[%s1 + $0x340] sm:$0xff]
  %v139 = vld [vmem:[%s1 + $0x348] sm:$0xff]
  %v140 = vld [vmem:[%s1 + $0x350] sm:$0xff]
  %v141 = vld [vmem:[%s1 + $0x358] sm:$0xff]
  %v142 = vld [vmem:[%s1 + $0x360] sm:$0xff]
  %v143 = vld [vmem:[%s1 + $0x368] sm:$0xff]
  %v144 = vld [vmem:[%s1 + $0x370] sm:$0xff]
  %v145 = vld [vmem:[%s1 + $0x378] sm:$0xff]
  %v146 = vld [vmem:[%s1 + $0x380] sm:$0xff]
  %v147 = vld [vmem:[%s1 + $0x388] sm:$0xff]
  %v148 = vld [vmem:[%s1 + $0x390] sm:$0xff]
  %v149 = vld [vmem:[%s1 + $0x398] sm:$0xff]
  %v150 = vld [vmem:[%s1 + $0x3a0] sm:$0xff]
  %v151 = vld [vmem:[%s1 + $0x3a8] sm:$0xff]
  %v152 = vld [vmem:[%s1 + $0x3b0] sm:$0xff]
  %v153 = vld [vmem:[%s1 + $0x3b8] sm:$0xff]
  %v154 = vld [vmem:[%s1 + $0x3c0] sm:$0xff]
  %v155 = vld [vmem:[%s1 + $0x3c8] sm:$0xff]
  %v156 = vld [vmem:[%s1 + $0x3d0] sm:$0xff]
  %v157 = vld [vmem:[%s1 + $0x3d8] sm:$0xff]
  %v158 = vld [vmem:[%s1 + $0x3e0] sm:$0xff]
  %v159 = vld [vmem:[%s1 + $0x3e8] sm:$0xff]
  %v160 = vld [vmem:[%s1 + $0x3f0] sm:$0xff]
  %v161 = vld [vmem:[%s1 + $0x3f8] sm:$0xff]
  %v162 = vld [vmem:[%s1 + $0x400] sm:$0xff]
  %v163 = vld [vmem:[%s1 + $0x408] sm:$0xff]
  %v164 = vld [vmem:[%s1 + $0x410] sm:$0xff]
  %v165 = vld [vmem:[%s1 + $0x418] sm:$0xff]
  %v166 = vld [vmem:[%s1 + $0x420] sm:$0xff]
  %v167 = vld [vmem:[%s1 + $0x428] sm:$0xff]
  %v168 = vld [vmem:[%s1 + $0x430] sm:$0xff]
  %v169 = vld [vmem:[%s1 + $0x438] sm:$0xff]
  %v170 = vld [vmem:[%s1 + $0x440] sm:$0xff]
  %v171 = vld [vmem:[%s1 + $0x448] sm:$0xff]
  %v172 = vld [vmem:[%s1 + $0x450] sm:$0xff]
  %v173 = vld [vmem:[%s1 + $0x458] sm:$0xff]
  %v174 = vld [vmem:[%s1 + $0x460] sm:$0xff]
  %v175 = vld [vmem:[%s1 + $0x468] sm:$0xff]
  %v176 = vld [vmem:[%s1 + $0x470] sm:$0xff]
  %v177 = vld [vmem:[%s1 + $0x478] sm:$0xff]
  %v178 = vld [vmem:[%s1 + $0x480] sm:$0xff]
  %v179 = vld [vmem:[%s1 + $0x488] sm:$0xff]
  %v180 = vld [vmem:[%s1 + $0x490] sm:$0xff]
  %v181 = vld [vmem:[%s1 + $0x498] sm:$0xff]
  %v182 = vld [vmem:[%s1 + $0x4a0] sm:$0xff]
  %v183 = vld [vmem:[%s1 + $0x4a8] sm:$0xff]
  %v184 = vld [vmem:[%s1 + $0x4b0] sm:$0xff]
  %v185 = vld [vmem:[%s1 + $0x4b8] sm:$0xff]
  %v186 = vld [vmem:[%s1 + $0x4c0] sm:$0xff]
  %v187 = vld [vmem:[%s1 + $0x4c8] sm:$0xff]
  %v188 = vld [vmem:[%s1 + $0x4d0] sm:$0xff]
  %v189 = vld [vmem:[%s1 + $0x4d8] sm:$0xff]
  %v190 = vld [vmem:[%s1 + $0x4e0] sm:$0xff]
  %v191 = vld [vmem:[%s1 + $0x4e8] sm:$0xff]
  %v192 = vld [vmem:[%s1 + $0x4f0] sm:$0xff]
  %v193 = vld [vmem:[%s1 + $0x4f8] sm:$0xff]
  %v194 = vld [vmem:[%s1 + $0x500] sm:$0xff]
  %v195 = vld [vmem:[%s1 + $0x508] sm:$0xff]
  %v196 = vld [vmem:[%s1 + $0x510] sm:$0xff]
  %v197 = vld [vmem:[%s1 + $0x518] sm:$0xff]
  %v198 = vld [vmem:[%s1 + $0x520] sm:$0xff]
  %v199 = vld [vmem:[%s1 + $0x528] sm:$0xff]
  %v200 = vld [vmem:[%s1 + $0x530] sm:$0xff]
  %v201 = vld [vmem:[%s1 + $0x538] sm:$0xff]
  %v202 = vld [vmem:[%s1 + $0x540] sm:$0xff]
  %v203 = vld [vmem:[%s1 + $0x548] sm:$0xff]
  %v204 = vld [vmem:[%s1 + $0x550] sm:$0xff]
  %v205 = vld [vmem:[%s1 + $0x558] sm:$0xff]
  %v206 = vld [vmem:[%s1 + $0x560] sm:$0xff]
  %v207 = vld [vmem:[%s1 + $0x568] sm:$0xff]
  %v208 = vld [vmem:[%s1 + $0x570] sm:$0xff]
  %v209 = vld [vmem:[%s1 + $0x578] sm:$0xff]
  %v210 = vld [vmem:[%s1 + $0x580] sm:$0xff]
  %v211 = vld [vmem:[%s1 + $0x588] sm:$0xff]
  %v212 = vld [vmem:[%s1 + $0x590] sm:$0xff]
  %v213 = vld [vmem:[%s1 + $0x598] sm:$0xff]
  %v214 = vld [vmem:[%s1 + $0x5a0] sm:$0xff]
  %v215 = vld [vmem:[%s1 + $0x5a8] sm:$0xff]
  %v216 = vld [vmem:[%s1 + $0x5b0] sm:$0xff]
  %v217 = vld [vmem:[%s1 + $0x5b8] sm:$0xff]
  %v218 = vld [vmem:[%s1 + $0x5c0] sm:$0xff]
  %v219 = vld [vmem:[%s1 + $0x5c8] sm:$0xff]
  %v220 = vld [vmem:[%s1 + $0x5d0] sm:$0xff]
  %v221 = vld [vmem:[%s1 + $0x5d8] sm:$0xff]
  %v222 = vld [vmem:[%s1 + $0x5e0] sm:$0xff]
  %v223 = vld [vmem:[%s1 + $0x5e8] sm:$0xff]
  %v224 = vld [vmem:[%s1 + $0x5f0] sm:$0xff]
  %v225 = vld [vmem:[%s1 + $0x5f8] sm:$0xff]
  %v226 = vld [vmem:[%s1 + $0x600] sm:$0xff]
  %v227 = vld [vmem:[%s1 + $0x608] sm:$0xff]
  %v228 = vld [vmem:[%s1 + $0x610] sm:$0xff]
  %v229 = vld [vmem:[%s1 + $0x618] sm:$0xff]
  %v230 = vld [vmem:[%s1 + $0x620] sm:$0xff]
  %v231 = vld [vmem:[%s1 + $0x628] sm:$0xff]
  %v232 = vld [vmem:[%s1 + $0x630] sm:$0xff]
  %v233 = vld [vmem:[%s1 + $0x638] sm:$0xff]
  %v234 = vld [vmem:[%s1 + $0x640] sm:$0xff]
  %v235 = vld [vmem:[%s1 + $0x648] sm:$0xff]
  %v236 = vld [vmem:[%s1 + $0x650] sm:$0xff]
  %v237 = vld [vmem:[%s1 + $0x658] sm:$0xff]
  %v238 = vld [vmem:[%s1 + $0x660] sm:$0xff]
  %v239 = vld [vmem:[%s1 + $0x668] sm:$0xff]
  %v240 = vld [vmem:[%s1 + $0x670] sm:$0xff]
  %v241 = vld [vmem:[%s1 + $0x678] sm:$0xff]
  %v242 = vld [vmem:[%s1 + $0x680] sm:$0xff]
  %v243 = vld [vmem:[%s1 + $0x688] sm:$0xff]
  %v244 = vld [vmem:[%s1 + $0x690] sm:$0xff]
  %v245 = vld [vmem:[%s1 + $0x698] sm:$0xff]
  %v246 = vld [vmem:[%s1 + $0x6a0] sm:$0xff]
  %v247 = vld [vmem:[%s1 + $0x6a8] sm:$0xff]
  %v248 = vld [vmem:[%s1 + $0x6b0] sm:$0xff]
  %v249 = vld [vmem:[%s1 + $0x6b8] sm:$0xff]
  %v250 = vld [vmem:[%s1 + $0x6c0] sm:$0xff]
  %v251 = vld [vmem:[%s1 + $0x6c8] sm:$0xff]
  %v252 = vld [vmem:[%s1 + $0x6d0] sm:$0xff]
  %v253 = vld [vmem:[%s1 + $0x6d8] sm:$0xff]
  %v254 = vld [vmem:[%s1 + $0x6e0] sm:$0xff]
  %v255 = vld [vmem:[%s1 + $0x6e8] sm:$0xff]
  %v256 = vld [vmem:[%s1 + $0x6f0] sm:$0xff]
  %v257 = vld [vmem:[%s1 + $0x6f8] sm:$0xff]
  %v258 = vld [vmem:[%s1 + $0x700] sm:$0xff]
  %v259 = vld [vmem:[%s1 + $0x708] sm:$0xff]
  %v260 = vld [vmem:[%s1 + $0x710] sm:$0xff]
  %v261 = vld [vmem:[%s1 + $0x718] sm:$0xff]
  %v262 = vld [vmem:[%s1 + $0x720] sm:$0xff]
  %v263 = vld [vmem:[%s1 + $0x728] sm:$0xff]
  %v264 = vld [vmem:[%s1 + $0x730] sm:$0xff]
  %v265 = vld [vmem:[%s1 + $0x738] sm:$0xff]
  %v266 = vld [vmem:[%s1 + $0x740] sm:$0xff]
  %v267 = vld [vmem:[%s1 + $0x748] sm:$0xff]
  %v268 = vld [vmem:[%s1 + $0x750] sm:$0xff]
  %v269 = vld [vmem:[%s1 + $0x758] sm:$0xff]
  %v270 = vld [vmem:[%s1 + $0x760] sm:$0xff]
  %v271 = vld [vmem:[%s1 + $0x768] sm:$0xff]
  %v272 = vld [vmem:[%s1 + $0x770] sm:$0xff]
  %v273 = vld [vmem:[%s1 + $0x778] sm:$0xff]
  %v274 = vld [vmem:[%s1 + $0x780] sm:$0xff]
  %v275 = vld [vmem:[%s1 + $0x788] sm:$0xff]
  %v276 = vld [vmem:[%s1 + $0x790] sm:$0xff]
  %v277 = vld [vmem:[%s1 + $0x798] sm:$0xff]
  %v278 = vld [vmem:[%s1 + $0x7a0] sm:$0xff]
  %v279 = vld [vmem:[%s1 + $0x7a8] sm:$0xff]
  %v280 = vld [vmem:[%s1 + $0x7b0] sm:$0xff]
  %v281 = vld [vmem:[%s1 + $0x7b8] sm:$0xff]
  %v282 = vld [vmem:[%s1 + $0x7c0] sm:$0xff]
  %v283 = vld [vmem:[%s1 + $0x7c8] sm:$0xff]
  %v284 = vld [vmem:[%s1 + $0x7d0] sm:$0xff]
  %v285 = vld [vmem:[%s1 + $0x7d8] sm:$0xff]
  %v286 = vld [vmem:[%s1 + $0x7e0] sm:$0xff]
  %v287 = vld [vmem:[%s1 + $0x7e8] sm:$0xff]
  %v288 = vld [vmem:[%s1 + $0x7f0] sm:$0xff]
  %v289 = vld [vmem:[%s1 + $0x7f8] sm:$0xff]
  %v290 = vld [vmem:[%s1 + $0x800] sm:$0xff]
  %v291 = vld [vmem:[%s1 + $0x808] sm:$0xff]
  %v292 = vld [vmem:[%s1 + $0x810] sm:$0xff]
  %v293 = vld [vmem:[%s1 + $0x818] sm:$0xff]
  %v294 = vld [vmem:[%s1 + $0x820] sm:$0xff]
  %v295 = vld [vmem:[%s1 + $0x828] sm:$0xff]
  %v296 = vld [vmem:[%s1 + $0x830] sm:$0xff]
  %v297 = vld [vmem:[%s1 + $0x838] sm:$0xff]
  %v298 = vld [vmem:[%s1 + $0x840] sm:$0xff]
  %v299 = vld [vmem:[%s1 + $0x848] sm:$0xff]
  %v300 = vld [vmem:[%s1 + $0x850] sm:$0xff]
  %v301 = vld [vmem:[%s1 + $0x858] sm:$0xff]
  %v302 = vld [vmem:[%s1 + $0x860] sm:$0xff]
  %v303 = vld [vmem:[%s1 + $0x868] sm:$0xff]
  %v304 = vld [vmem:[%s1 + $0x870] sm:$0xff]
  %v305 = vld [vmem:[%s1 + $0x878] sm:$0xff]
  %v306 = vld [vmem:[%s1 + $0x880] sm:$0xff]
  %v307 = vld [vmem:[%s1 + $0x888] sm:$0xff]
  %v308 = vld [vmem:[%s1 + $0x890] sm:$0xff]
  %v309 = vld [vmem:[%s1 + $0x898] sm:$0xff]
  %v310 = vld [vmem:[%s1 + $0x8a0] sm:$0xff]
  %v311 = vld [vmem:[%s1 + $0x8a8] sm:$0xff]
  %v312 = vld [vmem:[%s1 + $0x8b0] sm:$0xff]
  %v313 = vld [vmem:[%s1 + $0x8b8] sm:$0xff]
  %v314 = vld [vmem:[%s1 + $0x8c0] sm:$0xff]
  %v315 = vld [vmem:[%s1 + $0x8c8] sm:$0xff]
  %v316 = vld [vmem:[%s1 + $0x8d0] sm:$0xff]
  %v317 = vld [vmem:[%s1 + $0x8d8] sm:$0xff]
  %v318 = vld [vmem:[%s1 + $0x8e0] sm:$0xff]
  %v319 = vld [vmem:[%s1 + $0x8e8] sm:$0xff]
  %v320 = vld [vmem:[%s1 + $0x8f0] sm:$0xff]
  %v321 = vld [vmem:[%s1 + $0x8f8] sm:$0xff]
  %v322 = vld [vmem:[%s1 + $0x900] sm:$0xff]
  %v323 = vld [vmem:[%s1 + $0x908] sm:$0xff]
  %v324 = vld [vmem:[%s1 + $0x910] sm:$0xff]
  %v325 = vld [vmem:[%s1 + $0x918] sm:$0xff]
  %v326 = vld [vmem:[%s1 + $0x920] sm:$0xff]
  %v327 = vld [vmem:[%s1 + $0x928] sm:$0xff]
  %v328 = vld [vmem:[%s1 + $0x930] sm:$0xff]
  %v329 = vld [vmem:[%s1 + $0x938] sm:$0xff]
  %v330 = vld [vmem:[%s1 + $0x940] sm:$0xff]
  %v331 = vld [vmem:[%s1 + $0x948] sm:$0xff]
  %v332 = vld [vmem:[%s1 + $0x950] sm:$0xff]
  %v333 = vld [vmem:[%s1 + $0x958] sm:$0xff]
  %v334 = vld [vmem:[%s1 + $0x960] sm:$0xff]
  %v335 = vld [vmem:[%s1 + $0x968] sm:$0xff]
  %v336 = vld [vmem:[%s1 + $0x970] sm:$0xff]
  %v337 = vld [vmem:[%s1 + $0x978] sm:$0xff]
  %v338 = vld [vmem:[%s1 + $0x980] sm:$0xff]
  %v339 = vld [vmem:[%s1 + $0x988] sm:$0xff]
  %v340 = vld [vmem:[%s1 + $0x990] sm:$0xff]
  %v341 = vld [vmem:[%s1 + $0x998] sm:$0xff]
  %v342 = vld [vmem:[%s1 + $0x9a0] sm:$0xff]
  %v343 = vld [vmem:[%s1 + $0x9a8] sm:$0xff]
  %v344 = vld [vmem:[%s1 + $0x9b0] sm:$0xff]
  %v345 = vld [vmem:[%s1 + $0x9b8] sm:$0xff]
  %v346 = vld [vmem:[%s1 + $0x9c0] sm:$0xff]
  %v347 = vld [vmem:[%s1 + $0x9c8] sm:$0xff]
  %v348 = vld [vmem:[%s1 + $0x9d0] sm:$0xff]
  %v349 = vld [vmem:[%s1 + $0x9d8] sm:$0xff]
  %v350 = vld [vmem:[%s1 + $0x9e0] sm:$0xff]
  %v351 = vld [vmem:[%s1 + $0x9e8] sm:$0xff]
  %v352 = vld [vmem:[%s1 + $0x9f0] sm:$0xff]
  %v353 = vld [vmem:[%s1 + $0x9f8] sm:$0xff]
  %v354 = vld [vmem:[%s1 + $0xa00] sm:$0xff]
  %v355 = vld [vmem:[%s1 + $0xa08] sm:$0xff]
  %v356 = vld [vmem:[%s1 + $0xa10] sm:$0xff]
  %v357 = vld [vmem:[%s1 + $0xa18] sm:$0xff]
  %v358 = vld [vmem:[%s1 + $0xa20] sm:$0xff]
  %v359 = vld [vmem:[%s1 + $0xa28] sm:$0xff]
  %v360 = vld [vmem:[%s1 + $0xa30] sm:$0xff]
  %v361 = vld [vmem:[%s1 + $0xa38] sm:$0xff]
  %v362 = vld [vmem:[%s1 + $0xa40] sm:$0xff]
  %v363 = vld [vmem:[%s1 + $0xa48] sm:$0xff]
  %v364 = vld [vmem:[%s1 + $0xa50] sm:$0xff]
  %v365 = vld [vmem:[%s1 + $0xa58] sm:$0xff]
  %v366 = vld [vmem:[%s1 + $0xa60] sm:$0xff]
  %v367 = vld [vmem:[%s1 + $0xa68] sm:$0xff]
  %v368 = vld [vmem:[%s1 + $0xa70] sm:$0xff]
  %v369 = vld [vmem:[%s1 + $0xa78] sm:$0xff]
  %v370 = vld [vmem:[%s1 + $0xa80] sm:$0xff]
  %v371 = vld [vmem:[%s1 + $0xa88] sm:$0xff]
  %v372 = vld [vmem:[%s1 + $0xa90] sm:$0xff]
  %v373 = vld [vmem:[%s1 + $0xa98] sm:$0xff]
  %v374 = vld [vmem:[%s1 + $0xaa0] sm:$0xff]
  %v375 = vld [vmem:[%s1 + $0xaa8] sm:$0xff]
  %v376 = vld [vmem:[%s1 + $0xab0] sm:$0xff]
  %v377 = vld [vmem:[%s1 + $0xab8] sm:$0xff]
  %v378 = vld [vmem:[%s1 + $0xac0] sm:$0xff]
  %v379 = vld [vmem:[%s1 + $0xac8] sm:$0xff]
  %v380 = vld [vmem:[%s1 + $0xad0] sm:$0xff]
  %v381 = vld [vmem:[%s1 + $0xad8] sm:$0xff]
  %v382 = vld [vmem:[%s1 + $0xae0] sm:$0xff]
  %v383 = vld [vmem:[%s1 + $0xae8] sm:$0xff]
  %v384 = vld [vmem:[%s1 + $0xaf0] sm:$0xff]
  %v385 = vld [vmem:[%s1 + $0xaf8] sm:$0xff]
  %v386 = vld [vmem:[%s1 + $0xb00] sm:$0xff]
  %v387 = vld [vmem:[%s1 + $0xb08] sm:$0xff]
  %v388 = vld [vmem:[%s1 + $0xb10] sm:$0xff]
  %v389 = vld [vmem:[%s1 + $0xb18] sm:$0xff]
  %v390 = vld [vmem:[%s1 + $0xb20] sm:$0xff]
  %v391 = vld [vmem:[%s1 + $0xb28] sm:$0xff]
  %v392 = vld [vmem:[%s1 + $0xb30] sm:$0xff]
  %v393 = vld [vmem:[%s1 + $0xb38] sm:$0xff]
  %v394 = vld [vmem:[%s1 + $0xb40] sm:$0xff]
  %v395 = vld [vmem:[%s1 + $0xb48] sm:$0xff]
  %v396 = vld [vmem:[%s1 + $0xb50] sm:$0xff]
  %v397 = vld [vmem:[%s1 + $0xb58] sm:$0xff]
  %v398 = vld [vmem:[%s1 + $0xb60] sm:$0xff]
  %v399 = vld [vmem:[%s1 + $0xb68] sm:$0xff]
  %v400 = vld [vmem:[%s1 + $0xb70] sm:$0xff]
  %v401 = vld [vmem:[%s1 + $0xb78] sm:$0xff]
  %v402 = vld [vmem:[%s1 + $0xb80] sm:$0xff]
  %v403 = vld [vmem:[%s1 + $0xb88] sm:$0xff]
  %v404 = vld [vmem:[%s1 + $0xb90] sm:$0xff]
  %v405 = vld [vmem:[%s1 + $0xb98] sm:$0xff]
  %v406 = vld [vmem:[%s1 + $0xba0] sm:$0xff]
  %v407 = vld [vmem:[%s1 + $0xba8] sm:$0xff]
  %v408 = vld [vmem:[%s1 + $0xbb0] sm:$0xff]
  %v409 = vld [vmem:[%s1 + $0xbb8] sm:$0xff]
  %v410 = vld [vmem:[%s1 + $0xbc0] sm:$0xff]
  %v411 = vld [vmem:[%s1 + $0xbc8] sm:$0xff]
  %v412 = vld [vmem:[%s1 + $0xbd0] sm:$0xff]
  %v413 = vld [vmem:[%s1 + $0xbd8] sm:$0xff]
  %v414 = vld [vmem:[%s1 + $0xbe0] sm:$0xff]
  %v415 = vld [vmem:[%s1 + $0xbe8] sm:$0xff]
  %v416 = vld [vmem:[%s1 + $0xbf0] sm:$0xff]
  %v417 = vld [vmem:[%s1 + $0xbf8] sm:$0xff]
  %v418 = vld [vmem:[%s1 + $0xc00] sm:$0xff]
  %v419 = vld [vmem:[%s1 + $0xc08] sm:$0xff]
  %v420 = vld [vmem:[%s1 + $0xc10] sm:$0xff]
  %v421 = vld [vmem:[%s1 + $0xc18] sm:$0xff]
  %v422 = vld [vmem:[%s1 + $0xc20] sm:$0xff]
  %v423 = vld [vmem:[%s1 + $0xc28] sm:$0xff]
  %v424 = vld [vmem:[%s1 + $0xc30] sm:$0xff]
  %v425 = vld [vmem:[%s1 + $0xc38] sm:$0xff]
  %v426 = vld [vmem:[%s1 + $0xc40] sm:$0xff]
  %v427 = vld [vmem:[%s1 + $0xc48] sm:$0xff]
  %v428 = vld [vmem:[%s1 + $0xc50] sm:$0xff]
  %v429 = vld [vmem:[%s1 + $0xc58] sm:$0xff]
  %v430 = vld [vmem:[%s1 + $0xc60] sm:$0xff]
  %v431 = vld [vmem:[%s1 + $0xc68] sm:$0xff]
  %v432 = vld [vmem:[%s1 + $0xc70] sm:$0xff]
  %v433 = vld [vmem:[%s1 + $0xc78] sm:$0xff]
  %v434 = vld [vmem:[%s2] sm:$0x3]
  %v436 = vlaneseq
  %v437 = vshrl.u32 %v436, 7
  %v438 = vsub.s32 0, %v437
  %v439 = vrot.slane %v434, %v438
  %v440 = vlaneseq
  %v441 = vshrl.u32 %v440, 7
  %v442 = vsub.s32 1, %v441
  %v443 = vrot.slane %v434, %v442
  %v459 = vunpack.c.l.b16 %v21
  %v460 = vunpack.c.h.b16 %v21
  %v461 = vunpack.c.l.b16 %v22
  %v462 = vunpack.c.h.b16 %v22
  %v463 = vunpack.c.l.b16 %v23
  %v464 = vunpack.c.h.b16 %v23
  %v465 = vunpack.c.l.b16 %v24
  %v466 = vunpack.c.h.b16 %v24
  %v467 = vunpack.c.l.b16 %v25
  %v468 = vunpack.c.h.b16 %v25
  %v469 = vunpack.c.l.b16 %v26
  %v470 = vunpack.c.h.b16 %v26
  %v471 = vunpack.c.l.b16 %v27
  %v472 = vunpack.c.h.b16 %v27
  %v473 = vunpack.c.l.b16 %v28
  %v474 = vunpack.c.h.b16 %v28
  %v475 = vunpack.c.l.b16 %v29
  %v476 = vunpack.c.h.b16 %v29
  %v477 = vunpack.c.l.b16 %v30
  %v478 = vunpack.c.h.b16 %v30
  %v479 = vunpack.c.l.b16 %v31
  %v480 = vunpack.c.h.b16 %v31
  %v481 = vunpack.c.l.b16 %v32
  %v482 = vunpack.c.h.b16 %v32
  %v483 = vunpack.c.l.b16 %v33
  %v484 = vpack.c.b16 %v459, %v459
  %v485 = vpack.c.b16 %v460, %v460
  %v486 = vpack.c.b16 %v461, %v461
  %v487 = vpack.c.b16 %v462, %v462
  %v488 = vpack.c.b16 %v463, %v463
  %v489 = vpack.c.b16 %v464, %v464
  %v490 = vpack.c.b16 %v465, %v465
  %v491 = vpack.c.b16 %v466, %v466
  %v492 = vpack.c.b16 %v467, %v467
  %v493 = vpack.c.b16 %v468, %v468
  %v494 = vpack.c.b16 %v469, %v469
  %v495 = vpack.c.b16 %v470, %v470
  %v496 = vpack.c.b16 %v471, %v471
  %v497 = vpack.c.b16 %v472, %v472
  %v498 = vpack.c.b16 %v473, %v473
  %v499 = vpack.c.b16 %v474, %v474
  %v500 = vpack.c.b16 %v475, %v475
  %v501 = vpack.c.b16 %v476, %v476
  %v502 = vpack.c.b16 %v477, %v477
  %v503 = vpack.c.b16 %v478, %v478
  %v504 = vpack.c.b16 %v479, %v479
  %v505 = vpack.c.b16 %v480, %v480
  %v506 = vpack.c.b16 %v481, %v481
  %v507 = vpack.c.b16 %v482, %v482
  %v508 = vpack.c.b16 %v483, %v483
  %v934 = vunpack.c.l.b16 %v34
  %v935 = vunpack.c.h.b16 %v34
  %v936 = vunpack.c.l.b16 %v35
  %v937 = vunpack.c.h.b16 %v35
  %v938 = vunpack.c.l.b16 %v36
  %v939 = vunpack.c.h.b16 %v36
  %v940 = vunpack.c.l.b16 %v37
  %v941 = vunpack.c.h.b16 %v37
  %v942 = vunpack.c.l.b16 %v38
  %v943 = vunpack.c.h.b16 %v38
  %v944 = vunpack.c.l.b16 %v39
  %v945 = vunpack.c.h.b16 %v39
  %v946 = vunpack.c.l.b16 %v40
  %v947 = vunpack.c.h.b16 %v40
  %v948 = vunpack.c.l.b16 %v41
  %v949 = vunpack.c.h.b16 %v41
  %v950 = vunpack.c.l.b16 %v42
  %v951 = vunpack.c.h.b16 %v42
  %v952 = vunpack.c.l.b16 %v43
  %v953 = vunpack.c.h.b16 %v43
  %v954 = vunpack.c.l.b16 %v44
  %v955 = vunpack.c.h.b16 %v44
  %v956 = vunpack.c.l.b16 %v45
  %v957 = vunpack.c.h.b16 %v45
  %v958 = vunpack.c.l.b16 %v46
  %v959 = vunpack.c.h.b16 %v46
  %v960 = vunpack.c.l.b16 %v47
  %v961 = vunpack.c.h.b16 %v47
  %v962 = vunpack.c.l.b16 %v48
  %v963 = vunpack.c.h.b16 %v48
  %v964 = vunpack.c.l.b16 %v49
  %v965 = vunpack.c.h.b16 %v49
  %v966 = vunpack.c.l.b16 %v50
  %v967 = vunpack.c.h.b16 %v50
  %v968 = vunpack.c.l.b16 %v51
  %v969 = vunpack.c.h.b16 %v51
  %v970 = vunpack.c.l.b16 %v52
  %v971 = vunpack.c.h.b16 %v52
  %v972 = vunpack.c.l.b16 %v53
  %v973 = vunpack.c.h.b16 %v53
  %v974 = vunpack.c.l.b16 %v54
  %v975 = vunpack.c.h.b16 %v54
  %v976 = vunpack.c.l.b16 %v55
  %v977 = vunpack.c.h.b16 %v55
  %v978 = vunpack.c.l.b16 %v56
  %v979 = vunpack.c.h.b16 %v56
  %v980 = vunpack.c.l.b16 %v57
  %v981 = vunpack.c.h.b16 %v57
  %v982 = vunpack.c.l.b16 %v58
  %v983 = vunpack.c.h.b16 %v58
  %v984 = vunpack.c.l.b16 %v59
  %v985 = vunpack.c.h.b16 %v59
  %v986 = vunpack.c.l.b16 %v60
  %v987 = vunpack.c.h.b16 %v60
  %v988 = vunpack.c.l.b16 %v61
  %v989 = vunpack.c.h.b16 %v61
  %v990 = vunpack.c.l.b16 %v62
  %v991 = vunpack.c.h.b16 %v62
  %v992 = vunpack.c.l.b16 %v63
  %v993 = vunpack.c.h.b16 %v63
  %v994 = vunpack.c.l.b16 %v64
  %v995 = vunpack.c.h.b16 %v64
  %v996 = vunpack.c.l.b16 %v65
  %v997 = vunpack.c.h.b16 %v65
  %v998 = vunpack.c.l.b16 %v66
  %v999 = vunpack.c.h.b16 %v66
  %v1000 = vunpack.c.l.b16 %v67
  %v1001 = vunpack.c.h.b16 %v67
  %v1002 = vunpack.c.l.b16 %v68
  %v1003 = vunpack.c.h.b16 %v68
  %v1004 = vunpack.c.l.b16 %v69
  %v1005 = vunpack.c.h.b16 %v69
  %v1006 = vunpack.c.l.b16 %v70
  %v1007 = vunpack.c.h.b16 %v70
  %v1008 = vunpack.c.l.b16 %v71
  %v1009 = vunpack.c.h.b16 %v71
  %v1010 = vunpack.c.l.b16 %v72
  %v1011 = vunpack.c.h.b16 %v72
  %v1012 = vunpack.c.l.b16 %v73
  %v1013 = vunpack.c.h.b16 %v73
  %v1014 = vunpack.c.l.b16 %v74
  %v1015 = vunpack.c.h.b16 %v74
  %v1016 = vunpack.c.l.b16 %v75
  %v1017 = vunpack.c.h.b16 %v75
  %v1018 = vunpack.c.l.b16 %v76
  %v1019 = vunpack.c.h.b16 %v76
  %v1020 = vunpack.c.l.b16 %v77
  %v1021 = vunpack.c.h.b16 %v77
  %v1022 = vunpack.c.l.b16 %v78
  %v1023 = vunpack.c.h.b16 %v78
  %v1024 = vunpack.c.l.b16 %v79
  %v1025 = vunpack.c.h.b16 %v79
  %v1026 = vunpack.c.l.b16 %v80
  %v1027 = vunpack.c.h.b16 %v80
  %v1028 = vunpack.c.l.b16 %v81
  %v1029 = vunpack.c.h.b16 %v81
  %v1030 = vunpack.c.l.b16 %v82
  %v1031 = vunpack.c.h.b16 %v82
  %v1032 = vunpack.c.l.b16 %v83
  %v1033 = vunpack.c.h.b16 %v83
  %v1034 = vunpack.c.l.b16 %v84
  %v1035 = vunpack.c.h.b16 %v84
  %v1036 = vunpack.c.l.b16 %v85
  %v1037 = vunpack.c.h.b16 %v85
  %v1038 = vunpack.c.l.b16 %v86
  %v1039 = vunpack.c.h.b16 %v86
  %v1040 = vunpack.c.l.b16 %v87
  %v1041 = vunpack.c.h.b16 %v87
  %v1042 = vunpack.c.l.b16 %v88
  %v1043 = vunpack.c.h.b16 %v88
  %v1044 = vunpack.c.l.b16 %v89
  %v1045 = vunpack.c.h.b16 %v89
  %v1046 = vunpack.c.l.b16 %v90
  %v1047 = vunpack.c.h.b16 %v90
  %v1048 = vunpack.c.l.b16 %v91
  %v1049 = vunpack.c.h.b16 %v91
  %v1050 = vunpack.c.l.b16 %v92
  %v1051 = vunpack.c.h.b16 %v92
  %v1052 = vunpack.c.l.b16 %v93
  %v1053 = vunpack.c.h.b16 %v93
  %v1054 = vunpack.c.l.b16 %v94
  %v1055 = vunpack.c.h.b16 %v94
  %v1056 = vunpack.c.l.b16 %v95
  %v1057 = vunpack.c.h.b16 %v95
  %v1058 = vunpack.c.l.b16 %v96
  %v1059 = vunpack.c.h.b16 %v96
  %v1060 = vunpack.c.l.b16 %v97
  %v1061 = vunpack.c.h.b16 %v97
  %v1062 = vunpack.c.l.b16 %v98
  %v1063 = vunpack.c.h.b16 %v98
  %v1064 = vunpack.c.l.b16 %v99
  %v1065 = vunpack.c.h.b16 %v99
  %v1066 = vunpack.c.l.b16 %v100
  %v1067 = vunpack.c.h.b16 %v100
  %v1068 = vunpack.c.l.b16 %v101
  %v1069 = vunpack.c.h.b16 %v101
  %v1070 = vunpack.c.l.b16 %v102
  %v1071 = vunpack.c.h.b16 %v102
  %v1072 = vunpack.c.l.b16 %v103
  %v1073 = vunpack.c.h.b16 %v103
  %v1074 = vunpack.c.l.b16 %v104
  %v1075 = vunpack.c.h.b16 %v104
  %v1076 = vunpack.c.l.b16 %v105
  %v1077 = vunpack.c.h.b16 %v105
  %v1078 = vunpack.c.l.b16 %v106
  %v1079 = vunpack.c.h.b16 %v106
  %v1080 = vunpack.c.l.b16 %v107
  %v1081 = vunpack.c.h.b16 %v107
  %v1082 = vunpack.c.l.b16 %v108
  %v1083 = vunpack.c.h.b16 %v108
  %v1084 = vunpack.c.l.b16 %v109
  %v1085 = vunpack.c.h.b16 %v109
  %v1086 = vunpack.c.l.b16 %v110
  %v1087 = vunpack.c.h.b16 %v110
  %v1088 = vunpack.c.l.b16 %v111
  %v1089 = vunpack.c.h.b16 %v111
  %v1090 = vunpack.c.l.b16 %v112
  %v1091 = vunpack.c.h.b16 %v112
  %v1092 = vunpack.c.l.b16 %v113
  %v1093 = vunpack.c.h.b16 %v113
  %v1094 = vunpack.c.l.b16 %v114
  %v1095 = vunpack.c.h.b16 %v114
  %v1096 = vunpack.c.l.b16 %v115
  %v1097 = vunpack.c.h.b16 %v115
  %v1098 = vunpack.c.l.b16 %v116
  %v1099 = vunpack.c.h.b16 %v116
  %v1100 = vunpack.c.l.b16 %v117
  %v1101 = vunpack.c.h.b16 %v117
  %v1102 = vunpack.c.l.b16 %v118
  %v1103 = vunpack.c.h.b16 %v118
  %v1104 = vunpack.c.l.b16 %v119
  %v1105 = vunpack.c.h.b16 %v119
  %v1106 = vunpack.c.l.b16 %v120
  %v1107 = vunpack.c.h.b16 %v120
  %v1108 = vunpack.c.l.b16 %v121
  %v1109 = vunpack.c.h.b16 %v121
  %v1110 = vunpack.c.l.b16 %v122
  %v1111 = vunpack.c.h.b16 %v122
  %v1112 = vunpack.c.l.b16 %v123
  %v1113 = vunpack.c.h.b16 %v123
  %v1114 = vunpack.c.l.b16 %v124
  %v1115 = vunpack.c.h.b16 %v124
  %v1116 = vunpack.c.l.b16 %v125
  %v1117 = vunpack.c.h.b16 %v125
  %v1118 = vunpack.c.l.b16 %v126
  %v1119 = vunpack.c.h.b16 %v126
  %v1120 = vunpack.c.l.b16 %v127
  %v1121 = vunpack.c.h.b16 %v127
  %v1122 = vunpack.c.l.b16 %v128
  %v1123 = vunpack.c.h.b16 %v128
  %v1124 = vunpack.c.l.b16 %v129
  %v1125 = vunpack.c.h.b16 %v129
  %v1126 = vunpack.c.l.b16 %v130
  %v1127 = vunpack.c.h.b16 %v130
  %v1128 = vunpack.c.l.b16 %v131
  %v1129 = vunpack.c.h.b16 %v131
  %v1130 = vunpack.c.l.b16 %v132
  %v1131 = vunpack.c.h.b16 %v132
  %v1132 = vunpack.c.l.b16 %v133
  %v1133 = vunpack.c.h.b16 %v133
  %v1134 = vunpack.c.l.b16 %v134
  %v1135 = vunpack.c.h.b16 %v134
  %v1136 = vunpack.c.l.b16 %v135
  %v1137 = vunpack.c.h.b16 %v135
  %v1138 = vunpack.c.l.b16 %v136
  %v1139 = vunpack.c.h.b16 %v136
  %v1140 = vunpack.c.l.b16 %v137
  %v1141 = vunpack.c.h.b16 %v137
  %v1142 = vunpack.c.l.b16 %v138
  %v1143 = vunpack.c.h.b16 %v138
  %v1144 = vunpack.c.l.b16 %v139
  %v1145 = vunpack.c.h.b16 %v139
  %v1146 = vunpack.c.l.b16 %v140
  %v1147 = vunpack.c.h.b16 %v140
  %v1148 = vunpack.c.l.b16 %v141
  %v1149 = vunpack.c.h.b16 %v141
  %v1150 = vunpack.c.l.b16 %v142
  %v1151 = vunpack.c.h.b16 %v142
  %v1152 = vunpack.c.l.b16 %v143
  %v1153 = vunpack.c.h.b16 %v143
  %v1154 = vunpack.c.l.b16 %v144
  %v1155 = vunpack.c.h.b16 %v144
  %v1156 = vunpack.c.l.b16 %v145
  %v1157 = vunpack.c.h.b16 %v145
  %v1158 = vunpack.c.l.b16 %v146
  %v1159 = vunpack.c.h.b16 %v146
  %v1160 = vunpack.c.l.b16 %v147
  %v1161 = vunpack.c.h.b16 %v147
  %v1162 = vunpack.c.l.b16 %v148
  %v1163 = vunpack.c.h.b16 %v148
  %v1164 = vunpack.c.l.b16 %v149
  %v1165 = vunpack.c.h.b16 %v149
  %v1166 = vunpack.c.l.b16 %v150
  %v1167 = vunpack.c.h.b16 %v150
  %v1168 = vunpack.c.l.b16 %v151
  %v1169 = vunpack.c.h.b16 %v151
  %v1170 = vunpack.c.l.b16 %v152
  %v1171 = vunpack.c.h.b16 %v152
  %v1172 = vunpack.c.l.b16 %v153
  %v1173 = vunpack.c.h.b16 %v153
  %v1174 = vunpack.c.l.b16 %v154
  %v1175 = vunpack.c.h.b16 %v154
  %v1176 = vunpack.c.l.b16 %v155
  %v1177 = vunpack.c.h.b16 %v155
  %v1178 = vunpack.c.l.b16 %v156
  %v1179 = vunpack.c.h.b16 %v156
  %v1180 = vunpack.c.l.b16 %v157
  %v1181 = vunpack.c.h.b16 %v157
  %v1182 = vunpack.c.l.b16 %v158
  %v1183 = vunpack.c.h.b16 %v158
  %v1184 = vunpack.c.l.b16 %v159
  %v1185 = vunpack.c.h.b16 %v159
  %v1186 = vunpack.c.l.b16 %v160
  %v1187 = vunpack.c.h.b16 %v160
  %v1188 = vunpack.c.l.b16 %v161
  %v1189 = vunpack.c.h.b16 %v161
  %v1190 = vunpack.c.l.b16 %v162
  %v1191 = vunpack.c.h.b16 %v162
  %v1192 = vunpack.c.l.b16 %v163
  %v1193 = vunpack.c.h.b16 %v163
  %v1194 = vunpack.c.l.b16 %v164
  %v1195 = vunpack.c.h.b16 %v164
  %v1196 = vunpack.c.l.b16 %v165
  %v1197 = vunpack.c.h.b16 %v165
  %v1198 = vunpack.c.l.b16 %v166
  %v1199 = vunpack.c.h.b16 %v166
  %v1200 = vunpack.c.l.b16 %v167
  %v1201 = vunpack.c.h.b16 %v167
  %v1202 = vunpack.c.l.b16 %v168
  %v1203 = vunpack.c.h.b16 %v168
  %v1204 = vunpack.c.l.b16 %v169
  %v1205 = vunpack.c.h.b16 %v169
  %v1206 = vunpack.c.l.b16 %v170
  %v1207 = vunpack.c.h.b16 %v170
  %v1208 = vunpack.c.l.b16 %v171
  %v1209 = vunpack.c.h.b16 %v171
  %v1210 = vunpack.c.l.b16 %v172
  %v1211 = vunpack.c.h.b16 %v172
  %v1212 = vunpack.c.l.b16 %v173
  %v1213 = vunpack.c.h.b16 %v173
  %v1214 = vunpack.c.l.b16 %v174
  %v1215 = vunpack.c.h.b16 %v174
  %v1216 = vunpack.c.l.b16 %v175
  %v1217 = vunpack.c.h.b16 %v175
  %v1218 = vunpack.c.l.b16 %v176
  %v1219 = vunpack.c.h.b16 %v176
  %v1220 = vunpack.c.l.b16 %v177
  %v1221 = vunpack.c.h.b16 %v177
  %v1222 = vunpack.c.l.b16 %v178
  %v1223 = vunpack.c.h.b16 %v178
  %v1224 = vunpack.c.l.b16 %v179
  %v1225 = vunpack.c.h.b16 %v179
  %v1226 = vunpack.c.l.b16 %v180
  %v1227 = vunpack.c.h.b16 %v180
  %v1228 = vunpack.c.l.b16 %v181
  %v1229 = vunpack.c.h.b16 %v181
  %v1230 = vunpack.c.l.b16 %v182
  %v1231 = vunpack.c.h.b16 %v182
  %v1232 = vunpack.c.l.b16 %v183
  %v1233 = vunpack.c.h.b16 %v183
  %v1234 = vunpack.c.l.b16 %v184
  %v1235 = vunpack.c.h.b16 %v184
  %v1236 = vunpack.c.l.b16 %v185
  %v1237 = vunpack.c.h.b16 %v185
  %v1238 = vunpack.c.l.b16 %v186
  %v1239 = vunpack.c.h.b16 %v186
  %v1240 = vunpack.c.l.b16 %v187
  %v1241 = vunpack.c.h.b16 %v187
  %v1242 = vunpack.c.l.b16 %v188
  %v1243 = vunpack.c.h.b16 %v188
  %v1244 = vunpack.c.l.b16 %v189
  %v1245 = vunpack.c.h.b16 %v189
  %v1246 = vunpack.c.l.b16 %v190
  %v1247 = vunpack.c.h.b16 %v190
  %v1248 = vunpack.c.l.b16 %v191
  %v1249 = vunpack.c.h.b16 %v191
  %v1250 = vunpack.c.l.b16 %v192
  %v1251 = vunpack.c.h.b16 %v192
  %v1252 = vunpack.c.l.b16 %v193
  %v1253 = vunpack.c.h.b16 %v193
  %v1254 = vunpack.c.l.b16 %v194
  %v1255 = vunpack.c.h.b16 %v194
  %v1256 = vunpack.c.l.b16 %v195
  %v1257 = vunpack.c.h.b16 %v195
  %v1258 = vunpack.c.l.b16 %v196
  %v1259 = vunpack.c.h.b16 %v196
  %v1260 = vunpack.c.l.b16 %v197
  %v1261 = vunpack.c.h.b16 %v197
  %v1262 = vunpack.c.l.b16 %v198
  %v1263 = vunpack.c.h.b16 %v198
  %v1264 = vunpack.c.l.b16 %v199
  %v1265 = vunpack.c.h.b16 %v199
  %v1266 = vunpack.c.l.b16 %v200
  %v1267 = vunpack.c.h.b16 %v200
  %v1268 = vunpack.c.l.b16 %v201
  %v1269 = vunpack.c.h.b16 %v201
  %v1270 = vunpack.c.l.b16 %v202
  %v1271 = vunpack.c.h.b16 %v202
  %v1272 = vunpack.c.l.b16 %v203
  %v1273 = vunpack.c.h.b16 %v203
  %v1274 = vunpack.c.l.b16 %v204
  %v1275 = vunpack.c.h.b16 %v204
  %v1276 = vunpack.c.l.b16 %v205
  %v1277 = vunpack.c.h.b16 %v205
  %v1278 = vunpack.c.l.b16 %v206
  %v1279 = vunpack.c.h.b16 %v206
  %v1280 = vunpack.c.l.b16 %v207
  %v1281 = vunpack.c.h.b16 %v207
  %v1282 = vunpack.c.l.b16 %v208
  %v1283 = vunpack.c.h.b16 %v208
  %v1284 = vunpack.c.l.b16 %v209
  %v1285 = vunpack.c.h.b16 %v209
  %v1286 = vunpack.c.l.b16 %v210
  %v1287 = vunpack.c.h.b16 %v210
  %v1288 = vunpack.c.l.b16 %v211
  %v1289 = vunpack.c.h.b16 %v211
  %v1290 = vunpack.c.l.b16 %v212
  %v1291 = vunpack.c.h.b16 %v212
  %v1292 = vunpack.c.l.b16 %v213
  %v1293 = vunpack.c.h.b16 %v213
  %v1294 = vunpack.c.l.b16 %v214
  %v1295 = vunpack.c.h.b16 %v214
  %v1296 = vunpack.c.l.b16 %v215
  %v1297 = vunpack.c.h.b16 %v215
  %v1298 = vunpack.c.l.b16 %v216
  %v1299 = vunpack.c.h.b16 %v216
  %v1300 = vunpack.c.l.b16 %v217
  %v1301 = vunpack.c.h.b16 %v217
  %v1302 = vunpack.c.l.b16 %v218
  %v1303 = vunpack.c.h.b16 %v218
  %v1304 = vunpack.c.l.b16 %v219
  %v1305 = vunpack.c.h.b16 %v219
  %v1306 = vunpack.c.l.b16 %v220
  %v1307 = vunpack.c.h.b16 %v220
  %v1308 = vunpack.c.l.b16 %v221
  %v1309 = vunpack.c.h.b16 %v221
  %v1310 = vunpack.c.l.b16 %v222
  %v1311 = vunpack.c.h.b16 %v222
  %v1312 = vunpack.c.l.b16 %v223
  %v1313 = vunpack.c.h.b16 %v223
  %v1314 = vunpack.c.l.b16 %v224
  %v1315 = vunpack.c.h.b16 %v224
  %v1316 = vunpack.c.l.b16 %v225
  %v1317 = vunpack.c.h.b16 %v225
  %v1318 = vunpack.c.l.b16 %v226
  %v1319 = vunpack.c.h.b16 %v226
  %v1320 = vunpack.c.l.b16 %v227
  %v1321 = vunpack.c.h.b16 %v227
  %v1322 = vunpack.c.l.b16 %v228
  %v1323 = vunpack.c.h.b16 %v228
  %v1324 = vunpack.c.l.b16 %v229
  %v1325 = vunpack.c.h.b16 %v229
  %v1326 = vunpack.c.l.b16 %v230
  %v1327 = vunpack.c.h.b16 %v230
  %v1328 = vunpack.c.l.b16 %v231
  %v1329 = vunpack.c.h.b16 %v231
  %v1330 = vunpack.c.l.b16 %v232
  %v1331 = vunpack.c.h.b16 %v232
  %v1332 = vunpack.c.l.b16 %v233
  %v1333 = vunpack.c.h.b16 %v233
  %v1334 = vunpack.c.l.b16 %v234
  %v1335 = vunpack.c.h.b16 %v234
  %v1336 = vunpack.c.l.b16 %v235
  %v1337 = vunpack.c.h.b16 %v235
  %v1338 = vunpack.c.l.b16 %v236
  %v1339 = vunpack.c.h.b16 %v236
  %v1340 = vunpack.c.l.b16 %v237
  %v1341 = vunpack.c.h.b16 %v237
  %v1342 = vunpack.c.l.b16 %v238
  %v1343 = vunpack.c.h.b16 %v238
  %v1344 = vunpack.c.l.b16 %v239
  %v1345 = vunpack.c.h.b16 %v239
  %v1346 = vunpack.c.l.b16 %v240
  %v1347 = vunpack.c.h.b16 %v240
  %v1348 = vunpack.c.l.b16 %v241
  %v1349 = vunpack.c.h.b16 %v241
  %v1350 = vunpack.c.l.b16 %v242
  %v1351 = vunpack.c.h.b16 %v242
  %v1352 = vunpack.c.l.b16 %v243
  %v1353 = vunpack.c.h.b16 %v243
  %v1354 = vunpack.c.l.b16 %v244
  %v1355 = vunpack.c.h.b16 %v244
  %v1356 = vunpack.c.l.b16 %v245
  %v1357 = vunpack.c.h.b16 %v245
  %v1358 = vunpack.c.l.b16 %v246
  %v1359 = vunpack.c.h.b16 %v246
  %v1360 = vunpack.c.l.b16 %v247
  %v1361 = vunpack.c.h.b16 %v247
  %v1362 = vunpack.c.l.b16 %v248
  %v1363 = vunpack.c.h.b16 %v248
  %v1364 = vunpack.c.l.b16 %v249
  %v1365 = vunpack.c.h.b16 %v249
  %v1366 = vunpack.c.l.b16 %v250
  %v1367 = vunpack.c.h.b16 %v250
  %v1368 = vunpack.c.l.b16 %v251
  %v1369 = vunpack.c.h.b16 %v251
  %v1370 = vunpack.c.l.b16 %v252
  %v1371 = vunpack.c.h.b16 %v252
  %v1372 = vunpack.c.l.b16 %v253
  %v1373 = vunpack.c.h.b16 %v253
  %v1374 = vunpack.c.l.b16 %v254
  %v1375 = vunpack.c.h.b16 %v254
  %v1376 = vunpack.c.l.b16 %v255
  %v1377 = vunpack.c.h.b16 %v255
  %v1378 = vunpack.c.l.b16 %v256
  %v1379 = vunpack.c.h.b16 %v256
  %v1380 = vunpack.c.l.b16 %v257
  %v1381 = vunpack.c.h.b16 %v257
  %v1382 = vunpack.c.l.b16 %v258
  %v1383 = vunpack.c.h.b16 %v258
  %v1384 = vunpack.c.l.b16 %v259
  %v1385 = vunpack.c.h.b16 %v259
  %v1386 = vunpack.c.l.b16 %v260
  %v1387 = vunpack.c.h.b16 %v260
  %v1388 = vunpack.c.l.b16 %v261
  %v1389 = vunpack.c.h.b16 %v261
  %v1390 = vunpack.c.l.b16 %v262
  %v1391 = vunpack.c.h.b16 %v262
  %v1392 = vunpack.c.l.b16 %v263
  %v1393 = vunpack.c.h.b16 %v263
  %v1394 = vunpack.c.l.b16 %v264
  %v1395 = vunpack.c.h.b16 %v264
  %v1396 = vunpack.c.l.b16 %v265
  %v1397 = vunpack.c.h.b16 %v265
  %v1398 = vunpack.c.l.b16 %v266
  %v1399 = vunpack.c.h.b16 %v266
  %v1400 = vunpack.c.l.b16 %v267
  %v1401 = vunpack.c.h.b16 %v267
  %v1402 = vunpack.c.l.b16 %v268
  %v1403 = vunpack.c.h.b16 %v268
  %v1404 = vunpack.c.l.b16 %v269
  %v1405 = vunpack.c.h.b16 %v269
  %v1406 = vunpack.c.l.b16 %v270
  %v1407 = vunpack.c.h.b16 %v270
  %v1408 = vunpack.c.l.b16 %v271
  %v1409 = vunpack.c.h.b16 %v271
  %v1410 = vunpack.c.l.b16 %v272
  %v1411 = vunpack.c.h.b16 %v272
  %v1412 = vunpack.c.l.b16 %v273
  %v1413 = vunpack.c.h.b16 %v273
  %v1414 = vunpack.c.l.b16 %v274
  %v1415 = vunpack.c.h.b16 %v274
  %v1416 = vunpack.c.l.b16 %v275
  %v1417 = vunpack.c.h.b16 %v275
  %v1418 = vunpack.c.l.b16 %v276
  %v1419 = vunpack.c.h.b16 %v276
  %v1420 = vunpack.c.l.b16 %v277
  %v1421 = vunpack.c.h.b16 %v277
  %v1422 = vunpack.c.l.b16 %v278
  %v1423 = vunpack.c.h.b16 %v278
  %v1424 = vunpack.c.l.b16 %v279
  %v1425 = vunpack.c.h.b16 %v279
  %v1426 = vunpack.c.l.b16 %v280
  %v1427 = vunpack.c.h.b16 %v280
  %v1428 = vunpack.c.l.b16 %v281
  %v1429 = vunpack.c.h.b16 %v281
  %v1430 = vunpack.c.l.b16 %v282
  %v1431 = vunpack.c.h.b16 %v282
  %v1432 = vunpack.c.l.b16 %v283
  %v1433 = vunpack.c.h.b16 %v283
  %v1434 = vunpack.c.l.b16 %v284
  %v1435 = vunpack.c.h.b16 %v284
  %v1436 = vunpack.c.l.b16 %v285
  %v1437 = vunpack.c.h.b16 %v285
  %v1438 = vunpack.c.l.b16 %v286
  %v1439 = vunpack.c.h.b16 %v286
  %v1440 = vunpack.c.l.b16 %v287
  %v1441 = vunpack.c.h.b16 %v287
  %v1442 = vunpack.c.l.b16 %v288
  %v1443 = vunpack.c.h.b16 %v288
  %v1444 = vunpack.c.l.b16 %v289
  %v1445 = vunpack.c.h.b16 %v289
  %v1446 = vunpack.c.l.b16 %v290
  %v1447 = vunpack.c.h.b16 %v290
  %v1448 = vunpack.c.l.b16 %v291
  %v1449 = vunpack.c.h.b16 %v291
  %v1450 = vunpack.c.l.b16 %v292
  %v1451 = vunpack.c.h.b16 %v292
  %v1452 = vunpack.c.l.b16 %v293
  %v1453 = vunpack.c.h.b16 %v293
  %v1454 = vunpack.c.l.b16 %v294
  %v1455 = vunpack.c.h.b16 %v294
  %v1456 = vunpack.c.l.b16 %v295
  %v1457 = vunpack.c.h.b16 %v295
  %v1458 = vunpack.c.l.b16 %v296
  %v1459 = vunpack.c.h.b16 %v296
  %v1460 = vunpack.c.l.b16 %v297
  %v1461 = vunpack.c.h.b16 %v297
  %v1462 = vunpack.c.l.b16 %v298
  %v1463 = vunpack.c.h.b16 %v298
  %v1464 = vunpack.c.l.b16 %v299
  %v1465 = vunpack.c.h.b16 %v299
  %v1466 = vunpack.c.l.b16 %v300
  %v1467 = vunpack.c.h.b16 %v300
  %v1468 = vunpack.c.l.b16 %v301
  %v1469 = vunpack.c.h.b16 %v301
  %v1470 = vunpack.c.l.b16 %v302
  %v1471 = vunpack.c.h.b16 %v302
  %v1472 = vunpack.c.l.b16 %v303
  %v1473 = vunpack.c.h.b16 %v303
  %v1474 = vunpack.c.l.b16 %v304
  %v1475 = vunpack.c.h.b16 %v304
  %v1476 = vunpack.c.l.b16 %v305
  %v1477 = vunpack.c.h.b16 %v305
  %v1478 = vunpack.c.l.b16 %v306
  %v1479 = vunpack.c.h.b16 %v306
  %v1480 = vunpack.c.l.b16 %v307
  %v1481 = vunpack.c.h.b16 %v307
  %v1482 = vunpack.c.l.b16 %v308
  %v1483 = vunpack.c.h.b16 %v308
  %v1484 = vunpack.c.l.b16 %v309
  %v1485 = vunpack.c.h.b16 %v309
  %v1486 = vunpack.c.l.b16 %v310
  %v1487 = vunpack.c.h.b16 %v310
  %v1488 = vunpack.c.l.b16 %v311
  %v1489 = vunpack.c.h.b16 %v311
  %v1490 = vunpack.c.l.b16 %v312
  %v1491 = vunpack.c.h.b16 %v312
  %v1492 = vunpack.c.l.b16 %v313
  %v1493 = vunpack.c.h.b16 %v313
  %v1494 = vunpack.c.l.b16 %v314
  %v1495 = vunpack.c.h.b16 %v314
  %v1496 = vunpack.c.l.b16 %v315
  %v1497 = vunpack.c.h.b16 %v315
  %v1498 = vunpack.c.l.b16 %v316
  %v1499 = vunpack.c.h.b16 %v316
  %v1500 = vunpack.c.l.b16 %v317
  %v1501 = vunpack.c.h.b16 %v317
  %v1502 = vunpack.c.l.b16 %v318
  %v1503 = vunpack.c.h.b16 %v318
  %v1504 = vunpack.c.l.b16 %v319
  %v1505 = vunpack.c.h.b16 %v319
  %v1506 = vunpack.c.l.b16 %v320
  %v1507 = vunpack.c.h.b16 %v320
  %v1508 = vunpack.c.l.b16 %v321
  %v1509 = vunpack.c.h.b16 %v321
  %v1510 = vunpack.c.l.b16 %v322
  %v1511 = vunpack.c.h.b16 %v322
  %v1512 = vunpack.c.l.b16 %v323
  %v1513 = vunpack.c.h.b16 %v323
  %v1514 = vunpack.c.l.b16 %v324
  %v1515 = vunpack.c.h.b16 %v324
  %v1516 = vunpack.c.l.b16 %v325
  %v1517 = vunpack.c.h.b16 %v325
  %v1518 = vunpack.c.l.b16 %v326
  %v1519 = vunpack.c.h.b16 %v326
  %v1520 = vunpack.c.l.b16 %v327
  %v1521 = vunpack.c.h.b16 %v327
  %v1522 = vunpack.c.l.b16 %v328
  %v1523 = vunpack.c.h.b16 %v328
  %v1524 = vunpack.c.l.b16 %v329
  %v1525 = vunpack.c.h.b16 %v329
  %v1526 = vunpack.c.l.b16 %v330
  %v1527 = vunpack.c.h.b16 %v330
  %v1528 = vunpack.c.l.b16 %v331
  %v1529 = vunpack.c.h.b16 %v331
  %v1530 = vunpack.c.l.b16 %v332
  %v1531 = vunpack.c.h.b16 %v332
  %v1532 = vunpack.c.l.b16 %v333
  %v1533 = vunpack.c.h.b16 %v333
  %v1534 = vunpack.c.l.b16 %v334
  %v1535 = vunpack.c.h.b16 %v334
  %v1536 = vunpack.c.l.b16 %v335
  %v1537 = vunpack.c.h.b16 %v335
  %v1538 = vunpack.c.l.b16 %v336
  %v1539 = vunpack.c.h.b16 %v336
  %v1540 = vunpack.c.l.b16 %v337
  %v1541 = vunpack.c.h.b16 %v337
  %v1542 = vunpack.c.l.b16 %v338
  %v1543 = vunpack.c.h.b16 %v338
  %v1544 = vunpack.c.l.b16 %v339
  %v1545 = vunpack.c.h.b16 %v339
  %v1546 = vunpack.c.l.b16 %v340
  %v1547 = vunpack.c.h.b16 %v340
  %v1548 = vunpack.c.l.b16 %v341
  %v1549 = vunpack.c.h.b16 %v341
  %v1550 = vunpack.c.l.b16 %v342
  %v1551 = vunpack.c.h.b16 %v342
  %v1552 = vunpack.c.l.b16 %v343
  %v1553 = vunpack.c.h.b16 %v343
  %v1554 = vunpack.c.l.b16 %v344
  %v1555 = vunpack.c.h.b16 %v344
  %v1556 = vunpack.c.l.b16 %v345
  %v1557 = vunpack.c.h.b16 %v345
  %v1558 = vunpack.c.l.b16 %v346
  %v1559 = vunpack.c.h.b16 %v346
  %v1560 = vunpack.c.l.b16 %v347
  %v1561 = vunpack.c.h.b16 %v347
  %v1562 = vunpack.c.l.b16 %v348
  %v1563 = vunpack.c.h.b16 %v348
  %v1564 = vunpack.c.l.b16 %v349
  %v1565 = vunpack.c.h.b16 %v349
  %v1566 = vunpack.c.l.b16 %v350
  %v1567 = vunpack.c.h.b16 %v350
  %v1568 = vunpack.c.l.b16 %v351
  %v1569 = vunpack.c.h.b16 %v351
  %v1570 = vunpack.c.l.b16 %v352
  %v1571 = vunpack.c.h.b16 %v352
  %v1572 = vunpack.c.l.b16 %v353
  %v1573 = vunpack.c.h.b16 %v353
  %v1574 = vunpack.c.l.b16 %v354
  %v1575 = vunpack.c.h.b16 %v354
  %v1576 = vunpack.c.l.b16 %v355
  %v1577 = vunpack.c.h.b16 %v355
  %v1578 = vunpack.c.l.b16 %v356
  %v1579 = vunpack.c.h.b16 %v356
  %v1580 = vunpack.c.l.b16 %v357
  %v1581 = vunpack.c.h.b16 %v357
  %v1582 = vunpack.c.l.b16 %v358
  %v1583 = vunpack.c.h.b16 %v358
  %v1584 = vunpack.c.l.b16 %v359
  %v1585 = vunpack.c.h.b16 %v359
  %v1586 = vunpack.c.l.b16 %v360
  %v1587 = vunpack.c.h.b16 %v360
  %v1588 = vunpack.c.l.b16 %v361
  %v1589 = vunpack.c.h.b16 %v361
  %v1590 = vunpack.c.l.b16 %v362
  %v1591 = vunpack.c.h.b16 %v362
  %v1592 = vunpack.c.l.b16 %v363
  %v1593 = vunpack.c.h.b16 %v363
  %v1594 = vunpack.c.l.b16 %v364
  %v1595 = vunpack.c.h.b16 %v364
  %v1596 = vunpack.c.l.b16 %v365
  %v1597 = vunpack.c.h.b16 %v365
  %v1598 = vunpack.c.l.b16 %v366
  %v1599 = vunpack.c.h.b16 %v366
  %v1600 = vunpack.c.l.b16 %v367
  %v1601 = vunpack.c.h.b16 %v367
  %v1602 = vunpack.c.l.b16 %v368
  %v1603 = vunpack.c.h.b16 %v368
  %v1604 = vunpack.c.l.b16 %v369
  %v1605 = vunpack.c.h.b16 %v369
  %v1606 = vunpack.c.l.b16 %v370
  %v1607 = vunpack.c.h.b16 %v370
  %v1608 = vunpack.c.l.b16 %v371
  %v1609 = vunpack.c.h.b16 %v371
  %v1610 = vunpack.c.l.b16 %v372
  %v1611 = vunpack.c.h.b16 %v372
  %v1612 = vunpack.c.l.b16 %v373
  %v1613 = vunpack.c.h.b16 %v373
  %v1614 = vunpack.c.l.b16 %v374
  %v1615 = vunpack.c.h.b16 %v374
  %v1616 = vunpack.c.l.b16 %v375
  %v1617 = vunpack.c.h.b16 %v375
  %v1618 = vunpack.c.l.b16 %v376
  %v1619 = vunpack.c.h.b16 %v376
  %v1620 = vunpack.c.l.b16 %v377
  %v1621 = vunpack.c.h.b16 %v377
  %v1622 = vunpack.c.l.b16 %v378
  %v1623 = vunpack.c.h.b16 %v378
  %v1624 = vunpack.c.l.b16 %v379
  %v1625 = vunpack.c.h.b16 %v379
  %v1626 = vunpack.c.l.b16 %v380
  %v1627 = vunpack.c.h.b16 %v380
  %v1628 = vunpack.c.l.b16 %v381
  %v1629 = vunpack.c.h.b16 %v381
  %v1630 = vunpack.c.l.b16 %v382
  %v1631 = vunpack.c.h.b16 %v382
  %v1632 = vunpack.c.l.b16 %v383
  %v1633 = vunpack.c.h.b16 %v383
  %v1634 = vunpack.c.l.b16 %v384
  %v1635 = vunpack.c.h.b16 %v384
  %v1636 = vunpack.c.l.b16 %v385
  %v1637 = vunpack.c.h.b16 %v385
  %v1638 = vunpack.c.l.b16 %v386
  %v1639 = vunpack.c.h.b16 %v386
  %v1640 = vunpack.c.l.b16 %v387
  %v1641 = vunpack.c.h.b16 %v387
  %v1642 = vunpack.c.l.b16 %v388
  %v1643 = vunpack.c.h.b16 %v388
  %v1644 = vunpack.c.l.b16 %v389
  %v1645 = vunpack.c.h.b16 %v389
  %v1646 = vunpack.c.l.b16 %v390
  %v1647 = vunpack.c.h.b16 %v390
  %v1648 = vunpack.c.l.b16 %v391
  %v1649 = vunpack.c.h.b16 %v391
  %v1650 = vunpack.c.l.b16 %v392
  %v1651 = vunpack.c.h.b16 %v392
  %v1652 = vunpack.c.l.b16 %v393
  %v1653 = vunpack.c.h.b16 %v393
  %v1654 = vunpack.c.l.b16 %v394
  %v1655 = vunpack.c.h.b16 %v394
  %v1656 = vunpack.c.l.b16 %v395
  %v1657 = vunpack.c.h.b16 %v395
  %v1658 = vunpack.c.l.b16 %v396
  %v1659 = vunpack.c.h.b16 %v396
  %v1660 = vunpack.c.l.b16 %v397
  %v1661 = vunpack.c.h.b16 %v397
  %v1662 = vunpack.c.l.b16 %v398
  %v1663 = vunpack.c.h.b16 %v398
  %v1664 = vunpack.c.l.b16 %v399
  %v1665 = vunpack.c.h.b16 %v399
  %v1666 = vunpack.c.l.b16 %v400
  %v1667 = vunpack.c.h.b16 %v400
  %v1668 = vunpack.c.l.b16 %v401
  %v1669 = vunpack.c.h.b16 %v401
  %v1670 = vunpack.c.l.b16 %v402
  %v1671 = vunpack.c.h.b16 %v402
  %v1672 = vunpack.c.l.b16 %v403
  %v1673 = vunpack.c.h.b16 %v403
  %v1674 = vunpack.c.l.b16 %v404
  %v1675 = vunpack.c.h.b16 %v404
  %v1676 = vunpack.c.l.b16 %v405
  %v1677 = vunpack.c.h.b16 %v405
  %v1678 = vunpack.c.l.b16 %v406
  %v1679 = vunpack.c.h.b16 %v406
  %v1680 = vunpack.c.l.b16 %v407
  %v1681 = vunpack.c.h.b16 %v407
  %v1682 = vunpack.c.l.b16 %v408
  %v1683 = vunpack.c.h.b16 %v408
  %v1684 = vunpack.c.l.b16 %v409
  %v1685 = vunpack.c.h.b16 %v409
  %v1686 = vunpack.c.l.b16 %v410
  %v1687 = vunpack.c.h.b16 %v410
  %v1688 = vunpack.c.l.b16 %v411
  %v1689 = vunpack.c.h.b16 %v411
  %v1690 = vunpack.c.l.b16 %v412
  %v1691 = vunpack.c.h.b16 %v412
  %v1692 = vunpack.c.l.b16 %v413
  %v1693 = vunpack.c.h.b16 %v413
  %v1694 = vunpack.c.l.b16 %v414
  %v1695 = vunpack.c.h.b16 %v414
  %v1696 = vunpack.c.l.b16 %v415
  %v1697 = vunpack.c.h.b16 %v415
  %v1698 = vunpack.c.l.b16 %v416
  %v1699 = vunpack.c.h.b16 %v416
  %v1700 = vunpack.c.l.b16 %v417
  %v1701 = vunpack.c.h.b16 %v417
  %v1702 = vunpack.c.l.b16 %v418
  %v1703 = vunpack.c.h.b16 %v418
  %v1704 = vunpack.c.l.b16 %v419
  %v1705 = vunpack.c.h.b16 %v419
  %v1706 = vunpack.c.l.b16 %v420
  %v1707 = vunpack.c.h.b16 %v420
  %v1708 = vunpack.c.l.b16 %v421
  %v1709 = vunpack.c.h.b16 %v421
  %v1710 = vunpack.c.l.b16 %v422
  %v1711 = vunpack.c.h.b16 %v422
  %v1712 = vunpack.c.l.b16 %v423
  %v1713 = vunpack.c.h.b16 %v423
  %v1714 = vunpack.c.l.b16 %v424
  %v1715 = vunpack.c.h.b16 %v424
  %v1716 = vunpack.c.l.b16 %v425
  %v1717 = vunpack.c.h.b16 %v425
  %v1718 = vunpack.c.l.b16 %v426
  %v1719 = vunpack.c.h.b16 %v426
  %v1720 = vunpack.c.l.b16 %v427
  %v1721 = vunpack.c.h.b16 %v427
  %v1722 = vunpack.c.l.b16 %v428
  %v1723 = vunpack.c.h.b16 %v428
  %v1724 = vunpack.c.l.b16 %v429
  %v1725 = vunpack.c.h.b16 %v429
  %v1726 = vunpack.c.l.b16 %v430
  %v1727 = vunpack.c.h.b16 %v430
  %v1728 = vunpack.c.l.b16 %v431
  %v1729 = vunpack.c.h.b16 %v431
  %v1730 = vunpack.c.l.b16 %v432
  %v1731 = vunpack.c.h.b16 %v432
  %v1732 = vunpack.c.l.b16 %v433
  %v1733 = vunpack.c.h.b16 %v433
  %v1734 = vpack.c.b16 %v936, %v934
  %v1735 = vpack.c.b16 %v937, %v935
  %v1736 = vpack.c.b16 %v940, %v938
  %v1737 = vpack.c.b16 %v941, %v939
  %v1738 = vpack.c.b16 %v944, %v942
  %v1739 = vpack.c.b16 %v945, %v943
  %v1740 = vpack.c.b16 %v948, %v946
  %v1741 = vpack.c.b16 %v949, %v947
  %v1742 = vpack.c.b16 %v952, %v950
  %v1743 = vpack.c.b16 %v953, %v951
  %v1744 = vpack.c.b16 %v956, %v954
  %v1745 = vpack.c.b16 %v957, %v955
  %v1746 = vpack.c.b16 %v960, %v958
  %v1747 = vpack.c.b16 %v961, %v959
  %v1748 = vpack.c.b16 %v964, %v962
  %v1749 = vpack.c.b16 %v965, %v963
  %v1750 = vpack.c.b16 %v968, %v966
  %v1751 = vpack.c.b16 %v969, %v967
  %v1752 = vpack.c.b16 %v972, %v970
  %v1753 = vpack.c.b16 %v973, %v971
  %v1754 = vpack.c.b16 %v976, %v974
  %v1755 = vpack.c.b16 %v977, %v975
  %v1756 = vpack.c.b16 %v980, %v978
  %v1757 = vpack.c.b16 %v981, %v979
  %v1758 = vpack.c.b16 %v984, %v982
  %v1759 = vpack.c.b16 %v985, %v983
  %v1760 = vpack.c.b16 %v988, %v986
  %v1761 = vpack.c.b16 %v989, %v987
  %v1762 = vpack.c.b16 %v992, %v990
  %v1763 = vpack.c.b16 %v993, %v991
  %v1764 = vpack.c.b16 %v996, %v994
  %v1765 = vpack.c.b16 %v997, %v995
  %v1766 = vpack.c.b16 %v1000, %v998
  %v1767 = vpack.c.b16 %v1001, %v999
  %v1768 = vpack.c.b16 %v1004, %v1002
  %v1769 = vpack.c.b16 %v1005, %v1003
  %v1770 = vpack.c.b16 %v1008, %v1006
  %v1771 = vpack.c.b16 %v1009, %v1007
  %v1772 = vpack.c.b16 %v1012, %v1010
  %v1773 = vpack.c.b16 %v1013, %v1011
  %v1774 = vpack.c.b16 %v1016, %v1014
  %v1775 = vpack.c.b16 %v1017, %v1015
  %v1776 = vpack.c.b16 %v1020, %v1018
  %v1777 = vpack.c.b16 %v1021, %v1019
  %v1778 = vpack.c.b16 %v1024, %v1022
  %v1779 = vpack.c.b16 %v1025, %v1023
  %v1780 = vpack.c.b16 %v1028, %v1026
  %v1781 = vpack.c.b16 %v1029, %v1027
  %v1782 = vpack.c.b16 %v1032, %v1030
  %v1783 = vpack.c.b16 %v1033, %v1031
  %v1784 = vpack.c.b16 %v1036, %v1034
  %v1785 = vpack.c.b16 %v1037, %v1035
  %v1786 = vpack.c.b16 %v1040, %v1038
  %v1787 = vpack.c.b16 %v1041, %v1039
  %v1788 = vpack.c.b16 %v1044, %v1042
  %v1789 = vpack.c.b16 %v1045, %v1043
  %v1790 = vpack.c.b16 %v1048, %v1046
  %v1791 = vpack.c.b16 %v1049, %v1047
  %v1792 = vpack.c.b16 %v1052, %v1050
  %v1793 = vpack.c.b16 %v1053, %v1051
  %v1794 = vpack.c.b16 %v1056, %v1054
  %v1795 = vpack.c.b16 %v1057, %v1055
  %v1796 = vpack.c.b16 %v1060, %v1058
  %v1797 = vpack.c.b16 %v1061, %v1059
  %v1798 = vpack.c.b16 %v1064, %v1062
  %v1799 = vpack.c.b16 %v1065, %v1063
  %v1800 = vpack.c.b16 %v1068, %v1066
  %v1801 = vpack.c.b16 %v1069, %v1067
  %v1802 = vpack.c.b16 %v1072, %v1070
  %v1803 = vpack.c.b16 %v1073, %v1071
  %v1804 = vpack.c.b16 %v1076, %v1074
  %v1805 = vpack.c.b16 %v1077, %v1075
  %v1806 = vpack.c.b16 %v1080, %v1078
  %v1807 = vpack.c.b16 %v1081, %v1079
  %v1808 = vpack.c.b16 %v1084, %v1082
  %v1809 = vpack.c.b16 %v1085, %v1083
  %v1810 = vpack.c.b16 %v1088, %v1086
  %v1811 = vpack.c.b16 %v1089, %v1087
  %v1812 = vpack.c.b16 %v1092, %v1090
  %v1813 = vpack.c.b16 %v1093, %v1091
  %v1814 = vpack.c.b16 %v1096, %v1094
  %v1815 = vpack.c.b16 %v1097, %v1095
  %v1816 = vpack.c.b16 %v1100, %v1098
  %v1817 = vpack.c.b16 %v1101, %v1099
  %v1818 = vpack.c.b16 %v1104, %v1102
  %v1819 = vpack.c.b16 %v1105, %v1103
  %v1820 = vpack.c.b16 %v1108, %v1106
  %v1821 = vpack.c.b16 %v1109, %v1107
  %v1822 = vpack.c.b16 %v1112, %v1110
  %v1823 = vpack.c.b16 %v1113, %v1111
  %v1824 = vpack.c.b16 %v1116, %v1114
  %v1825 = vpack.c.b16 %v1117, %v1115
  %v1826 = vpack.c.b16 %v1120, %v1118
  %v1827 = vpack.c.b16 %v1121, %v1119
  %v1828 = vpack.c.b16 %v1124, %v1122
  %v1829 = vpack.c.b16 %v1125, %v1123
  %v1830 = vpack.c.b16 %v1128, %v1126
  %v1831 = vpack.c.b16 %v1129, %v1127
  %v1832 = vpack.c.b16 %v1132, %v1130
  %v1833 = vpack.c.b16 %v1133, %v1131
  %v1834 = vpack.c.b16 %v1136, %v1134
  %v1835 = vpack.c.b16 %v1137, %v1135
  %v1836 = vpack.c.b16 %v1140, %v1138
  %v1837 = vpack.c.b16 %v1141, %v1139
  %v1838 = vpack.c.b16 %v1144, %v1142
  %v1839 = vpack.c.b16 %v1145, %v1143
  %v1840 = vpack.c.b16 %v1148, %v1146
  %v1841 = vpack.c.b16 %v1149, %v1147
  %v1842 = vpack.c.b16 %v1152, %v1150
  %v1843 = vpack.c.b16 %v1153, %v1151
  %v1844 = vpack.c.b16 %v1156, %v1154
  %v1845 = vpack.c.b16 %v1157, %v1155
  %v1846 = vpack.c.b16 %v1160, %v1158
  %v1847 = vpack.c.b16 %v1161, %v1159
  %v1848 = vpack.c.b16 %v1164, %v1162
  %v1849 = vpack.c.b16 %v1165, %v1163
  %v1850 = vpack.c.b16 %v1168, %v1166
  %v1851 = vpack.c.b16 %v1169, %v1167
  %v1852 = vpack.c.b16 %v1172, %v1170
  %v1853 = vpack.c.b16 %v1173, %v1171
  %v1854 = vpack.c.b16 %v1176, %v1174
  %v1855 = vpack.c.b16 %v1177, %v1175
  %v1856 = vpack.c.b16 %v1180, %v1178
  %v1857 = vpack.c.b16 %v1181, %v1179
  %v1858 = vpack.c.b16 %v1184, %v1182
  %v1859 = vpack.c.b16 %v1185, %v1183
  %v1860 = vpack.c.b16 %v1188, %v1186
  %v1861 = vpack.c.b16 %v1189, %v1187
  %v1862 = vpack.c.b16 %v1192, %v1190
  %v1863 = vpack.c.b16 %v1193, %v1191
  %v1864 = vpack.c.b16 %v1196, %v1194
  %v1865 = vpack.c.b16 %v1197, %v1195
  %v1866 = vpack.c.b16 %v1200, %v1198
  %v1867 = vpack.c.b16 %v1201, %v1199
  %v1868 = vpack.c.b16 %v1204, %v1202
  %v1869 = vpack.c.b16 %v1205, %v1203
  %v1870 = vpack.c.b16 %v1208, %v1206
  %v1871 = vpack.c.b16 %v1209, %v1207
  %v1872 = vpack.c.b16 %v1212, %v1210
  %v1873 = vpack.c.b16 %v1213, %v1211
  %v1874 = vpack.c.b16 %v1216, %v1214
  %v1875 = vpack.c.b16 %v1217, %v1215
  %v1876 = vpack.c.b16 %v1220, %v1218
  %v1877 = vpack.c.b16 %v1221, %v1219
  %v1878 = vpack.c.b16 %v1224, %v1222
  %v1879 = vpack.c.b16 %v1225, %v1223
  %v1880 = vpack.c.b16 %v1228, %v1226
  %v1881 = vpack.c.b16 %v1229, %v1227
  %v1882 = vpack.c.b16 %v1232, %v1230
  %v1883 = vpack.c.b16 %v1233, %v1231
  %v1884 = vpack.c.b16 %v1236, %v1234
  %v1885 = vpack.c.b16 %v1237, %v1235
  %v1886 = vpack.c.b16 %v1240, %v1238
  %v1887 = vpack.c.b16 %v1241, %v1239
  %v1888 = vpack.c.b16 %v1244, %v1242
  %v1889 = vpack.c.b16 %v1245, %v1243
  %v1890 = vpack.c.b16 %v1248, %v1246
  %v1891 = vpack.c.b16 %v1249, %v1247
  %v1892 = vpack.c.b16 %v1252, %v1250
  %v1893 = vpack.c.b16 %v1253, %v1251
  %v1894 = vpack.c.b16 %v1256, %v1254
  %v1895 = vpack.c.b16 %v1257, %v1255
  %v1896 = vpack.c.b16 %v1260, %v1258
  %v1897 = vpack.c.b16 %v1261, %v1259
  %v1898 = vpack.c.b16 %v1264, %v1262
  %v1899 = vpack.c.b16 %v1265, %v1263
  %v1900 = vpack.c.b16 %v1268, %v1266
  %v1901 = vpack.c.b16 %v1269, %v1267
  %v1902 = vpack.c.b16 %v1272, %v1270
  %v1903 = vpack.c.b16 %v1273, %v1271
  %v1904 = vpack.c.b16 %v1276, %v1274
  %v1905 = vpack.c.b16 %v1277, %v1275
  %v1906 = vpack.c.b16 %v1280, %v1278
  %v1907 = vpack.c.b16 %v1281, %v1279
  %v1908 = vpack.c.b16 %v1284, %v1282
  %v1909 = vpack.c.b16 %v1285, %v1283
  %v1910 = vpack.c.b16 %v1288, %v1286
  %v1911 = vpack.c.b16 %v1289, %v1287
  %v1912 = vpack.c.b16 %v1292, %v1290
  %v1913 = vpack.c.b16 %v1293, %v1291
  %v1914 = vpack.c.b16 %v1296, %v1294
  %v1915 = vpack.c.b16 %v1297, %v1295
  %v1916 = vpack.c.b16 %v1300, %v1298
  %v1917 = vpack.c.b16 %v1301, %v1299
  %v1918 = vpack.c.b16 %v1304, %v1302
  %v1919 = vpack.c.b16 %v1305, %v1303
  %v1920 = vpack.c.b16 %v1308, %v1306
  %v1921 = vpack.c.b16 %v1309, %v1307
  %v1922 = vpack.c.b16 %v1312, %v1310
  %v1923 = vpack.c.b16 %v1313, %v1311
  %v1924 = vpack.c.b16 %v1316, %v1314
  %v1925 = vpack.c.b16 %v1317, %v1315
  %v1926 = vpack.c.b16 %v1320, %v1318
  %v1927 = vpack.c.b16 %v1321, %v1319
  %v1928 = vpack.c.b16 %v1324, %v1322
  %v1929 = vpack.c.b16 %v1325, %v1323
  %v1930 = vpack.c.b16 %v1328, %v1326
  %v1931 = vpack.c.b16 %v1329, %v1327
  %v1932 = vpack.c.b16 %v1332, %v1330
  %v1933 = vpack.c.b16 %v1333, %v1331
  %v1934 = vpack.c.b16 %v1336, %v1334
  %v1935 = vpack.c.b16 %v1337, %v1335
  %v1936 = vpack.c.b16 %v1340, %v1338
  %v1937 = vpack.c.b16 %v1341, %v1339
  %v1938 = vpack.c.b16 %v1344, %v1342
  %v1939 = vpack.c.b16 %v1345, %v1343
  %v1940 = vpack.c.b16 %v1348, %v1346
  %v1941 = vpack.c.b16 %v1349, %v1347
  %v1942 = vpack.c.b16 %v1352, %v1350
  %v1943 = vpack.c.b16 %v1353, %v1351
  %v1944 = vpack.c.b16 %v1356, %v1354
  %v1945 = vpack.c.b16 %v1357, %v1355
  %v1946 = vpack.c.b16 %v1360, %v1358
  %v1947 = vpack.c.b16 %v1361, %v1359
  %v1948 = vpack.c.b16 %v1364, %v1362
  %v1949 = vpack.c.b16 %v1365, %v1363
  %v1950 = vpack.c.b16 %v1368, %v1366
  %v1951 = vpack.c.b16 %v1369, %v1367
  %v1952 = vpack.c.b16 %v1372, %v1370
  %v1953 = vpack.c.b16 %v1373, %v1371
  %v1954 = vpack.c.b16 %v1376, %v1374
  %v1955 = vpack.c.b16 %v1377, %v1375
  %v1956 = vpack.c.b16 %v1380, %v1378
  %v1957 = vpack.c.b16 %v1381, %v1379
  %v1958 = vpack.c.b16 %v1384, %v1382
  %v1959 = vpack.c.b16 %v1385, %v1383
  %v1960 = vpack.c.b16 %v1388, %v1386
  %v1961 = vpack.c.b16 %v1389, %v1387
  %v1962 = vpack.c.b16 %v1392, %v1390
  %v1963 = vpack.c.b16 %v1393, %v1391
  %v1964 = vpack.c.b16 %v1396, %v1394
  %v1965 = vpack.c.b16 %v1397, %v1395
  %v1966 = vpack.c.b16 %v1400, %v1398
  %v1967 = vpack.c.b16 %v1401, %v1399
  %v1968 = vpack.c.b16 %v1404, %v1402
  %v1969 = vpack.c.b16 %v1405, %v1403
  %v1970 = vpack.c.b16 %v1408, %v1406
  %v1971 = vpack.c.b16 %v1409, %v1407
  %v1972 = vpack.c.b16 %v1412, %v1410
  %v1973 = vpack.c.b16 %v1413, %v1411
  %v1974 = vpack.c.b16 %v1416, %v1414
  %v1975 = vpack.c.b16 %v1417, %v1415
  %v1976 = vpack.c.b16 %v1420, %v1418
  %v1977 = vpack.c.b16 %v1421, %v1419
  %v1978 = vpack.c.b16 %v1424, %v1422
  %v1979 = vpack.c.b16 %v1425, %v1423
  %v1980 = vpack.c.b16 %v1428, %v1426
  %v1981 = vpack.c.b16 %v1429, %v1427
  %v1982 = vpack.c.b16 %v1432, %v1430
  %v1983 = vpack.c.b16 %v1433, %v1431
  %v1984 = vpack.c.b16 %v1436, %v1434
  %v1985 = vpack.c.b16 %v1437, %v1435
  %v1986 = vpack.c.b16 %v1440, %v1438
  %v1987 = vpack.c.b16 %v1441, %v1439
  %v1988 = vpack.c.b16 %v1444, %v1442
  %v1989 = vpack.c.b16 %v1445, %v1443
  %v1990 = vpack.c.b16 %v1448, %v1446
  %v1991 = vpack.c.b16 %v1449, %v1447
  %v1992 = vpack.c.b16 %v1452, %v1450
  %v1993 = vpack.c.b16 %v1453, %v1451
  %v1994 = vpack.c.b16 %v1456, %v1454
  %v1995 = vpack.c.b16 %v1457, %v1455
  %v1996 = vpack.c.b16 %v1460, %v1458
  %v1997 = vpack.c.b16 %v1461, %v1459
  %v1998 = vpack.c.b16 %v1464, %v1462
  %v1999 = vpack.c.b16 %v1465, %v1463
  %v2000 = vpack.c.b16 %v1468, %v1466
  %v2001 = vpack.c.b16 %v1469, %v1467
  %v2002 = vpack.c.b16 %v1472, %v1470
  %v2003 = vpack.c.b16 %v1473, %v1471
  %v2004 = vpack.c.b16 %v1476, %v1474
  %v2005 = vpack.c.b16 %v1477, %v1475
  %v2006 = vpack.c.b16 %v1480, %v1478
  %v2007 = vpack.c.b16 %v1481, %v1479
  %v2008 = vpack.c.b16 %v1484, %v1482
  %v2009 = vpack.c.b16 %v1485, %v1483
  %v2010 = vpack.c.b16 %v1488, %v1486
  %v2011 = vpack.c.b16 %v1489, %v1487
  %v2012 = vpack.c.b16 %v1492, %v1490
  %v2013 = vpack.c.b16 %v1493, %v1491
  %v2014 = vpack.c.b16 %v1496, %v1494
  %v2015 = vpack.c.b16 %v1497, %v1495
  %v2016 = vpack.c.b16 %v1500, %v1498
  %v2017 = vpack.c.b16 %v1501, %v1499
  %v2018 = vpack.c.b16 %v1504, %v1502
  %v2019 = vpack.c.b16 %v1505, %v1503
  %v2020 = vpack.c.b16 %v1508, %v1506
  %v2021 = vpack.c.b16 %v1509, %v1507
  %v2022 = vpack.c.b16 %v1512, %v1510
  %v2023 = vpack.c.b16 %v1513, %v1511
  %v2024 = vpack.c.b16 %v1516, %v1514
  %v2025 = vpack.c.b16 %v1517, %v1515
  %v2026 = vpack.c.b16 %v1520, %v1518
  %v2027 = vpack.c.b16 %v1521, %v1519
  %v2028 = vpack.c.b16 %v1524, %v1522
  %v2029 = vpack.c.b16 %v1525, %v1523
  %v2030 = vpack.c.b16 %v1528, %v1526
  %v2031 = vpack.c.b16 %v1529, %v1527
  %v2032 = vpack.c.b16 %v1532, %v1530
  %v2033 = vpack.c.b16 %v1533, %v1531
  %v2034 = vpack.c.b16 %v1536, %v1534
  %v2035 = vpack.c.b16 %v1537, %v1535
  %v2036 = vpack.c.b16 %v1540, %v1538
  %v2037 = vpack.c.b16 %v1541, %v1539
  %v2038 = vpack.c.b16 %v1544, %v1542
  %v2039 = vpack.c.b16 %v1545, %v1543
  %v2040 = vpack.c.b16 %v1548, %v1546
  %v2041 = vpack.c.b16 %v1549, %v1547
  %v2042 = vpack.c.b16 %v1552, %v1550
  %v2043 = vpack.c.b16 %v1553, %v1551
  %v2044 = vpack.c.b16 %v1556, %v1554
  %v2045 = vpack.c.b16 %v1557, %v1555
  %v2046 = vpack.c.b16 %v1560, %v1558
  %v2047 = vpack.c.b16 %v1561, %v1559
  %v2048 = vpack.c.b16 %v1564, %v1562
  %v2049 = vpack.c.b16 %v1565, %v1563
  %v2050 = vpack.c.b16 %v1568, %v1566
  %v2051 = vpack.c.b16 %v1569, %v1567
  %v2052 = vpack.c.b16 %v1572, %v1570
  %v2053 = vpack.c.b16 %v1573, %v1571
  %v2054 = vpack.c.b16 %v1576, %v1574
  %v2055 = vpack.c.b16 %v1577, %v1575
  %v2056 = vpack.c.b16 %v1580, %v1578
  %v2057 = vpack.c.b16 %v1581, %v1579
  %v2058 = vpack.c.b16 %v1584, %v1582
  %v2059 = vpack.c.b16 %v1585, %v1583
  %v2060 = vpack.c.b16 %v1588, %v1586
  %v2061 = vpack.c.b16 %v1589, %v1587
  %v2062 = vpack.c.b16 %v1592, %v1590
  %v2063 = vpack.c.b16 %v1593, %v1591
  %v2064 = vpack.c.b16 %v1596, %v1594
  %v2065 = vpack.c.b16 %v1597, %v1595
  %v2066 = vpack.c.b16 %v1600, %v1598
  %v2067 = vpack.c.b16 %v1601, %v1599
  %v2068 = vpack.c.b16 %v1604, %v1602
  %v2069 = vpack.c.b16 %v1605, %v1603
  %v2070 = vpack.c.b16 %v1608, %v1606
  %v2071 = vpack.c.b16 %v1609, %v1607
  %v2072 = vpack.c.b16 %v1612, %v1610
  %v2073 = vpack.c.b16 %v1613, %v1611
  %v2074 = vpack.c.b16 %v1616, %v1614
  %v2075 = vpack.c.b16 %v1617, %v1615
  %v2076 = vpack.c.b16 %v1620, %v1618
  %v2077 = vpack.c.b16 %v1621, %v1619
  %v2078 = vpack.c.b16 %v1624, %v1622
  %v2079 = vpack.c.b16 %v1625, %v1623
  %v2080 = vpack.c.b16 %v1628, %v1626
  %v2081 = vpack.c.b16 %v1629, %v1627
  %v2082 = vpack.c.b16 %v1632, %v1630
  %v2083 = vpack.c.b16 %v1633, %v1631
  %v2084 = vpack.c.b16 %v1636, %v1634
  %v2085 = vpack.c.b16 %v1637, %v1635
  %v2086 = vpack.c.b16 %v1640, %v1638
  %v2087 = vpack.c.b16 %v1641, %v1639
  %v2088 = vpack.c.b16 %v1644, %v1642
  %v2089 = vpack.c.b16 %v1645, %v1643
  %v2090 = vpack.c.b16 %v1648, %v1646
  %v2091 = vpack.c.b16 %v1649, %v1647
  %v2092 = vpack.c.b16 %v1652, %v1650
  %v2093 = vpack.c.b16 %v1653, %v1651
  %v2094 = vpack.c.b16 %v1656, %v1654
  %v2095 = vpack.c.b16 %v1657, %v1655
  %v2096 = vpack.c.b16 %v1660, %v1658
  %v2097 = vpack.c.b16 %v1661, %v1659
  %v2098 = vpack.c.b16 %v1664, %v1662
  %v2099 = vpack.c.b16 %v1665, %v1663
  %v2100 = vpack.c.b16 %v1668, %v1666
  %v2101 = vpack.c.b16 %v1669, %v1667
  %v2102 = vpack.c.b16 %v1672, %v1670
  %v2103 = vpack.c.b16 %v1673, %v1671
  %v2104 = vpack.c.b16 %v1676, %v1674
  %v2105 = vpack.c.b16 %v1677, %v1675
  %v2106 = vpack.c.b16 %v1680, %v1678
  %v2107 = vpack.c.b16 %v1681, %v1679
  %v2108 = vpack.c.b16 %v1684, %v1682
  %v2109 = vpack.c.b16 %v1685, %v1683
  %v2110 = vpack.c.b16 %v1688, %v1686
  %v2111 = vpack.c.b16 %v1689, %v1687
  %v2112 = vpack.c.b16 %v1692, %v1690
  %v2113 = vpack.c.b16 %v1693, %v1691
  %v2114 = vpack.c.b16 %v1696, %v1694
  %v2115 = vpack.c.b16 %v1697, %v1695
  %v2116 = vpack.c.b16 %v1700, %v1698
  %v2117 = vpack.c.b16 %v1701, %v1699
  %v2118 = vpack.c.b16 %v1704, %v1702
  %v2119 = vpack.c.b16 %v1705, %v1703
  %v2120 = vpack.c.b16 %v1708, %v1706
  %v2121 = vpack.c.b16 %v1709, %v1707
  %v2122 = vpack.c.b16 %v1712, %v1710
  %v2123 = vpack.c.b16 %v1713, %v1711
  %v2124 = vpack.c.b16 %v1716, %v1714
  %v2125 = vpack.c.b16 %v1717, %v1715
  %v2126 = vpack.c.b16 %v1720, %v1718
  %v2127 = vpack.c.b16 %v1721, %v1719
  %v2128 = vpack.c.b16 %v1724, %v1722
  %v2129 = vpack.c.b16 %v1725, %v1723
  %v2130 = vpack.c.b16 %v1728, %v1726
  %v2131 = vpack.c.b16 %v1729, %v1727
  %v2132 = vpack.c.b16 %v1732, %v1730
  %v2133 = vpack.c.b16 %v1733, %v1731
  %2534 = vmatprep.subr.bf16.mxu0 %v1735
  %2535 = vmatpush1.bf16.msra.mxu0 %v1734
  %2536 = vmatprep.subr.bf16.mxu0 %v1737
  %2537 = vmatpush1.bf16.msra.mxu0 %v1736
  %2538 = vmatprep.subr.bf16.mxu0 %v1739
  %2539 = vmatpush1.bf16.msra.mxu0 %v1738
  %2540 = vmatprep.subr.bf16.mxu0 %v1741
  %2541 = vmatpush1.bf16.msra.mxu0 %v1740
  %2542 = vmatprep.subr.bf16.mxu0 %v1743
  %2543 = vmatpush1.bf16.msra.mxu0 %v1742
  %2544 = vmatprep.subr.bf16.mxu0 %v1745
  %2545 = vmatpush1.bf16.msra.mxu0 %v1744
  %2546 = vmatprep.subr.bf16.mxu0 %v1747
  %2547 = vmatpush1.bf16.msra.mxu0 %v1746
  %2548 = vmatprep.subr.bf16.mxu0 %v1749
  %2549 = vmatpush1.bf16.msra.mxu0 %v1748
  %2550 = vmatprep.subr.bf16.mxu0 %v1751
  %2551 = vmatpush1.bf16.msra.mxu0 %v1750
  %2552 = vmatprep.subr.bf16.mxu0 %v1753
  %2553 = vmatpush1.bf16.msra.mxu0 %v1752
  %2554 = vmatprep.subr.bf16.mxu0 %v1755
  %2555 = vmatpush1.bf16.msra.mxu0 %v1754
  %2556 = vmatprep.subr.bf16.mxu0 %v1757
  %2557 = vmatpush1.bf16.msra.mxu0 %v1756
  %2558 = vmatprep.subr.bf16.mxu0 %v1759
  %2559 = vmatpush1.bf16.msra.mxu0 %v1758
  %2560 = vmatprep.subr.bf16.mxu0 %v1761
  %2561 = vmatpush1.bf16.msra.mxu0 %v1760
  %2562 = vmatprep.subr.bf16.mxu0 %v1763
  %2563 = vmatpush1.bf16.msra.mxu0 %v1762
  %2564 = vmatprep.subr.bf16.mxu0 %v1765
  %2565 = vmatpush1.bf16.msra.mxu0 %v1764
  %2566 = vmatprep.mubr.bf16.mxu0 %v485
  %2567 = vmatmul.mubr.bf16.gmra.mrb[0].mxu0 %v484
  %v2568 = vpop.f32.mrb[0].mxu0
  %v2569 = vadd.f32 %v439, %v2568
  %v2570 = vpop.f32.mrb[0].mxu0
  %v2571 = vadd.f32 %v443, %v2570
  %v2572 = vpop.f32.mrb[0].mxu0
  %v2573 = vpop.f32.mrb[0].mxu0
  %2574 = vdwg.mxu0
  %2575 = vmatprep.subr.bf16.mxu0 %v1767
  %2576 = vmatpush1.bf16.msra.mxu0 %v1766
  %2577 = vmatprep.subr.bf16.mxu0 %v1769
  %2578 = vmatpush1.bf16.msra.mxu0 %v1768
  %2579 = vmatprep.subr.bf16.mxu0 %v1771
  %2580 = vmatpush1.bf16.msra.mxu0 %v1770
  %2581 = vmatprep.subr.bf16.mxu0 %v1773
  %2582 = vmatpush1.bf16.msra.mxu0 %v1772
  %2583 = vmatprep.subr.bf16.mxu0 %v1775
  %2584 = vmatpush1.bf16.msra.mxu0 %v1774
  %2585 = vmatprep.subr.bf16.mxu0 %v1777
  %2586 = vmatpush1.bf16.msra.mxu0 %v1776
  %2587 = vmatprep.subr.bf16.mxu0 %v1779
  %2588 = vmatpush1.bf16.msra.mxu0 %v1778
  %2589 = vmatprep.subr.bf16.mxu0 %v1781
  %2590 = vmatpush1.bf16.msra.mxu0 %v1780
  %2591 = vmatprep.subr.bf16.mxu0 %v1783
  %2592 = vmatpush1.bf16.msra.mxu0 %v1782
  %2593 = vmatprep.subr.bf16.mxu0 %v1785
  %2594 = vmatpush1.bf16.msra.mxu0 %v1784
  %2595 = vmatprep.subr.bf16.mxu0 %v1787
  %2596 = vmatpush1.bf16.msra.mxu0 %v1786
  %2597 = vmatprep.subr.bf16.mxu0 %v1789
  %2598 = vmatpush1.bf16.msra.mxu0 %v1788
  %2599 = vmatprep.subr.bf16.mxu0 %v1791
  %2600 = vmatpush1.bf16.msra.mxu0 %v1790
  %2601 = vmatprep.subr.bf16.mxu0 %v1793
  %2602 = vmatpush1.bf16.msra.mxu0 %v1792
  %2603 = vmatprep.subr.bf16.mxu0 %v1795
  %2604 = vmatpush1.bf16.msra.mxu0 %v1794
  %2605 = vmatprep.subr.bf16.mxu0 %v1797
  %2606 = vmatpush1.bf16.msra.mxu0 %v1796
  %2607 = vmatprep.mubr.bf16.mxu0 %v487
  %2608 = vmatmul.mubr.bf16.gmra.mrb[0].mxu0 %v486
  %v2609 = vpop.f32.mrb[0].mxu0
  %v2610 = vadd.f32 %v2569, %v2609
  %v2611 = vpop.f32.mrb[0].mxu0
  %v2612 = vadd.f32 %v2571, %v2611
  %v2613 = vpop.f32.mrb[0].mxu0
  %v2614 = vpop.f32.mrb[0].mxu0
  %2615 = vdwg.mxu0
  %2616 = vmatprep.subr.bf16.mxu0 %v1799
  %2617 = vmatpush1.bf16.msra.mxu0 %v1798
  %2618 = vmatprep.subr.bf16.mxu0 %v1801
  %2619 = vmatpush1.bf16.msra.mxu0 %v1800
  %2620 = vmatprep.subr.bf16.mxu0 %v1803
  %2621 = vmatpush1.bf16.msra.mxu0 %v1802
  %2622 = vmatprep.subr.bf16.mxu0 %v1805
  %2623 = vmatpush1.bf16.msra.mxu0 %v1804
  %2624 = vmatprep.subr.bf16.mxu0 %v1807
  %2625 = vmatpush1.bf16.msra.mxu0 %v1806
  %2626 = vmatprep.subr.bf16.mxu0 %v1809
  %2627 = vmatpush1.bf16.msra.mxu0 %v1808
  %2628 = vmatprep.subr.bf16.mxu0 %v1811
  %2629 = vmatpush1.bf16.msra.mxu0 %v1810
  %2630 = vmatprep.subr.bf16.mxu0 %v1813
  %2631 = vmatpush1.bf16.msra.mxu0 %v1812
  %2632 = vmatprep.subr.bf16.mxu0 %v1815
  %2633 = vmatpush1.bf16.msra.mxu0 %v1814
  %2634 = vmatprep.subr.bf16.mxu0 %v1817
  %2635 = vmatpush1.bf16.msra.mxu0 %v1816
  %2636 = vmatprep.subr.bf16.mxu0 %v1819
  %2637 = vmatpush1.bf16.msra.mxu0 %v1818
  %2638 = vmatprep.subr.bf16.mxu0 %v1821
  %2639 = vmatpush1.bf16.msra.mxu0 %v1820
  %2640 = vmatprep.subr.bf16.mxu0 %v1823
  %2641 = vmatpush1.bf16.msra.mxu0 %v1822
  %2642 = vmatprep.subr.bf16.mxu0 %v1825
  %2643 = vmatpush1.bf16.msra.mxu0 %v1824
  %2644 = vmatprep.subr.bf16.mxu0 %v1827
  %2645 = vmatpush1.bf16.msra.mxu0 %v1826
  %2646 = vmatprep.subr.bf16.mxu0 %v1829
  %2647 = vmatpush1.bf16.msra.mxu0 %v1828
  %2648 = vmatprep.mubr.bf16.mxu0 %v489
  %2649 = vmatmul.mubr.bf16.gmra.mrb[0].mxu0 %v488
  %v2650 = vpop.f32.mrb[0].mxu0
  %v2651 = vadd.f32 %v2610, %v2650
  %v2652 = vpop.f32.mrb[0].mxu0
  %v2653 = vadd.f32 %v2612, %v2652
  %v2654 = vpop.f32.mrb[0].mxu0
  %v2655 = vpop.f32.mrb[0].mxu0
  %2656 = vdwg.mxu0
  %2657 = vmatprep.subr.bf16.mxu0 %v1831
  %2658 = vmatpush1.bf16.msra.mxu0 %v1830
  %2659 = vmatprep.subr.bf16.mxu0 %v1833
  %2660 = vmatpush1.bf16.msra.mxu0 %v1832
  %2661 = vmatprep.subr.bf16.mxu0 %v1835
  %2662 = vmatpush1.bf16.msra.mxu0 %v1834
  %2663 = vmatprep.subr.bf16.mxu0 %v1837
  %2664 = vmatpush1.bf16.msra.mxu0 %v1836
  %2665 = vmatprep.subr.bf16.mxu0 %v1839
  %2666 = vmatpush1.bf16.msra.mxu0 %v1838
  %2667 = vmatprep.subr.bf16.mxu0 %v1841
  %2668 = vmatpush1.bf16.msra.mxu0 %v1840
  %2669 = vmatprep.subr.bf16.mxu0 %v1843
  %2670 = vmatpush1.bf16.msra.mxu0 %v1842
  %2671 = vmatprep.subr.bf16.mxu0 %v1845
  %2672 = vmatpush1.bf16.msra.mxu0 %v1844
  %2673 = vmatprep.subr.bf16.mxu0 %v1847
  %2674 = vmatpush1.bf16.msra.mxu0 %v1846
  %2675 = vmatprep.subr.bf16.mxu0 %v1849
  %2676 = vmatpush1.bf16.msra.mxu0 %v1848
  %2677 = vmatprep.subr.bf16.mxu0 %v1851
  %2678 = vmatpush1.bf16.msra.mxu0 %v1850
  %2679 = vmatprep.subr.bf16.mxu0 %v1853
  %2680 = vmatpush1.bf16.msra.mxu0 %v1852
  %2681 = vmatprep.subr.bf16.mxu0 %v1855
  %2682 = vmatpush1.bf16.msra.mxu0 %v1854
  %2683 = vmatprep.subr.bf16.mxu0 %v1857
  %2684 = vmatpush1.bf16.msra.mxu0 %v1856
  %2685 = vmatprep.subr.bf16.mxu0 %v1859
  %2686 = vmatpush1.bf16.msra.mxu0 %v1858
  %2687 = vmatprep.subr.bf16.mxu0 %v1861
  %2688 = vmatpush1.bf16.msra.mxu0 %v1860
  %2689 = vmatprep.mubr.bf16.mxu0 %v491
  %2690 = vmatmul.mubr.bf16.gmra.mrb[0].mxu0 %v490
  %v2691 = vpop.f32.mrb[0].mxu0
  %v2692 = vadd.f32 %v2651, %v2691
  %v2693 = vpop.f32.mrb[0].mxu0
  %v2694 = vadd.f32 %v2653, %v2693
  %v2695 = vpop.f32.mrb[0].mxu0
  %v2696 = vpop.f32.mrb[0].mxu0
  %2697 = vdwg.mxu0
  %2698 = vmatprep.subr.bf16.mxu0 %v1863
  %2699 = vmatpush1.bf16.msra.mxu0 %v1862
  %2700 = vmatprep.subr.bf16.mxu0 %v1865
  %2701 = vmatpush1.bf16.msra.mxu0 %v1864
  %2702 = vmatprep.subr.bf16.mxu0 %v1867
  %2703 = vmatpush1.bf16.msra.mxu0 %v1866
  %2704 = vmatprep.subr.bf16.mxu0 %v1869
  %2705 = vmatpush1.bf16.msra.mxu0 %v1868
  %2706 = vmatprep.subr.bf16.mxu0 %v1871
  %2707 = vmatpush1.bf16.msra.mxu0 %v1870
  %2708 = vmatprep.subr.bf16.mxu0 %v1873
  %2709 = vmatpush1.bf16.msra.mxu0 %v1872
  %2710 = vmatprep.subr.bf16.mxu0 %v1875
  %2711 = vmatpush1.bf16.msra.mxu0 %v1874
  %2712 = vmatprep.subr.bf16.mxu0 %v1877
  %2713 = vmatpush1.bf16.msra.mxu0 %v1876
  %2714 = vmatprep.subr.bf16.mxu0 %v1879
  %2715 = vmatpush1.bf16.msra.mxu0 %v1878
  %2716 = vmatprep.subr.bf16.mxu0 %v1881
  %2717 = vmatpush1.bf16.msra.mxu0 %v1880
  %2718 = vmatprep.subr.bf16.mxu0 %v1883
  %2719 = vmatpush1.bf16.msra.mxu0 %v1882
  %2720 = vmatprep.subr.bf16.mxu0 %v1885
  %2721 = vmatpush1.bf16.msra.mxu0 %v1884
  %2722 = vmatprep.subr.bf16.mxu0 %v1887
  %2723 = vmatpush1.bf16.msra.mxu0 %v1886
  %2724 = vmatprep.subr.bf16.mxu0 %v1889
  %2725 = vmatpush1.bf16.msra.mxu0 %v1888
  %2726 = vmatprep.subr.bf16.mxu0 %v1891
  %2727 = vmatpush1.bf16.msra.mxu0 %v1890
  %2728 = vmatprep.subr.bf16.mxu0 %v1893
  %2729 = vmatpush1.bf16.msra.mxu0 %v1892
  %2730 = vmatprep.mubr.bf16.mxu0 %v493
  %2731 = vmatmul.mubr.bf16.gmra.mrb[0].mxu0 %v492
  %v2732 = vpop.f32.mrb[0].mxu0
  %v2733 = vadd.f32 %v2692, %v2732
  %v2734 = vpop.f32.mrb[0].mxu0
  %v2735 = vadd.f32 %v2694, %v2734
  %v2736 = vpop.f32.mrb[0].mxu0
  %v2737 = vpop.f32.mrb[0].mxu0
  %2738 = vdwg.mxu0
  %2739 = vmatprep.subr.bf16.mxu0 %v1895
  %2740 = vmatpush1.bf16.msra.mxu0 %v1894
  %2741 = vmatprep.subr.bf16.mxu0 %v1897
  %2742 = vmatpush1.bf16.msra.mxu0 %v1896
  %2743 = vmatprep.subr.bf16.mxu0 %v1899
  %2744 = vmatpush1.bf16.msra.mxu0 %v1898
  %2745 = vmatprep.subr.bf16.mxu0 %v1901
  %2746 = vmatpush1.bf16.msra.mxu0 %v1900
  %2747 = vmatprep.subr.bf16.mxu0 %v1903
  %2748 = vmatpush1.bf16.msra.mxu0 %v1902
  %2749 = vmatprep.subr.bf16.mxu0 %v1905
  %2750 = vmatpush1.bf16.msra.mxu0 %v1904
  %2751 = vmatprep.subr.bf16.mxu0 %v1907
  %2752 = vmatpush1.bf16.msra.mxu0 %v1906
  %2753 = vmatprep.subr.bf16.mxu0 %v1909
  %2754 = vmatpush1.bf16.msra.mxu0 %v1908
  %2755 = vmatprep.subr.bf16.mxu0 %v1911
  %2756 = vmatpush1.bf16.msra.mxu0 %v1910
  %2757 = vmatprep.subr.bf16.mxu0 %v1913
  %2758 = vmatpush1.bf16.msra.mxu0 %v1912
  %2759 = vmatprep.subr.bf16.mxu0 %v1915
  %2760 = vmatpush1.bf16.msra.mxu0 %v1914
  %2761 = vmatprep.subr.bf16.mxu0 %v1917
  %2762 = vmatpush1.bf16.msra.mxu0 %v1916
  %2763 = vmatprep.subr.bf16.mxu0 %v1919
  %2764 = vmatpush1.bf16.msra.mxu0 %v1918
  %2765 = vmatprep.subr.bf16.mxu0 %v1921
  %2766 = vmatpush1.bf16.msra.mxu0 %v1920
  %2767 = vmatprep.subr.bf16.mxu0 %v1923
  %2768 = vmatpush1.bf16.msra.mxu0 %v1922
  %2769 = vmatprep.subr.bf16.mxu0 %v1925
  %2770 = vmatpush1.bf16.msra.mxu0 %v1924
  %2771 = vmatprep.mubr.bf16.mxu0 %v495
  %2772 = vmatmul.mubr.bf16.gmra.mrb[0].mxu0 %v494
  %v2773 = vpop.f32.mrb[0].mxu0
  %v2774 = vadd.f32 %v2733, %v2773
  %v2775 = vpop.f32.mrb[0].mxu0
  %v2776 = vadd.f32 %v2735, %v2775
  %v2777 = vpop.f32.mrb[0].mxu0
  %v2778 = vpop.f32.mrb[0].mxu0
  %2779 = vdwg.mxu0
  %2780 = vmatprep.subr.bf16.mxu0 %v1927
  %2781 = vmatpush1.bf16.msra.mxu0 %v1926
  %2782 = vmatprep.subr.bf16.mxu0 %v1929
  %2783 = vmatpush1.bf16.msra.mxu0 %v1928
  %2784 = vmatprep.subr.bf16.mxu0 %v1931
  %2785 = vmatpush1.bf16.msra.mxu0 %v1930
  %2786 = vmatprep.subr.bf16.mxu0 %v1933
  %2787 = vmatpush1.bf16.msra.mxu0 %v1932
  %2788 = vmatprep.subr.bf16.mxu0 %v1935
  %2789 = vmatpush1.bf16.msra.mxu0 %v1934
  %2790 = vmatprep.subr.bf16.mxu0 %v1937
  %2791 = vmatpush1.bf16.msra.mxu0 %v1936
  %2792 = vmatprep.subr.bf16.mxu0 %v1939
  %2793 = vmatpush1.bf16.msra.mxu0 %v1938
  %2794 = vmatprep.subr.bf16.mxu0 %v1941
  %2795 = vmatpush1.bf16.msra.mxu0 %v1940
  %2796 = vmatprep.subr.bf16.mxu0 %v1943
  %2797 = vmatpush1.bf16.msra.mxu0 %v1942
  %2798 = vmatprep.subr.bf16.mxu0 %v1945
  %2799 = vmatpush1.bf16.msra.mxu0 %v1944
  %2800 = vmatprep.subr.bf16.mxu0 %v1947
  %2801 = vmatpush1.bf16.msra.mxu0 %v1946
  %2802 = vmatprep.subr.bf16.mxu0 %v1949
  %2803 = vmatpush1.bf16.msra.mxu0 %v1948
  %2804 = vmatprep.subr.bf16.mxu0 %v1951
  %2805 = vmatpush1.bf16.msra.mxu0 %v1950
  %2806 = vmatprep.subr.bf16.mxu0 %v1953
  %2807 = vmatpush1.bf16.msra.mxu0 %v1952
  %2808 = vmatprep.subr.bf16.mxu0 %v1955
  %2809 = vmatpush1.bf16.msra.mxu0 %v1954
  %2810 = vmatprep.subr.bf16.mxu0 %v1957
  %2811 = vmatpush1.bf16.msra.mxu0 %v1956
  %2812 = vmatprep.mubr.bf16.mxu0 %v497
  %2813 = vmatmul.mubr.bf16.gmra.mrb[0].mxu0 %v496
  %v2814 = vpop.f32.mrb[0].mxu0
  %v2815 = vadd.f32 %v2774, %v2814
  %v2816 = vpop.f32.mrb[0].mxu0
  %v2817 = vadd.f32 %v2776, %v2816
  %v2818 = vpop.f32.mrb[0].mxu0
  %v2819 = vpop.f32.mrb[0].mxu0
  %2820 = vdwg.mxu0
  %2821 = vmatprep.subr.bf16.mxu0 %v1959
  %2822 = vmatpush1.bf16.msra.mxu0 %v1958
  %2823 = vmatprep.subr.bf16.mxu0 %v1961
  %2824 = vmatpush1.bf16.msra.mxu0 %v1960
  %2825 = vmatprep.subr.bf16.mxu0 %v1963
  %2826 = vmatpush1.bf16.msra.mxu0 %v1962
  %2827 = vmatprep.subr.bf16.mxu0 %v1965
  %2828 = vmatpush1.bf16.msra.mxu0 %v1964
  %2829 = vmatprep.subr.bf16.mxu0 %v1967
  %2830 = vmatpush1.bf16.msra.mxu0 %v1966
  %2831 = vmatprep.subr.bf16.mxu0 %v1969
  %2832 = vmatpush1.bf16.msra.mxu0 %v1968
  %2833 = vmatprep.subr.bf16.mxu0 %v1971
  %2834 = vmatpush1.bf16.msra.mxu0 %v1970
  %2835 = vmatprep.subr.bf16.mxu0 %v1973
  %2836 = vmatpush1.bf16.msra.mxu0 %v1972
  %2837 = vmatprep.subr.bf16.mxu0 %v1975
  %2838 = vmatpush1.bf16.msra.mxu0 %v1974
  %2839 = vmatprep.subr.bf16.mxu0 %v1977
  %2840 = vmatpush1.bf16.msra.mxu0 %v1976
  %2841 = vmatprep.subr.bf16.mxu0 %v1979
  %2842 = vmatpush1.bf16.msra.mxu0 %v1978
  %2843 = vmatprep.subr.bf16.mxu0 %v1981
  %2844 = vmatpush1.bf16.msra.mxu0 %v1980
  %2845 = vmatprep.subr.bf16.mxu0 %v1983
  %2846 = vmatpush1.bf16.msra.mxu0 %v1982
  %2847 = vmatprep.subr.bf16.mxu0 %v1985
  %2848 = vmatpush1.bf16.msra.mxu0 %v1984
  %2849 = vmatprep.subr.bf16.mxu0 %v1987
  %2850 = vmatpush1.bf16.msra.mxu0 %v1986
  %2851 = vmatprep.subr.bf16.mxu0 %v1989
  %2852 = vmatpush1.bf16.msra.mxu0 %v1988
  %2853 = vmatprep.mubr.bf16.mxu0 %v499
  %2854 = vmatmul.mubr.bf16.gmra.mrb[0].mxu0 %v498
  %v2855 = vpop.f32.mrb[0].mxu0
  %v2856 = vadd.f32 %v2815, %v2855
  %v2857 = vpop.f32.mrb[0].mxu0
  %v2858 = vadd.f32 %v2817, %v2857
  %v2859 = vpop.f32.mrb[0].mxu0
  %v2860 = vpop.f32.mrb[0].mxu0
  %2861 = vdwg.mxu0
  %2862 = vmatprep.subr.bf16.mxu0 %v1991
  %2863 = vmatpush1.bf16.msra.mxu0 %v1990
  %2864 = vmatprep.subr.bf16.mxu0 %v1993
  %2865 = vmatpush1.bf16.msra.mxu0 %v1992
  %2866 = vmatprep.subr.bf16.mxu0 %v1995
  %2867 = vmatpush1.bf16.msra.mxu0 %v1994
  %2868 = vmatprep.subr.bf16.mxu0 %v1997
  %2869 = vmatpush1.bf16.msra.mxu0 %v1996
  %2870 = vmatprep.subr.bf16.mxu0 %v1999
  %2871 = vmatpush1.bf16.msra.mxu0 %v1998
  %2872 = vmatprep.subr.bf16.mxu0 %v2001
  %2873 = vmatpush1.bf16.msra.mxu0 %v2000
  %2874 = vmatprep.subr.bf16.mxu0 %v2003
  %2875 = vmatpush1.bf16.msra.mxu0 %v2002
  %2876 = vmatprep.subr.bf16.mxu0 %v2005
  %2877 = vmatpush1.bf16.msra.mxu0 %v2004
  %2878 = vmatprep.subr.bf16.mxu0 %v2007
  %2879 = vmatpush1.bf16.msra.mxu0 %v2006
  %2880 = vmatprep.subr.bf16.mxu0 %v2009
  %2881 = vmatpush1.bf16.msra.mxu0 %v2008
  %2882 = vmatprep.subr.bf16.mxu0 %v2011
  %2883 = vmatpush1.bf16.msra.mxu0 %v2010
  %2884 = vmatprep.subr.bf16.mxu0 %v2013
  %2885 = vmatpush1.bf16.msra.mxu0 %v2012
  %2886 = vmatprep.subr.bf16.mxu0 %v2015
  %2887 = vmatpush1.bf16.msra.mxu0 %v2014
  %2888 = vmatprep.subr.bf16.mxu0 %v2017
  %2889 = vmatpush1.bf16.msra.mxu0 %v2016
  %2890 = vmatprep.subr.bf16.mxu0 %v2019
  %2891 = vmatpush1.bf16.msra.mxu0 %v2018
  %2892 = vmatprep.subr.bf16.mxu0 %v2021
  %2893 = vmatpush1.bf16.msra.mxu0 %v2020
  %2894 = vmatprep.mubr.bf16.mxu0 %v501
  %2895 = vmatmul.mubr.bf16.gmra.mrb[0].mxu0 %v500
  %v2896 = vpop.f32.mrb[0].mxu0
  %v2897 = vadd.f32 %v2856, %v2896
  %v2898 = vpop.f32.mrb[0].mxu0
  %v2899 = vadd.f32 %v2858, %v2898
  %v2900 = vpop.f32.mrb[0].mxu0
  %v2901 = vpop.f32.mrb[0].mxu0
  %2902 = vdwg.mxu0
  %2903 = vmatprep.subr.bf16.mxu0 %v2023
  %2904 = vmatpush1.bf16.msra.mxu0 %v2022
  %2905 = vmatprep.subr.bf16.mxu0 %v2025
  %2906 = vmatpush1.bf16.msra.mxu0 %v2024
  %2907 = vmatprep.subr.bf16.mxu0 %v2027
  %2908 = vmatpush1.bf16.msra.mxu0 %v2026
  %2909 = vmatprep.subr.bf16.mxu0 %v2029
  %2910 = vmatpush1.bf16.msra.mxu0 %v2028
  %2911 = vmatprep.subr.bf16.mxu0 %v2031
  %2912 = vmatpush1.bf16.msra.mxu0 %v2030
  %2913 = vmatprep.subr.bf16.mxu0 %v2033
  %2914 = vmatpush1.bf16.msra.mxu0 %v2032
  %2915 = vmatprep.subr.bf16.mxu0 %v2035
  %2916 = vmatpush1.bf16.msra.mxu0 %v2034
  %2917 = vmatprep.subr.bf16.mxu0 %v2037
  %2918 = vmatpush1.bf16.msra.mxu0 %v2036
  %2919 = vmatprep.subr.bf16.mxu0 %v2039
  %2920 = vmatpush1.bf16.msra.mxu0 %v2038
  %2921 = vmatprep.subr.bf16.mxu0 %v2041
  %2922 = vmatpush1.bf16.msra.mxu0 %v2040
  %2923 = vmatprep.subr.bf16.mxu0 %v2043
  %2924 = vmatpush1.bf16.msra.mxu0 %v2042
  %2925 = vmatprep.subr.bf16.mxu0 %v2045
  %2926 = vmatpush1.bf16.msra.mxu0 %v2044
  %2927 = vmatprep.subr.bf16.mxu0 %v2047
  %2928 = vmatpush1.bf16.msra.mxu0 %v2046
  %2929 = vmatprep.subr.bf16.mxu0 %v2049
  %2930 = vmatpush1.bf16.msra.mxu0 %v2048
  %2931 = vmatprep.subr.bf16.mxu0 %v2051
  %2932 = vmatpush1.bf16.msra.mxu0 %v2050
  %2933 = vmatprep.subr.bf16.mxu0 %v2053
  %2934 = vmatpush1.bf16.msra.mxu0 %v2052
  %2935 = vmatprep.mubr.bf16.mxu0 %v503
  %2936 = vmatmul.mubr.bf16.gmra.mrb[0].mxu0 %v502
  %v2937 = vpop.f32.mrb[0].mxu0
  %v2938 = vadd.f32 %v2897, %v2937
  %v2939 = vpop.f32.mrb[0].mxu0
  %v2940 = vadd.f32 %v2899, %v2939
  %v2941 = vpop.f32.mrb[0].mxu0
  %v2942 = vpop.f32.mrb[0].mxu0
  %2943 = vdwg.mxu0
  %2944 = vmatprep.subr.bf16.mxu0 %v2055
  %2945 = vmatpush1.bf16.msra.mxu0 %v2054
  %2946 = vmatprep.subr.bf16.mxu0 %v2057
  %2947 = vmatpush1.bf16.msra.mxu0 %v2056
  %2948 = vmatprep.subr.bf16.mxu0 %v2059
  %2949 = vmatpush1.bf16.msra.mxu0 %v2058
  %2950 = vmatprep.subr.bf16.mxu0 %v2061
  %2951 = vmatpush1.bf16.msra.mxu0 %v2060
  %2952 = vmatprep.subr.bf16.mxu0 %v2063
  %2953 = vmatpush1.bf16.msra.mxu0 %v2062
  %2954 = vmatprep.subr.bf16.mxu0 %v2065
  %2955 = vmatpush1.bf16.msra.mxu0 %v2064
  %2956 = vmatprep.subr.bf16.mxu0 %v2067
  %2957 = vmatpush1.bf16.msra.mxu0 %v2066
  %2958 = vmatprep.subr.bf16.mxu0 %v2069
  %2959 = vmatpush1.bf16.msra.mxu0 %v2068
  %2960 = vmatprep.subr.bf16.mxu0 %v2071
  %2961 = vmatpush1.bf16.msra.mxu0 %v2070
  %2962 = vmatprep.subr.bf16.mxu0 %v2073
  %2963 = vmatpush1.bf16.msra.mxu0 %v2072
  %2964 = vmatprep.subr.bf16.mxu0 %v2075
  %2965 = vmatpush1.bf16.msra.mxu0 %v2074
  %2966 = vmatprep.subr.bf16.mxu0 %v2077
  %2967 = vmatpush1.bf16.msra.mxu0 %v2076
  %2968 = vmatprep.subr.bf16.mxu0 %v2079
  %2969 = vmatpush1.bf16.msra.mxu0 %v2078
  %2970 = vmatprep.subr.bf16.mxu0 %v2081
  %2971 = vmatpush1.bf16.msra.mxu0 %v2080
  %2972 = vmatprep.subr.bf16.mxu0 %v2083
  %2973 = vmatpush1.bf16.msra.mxu0 %v2082
  %2974 = vmatprep.subr.bf16.mxu0 %v2085
  %2975 = vmatpush1.bf16.msra.mxu0 %v2084
  %2976 = vmatprep.mubr.bf16.mxu0 %v505
  %2977 = vmatmul.mubr.bf16.gmra.mrb[0].mxu0 %v504
  %v2978 = vpop.f32.mrb[0].mxu0
  %v2979 = vadd.f32 %v2938, %v2978
  %v2980 = vpop.f32.mrb[0].mxu0
  %v2981 = vadd.f32 %v2940, %v2980
  %v2982 = vpop.f32.mrb[0].mxu0
  %v2983 = vpop.f32.mrb[0].mxu0
  %2984 = vdwg.mxu0
  %2985 = vmatprep.subr.bf16.mxu0 %v2087
  %2986 = vmatpush1.bf16.msra.mxu0 %v2086
  %2987 = vmatprep.subr.bf16.mxu0 %v2089
  %2988 = vmatpush1.bf16.msra.mxu0 %v2088
  %2989 = vmatprep.subr.bf16.mxu0 %v2091
  %2990 = vmatpush1.bf16.msra.mxu0 %v2090
  %2991 = vmatprep.subr.bf16.mxu0 %v2093
  %2992 = vmatpush1.bf16.msra.mxu0 %v2092
  %2993 = vmatprep.subr.bf16.mxu0 %v2095
  %2994 = vmatpush1.bf16.msra.mxu0 %v2094
  %2995 = vmatprep.subr.bf16.mxu0 %v2097
  %2996 = vmatpush1.bf16.msra.mxu0 %v2096
  %2997 = vmatprep.subr.bf16.mxu0 %v2099
  %2998 = vmatpush1.bf16.msra.mxu0 %v2098
  %2999 = vmatprep.subr.bf16.mxu0 %v2101
  %3000 = vmatpush1.bf16.msra.mxu0 %v2100
  %3001 = vmatprep.subr.bf16.mxu0 %v2103
  %3002 = vmatpush1.bf16.msra.mxu0 %v2102
  %3003 = vmatprep.subr.bf16.mxu0 %v2105
  %3004 = vmatpush1.bf16.msra.mxu0 %v2104
  %3005 = vmatprep.subr.bf16.mxu0 %v2107
  %3006 = vmatpush1.bf16.msra.mxu0 %v2106
  %3007 = vmatprep.subr.bf16.mxu0 %v2109
  %3008 = vmatpush1.bf16.msra.mxu0 %v2108
  %3009 = vmatprep.subr.bf16.mxu0 %v2111
  %3010 = vmatpush1.bf16.msra.mxu0 %v2110
  %3011 = vmatprep.subr.bf16.mxu0 %v2113
  %3012 = vmatpush1.bf16.msra.mxu0 %v2112
  %3013 = vmatprep.subr.bf16.mxu0 %v2115
  %3014 = vmatpush1.bf16.msra.mxu0 %v2114
  %3015 = vmatprep.subr.bf16.mxu0 %v2117
  %3016 = vmatpush1.bf16.msra.mxu0 %v2116
  %3017 = vmatprep.mubr.bf16.mxu0 %v507
  %3018 = vmatmul.mubr.bf16.gmra.mrb[0].mxu0 %v506
  %v3019 = vpop.f32.mrb[0].mxu0
  %v3020 = vadd.f32 %v2979, %v3019
  %v3021 = vpop.f32.mrb[0].mxu0
  %v3022 = vadd.f32 %v2981, %v3021
  %v3023 = vpop.f32.mrb[0].mxu0
  %v3024 = vpop.f32.mrb[0].mxu0
  %3025 = vdwg.mxu0
  %3026 = vmatprep.subr.bf16.mxu0 %v2119
  %3027 = vmatpush1.bf16.msra.mxu0 %v2118
  %3028 = vmatprep.subr.bf16.mxu0 %v2121
  %3029 = vmatpush1.bf16.msra.mxu0 %v2120
  %3030 = vmatprep.subr.bf16.mxu0 %v2123
  %3031 = vmatpush1.bf16.msra.mxu0 %v2122
  %3032 = vmatprep.subr.bf16.mxu0 %v2125
  %3033 = vmatpush1.bf16.msra.mxu0 %v2124
  %3034 = vmatprep.subr.bf16.mxu0 %v2127
  %3035 = vmatpush1.bf16.msra.mxu0 %v2126
  %3036 = vmatprep.subr.bf16.mxu0 %v2129
  %3037 = vmatpush1.bf16.msra.mxu0 %v2128
  %3038 = vmatprep.subr.bf16.mxu0 %v2131
  %3039 = vmatpush1.bf16.msra.mxu0 %v2130
  %3040 = vmatprep.subr.bf16.mxu0 %v2133
  %3041 = vmatpush1.bf16.msra.mxu0 %v2132
  %3042 = vmatprep.subr.bf16.mxu0 0
  %3043 = vmatpush1.bf16.msra.mxu0 0
  %3044 = vmatprep.subr.bf16.mxu0 0
  %3045 = vmatpush1.bf16.msra.mxu0 0
  %3046 = vmatprep.subr.bf16.mxu0 0
  %3047 = vmatpush1.bf16.msra.mxu0 0
  %3048 = vmatprep.subr.bf16.mxu0 0
  %3049 = vmatpush1.bf16.msra.mxu0 0
  %3050 = vmatprep.subr.bf16.mxu0 0
  %3051 = vmatpush1.bf16.msra.mxu0 0
  %3052 = vmatprep.subr.bf16.mxu0 0
  %3053 = vmatpush1.bf16.msra.mxu0 0
  %3054 = vmatprep.subr.bf16.mxu0 0
  %3055 = vmatpush1.bf16.msra.mxu0 0
  %3056 = vmatprep.subr.bf16.mxu0 0
  %3057 = vmatpush1.bf16.msra.mxu0 0
  %3058 = vmatprep.mubr.bf16.mxu0 0
  %3059 = vmatmul.mubr.bf16.gmra.mrb[0].mxu0 %v508
  %v3060 = vpop.f32.mrb[0].mxu0
  %v3061 = vadd.f32 %v3020, %v3060
  %v3062 = vpop.f32.mrb[0].mxu0
  %v3063 = vadd.f32 %v3022, %v3062
  %v3064 = vpop.f32.mrb[0].mxu0
  %v3065 = vpop.f32.mrb[0].mxu0
  %3066 = vdwg.mxu0
  %v3067 = vld [vmem:[%s3] sm:$0xff]
  %v3068 = vld [vmem:[%s3 + $0x8] sm:$0xff]
  %v3069 = vld [vmem:[%s3 + $0x10] sm:$0xff]
  %v3070 = vld [vmem:[%s3 + $0x18] sm:$0xff]
  %v3071 = vld [vmem:[%s3 + $0x20] sm:$0xff]
  %v3072 = vld [vmem:[%s3 + $0x28] sm:$0xff]
  %v3073 = vld [vmem:[%s3 + $0x30] sm:$0xff]
  %v3074 = vld [vmem:[%s3 + $0x38] sm:$0xff]
  %v3075 = vld [vmem:[%s3 + $0x40] sm:$0xff]
  %v3076 = vld [vmem:[%s3 + $0x48] sm:$0xff]
  %v3077 = vld [vmem:[%s3 + $0x50] sm:$0xff]
  %v3078 = vld [vmem:[%s3 + $0x58] sm:$0xff]
  %v3079 = vld [vmem:[%s3 + $0x60] sm:$0xff]
  %v3080 = vld [vmem:[%s3 + $0x68] sm:$0xff]
  %v3081 = vld [vmem:[%s3 + $0x70] sm:$0xff]
  %v3082 = vld [vmem:[%s3 + $0x78] sm:$0xff]
  %v3083 = vld [vmem:[%s3 + $0x80] sm:$0xff]
  %v3084 = vld [vmem:[%s3 + $0x88] sm:$0xff]
  %v3085 = vld [vmem:[%s3 + $0x90] sm:$0xff]
  %v3086 = vld [vmem:[%s3 + $0x98] sm:$0xff]
  %v3087 = vld [vmem:[%s3 + $0xa0] sm:$0xff]
  %v3088 = vld [vmem:[%s3 + $0xa8] sm:$0xff]
  %v3089 = vld [vmem:[%s3 + $0xb0] sm:$0xff]
  %v3090 = vld [vmem:[%s3 + $0xb8] sm:$0xff]
  %v3091 = vld [vmem:[%s3 + $0xc0] sm:$0xff]
  %v3092 = vld [vmem:[%s3 + $0xc8] sm:$0xff]
  %v3093 = vld [vmem:[%s3 + $0xd0] sm:$0xff]
  %v3094 = vld [vmem:[%s3 + $0xd8] sm:$0xff]
  %v3095 = vld [vmem:[%s3 + $0xe0] sm:$0xff]
  %v3096 = vld [vmem:[%s3 + $0xe8] sm:$0xff]
  %v3097 = vld [vmem:[%s3 + $0xf0] sm:$0xff]
  %v3098 = vld [vmem:[%s3 + $0xf8] sm:$0xff]
  %v3099 = vld [vmem:[%s4] sm:$0x1]
  %v3101 = vlaneseq
  %v3102 = vshrl.u32 %v3101, 7
  %v3103 = vsub.s32 0, %v3102
  %v3104 = vrot.slane %v3099, %v3103
  %3106 = vmatprep.subr.mxu0 0.0
  %3107 = vmatpush1.msra.mxu0 %v3067
  %3108 = vmatprep.subr.mxu0 0.0
  %3109 = vmatpush1.msra.mxu0 %v3068
  %3110 = vmatprep.subr.mxu0 0.0
  %3111 = vmatpush1.msra.mxu0 %v3069
  %3112 = vmatprep.subr.mxu0 0.0
  %3113 = vmatpush1.msra.mxu0 %v3070
  %3114 = vmatprep.subr.mxu0 0.0
  %3115 = vmatpush1.msra.mxu0 %v3071
  %3116 = vmatprep.subr.mxu0 0.0
  %3117 = vmatpush1.msra.mxu0 %v3072
  %3118 = vmatprep.subr.mxu0 0.0
  %3119 = vmatpush1.msra.mxu0 %v3073
  %3120 = vmatprep.subr.mxu0 0.0
  %3121 = vmatpush1.msra.mxu0 %v3074
  %3122 = vmatprep.subr.mxu0 0.0
  %3123 = vmatpush1.msra.mxu0 %v3075
  %3124 = vmatprep.subr.mxu0 0.0
  %3125 = vmatpush1.msra.mxu0 %v3076
  %3126 = vmatprep.subr.mxu0 0.0
  %3127 = vmatpush1.msra.mxu0 %v3077
  %3128 = vmatprep.subr.mxu0 0.0
  %3129 = vmatpush1.msra.mxu0 %v3078
  %3130 = vmatprep.subr.mxu0 0.0
  %3131 = vmatpush1.msra.mxu0 %v3079
  %3132 = vmatprep.subr.mxu0 0.0
  %3133 = vmatpush1.msra.mxu0 %v3080
  %3134 = vmatprep.subr.mxu0 0.0
  %3135 = vmatpush1.msra.mxu0 %v3081
  %3136 = vmatprep.subr.mxu0 0.0
  %3137 = vmatpush1.msra.mxu0 %v3082
  %3138 = vmatprep.subr.mxu0 0.0
  %3139 = vmatpush1.msra.mxu0 %v3083
  %3140 = vmatprep.subr.mxu0 0.0
  %3141 = vmatpush1.msra.mxu0 %v3084
  %3142 = vmatprep.subr.mxu0 0.0
  %3143 = vmatpush1.msra.mxu0 %v3085
  %3144 = vmatprep.subr.mxu0 0.0
  %3145 = vmatpush1.msra.mxu0 %v3086
  %3146 = vmatprep.subr.mxu0 0.0
  %3147 = vmatpush1.msra.mxu0 %v3087
  %3148 = vmatprep.subr.mxu0 0.0
  %3149 = vmatpush1.msra.mxu0 %v3088
  %3150 = vmatprep.subr.mxu0 0.0
  %3151 = vmatpush1.msra.mxu0 %v3089
  %3152 = vmatprep.subr.mxu0 0.0
  %3153 = vmatpush1.msra.mxu0 %v3090
  %3154 = vmatprep.subr.mxu0 0.0
  %3155 = vmatpush1.msra.mxu0 %v3091
  %3156 = vmatprep.subr.mxu0 0.0
  %3157 = vmatpush1.msra.mxu0 %v3092
  %3158 = vmatprep.subr.mxu0 0.0
  %3159 = vmatpush1.msra.mxu0 %v3093
  %3160 = vmatprep.subr.mxu0 0.0
  %3161 = vmatpush1.msra.mxu0 %v3094
  %3162 = vmatprep.subr.mxu0 0.0
  %3163 = vmatpush1.msra.mxu0 %v3095
  %3164 = vmatprep.subr.mxu0 0.0
  %3165 = vmatpush1.msra.mxu0 %v3096
  %3166 = vmatprep.subr.mxu0 0.0
  %3167 = vmatpush1.msra.mxu0 %v3097
  %3168 = vmatprep.subr.mxu0 0.0
  %3169 = vmatpush1.msra.mxu0 %v3098
  %3170 = vmatprep.mubr.f32.mxu0 %v3063
  %3171 = vmatmul.mubr.f32.gmra.mrb[0].mxu0 %v3061
  %v3172 = vpop.f32.mrb[0].mxu0
  %v3173 = vadd.f32 %v3104, %v3172
  %v3174 = vpop.f32.mrb[0].mxu0
  %3175 = vdwg.mxu0
  %vm3176 = vcmask 80896
  %3177 = vst.msk [vmem:[%s5] sm:$0xff] %vm3176, %v3173
  // Predicated region
  $region22: #{model_forward.11} parent=0 // pred_check
    _
  $region23: #{model_forward.11} parent=0 // pred_check_branch
    %3179 = sbr.rel (0) target = $region25
  $region24: #{model_forward.11} parent=0 // pred_region
    _
  $region25: #{model_forward.11} parent=0 // pred_fallthru
    _
  // Predicated region
  $region26: #{model_forward.11} parent=0 // pred_check
    _
  $region27: #{model_forward.11} parent=0 // pred_check_branch
    %3181 = sbr.rel (0) target = $region29
  $region28: #{model_forward.11} parent=0 // pred_region
    _
  $region29: #{model_forward.11} parent=0 // pred_fallthru
    _

</llo_original>
